<compile_context>
chip_gen: v6e
topology: v6e:2x2x1
jax: 0.10.0
libtpu: 0.0.40
codegen_flags: <defaults>
</compile_context>

<pallas_src>
import functools

import jax
import jax.numpy as jnp
from jax import lax
from jax.experimental import pallas as pl
from jax.experimental.pallas import tpu as pltpu

EPS = 1e-5
LANE = 128  # lane-dense channel padding for the resident feature map


# ----------------------------- Pallas kernel --------------------------------

def _dense_block_kernel(x_ref, s1_ref, b1_ref, w1_ref, s2_ref, b2_ref, w2_ref,
                        o_ref, feat_ref, pad_ref,
                        *, num_layers, in_ch, growth, cmid, H, W):
    HW = H * W
    c_pad = feat_ref.shape[-1]

    # Resident feature map for this image: input channels in [0, in_ch), the
    # remaining lanes are zero and receive each layer's output channels.
    feat_ref[...] = x_ref[0]

    # Zero only the 1-wide halo of the 3x3 pad scratch; the interior is fully
    # overwritten by every layer.  Done per grid step (NOT under
    # program_id==0) since scratch is per-core under "parallel" semantics.
    pad_ref[0:1, :, :] = jnp.zeros((1, W + 2, cmid), jnp.float32)
    pad_ref[H + 1:H + 2, :, :] = jnp.zeros((1, W + 2, cmid), jnp.float32)
    pad_ref[:, 0:1, :] = jnp.zeros((H + 2, 1, cmid), jnp.float32)
    pad_ref[:, W + 1:W + 2, :] = jnp.zeros((H + 2, 1, cmid), jnp.float32)

    ch = in_ch
    for l in range(num_layers):
        # ---- BN1(eval) + ReLU + 1x1 conv: single K=128 MXU matmul ----------
        # s1/b1/w1 are zero-padded beyond this layer's real ch channels.
        h1 = jnp.maximum(feat_ref[...] * s1_ref[l] + b1_ref[l], 0.0)
        mid = jnp.dot(h1.astype(jnp.bfloat16), w1_ref[l],
                      preferred_element_type=jnp.float32)        # (HW, cmid)

        # ---- BN2(eval) + ReLU ----------------------------------------------
        h2 = jnp.maximum(mid * s2_ref[l] + b2_ref[l], 0.0)

        # ---- 3x3 conv, padding=1: 9 shifted taps from the zero-halo scratch.
        pad_ref[1:H + 1, 1:W + 1, :] = h2.reshape(H, W, cmid)
        acc = jnp.zeros((HW, c_pad), jnp.float32)
        for ky in range(3):
            for kx in range(3):
                tap = pad_ref[ky:ky + H, kx:kx + W, :].reshape(HW, cmid)
                # Each w2 tap is zero-padded to all 128 output lanes with the
                # real growth_rate columns at [ch, ch+growth): the accumulate
                # lands this layer's output in its own channel slots.
                acc = acc + jnp.dot(tap.astype(jnp.bfloat16),
                                    w2_ref[l, 3 * ky + kx],
                                    preferred_element_type=jnp.float32)

        # Dense "concat": channels [ch, ch+growth) of feat are still zero.
        feat_ref[...] = feat_ref[...] + acc
        ch += growth

    # Lane-dense (128-wide) HBM writeback; the wrapper slices the real
    # channels back out.
    o_ref[0] = feat_ref[...]


# ------------------------------ wrapper --------------------------------------

def dense_block_forward(x, packed, *, num_layers, in_ch, growth):
    """x: (N, H, W, in_ch) float32 NHWC.  Returns (N, H, W, in_ch + L*growth)."""
    s1, b1, w1, s2, b2, w2 = packed
    N, H, W, _ = x.shape
    cmid = w1.shape[-1]
    c_pad = s1.shape[-1]
    c_out = in_ch + num_layers * growth
    HW = H * W

    # Flatten spatial dims and zero-pad channels to 128 lanes outside the
    # kernel (layout plumbing in XLA, keeps the kernel lane-dense).
    x_p = jnp.pad(x.reshape(N, HW, in_ch),
                  ((0, 0), (0, 0), (0, c_pad - in_ch)))

    kernel = functools.partial(
        _dense_block_kernel, num_layers=num_layers, in_ch=in_ch,
        growth=growth, cmid=cmid, H=H, W=W)

    y_pad = pl.pallas_call(
        kernel,
        out_shape=jax.ShapeDtypeStruct((N, HW, c_pad), jnp.float32),
        grid=(N,),
        in_specs=[
            pl.BlockSpec((1, HW, c_pad), lambda n: (n, 0, 0)),   # x (padded)
            pl.BlockSpec(s1.shape, lambda n: (0, 0, 0)),         # BN1 scale
            pl.BlockSpec(b1.shape, lambda n: (0, 0, 0)),         # BN1 bias
            pl.BlockSpec(w1.shape, lambda n: (0, 0, 0)),         # 1x1 weights
            pl.BlockSpec(s2.shape, lambda n: (0, 0, 0)),         # BN2 scale
            pl.BlockSpec(b2.shape, lambda n: (0, 0, 0)),         # BN2 bias
            pl.BlockSpec(w2.shape, lambda n: (0, 0, 0, 0)),      # 3x3 weights
        ],
        out_specs=pl.BlockSpec((1, HW, c_pad), lambda n: (n, 0, 0)),
        scratch_shapes=[
            pltpu.VMEM((HW, c_pad), jnp.float32),                # feature map
            pltpu.VMEM((H + 2, W + 2, cmid), jnp.float32),       # 3x3 halo pad
        ],
        compiler_params=pltpu.CompilerParams(
            dimension_semantics=("parallel",)),                  # v7x: 2 TCs
    )(x_p, s1, b1, w1, s2, b2, w2)

    return y_pad[:, :, :c_out].reshape(N, H, W, c_out)


# --------------------------- parameter handling ------------------------------

def _fold_bn(gamma, beta, mean, var):
    scale = gamma / jnp.sqrt(var + EPS)
    bias = beta - mean * scale
    return scale, bias


def init_dense_block_params(key, num_layers, in_ch, growth_rate, bn_size=4):
    """Deterministic synthetic parameters (eval-mode BN running stats)."""
    params = []
    ch = in_ch
    for _ in range(num_layers):
        mid = bn_size * growth_rate
        key, *ks = jax.random.split(key, 11)
        g1 = jax.random.uniform(ks[0], (ch,), jnp.float32, 0.5, 1.5)
        be1 = 0.1 * jax.random.normal(ks[1], (ch,), jnp.float32)
        m1 = 0.1 * jax.random.normal(ks[2], (ch,), jnp.float32)
        v1 = jax.random.uniform(ks[3], (ch,), jnp.float32, 0.5, 1.5)
        w1 = jax.random.normal(ks[4], (ch, mid), jnp.float32) / jnp.sqrt(ch)
        g2 = jax.random.uniform(ks[5], (mid,), jnp.float32, 0.5, 1.5)
        be2 = 0.1 * jax.random.normal(ks[6], (mid,), jnp.float32)
        m2 = 0.1 * jax.random.normal(ks[7], (mid,), jnp.float32)
        v2 = jax.random.uniform(ks[8], (mid,), jnp.float32, 0.5, 1.5)
        w2 = jax.random.normal(
            ks[9], (3, 3, mid, growth_rate), jnp.float32) / jnp.sqrt(9.0 * mid)
        s1, b1 = _fold_bn(g1, be1, m1, v1)
        s2, b2 = _fold_bn(g2, be2, m2, v2)
        params.append(dict(s1=s1, b1=b1, w1=w1, s2=s2, b2=b2, w2=w2))
        ch += growth_rate
    return params


def pack_params(params, in_ch, growth, c_pad=LANE):
    """Stack per-layer params, zero-pad channel axes to c_pad lanes, and place
    each layer's 3x3 output columns at its concat offset; weights in bf16."""
    cmid = params[0]["w1"].shape[1]
    s1l, b1l, w1l, s2l, b2l, w2l = [], [], [], [], [], []
    ch = in_ch
    for p in params:
        s1l.append(jnp.pad(p["s1"], (0, c_pad - ch)))
        b1l.append(jnp.pad(p["b1"], (0, c_pad - ch)))
        w1l.append(jnp.pad(p["w1"], ((0, c_pad - ch), (0, 0))))
        s2l.append(p["s2"])
        b2l.append(p["b2"])
        w2 = p["w2"].reshape(9, cmid, growth)            # (ky*3+kx, Cin, Cout)
        w2l.append(jnp.zeros((9, cmid, c_pad), jnp.float32)
                   .at[:, :, ch:ch + growth].set(w2))
        ch += growth
    s1 = jnp.stack(s1l)[:, None, :]                      # (L, 1, c_pad) f32
    b1 = jnp.stack(b1l)[:, None, :]
    w1 = jnp.stack(w1l).astype(jnp.bfloat16)             # (L, c_pad, cmid)
    s2 = jnp.stack(s2l)[:, None, :]                      # (L, 1, cmid)  f32
    b2 = jnp.stack(b2l)[:, None, :]
    w2 = jnp.stack(w2l).astype(jnp.bfloat16)             # (L, 9, cmid, c_pad)
    return s1, b1, w1, s2, b2, w2


# ---------------------------- pure-JAX reference -----------------------------

def ref_forward(x, params):
    """Reference DenseBlock (NHWC), matching the kernel's bf16 matmul inputs
    with f32 accumulation."""
    for p in params:
        h = jnp.maximum(x * p["s1"] + p["b1"], 0.0)
        mid = lax.conv_general_dilated(
            h.astype(jnp.bfloat16),
            p["w1"][None, None, :, :].astype(jnp.bfloat16),
            (1, 1), "VALID",
            dimension_numbers=("NHWC", "HWIO", "NHWC"),
            preferred_element_type=jnp.float32)
        h2 = jnp.maximum(mid * p["s2"] + p["b2"], 0.0)
        out = lax.conv_general_dilated(
            h2.astype(jnp.bfloat16), p["w2"].astype(jnp.bfloat16),
            (1, 1), "SAME",
            dimension_numbers=("NHWC", "HWIO", "NHWC"),
            preferred_element_type=jnp.float32)
        x = jnp.concatenate([x, out], axis=-1)           # torch.cat([x,out],1)
    return x


# ---------------------------------- main --------------------------------------

if __name__ == "__main__":
    key = jax.random.PRNGKey(0)
    kx, kp = jax.random.split(key)

    N, H, W = 2, 16, 16
    in_ch, growth_rate, num_layers = 4, 4, 3   # bn_size=4 -> bottleneck = 16

    x = jax.random.normal(kx, (N, H, W, in_ch), jnp.float32)
    params = init_dense_block_params(kp, num_layers, in_ch, growth_rate)
    packed = pack_params(params, in_ch, growth_rate)

    y = dense_block_forward(x, packed, num_layers=num_layers,
                            in_ch=in_ch, growth=growth_rate)
    y = jax.block_until_ready(y)

    c_out = in_ch + num_layers * growth_rate
    assert y.shape == (N, H, W, c_out), y.shape

    y_ref = ref_forward(x, params)
    max_err = float(jnp.max(jnp.abs(y - y_ref)))
    assert jnp.allclose(y, y_ref, atol=2e-2, rtol=2e-2), max_err

    print("KERNEL_OK")
</pallas_src>

<mosaic_0001>
module attributes {stable_mosaic.version = 11 : i64} {
  func.func @_dense_block_kernel(%arg0: i32, %arg1: memref<1x256x128xf32, #tpu.memory_space<vmem>>, %arg2: memref<3x1x128xf32, #tpu.memory_space<vmem>>, %arg3: memref<3x1x128xf32, #tpu.memory_space<vmem>>, %arg4: memref<3x128x16xbf16, #tpu.memory_space<vmem>>, %arg5: memref<3x1x16xf32, #tpu.memory_space<vmem>>, %arg6: memref<3x1x16xf32, #tpu.memory_space<vmem>>, %arg7: memref<3x9x16x128xbf16, #tpu.memory_space<vmem>>, %arg8: memref<1x256x128xf32, #tpu.memory_space<vmem>>, %arg9: memref<256x128xf32, #tpu.memory_space<vmem>>, %arg10: memref<18x18x16xf32, #tpu.memory_space<vmem>>) attributes {dimension_semantics = [#tpu.dimension_semantics<parallel>], iteration_bounds = array<i64: 2>, scalar_prefetch = 0 : i64, scratch_operands = 2 : i64, tpu.core_type = #tpu.core_type<tc>, window_params = [{transform_indices = @transform_0, window_bounds = array<i64: 1, 256, 128>}, {pipeline_mode = #tpu.pipeline_mode<synchronous>, transform_indices = @transform_1, window_bounds = array<i64: 3, 1, 128>}, {pipeline_mode = #tpu.pipeline_mode<synchronous>, transform_indices = @transform_2, window_bounds = array<i64: 3, 1, 128>}, {pipeline_mode = #tpu.pipeline_mode<synchronous>, transform_indices = @transform_3, window_bounds = array<i64: 3, 128, 16>}, {pipeline_mode = #tpu.pipeline_mode<synchronous>, transform_indices = @transform_4, window_bounds = array<i64: 3, 1, 16>}, {pipeline_mode = #tpu.pipeline_mode<synchronous>, transform_indices = @transform_5, window_bounds = array<i64: 3, 1, 16>}, {pipeline_mode = #tpu.pipeline_mode<synchronous>, transform_indices = @transform_6, window_bounds = array<i64: 3, 9, 16, 128>}, {transform_indices = @transform_7, window_bounds = array<i64: 1, 256, 128>}]} {
    %c0 = arith.constant 0 : index
    %c0_0 = arith.constant 0 : index
    %c0_1 = arith.constant 0 : index
    %0 = vector.load %arg1[%c0, %c0_0, %c0_1] : memref<1x256x128xf32, #tpu.memory_space<vmem>>, vector<1x256x128xf32>
    %1 = vector.shape_cast %0 : vector<1x256x128xf32> to vector<256x128xf32>
    %c0_2 = arith.constant 0 : index
    %c0_3 = arith.constant 0 : index
    %2 = vector.load %arg9[%c0_2, %c0_3] : memref<256x128xf32, #tpu.memory_space<vmem>>, vector<256x128xf32>
    tpu.vector_store %arg9[%c0_2, %c0_3], %1 {strides = array<i32>} : memref<256x128xf32, #tpu.memory_space<vmem>>, vector<256x128xf32>,
    %cst = arith.constant 0.000000e+00 : f32
    %3 = vector.broadcast %cst : f32 to vector<1x18x16xf32>
    %c0_4 = arith.constant 0 : index
    %c0_5 = arith.constant 0 : index
    %c0_6 = arith.constant 0 : index
    %4 = vector.load %arg10[%c0_4, %c0_5, %c0_6] : memref<18x18x16xf32, #tpu.memory_space<vmem>>, vector<1x18x16xf32>
    tpu.vector_store %arg10[%c0_4, %c0_5, %c0_6], %3 {strides = array<i32>} : memref<18x18x16xf32, #tpu.memory_space<vmem>>, vector<1x18x16xf32>,
    %cst_7 = arith.constant 0.000000e+00 : f32
    %5 = vector.broadcast %cst_7 : f32 to vector<1x18x16xf32>
    %c17 = arith.constant 17 : index
    %c0_8 = arith.constant 0 : index
    %c0_9 = arith.constant 0 : index
    %6 = vector.load %arg10[%c17, %c0_8, %c0_9] : memref<18x18x16xf32, #tpu.memory_space<vmem>>, vector<1x18x16xf32>
    tpu.vector_store %arg10[%c17, %c0_8, %c0_9], %5 {strides = array<i32>} : memref<18x18x16xf32, #tpu.memory_space<vmem>>, vector<1x18x16xf32>,
    %cst_10 = arith.constant 0.000000e+00 : f32
    %7 = vector.broadcast %cst_10 : f32 to vector<18x1x16xf32>
    %c0_11 = arith.constant 0 : index
    %c0_12 = arith.constant 0 : index
    %c0_13 = arith.constant 0 : index
    %8 = vector.load %arg10[%c0_11, %c0_12, %c0_13] : memref<18x18x16xf32, #tpu.memory_space<vmem>>, vector<18x1x16xf32>
    tpu.vector_store %arg10[%c0_11, %c0_12, %c0_13], %7 {strides = array<i32>} : memref<18x18x16xf32, #tpu.memory_space<vmem>>, vector<18x1x16xf32>,
    %cst_14 = arith.constant 0.000000e+00 : f32
    %9 = vector.broadcast %cst_14 : f32 to vector<18x1x16xf32>
    %c0_15 = arith.constant 0 : index
    %c17_16 = arith.constant 17 : index
    %c0_17 = arith.constant 0 : index
    %10 = vector.load %arg10[%c0_15, %c17_16, %c0_17] : memref<18x18x16xf32, #tpu.memory_space<vmem>>, vector<18x1x16xf32>
    tpu.vector_store %arg10[%c0_15, %c17_16, %c0_17], %9 {strides = array<i32>} : memref<18x18x16xf32, #tpu.memory_space<vmem>>, vector<18x1x16xf32>,
    %c0_18 = arith.constant 0 : index
    %c0_19 = arith.constant 0 : index
    %11 = vector.load %arg9[%c0_18, %c0_19] : memref<256x128xf32, #tpu.memory_space<vmem>>, vector<256x128xf32>
    %c0_20 = arith.constant 0 : index
    %c0_21 = arith.constant 0 : index
    %c0_22 = arith.constant 0 : index
    %12 = vector.load %arg2[%c0_20, %c0_21, %c0_22] : memref<3x1x128xf32, #tpu.memory_space<vmem>>, vector<1x1x128xf32>
    %13 = vector.shape_cast %12 : vector<1x1x128xf32> to vector<1x128xf32>
    %14 = vector.broadcast %13 : vector<1x128xf32> to vector<256x128xf32>
    %15 = arith.mulf %11, %14 : vector<256x128xf32>
    %c0_23 = arith.constant 0 : index
    %c0_24 = arith.constant 0 : index
    %c0_25 = arith.constant 0 : index
    %16 = vector.load %arg3[%c0_23, %c0_24, %c0_25] : memref<3x1x128xf32, #tpu.memory_space<vmem>>, vector<1x1x128xf32>
    %17 = vector.shape_cast %16 : vector<1x1x128xf32> to vector<1x128xf32>
    %18 = vector.broadcast %17 : vector<1x128xf32> to vector<256x128xf32>
    %19 = arith.addf %15, %18 : vector<256x128xf32>
    %cst_26 = arith.constant 0.000000e+00 : f32
    %20 = vector.broadcast %cst_26 : f32 to vector<256x128xf32>
    %21 = arith.maximumf %19, %20 : vector<256x128xf32>
    %22 = arith.truncf %21 : vector<256x128xf32> to vector<256x128xbf16>
    %c0_27 = arith.constant 0 : index
    %c0_28 = arith.constant 0 : index
    %c0_29 = arith.constant 0 : index
    %23 = vector.load %arg4[%c0_27, %c0_28, %c0_29] : memref<3x128x16xbf16, #tpu.memory_space<vmem>>, vector<1x128x16xbf16>
    %24 = vector.shape_cast %23 : vector<1x128x16xbf16> to vector<128x16xbf16>
    %cst_30 = arith.constant dense<0.000000e+00> : vector<256x16xf32>
    %25 = tpu.matmul %22, %24, %cst_30 {dimension_numbers = #tpu.dot_dimension_numbers<[1], [0], [0], [1], [0, 0, 1, 1], [], []>} : vector<256x128xbf16>, vector<128x16xbf16>, vector<256x16xf32> -> vector<256x16xf32>
    %c0_31 = arith.constant 0 : index
    %c0_32 = arith.constant 0 : index
    %c0_33 = arith.constant 0 : index
    %26 = vector.load %arg5[%c0_31, %c0_32, %c0_33] : memref<3x1x16xf32, #tpu.memory_space<vmem>>, vector<1x1x16xf32>
    %27 = vector.shape_cast %26 : vector<1x1x16xf32> to vector<1x16xf32>
    %28 = vector.broadcast %27 : vector<1x16xf32> to vector<256x16xf32>
    %29 = arith.mulf %25, %28 : vector<256x16xf32>
    %c0_34 = arith.constant 0 : index
    %c0_35 = arith.constant 0 : index
    %c0_36 = arith.constant 0 : index
    %30 = vector.load %arg6[%c0_34, %c0_35, %c0_36] : memref<3x1x16xf32, #tpu.memory_space<vmem>>, vector<1x1x16xf32>
    %31 = vector.shape_cast %30 : vector<1x1x16xf32> to vector<1x16xf32>
    %32 = vector.broadcast %31 : vector<1x16xf32> to vector<256x16xf32>
    %33 = arith.addf %29, %32 : vector<256x16xf32>
    %cst_37 = arith.constant 0.000000e+00 : f32
    %34 = vector.broadcast %cst_37 : f32 to vector<256x16xf32>
    %35 = arith.maximumf %33, %34 : vector<256x16xf32>
    %36 = vector.shape_cast %35 : vector<256x16xf32> to vector<16x16x16xf32>
    %c1 = arith.constant 1 : index
    %c1_38 = arith.constant 1 : index
    %c0_39 = arith.constant 0 : index
    %37 = vector.load %arg10[%c1, %c1_38, %c0_39] : memref<18x18x16xf32, #tpu.memory_space<vmem>>, vector<16x16x16xf32>
    tpu.vector_store %arg10[%c1, %c1_38, %c0_39], %36 {strides = array<i32>} : memref<18x18x16xf32, #tpu.memory_space<vmem>>, vector<16x16x16xf32>,
    %cst_40 = arith.constant 0.000000e+00 : f32
    %38 = vector.broadcast %cst_40 : f32 to vector<256x128xf32>
    %c0_41 = arith.constant 0 : index
    %c0_42 = arith.constant 0 : index
    %c0_43 = arith.constant 0 : index
    %39 = vector.load %arg10[%c0_41, %c0_42, %c0_43] : memref<18x18x16xf32, #tpu.memory_space<vmem>>, vector<16x16x16xf32>
    %40 = vector.shape_cast %39 : vector<16x16x16xf32> to vector<256x16xf32>
    %41 = arith.truncf %40 : vector<256x16xf32> to vector<256x16xbf16>
    %c0_44 = arith.constant 0 : index
    %c0_45 = arith.constant 0 : index
    %c0_46 = arith.constant 0 : index
    %c0_47 = arith.constant 0 : index
    %42 = vector.load %arg7[%c0_44, %c0_45, %c0_46, %c0_47] : memref<3x9x16x128xbf16, #tpu.memory_space<vmem>>, vector<1x1x16x128xbf16>
    %43 = vector.shape_cast %42 : vector<1x1x16x128xbf16> to vector<16x128xbf16>
    %cst_48 = arith.constant dense<0.000000e+00> : vector<256x128xf32>
    %44 = tpu.matmul %41, %43, %cst_48 {dimension_numbers = #tpu.dot_dimension_numbers<[1], [0], [0], [1], [0, 0, 1, 1], [], []>} : vector<256x16xbf16>, vector<16x128xbf16>, vector<256x128xf32> -> vector<256x128xf32>
    %45 = arith.addf %38, %44 : vector<256x128xf32>
    %c0_49 = arith.constant 0 : index
    %c1_50 = arith.constant 1 : index
    %c0_51 = arith.constant 0 : index
    %46 = vector.load %arg10[%c0_49, %c1_50, %c0_51] : memref<18x18x16xf32, #tpu.memory_space<vmem>>, vector<16x16x16xf32>
    %47 = vector.shape_cast %46 : vector<16x16x16xf32> to vector<256x16xf32>
    %48 = arith.truncf %47 : vector<256x16xf32> to vector<256x16xbf16>
    %c0_52 = arith.constant 0 : index
    %c1_53 = arith.constant 1 : index
    %c0_54 = arith.constant 0 : index
    %c0_55 = arith.constant 0 : index
    %49 = vector.load %arg7[%c0_52, %c1_53, %c0_54, %c0_55] : memref<3x9x16x128xbf16, #tpu.memory_space<vmem>>, vector<1x1x16x128xbf16>
    %50 = vector.shape_cast %49 : vector<1x1x16x128xbf16> to vector<16x128xbf16>
    %cst_56 = arith.constant dense<0.000000e+00> : vector<256x128xf32>
    %51 = tpu.matmul %48, %50, %cst_56 {dimension_numbers = #tpu.dot_dimension_numbers<[1], [0], [0], [1], [0, 0, 1, 1], [], []>} : vector<256x16xbf16>, vector<16x128xbf16>, vector<256x128xf32> -> vector<256x128xf32>
    %52 = arith.addf %45, %51 : vector<256x128xf32>
    %c0_57 = arith.constant 0 : index
    %c2 = arith.constant 2 : index
    %c0_58 = arith.constant 0 : index
    %53 = vector.load %arg10[%c0_57, %c2, %c0_58] : memref<18x18x16xf32, #tpu.memory_space<vmem>>, vector<16x16x16xf32>
    %54 = vector.shape_cast %53 : vector<16x16x16xf32> to vector<256x16xf32>
    %55 = arith.truncf %54 : vector<256x16xf32> to vector<256x16xbf16>
    %c0_59 = arith.constant 0 : index
    %c2_60 = arith.constant 2 : index
    %c0_61 = arith.constant 0 : index
    %c0_62 = arith.constant 0 : index
    %56 = vector.load %arg7[%c0_59, %c2_60, %c0_61, %c0_62] : memref<3x9x16x128xbf16, #tpu.memory_space<vmem>>, vector<1x1x16x128xbf16>
    %57 = vector.shape_cast %56 : vector<1x1x16x128xbf16> to vector<16x128xbf16>
    %cst_63 = arith.constant dense<0.000000e+00> : vector<256x128xf32>
    %58 = tpu.matmul %55, %57, %cst_63 {dimension_numbers = #tpu.dot_dimension_numbers<[1], [0], [0], [1], [0, 0, 1, 1], [], []>} : vector<256x16xbf16>, vector<16x128xbf16>, vector<256x128xf32> -> vector<256x128xf32>
    %59 = arith.addf %52, %58 : vector<256x128xf32>
    %c1_64 = arith.constant 1 : index
    %c0_65 = arith.constant 0 : index
    %c0_66 = arith.constant 0 : index
    %60 = vector.load %arg10[%c1_64, %c0_65, %c0_66] : memref<18x18x16xf32, #tpu.memory_space<vmem>>, vector<16x16x16xf32>
    %61 = vector.shape_cast %60 : vector<16x16x16xf32> to vector<256x16xf32>
    %62 = arith.truncf %61 : vector<256x16xf32> to vector<256x16xbf16>
    %c0_67 = arith.constant 0 : index
    %c3 = arith.constant 3 : index
    %c0_68 = arith.constant 0 : index
    %c0_69 = arith.constant 0 : index
    %63 = vector.load %arg7[%c0_67, %c3, %c0_68, %c0_69] : memref<3x9x16x128xbf16, #tpu.memory_space<vmem>>, vector<1x1x16x128xbf16>
    %64 = vector.shape_cast %63 : vector<1x1x16x128xbf16> to vector<16x128xbf16>
    %cst_70 = arith.constant dense<0.000000e+00> : vector<256x128xf32>
    %65 = tpu.matmul %62, %64, %cst_70 {dimension_numbers = #tpu.dot_dimension_numbers<[1], [0], [0], [1], [0, 0, 1, 1], [], []>} : vector<256x16xbf16>, vector<16x128xbf16>, vector<256x128xf32> -> vector<256x128xf32>
    %66 = arith.addf %59, %65 : vector<256x128xf32>
    %c1_71 = arith.constant 1 : index
    %c1_72 = arith.constant 1 : index
    %c0_73 = arith.constant 0 : index
    %67 = vector.load %arg10[%c1_71, %c1_72, %c0_73] : memref<18x18x16xf32, #tpu.memory_space<vmem>>, vector<16x16x16xf32>
    %68 = vector.shape_cast %67 : vector<16x16x16xf32> to vector<256x16xf32>
    %69 = arith.truncf %68 : vector<256x16xf32> to vector<256x16xbf16>
    %c0_74 = arith.constant 0 : index
    %c4 = arith.constant 4 : index
    %c0_75 = arith.constant 0 : index
    %c0_76 = arith.constant 0 : index
    %70 = vector.load %arg7[%c0_74, %c4, %c0_75, %c0_76] : memref<3x9x16x128xbf16, #tpu.memory_space<vmem>>, vector<1x1x16x128xbf16>
    %71 = vector.shape_cast %70 : vector<1x1x16x128xbf16> to vector<16x128xbf16>
    %cst_77 = arith.constant dense<0.000000e+00> : vector<256x128xf32>
    %72 = tpu.matmul %69, %71, %cst_77 {dimension_numbers = #tpu.dot_dimension_numbers<[1], [0], [0], [1], [0, 0, 1, 1], [], []>} : vector<256x16xbf16>, vector<16x128xbf16>, vector<256x128xf32> -> vector<256x128xf32>
    %73 = arith.addf %66, %72 : vector<256x128xf32>
    %c1_78 = arith.constant 1 : index
    %c2_79 = arith.constant 2 : index
    %c0_80 = arith.constant 0 : index
    %74 = vector.load %arg10[%c1_78, %c2_79, %c0_80] : memref<18x18x16xf32, #tpu.memory_space<vmem>>, vector<16x16x16xf32>
    %75 = vector.shape_cast %74 : vector<16x16x16xf32> to vector<256x16xf32>
    %76 = arith.truncf %75 : vector<256x16xf32> to vector<256x16xbf16>
    %c0_81 = arith.constant 0 : index
    %c5 = arith.constant 5 : index
    %c0_82 = arith.constant 0 : index
    %c0_83 = arith.constant 0 : index
    %77 = vector.load %arg7[%c0_81, %c5, %c0_82, %c0_83] : memref<3x9x16x128xbf16, #tpu.memory_space<vmem>>, vector<1x1x16x128xbf16>
    %78 = vector.shape_cast %77 : vector<1x1x16x128xbf16> to vector<16x128xbf16>
    %cst_84 = arith.constant dense<0.000000e+00> : vector<256x128xf32>
    %79 = tpu.matmul %76, %78, %cst_84 {dimension_numbers = #tpu.dot_dimension_numbers<[1], [0], [0], [1], [0, 0, 1, 1], [], []>} : vector<256x16xbf16>, vector<16x128xbf16>, vector<256x128xf32> -> vector<256x128xf32>
    %80 = arith.addf %73, %79 : vector<256x128xf32>
    %c2_85 = arith.constant 2 : index
    %c0_86 = arith.constant 0 : index
    %c0_87 = arith.constant 0 : index
    %81 = vector.load %arg10[%c2_85, %c0_86, %c0_87] : memref<18x18x16xf32, #tpu.memory_space<vmem>>, vector<16x16x16xf32>
    %82 = vector.shape_cast %81 : vector<16x16x16xf32> to vector<256x16xf32>
    %83 = arith.truncf %82 : vector<256x16xf32> to vector<256x16xbf16>
    %c0_88 = arith.constant 0 : index
    %c6 = arith.constant 6 : index
    %c0_89 = arith.constant 0 : index
    %c0_90 = arith.constant 0 : index
    %84 = vector.load %arg7[%c0_88, %c6, %c0_89, %c0_90] : memref<3x9x16x128xbf16, #tpu.memory_space<vmem>>, vector<1x1x16x128xbf16>
    %85 = vector.shape_cast %84 : vector<1x1x16x128xbf16> to vector<16x128xbf16>
    %cst_91 = arith.constant dense<0.000000e+00> : vector<256x128xf32>
    %86 = tpu.matmul %83, %85, %cst_91 {dimension_numbers = #tpu.dot_dimension_numbers<[1], [0], [0], [1], [0, 0, 1, 1], [], []>} : vector<256x16xbf16>, vector<16x128xbf16>, vector<256x128xf32> -> vector<256x128xf32>
    %87 = arith.addf %80, %86 : vector<256x128xf32>
    %c2_92 = arith.constant 2 : index
    %c1_93 = arith.constant 1 : index
    %c0_94 = arith.constant 0 : index
    %88 = vector.load %arg10[%c2_92, %c1_93, %c0_94] : memref<18x18x16xf32, #tpu.memory_space<vmem>>, vector<16x16x16xf32>
    %89 = vector.shape_cast %88 : vector<16x16x16xf32> to vector<256x16xf32>
    %90 = arith.truncf %89 : vector<256x16xf32> to vector<256x16xbf16>
    %c0_95 = arith.constant 0 : index
    %c7 = arith.constant 7 : index
    %c0_96 = arith.constant 0 : index
    %c0_97 = arith.constant 0 : index
    %91 = vector.load %arg7[%c0_95, %c7, %c0_96, %c0_97] : memref<3x9x16x128xbf16, #tpu.memory_space<vmem>>, vector<1x1x16x128xbf16>
    %92 = vector.shape_cast %91 : vector<1x1x16x128xbf16> to vector<16x128xbf16>
    %cst_98 = arith.constant dense<0.000000e+00> : vector<256x128xf32>
    %93 = tpu.matmul %90, %92, %cst_98 {dimension_numbers = #tpu.dot_dimension_numbers<[1], [0], [0], [1], [0, 0, 1, 1], [], []>} : vector<256x16xbf16>, vector<16x128xbf16>, vector<256x128xf32> -> vector<256x128xf32>
    %94 = arith.addf %87, %93 : vector<256x128xf32>
    %c2_99 = arith.constant 2 : index
    %c2_100 = arith.constant 2 : index
    %c0_101 = arith.constant 0 : index
    %95 = vector.load %arg10[%c2_99, %c2_100, %c0_101] : memref<18x18x16xf32, #tpu.memory_space<vmem>>, vector<16x16x16xf32>
    %96 = vector.shape_cast %95 : vector<16x16x16xf32> to vector<256x16xf32>
    %97 = arith.truncf %96 : vector<256x16xf32> to vector<256x16xbf16>
    %c0_102 = arith.constant 0 : index
    %c8 = arith.constant 8 : index
    %c0_103 = arith.constant 0 : index
    %c0_104 = arith.constant 0 : index
    %98 = vector.load %arg7[%c0_102, %c8, %c0_103, %c0_104] : memref<3x9x16x128xbf16, #tpu.memory_space<vmem>>, vector<1x1x16x128xbf16>
    %99 = vector.shape_cast %98 : vector<1x1x16x128xbf16> to vector<16x128xbf16>
    %cst_105 = arith.constant dense<0.000000e+00> : vector<256x128xf32>
    %100 = tpu.matmul %97, %99, %cst_105 {dimension_numbers = #tpu.dot_dimension_numbers<[1], [0], [0], [1], [0, 0, 1, 1], [], []>} : vector<256x16xbf16>, vector<16x128xbf16>, vector<256x128xf32> -> vector<256x128xf32>
    %101 = arith.addf %94, %100 : vector<256x128xf32>
    %c0_106 = arith.constant 0 : index
    %c0_107 = arith.constant 0 : index
    %102 = vector.load %arg9[%c0_106, %c0_107] : memref<256x128xf32, #tpu.memory_space<vmem>>, vector<256x128xf32>
    %103 = arith.addf %102, %101 : vector<256x128xf32>
    %c0_108 = arith.constant 0 : index
    %c0_109 = arith.constant 0 : index
    %104 = vector.load %arg9[%c0_108, %c0_109] : memref<256x128xf32, #tpu.memory_space<vmem>>, vector<256x128xf32>
    tpu.vector_store %arg9[%c0_108, %c0_109], %103 {strides = array<i32>} : memref<256x128xf32, #tpu.memory_space<vmem>>, vector<256x128xf32>,
    %c0_110 = arith.constant 0 : index
    %c0_111 = arith.constant 0 : index
    %105 = vector.load %arg9[%c0_110, %c0_111] : memref<256x128xf32, #tpu.memory_space<vmem>>, vector<256x128xf32>
    %c1_112 = arith.constant 1 : index
    %c0_113 = arith.constant 0 : index
    %c0_114 = arith.constant 0 : index
    %106 = vector.load %arg2[%c1_112, %c0_113, %c0_114] : memref<3x1x128xf32, #tpu.memory_space<vmem>>, vector<1x1x128xf32>
    %107 = vector.shape_cast %106 : vector<1x1x128xf32> to vector<1x128xf32>
    %108 = vector.broadcast %107 : vector<1x128xf32> to vector<256x128xf32>
    %109 = arith.mulf %105, %108 : vector<256x128xf32>
    %c1_115 = arith.constant 1 : index
    %c0_116 = arith.constant 0 : index
    %c0_117 = arith.constant 0 : index
    %110 = vector.load %arg3[%c1_115, %c0_116, %c0_117] : memref<3x1x128xf32, #tpu.memory_space<vmem>>, vector<1x1x128xf32>
    %111 = vector.shape_cast %110 : vector<1x1x128xf32> to vector<1x128xf32>
    %112 = vector.broadcast %111 : vector<1x128xf32> to vector<256x128xf32>
    %113 = arith.addf %109, %112 : vector<256x128xf32>
    %cst_118 = arith.constant 0.000000e+00 : f32
    %114 = vector.broadcast %cst_118 : f32 to vector<256x128xf32>
    %115 = arith.maximumf %113, %114 : vector<256x128xf32>
    %116 = arith.truncf %115 : vector<256x128xf32> to vector<256x128xbf16>
    %c1_119 = arith.constant 1 : index
    %c0_120 = arith.constant 0 : index
    %c0_121 = arith.constant 0 : index
    %117 = vector.load %arg4[%c1_119, %c0_120, %c0_121] : memref<3x128x16xbf16, #tpu.memory_space<vmem>>, vector<1x128x16xbf16>
    %118 = vector.shape_cast %117 : vector<1x128x16xbf16> to vector<128x16xbf16>
    %cst_122 = arith.constant dense<0.000000e+00> : vector<256x16xf32>
    %119 = tpu.matmul %116, %118, %cst_122 {dimension_numbers = #tpu.dot_dimension_numbers<[1], [0], [0], [1], [0, 0, 1, 1], [], []>} : vector<256x128xbf16>, vector<128x16xbf16>, vector<256x16xf32> -> vector<256x16xf32>
    %c1_123 = arith.constant 1 : index
    %c0_124 = arith.constant 0 : index
    %c0_125 = arith.constant 0 : index
    %120 = vector.load %arg5[%c1_123, %c0_124, %c0_125] : memref<3x1x16xf32, #tpu.memory_space<vmem>>, vector<1x1x16xf32>
    %121 = vector.shape_cast %120 : vector<1x1x16xf32> to vector<1x16xf32>
    %122 = vector.broadcast %121 : vector<1x16xf32> to vector<256x16xf32>
    %123 = arith.mulf %119, %122 : vector<256x16xf32>
    %c1_126 = arith.constant 1 : index
    %c0_127 = arith.constant 0 : index
    %c0_128 = arith.constant 0 : index
    %124 = vector.load %arg6[%c1_126, %c0_127, %c0_128] : memref<3x1x16xf32, #tpu.memory_space<vmem>>, vector<1x1x16xf32>
    %125 = vector.shape_cast %124 : vector<1x1x16xf32> to vector<1x16xf32>
    %126 = vector.broadcast %125 : vector<1x16xf32> to vector<256x16xf32>
    %127 = arith.addf %123, %126 : vector<256x16xf32>
    %cst_129 = arith.constant 0.000000e+00 : f32
    %128 = vector.broadcast %cst_129 : f32 to vector<256x16xf32>
    %129 = arith.maximumf %127, %128 : vector<256x16xf32>
    %130 = vector.shape_cast %129 : vector<256x16xf32> to vector<16x16x16xf32>
    %c1_130 = arith.constant 1 : index
    %c1_131 = arith.constant 1 : index
    %c0_132 = arith.constant 0 : index
    %131 = vector.load %arg10[%c1_130, %c1_131, %c0_132] : memref<18x18x16xf32, #tpu.memory_space<vmem>>, vector<16x16x16xf32>
    tpu.vector_store %arg10[%c1_130, %c1_131, %c0_132], %130 {strides = array<i32>} : memref<18x18x16xf32, #tpu.memory_space<vmem>>, vector<16x16x16xf32>,
    %cst_133 = arith.constant 0.000000e+00 : f32
    %132 = vector.broadcast %cst_133 : f32 to vector<256x128xf32>
    %c0_134 = arith.constant 0 : index
    %c0_135 = arith.constant 0 : index
    %c0_136 = arith.constant 0 : index
    %133 = vector.load %arg10[%c0_134, %c0_135, %c0_136] : memref<18x18x16xf32, #tpu.memory_space<vmem>>, vector<16x16x16xf32>
    %134 = vector.shape_cast %133 : vector<16x16x16xf32> to vector<256x16xf32>
    %135 = arith.truncf %134 : vector<256x16xf32> to vector<256x16xbf16>
    %c1_137 = arith.constant 1 : index
    %c0_138 = arith.constant 0 : index
    %c0_139 = arith.constant 0 : index
    %c0_140 = arith.constant 0 : index
    %136 = vector.load %arg7[%c1_137, %c0_138, %c0_139, %c0_140] : memref<3x9x16x128xbf16, #tpu.memory_space<vmem>>, vector<1x1x16x128xbf16>
    %137 = vector.shape_cast %136 : vector<1x1x16x128xbf16> to vector<16x128xbf16>
    %cst_141 = arith.constant dense<0.000000e+00> : vector<256x128xf32>
    %138 = tpu.matmul %135, %137, %cst_141 {dimension_numbers = #tpu.dot_dimension_numbers<[1], [0], [0], [1], [0, 0, 1, 1], [], []>} : vector<256x16xbf16>, vector<16x128xbf16>, vector<256x128xf32> -> vector<256x128xf32>
    %139 = arith.addf %132, %138 : vector<256x128xf32>
    %c0_142 = arith.constant 0 : index
    %c1_143 = arith.constant 1 : index
    %c0_144 = arith.constant 0 : index
    %140 = vector.load %arg10[%c0_142, %c1_143, %c0_144] : memref<18x18x16xf32, #tpu.memory_space<vmem>>, vector<16x16x16xf32>
    %141 = vector.shape_cast %140 : vector<16x16x16xf32> to vector<256x16xf32>
    %142 = arith.truncf %141 : vector<256x16xf32> to vector<256x16xbf16>
    %c1_145 = arith.constant 1 : index
    %c1_146 = arith.constant 1 : index
    %c0_147 = arith.constant 0 : index
    %c0_148 = arith.constant 0 : index
    %143 = vector.load %arg7[%c1_145, %c1_146, %c0_147, %c0_148] : memref<3x9x16x128xbf16, #tpu.memory_space<vmem>>, vector<1x1x16x128xbf16>
    %144 = vector.shape_cast %143 : vector<1x1x16x128xbf16> to vector<16x128xbf16>
    %cst_149 = arith.constant dense<0.000000e+00> : vector<256x128xf32>
    %145 = tpu.matmul %142, %144, %cst_149 {dimension_numbers = #tpu.dot_dimension_numbers<[1], [0], [0], [1], [0, 0, 1, 1], [], []>} : vector<256x16xbf16>, vector<16x128xbf16>, vector<256x128xf32> -> vector<256x128xf32>
    %146 = arith.addf %139, %145 : vector<256x128xf32>
    %c0_150 = arith.constant 0 : index
    %c2_151 = arith.constant 2 : index
    %c0_152 = arith.constant 0 : index
    %147 = vector.load %arg10[%c0_150, %c2_151, %c0_152] : memref<18x18x16xf32, #tpu.memory_space<vmem>>, vector<16x16x16xf32>
    %148 = vector.shape_cast %147 : vector<16x16x16xf32> to vector<256x16xf32>
    %149 = arith.truncf %148 : vector<256x16xf32> to vector<256x16xbf16>
    %c1_153 = arith.constant 1 : index
    %c2_154 = arith.constant 2 : index
    %c0_155 = arith.constant 0 : index
    %c0_156 = arith.constant 0 : index
    %150 = vector.load %arg7[%c1_153, %c2_154, %c0_155, %c0_156] : memref<3x9x16x128xbf16, #tpu.memory_space<vmem>>, vector<1x1x16x128xbf16>
    %151 = vector.shape_cast %150 : vector<1x1x16x128xbf16> to vector<16x128xbf16>
    %cst_157 = arith.constant dense<0.000000e+00> : vector<256x128xf32>
    %152 = tpu.matmul %149, %151, %cst_157 {dimension_numbers = #tpu.dot_dimension_numbers<[1], [0], [0], [1], [0, 0, 1, 1], [], []>} : vector<256x16xbf16>, vector<16x128xbf16>, vector<256x128xf32> -> vector<256x128xf32>
    %153 = arith.addf %146, %152 : vector<256x128xf32>
    %c1_158 = arith.constant 1 : index
    %c0_159 = arith.constant 0 : index
    %c0_160 = arith.constant 0 : index
    %154 = vector.load %arg10[%c1_158, %c0_159, %c0_160] : memref<18x18x16xf32, #tpu.memory_space<vmem>>, vector<16x16x16xf32>
    %155 = vector.shape_cast %154 : vector<16x16x16xf32> to vector<256x16xf32>
    %156 = arith.truncf %155 : vector<256x16xf32> to vector<256x16xbf16>
    %c1_161 = arith.constant 1 : index
    %c3_162 = arith.constant 3 : index
    %c0_163 = arith.constant 0 : index
    %c0_164 = arith.constant 0 : index
    %157 = vector.load %arg7[%c1_161, %c3_162, %c0_163, %c0_164] : memref<3x9x16x128xbf16, #tpu.memory_space<vmem>>, vector<1x1x16x128xbf16>
    %158 = vector.shape_cast %157 : vector<1x1x16x128xbf16> to vector<16x128xbf16>
    %cst_165 = arith.constant dense<0.000000e+00> : vector<256x128xf32>
    %159 = tpu.matmul %156, %158, %cst_165 {dimension_numbers = #tpu.dot_dimension_numbers<[1], [0], [0], [1], [0, 0, 1, 1], [], []>} : vector<256x16xbf16>, vector<16x128xbf16>, vector<256x128xf32> -> vector<256x128xf32>
    %160 = arith.addf %153, %159 : vector<256x128xf32>
    %c1_166 = arith.constant 1 : index
    %c1_167 = arith.constant 1 : index
    %c0_168 = arith.constant 0 : index
    %161 = vector.load %arg10[%c1_166, %c1_167, %c0_168] : memref<18x18x16xf32, #tpu.memory_space<vmem>>, vector<16x16x16xf32>
    %162 = vector.shape_cast %161 : vector<16x16x16xf32> to vector<256x16xf32>
    %163 = arith.truncf %162 : vector<256x16xf32> to vector<256x16xbf16>
    %c1_169 = arith.constant 1 : index
    %c4_170 = arith.constant 4 : index
    %c0_171 = arith.constant 0 : index
    %c0_172 = arith.constant 0 : index
    %164 = vector.load %arg7[%c1_169, %c4_170, %c0_171, %c0_172] : memref<3x9x16x128xbf16, #tpu.memory_space<vmem>>, vector<1x1x16x128xbf16>
    %165 = vector.shape_cast %164 : vector<1x1x16x128xbf16> to vector<16x128xbf16>
    %cst_173 = arith.constant dense<0.000000e+00> : vector<256x128xf32>
    %166 = tpu.matmul %163, %165, %cst_173 {dimension_numbers = #tpu.dot_dimension_numbers<[1], [0], [0], [1], [0, 0, 1, 1], [], []>} : vector<256x16xbf16>, vector<16x128xbf16>, vector<256x128xf32> -> vector<256x128xf32>
    %167 = arith.addf %160, %166 : vector<256x128xf32>
    %c1_174 = arith.constant 1 : index
    %c2_175 = arith.constant 2 : index
    %c0_176 = arith.constant 0 : index
    %168 = vector.load %arg10[%c1_174, %c2_175, %c0_176] : memref<18x18x16xf32, #tpu.memory_space<vmem>>, vector<16x16x16xf32>
    %169 = vector.shape_cast %168 : vector<16x16x16xf32> to vector<256x16xf32>
    %170 = arith.truncf %169 : vector<256x16xf32> to vector<256x16xbf16>
    %c1_177 = arith.constant 1 : index
    %c5_178 = arith.constant 5 : index
    %c0_179 = arith.constant 0 : index
    %c0_180 = arith.constant 0 : index
    %171 = vector.load %arg7[%c1_177, %c5_178, %c0_179, %c0_180] : memref<3x9x16x128xbf16, #tpu.memory_space<vmem>>, vector<1x1x16x128xbf16>
    %172 = vector.shape_cast %171 : vector<1x1x16x128xbf16> to vector<16x128xbf16>
    %cst_181 = arith.constant dense<0.000000e+00> : vector<256x128xf32>
    %173 = tpu.matmul %170, %172, %cst_181 {dimension_numbers = #tpu.dot_dimension_numbers<[1], [0], [0], [1], [0, 0, 1, 1], [], []>} : vector<256x16xbf16>, vector<16x128xbf16>, vector<256x128xf32> -> vector<256x128xf32>
    %174 = arith.addf %167, %173 : vector<256x128xf32>
    %c2_182 = arith.constant 2 : index
    %c0_183 = arith.constant 0 : index
    %c0_184 = arith.constant 0 : index
    %175 = vector.load %arg10[%c2_182, %c0_183, %c0_184] : memref<18x18x16xf32, #tpu.memory_space<vmem>>, vector<16x16x16xf32>
    %176 = vector.shape_cast %175 : vector<16x16x16xf32> to vector<256x16xf32>
    %177 = arith.truncf %176 : vector<256x16xf32> to vector<256x16xbf16>
    %c1_185 = arith.constant 1 : index
    %c6_186 = arith.constant 6 : index
    %c0_187 = arith.constant 0 : index
    %c0_188 = arith.constant 0 : index
    %178 = vector.load %arg7[%c1_185, %c6_186, %c0_187, %c0_188] : memref<3x9x16x128xbf16, #tpu.memory_space<vmem>>, vector<1x1x16x128xbf16>
    %179 = vector.shape_cast %178 : vector<1x1x16x128xbf16> to vector<16x128xbf16>
    %cst_189 = arith.constant dense<0.000000e+00> : vector<256x128xf32>
    %180 = tpu.matmul %177, %179, %cst_189 {dimension_numbers = #tpu.dot_dimension_numbers<[1], [0], [0], [1], [0, 0, 1, 1], [], []>} : vector<256x16xbf16>, vector<16x128xbf16>, vector<256x128xf32> -> vector<256x128xf32>
    %181 = arith.addf %174, %180 : vector<256x128xf32>
    %c2_190 = arith.constant 2 : index
    %c1_191 = arith.constant 1 : index
    %c0_192 = arith.constant 0 : index
    %182 = vector.load %arg10[%c2_190, %c1_191, %c0_192] : memref<18x18x16xf32, #tpu.memory_space<vmem>>, vector<16x16x16xf32>
    %183 = vector.shape_cast %182 : vector<16x16x16xf32> to vector<256x16xf32>
    %184 = arith.truncf %183 : vector<256x16xf32> to vector<256x16xbf16>
    %c1_193 = arith.constant 1 : index
    %c7_194 = arith.constant 7 : index
    %c0_195 = arith.constant 0 : index
    %c0_196 = arith.constant 0 : index
    %185 = vector.load %arg7[%c1_193, %c7_194, %c0_195, %c0_196] : memref<3x9x16x128xbf16, #tpu.memory_space<vmem>>, vector<1x1x16x128xbf16>
    %186 = vector.shape_cast %185 : vector<1x1x16x128xbf16> to vector<16x128xbf16>
    %cst_197 = arith.constant dense<0.000000e+00> : vector<256x128xf32>
    %187 = tpu.matmul %184, %186, %cst_197 {dimension_numbers = #tpu.dot_dimension_numbers<[1], [0], [0], [1], [0, 0, 1, 1], [], []>} : vector<256x16xbf16>, vector<16x128xbf16>, vector<256x128xf32> -> vector<256x128xf32>
    %188 = arith.addf %181, %187 : vector<256x128xf32>
    %c2_198 = arith.constant 2 : index
    %c2_199 = arith.constant 2 : index
    %c0_200 = arith.constant 0 : index
    %189 = vector.load %arg10[%c2_198, %c2_199, %c0_200] : memref<18x18x16xf32, #tpu.memory_space<vmem>>, vector<16x16x16xf32>
    %190 = vector.shape_cast %189 : vector<16x16x16xf32> to vector<256x16xf32>
    %191 = arith.truncf %190 : vector<256x16xf32> to vector<256x16xbf16>
    %c1_201 = arith.constant 1 : index
    %c8_202 = arith.constant 8 : index
    %c0_203 = arith.constant 0 : index
    %c0_204 = arith.constant 0 : index
    %192 = vector.load %arg7[%c1_201, %c8_202, %c0_203, %c0_204] : memref<3x9x16x128xbf16, #tpu.memory_space<vmem>>, vector<1x1x16x128xbf16>
    %193 = vector.shape_cast %192 : vector<1x1x16x128xbf16> to vector<16x128xbf16>
    %cst_205 = arith.constant dense<0.000000e+00> : vector<256x128xf32>
    %194 = tpu.matmul %191, %193, %cst_205 {dimension_numbers = #tpu.dot_dimension_numbers<[1], [0], [0], [1], [0, 0, 1, 1], [], []>} : vector<256x16xbf16>, vector<16x128xbf16>, vector<256x128xf32> -> vector<256x128xf32>
    %195 = arith.addf %188, %194 : vector<256x128xf32>
    %c0_206 = arith.constant 0 : index
    %c0_207 = arith.constant 0 : index
    %196 = vector.load %arg9[%c0_206, %c0_207] : memref<256x128xf32, #tpu.memory_space<vmem>>, vector<256x128xf32>
    %197 = arith.addf %196, %195 : vector<256x128xf32>
    %c0_208 = arith.constant 0 : index
    %c0_209 = arith.constant 0 : index
    %198 = vector.load %arg9[%c0_208, %c0_209] : memref<256x128xf32, #tpu.memory_space<vmem>>, vector<256x128xf32>
    tpu.vector_store %arg9[%c0_208, %c0_209], %197 {strides = array<i32>} : memref<256x128xf32, #tpu.memory_space<vmem>>, vector<256x128xf32>,
    %c0_210 = arith.constant 0 : index
    %c0_211 = arith.constant 0 : index
    %199 = vector.load %arg9[%c0_210, %c0_211] : memref<256x128xf32, #tpu.memory_space<vmem>>, vector<256x128xf32>
    %c2_212 = arith.constant 2 : index
    %c0_213 = arith.constant 0 : index
    %c0_214 = arith.constant 0 : index
    %200 = vector.load %arg2[%c2_212, %c0_213, %c0_214] : memref<3x1x128xf32, #tpu.memory_space<vmem>>, vector<1x1x128xf32>
    %201 = vector.shape_cast %200 : vector<1x1x128xf32> to vector<1x128xf32>
    %202 = vector.broadcast %201 : vector<1x128xf32> to vector<256x128xf32>
    %203 = arith.mulf %199, %202 : vector<256x128xf32>
    %c2_215 = arith.constant 2 : index
    %c0_216 = arith.constant 0 : index
    %c0_217 = arith.constant 0 : index
    %204 = vector.load %arg3[%c2_215, %c0_216, %c0_217] : memref<3x1x128xf32, #tpu.memory_space<vmem>>, vector<1x1x128xf32>
    %205 = vector.shape_cast %204 : vector<1x1x128xf32> to vector<1x128xf32>
    %206 = vector.broadcast %205 : vector<1x128xf32> to vector<256x128xf32>
    %207 = arith.addf %203, %206 : vector<256x128xf32>
    %cst_218 = arith.constant 0.000000e+00 : f32
    %208 = vector.broadcast %cst_218 : f32 to vector<256x128xf32>
    %209 = arith.maximumf %207, %208 : vector<256x128xf32>
    %210 = arith.truncf %209 : vector<256x128xf32> to vector<256x128xbf16>
    %c2_219 = arith.constant 2 : index
    %c0_220 = arith.constant 0 : index
    %c0_221 = arith.constant 0 : index
    %211 = vector.load %arg4[%c2_219, %c0_220, %c0_221] : memref<3x128x16xbf16, #tpu.memory_space<vmem>>, vector<1x128x16xbf16>
    %212 = vector.shape_cast %211 : vector<1x128x16xbf16> to vector<128x16xbf16>
    %cst_222 = arith.constant dense<0.000000e+00> : vector<256x16xf32>
    %213 = tpu.matmul %210, %212, %cst_222 {dimension_numbers = #tpu.dot_dimension_numbers<[1], [0], [0], [1], [0, 0, 1, 1], [], []>} : vector<256x128xbf16>, vector<128x16xbf16>, vector<256x16xf32> -> vector<256x16xf32>
    %c2_223 = arith.constant 2 : index
    %c0_224 = arith.constant 0 : index
    %c0_225 = arith.constant 0 : index
    %214 = vector.load %arg5[%c2_223, %c0_224, %c0_225] : memref<3x1x16xf32, #tpu.memory_space<vmem>>, vector<1x1x16xf32>
    %215 = vector.shape_cast %214 : vector<1x1x16xf32> to vector<1x16xf32>
    %216 = vector.broadcast %215 : vector<1x16xf32> to vector<256x16xf32>
    %217 = arith.mulf %213, %216 : vector<256x16xf32>
    %c2_226 = arith.constant 2 : index
    %c0_227 = arith.constant 0 : index
    %c0_228 = arith.constant 0 : index
    %218 = vector.load %arg6[%c2_226, %c0_227, %c0_228] : memref<3x1x16xf32, #tpu.memory_space<vmem>>, vector<1x1x16xf32>
    %219 = vector.shape_cast %218 : vector<1x1x16xf32> to vector<1x16xf32>
    %220 = vector.broadcast %219 : vector<1x16xf32> to vector<256x16xf32>
    %221 = arith.addf %217, %220 : vector<256x16xf32>
    %cst_229 = arith.constant 0.000000e+00 : f32
    %222 = vector.broadcast %cst_229 : f32 to vector<256x16xf32>
    %223 = arith.maximumf %221, %222 : vector<256x16xf32>
    %224 = vector.shape_cast %223 : vector<256x16xf32> to vector<16x16x16xf32>
    %c1_230 = arith.constant 1 : index
    %c1_231 = arith.constant 1 : index
    %c0_232 = arith.constant 0 : index
    %225 = vector.load %arg10[%c1_230, %c1_231, %c0_232] : memref<18x18x16xf32, #tpu.memory_space<vmem>>, vector<16x16x16xf32>
    tpu.vector_store %arg10[%c1_230, %c1_231, %c0_232], %224 {strides = array<i32>} : memref<18x18x16xf32, #tpu.memory_space<vmem>>, vector<16x16x16xf32>,
    %cst_233 = arith.constant 0.000000e+00 : f32
    %226 = vector.broadcast %cst_233 : f32 to vector<256x128xf32>
    %c0_234 = arith.constant 0 : index
    %c0_235 = arith.constant 0 : index
    %c0_236 = arith.constant 0 : index
    %227 = vector.load %arg10[%c0_234, %c0_235, %c0_236] : memref<18x18x16xf32, #tpu.memory_space<vmem>>, vector<16x16x16xf32>
    %228 = vector.shape_cast %227 : vector<16x16x16xf32> to vector<256x16xf32>
    %229 = arith.truncf %228 : vector<256x16xf32> to vector<256x16xbf16>
    %c2_237 = arith.constant 2 : index
    %c0_238 = arith.constant 0 : index
    %c0_239 = arith.constant 0 : index
    %c0_240 = arith.constant 0 : index
    %230 = vector.load %arg7[%c2_237, %c0_238, %c0_239, %c0_240] : memref<3x9x16x128xbf16, #tpu.memory_space<vmem>>, vector<1x1x16x128xbf16>
    %231 = vector.shape_cast %230 : vector<1x1x16x128xbf16> to vector<16x128xbf16>
    %cst_241 = arith.constant dense<0.000000e+00> : vector<256x128xf32>
    %232 = tpu.matmul %229, %231, %cst_241 {dimension_numbers = #tpu.dot_dimension_numbers<[1], [0], [0], [1], [0, 0, 1, 1], [], []>} : vector<256x16xbf16>, vector<16x128xbf16>, vector<256x128xf32> -> vector<256x128xf32>
    %233 = arith.addf %226, %232 : vector<256x128xf32>
    %c0_242 = arith.constant 0 : index
    %c1_243 = arith.constant 1 : index
    %c0_244 = arith.constant 0 : index
    %234 = vector.load %arg10[%c0_242, %c1_243, %c0_244] : memref<18x18x16xf32, #tpu.memory_space<vmem>>, vector<16x16x16xf32>
    %235 = vector.shape_cast %234 : vector<16x16x16xf32> to vector<256x16xf32>
    %236 = arith.truncf %235 : vector<256x16xf32> to vector<256x16xbf16>
    %c2_245 = arith.constant 2 : index
    %c1_246 = arith.constant 1 : index
    %c0_247 = arith.constant 0 : index
    %c0_248 = arith.constant 0 : index
    %237 = vector.load %arg7[%c2_245, %c1_246, %c0_247, %c0_248] : memref<3x9x16x128xbf16, #tpu.memory_space<vmem>>, vector<1x1x16x128xbf16>
    %238 = vector.shape_cast %237 : vector<1x1x16x128xbf16> to vector<16x128xbf16>
    %cst_249 = arith.constant dense<0.000000e+00> : vector<256x128xf32>
    %239 = tpu.matmul %236, %238, %cst_249 {dimension_numbers = #tpu.dot_dimension_numbers<[1], [0], [0], [1], [0, 0, 1, 1], [], []>} : vector<256x16xbf16>, vector<16x128xbf16>, vector<256x128xf32> -> vector<256x128xf32>
    %240 = arith.addf %233, %239 : vector<256x128xf32>
    %c0_250 = arith.constant 0 : index
    %c2_251 = arith.constant 2 : index
    %c0_252 = arith.constant 0 : index
    %241 = vector.load %arg10[%c0_250, %c2_251, %c0_252] : memref<18x18x16xf32, #tpu.memory_space<vmem>>, vector<16x16x16xf32>
    %242 = vector.shape_cast %241 : vector<16x16x16xf32> to vector<256x16xf32>
    %243 = arith.truncf %242 : vector<256x16xf32> to vector<256x16xbf16>
    %c2_253 = arith.constant 2 : index
    %c2_254 = arith.constant 2 : index
    %c0_255 = arith.constant 0 : index
    %c0_256 = arith.constant 0 : index
    %244 = vector.load %arg7[%c2_253, %c2_254, %c0_255, %c0_256] : memref<3x9x16x128xbf16, #tpu.memory_space<vmem>>, vector<1x1x16x128xbf16>
    %245 = vector.shape_cast %244 : vector<1x1x16x128xbf16> to vector<16x128xbf16>
    %cst_257 = arith.constant dense<0.000000e+00> : vector<256x128xf32>
    %246 = tpu.matmul %243, %245, %cst_257 {dimension_numbers = #tpu.dot_dimension_numbers<[1], [0], [0], [1], [0, 0, 1, 1], [], []>} : vector<256x16xbf16>, vector<16x128xbf16>, vector<256x128xf32> -> vector<256x128xf32>
    %247 = arith.addf %240, %246 : vector<256x128xf32>
    %c1_258 = arith.constant 1 : index
    %c0_259 = arith.constant 0 : index
    %c0_260 = arith.constant 0 : index
    %248 = vector.load %arg10[%c1_258, %c0_259, %c0_260] : memref<18x18x16xf32, #tpu.memory_space<vmem>>, vector<16x16x16xf32>
    %249 = vector.shape_cast %248 : vector<16x16x16xf32> to vector<256x16xf32>
    %250 = arith.truncf %249 : vector<256x16xf32> to vector<256x16xbf16>
    %c2_261 = arith.constant 2 : index
    %c3_262 = arith.constant 3 : index
    %c0_263 = arith.constant 0 : index
    %c0_264 = arith.constant 0 : index
    %251 = vector.load %arg7[%c2_261, %c3_262, %c0_263, %c0_264] : memref<3x9x16x128xbf16, #tpu.memory_space<vmem>>, vector<1x1x16x128xbf16>
    %252 = vector.shape_cast %251 : vector<1x1x16x128xbf16> to vector<16x128xbf16>
    %cst_265 = arith.constant dense<0.000000e+00> : vector<256x128xf32>
    %253 = tpu.matmul %250, %252, %cst_265 {dimension_numbers = #tpu.dot_dimension_numbers<[1], [0], [0], [1], [0, 0, 1, 1], [], []>} : vector<256x16xbf16>, vector<16x128xbf16>, vector<256x128xf32> -> vector<256x128xf32>
    %254 = arith.addf %247, %253 : vector<256x128xf32>
    %c1_266 = arith.constant 1 : index
    %c1_267 = arith.constant 1 : index
    %c0_268 = arith.constant 0 : index
    %255 = vector.load %arg10[%c1_266, %c1_267, %c0_268] : memref<18x18x16xf32, #tpu.memory_space<vmem>>, vector<16x16x16xf32>
    %256 = vector.shape_cast %255 : vector<16x16x16xf32> to vector<256x16xf32>
    %257 = arith.truncf %256 : vector<256x16xf32> to vector<256x16xbf16>
    %c2_269 = arith.constant 2 : index
    %c4_270 = arith.constant 4 : index
    %c0_271 = arith.constant 0 : index
    %c0_272 = arith.constant 0 : index
    %258 = vector.load %arg7[%c2_269, %c4_270, %c0_271, %c0_272] : memref<3x9x16x128xbf16, #tpu.memory_space<vmem>>, vector<1x1x16x128xbf16>
    %259 = vector.shape_cast %258 : vector<1x1x16x128xbf16> to vector<16x128xbf16>
    %cst_273 = arith.constant dense<0.000000e+00> : vector<256x128xf32>
    %260 = tpu.matmul %257, %259, %cst_273 {dimension_numbers = #tpu.dot_dimension_numbers<[1], [0], [0], [1], [0, 0, 1, 1], [], []>} : vector<256x16xbf16>, vector<16x128xbf16>, vector<256x128xf32> -> vector<256x128xf32>
    %261 = arith.addf %254, %260 : vector<256x128xf32>
    %c1_274 = arith.constant 1 : index
    %c2_275 = arith.constant 2 : index
    %c0_276 = arith.constant 0 : index
    %262 = vector.load %arg10[%c1_274, %c2_275, %c0_276] : memref<18x18x16xf32, #tpu.memory_space<vmem>>, vector<16x16x16xf32>
    %263 = vector.shape_cast %262 : vector<16x16x16xf32> to vector<256x16xf32>
    %264 = arith.truncf %263 : vector<256x16xf32> to vector<256x16xbf16>
    %c2_277 = arith.constant 2 : index
    %c5_278 = arith.constant 5 : index
    %c0_279 = arith.constant 0 : index
    %c0_280 = arith.constant 0 : index
    %265 = vector.load %arg7[%c2_277, %c5_278, %c0_279, %c0_280] : memref<3x9x16x128xbf16, #tpu.memory_space<vmem>>, vector<1x1x16x128xbf16>
    %266 = vector.shape_cast %265 : vector<1x1x16x128xbf16> to vector<16x128xbf16>
    %cst_281 = arith.constant dense<0.000000e+00> : vector<256x128xf32>
    %267 = tpu.matmul %264, %266, %cst_281 {dimension_numbers = #tpu.dot_dimension_numbers<[1], [0], [0], [1], [0, 0, 1, 1], [], []>} : vector<256x16xbf16>, vector<16x128xbf16>, vector<256x128xf32> -> vector<256x128xf32>
    %268 = arith.addf %261, %267 : vector<256x128xf32>
    %c2_282 = arith.constant 2 : index
    %c0_283 = arith.constant 0 : index
    %c0_284 = arith.constant 0 : index
    %269 = vector.load %arg10[%c2_282, %c0_283, %c0_284] : memref<18x18x16xf32, #tpu.memory_space<vmem>>, vector<16x16x16xf32>
    %270 = vector.shape_cast %269 : vector<16x16x16xf32> to vector<256x16xf32>
    %271 = arith.truncf %270 : vector<256x16xf32> to vector<256x16xbf16>
    %c2_285 = arith.constant 2 : index
    %c6_286 = arith.constant 6 : index
    %c0_287 = arith.constant 0 : index
    %c0_288 = arith.constant 0 : index
    %272 = vector.load %arg7[%c2_285, %c6_286, %c0_287, %c0_288] : memref<3x9x16x128xbf16, #tpu.memory_space<vmem>>, vector<1x1x16x128xbf16>
    %273 = vector.shape_cast %272 : vector<1x1x16x128xbf16> to vector<16x128xbf16>
    %cst_289 = arith.constant dense<0.000000e+00> : vector<256x128xf32>
    %274 = tpu.matmul %271, %273, %cst_289 {dimension_numbers = #tpu.dot_dimension_numbers<[1], [0], [0], [1], [0, 0, 1, 1], [], []>} : vector<256x16xbf16>, vector<16x128xbf16>, vector<256x128xf32> -> vector<256x128xf32>
    %275 = arith.addf %268, %274 : vector<256x128xf32>
    %c2_290 = arith.constant 2 : index
    %c1_291 = arith.constant 1 : index
    %c0_292 = arith.constant 0 : index
    %276 = vector.load %arg10[%c2_290, %c1_291, %c0_292] : memref<18x18x16xf32, #tpu.memory_space<vmem>>, vector<16x16x16xf32>
    %277 = vector.shape_cast %276 : vector<16x16x16xf32> to vector<256x16xf32>
    %278 = arith.truncf %277 : vector<256x16xf32> to vector<256x16xbf16>
    %c2_293 = arith.constant 2 : index
    %c7_294 = arith.constant 7 : index
    %c0_295 = arith.constant 0 : index
    %c0_296 = arith.constant 0 : index
    %279 = vector.load %arg7[%c2_293, %c7_294, %c0_295, %c0_296] : memref<3x9x16x128xbf16, #tpu.memory_space<vmem>>, vector<1x1x16x128xbf16>
    %280 = vector.shape_cast %279 : vector<1x1x16x128xbf16> to vector<16x128xbf16>
    %cst_297 = arith.constant dense<0.000000e+00> : vector<256x128xf32>
    %281 = tpu.matmul %278, %280, %cst_297 {dimension_numbers = #tpu.dot_dimension_numbers<[1], [0], [0], [1], [0, 0, 1, 1], [], []>} : vector<256x16xbf16>, vector<16x128xbf16>, vector<256x128xf32> -> vector<256x128xf32>
    %282 = arith.addf %275, %281 : vector<256x128xf32>
    %c2_298 = arith.constant 2 : index
    %c2_299 = arith.constant 2 : index
    %c0_300 = arith.constant 0 : index
    %283 = vector.load %arg10[%c2_298, %c2_299, %c0_300] : memref<18x18x16xf32, #tpu.memory_space<vmem>>, vector<16x16x16xf32>
    %284 = vector.shape_cast %283 : vector<16x16x16xf32> to vector<256x16xf32>
    %285 = arith.truncf %284 : vector<256x16xf32> to vector<256x16xbf16>
    %c2_301 = arith.constant 2 : index
    %c8_302 = arith.constant 8 : index
    %c0_303 = arith.constant 0 : index
    %c0_304 = arith.constant 0 : index
    %286 = vector.load %arg7[%c2_301, %c8_302, %c0_303, %c0_304] : memref<3x9x16x128xbf16, #tpu.memory_space<vmem>>, vector<1x1x16x128xbf16>
    %287 = vector.shape_cast %286 : vector<1x1x16x128xbf16> to vector<16x128xbf16>
    %cst_305 = arith.constant dense<0.000000e+00> : vector<256x128xf32>
    %288 = tpu.matmul %285, %287, %cst_305 {dimension_numbers = #tpu.dot_dimension_numbers<[1], [0], [0], [1], [0, 0, 1, 1], [], []>} : vector<256x16xbf16>, vector<16x128xbf16>, vector<256x128xf32> -> vector<256x128xf32>
    %289 = arith.addf %282, %288 : vector<256x128xf32>
    %c0_306 = arith.constant 0 : index
    %c0_307 = arith.constant 0 : index
    %290 = vector.load %arg9[%c0_306, %c0_307] : memref<256x128xf32, #tpu.memory_space<vmem>>, vector<256x128xf32>
    %291 = arith.addf %290, %289 : vector<256x128xf32>
    %c0_308 = arith.constant 0 : index
    %c0_309 = arith.constant 0 : index
    %292 = vector.load %arg9[%c0_308, %c0_309] : memref<256x128xf32, #tpu.memory_space<vmem>>, vector<256x128xf32>
    tpu.vector_store %arg9[%c0_308, %c0_309], %291 {strides = array<i32>} : memref<256x128xf32, #tpu.memory_space<vmem>>, vector<256x128xf32>,
    %c0_310 = arith.constant 0 : index
    %c0_311 = arith.constant 0 : index
    %293 = vector.load %arg9[%c0_310, %c0_311] : memref<256x128xf32, #tpu.memory_space<vmem>>, vector<256x128xf32>
    %c0_312 = arith.constant 0 : index
    %c0_313 = arith.constant 0 : index
    %c0_314 = arith.constant 0 : index
    %294 = vector.load %arg8[%c0_312, %c0_313, %c0_314] : memref<1x256x128xf32, #tpu.memory_space<vmem>>, vector<1x256x128xf32>
    %295 = vector.shape_cast %294 : vector<1x256x128xf32> to vector<256x128xf32>
    %296 = vector.shape_cast %293 : vector<256x128xf32> to vector<1x256x128xf32>
    tpu.vector_store %arg8[%c0_312, %c0_313, %c0_314], %296 {strides = array<i32>} : memref<1x256x128xf32, #tpu.memory_space<vmem>>, vector<1x256x128xf32>,
    return
  }
  func.func @transform_0(%arg0: i32) -> (i32, i32, i32) {
    %c0_i32 = arith.constant 0 : i32
    %c0_i32_0 = arith.constant 0 : i32
    %c0_i32_1 = arith.constant 0 : i32
    return %arg0, %c0_i32, %c0_i32_0 : i32, i32, i32
  }
  func.func @transform_1(%arg0: i32) -> (i32, i32, i32) {
    %c0_i32 = arith.constant 0 : i32
    %c0_i32_0 = arith.constant 0 : i32
    %c0_i32_1 = arith.constant 0 : i32
    %c0_i32_2 = arith.constant 0 : i32
    return %c0_i32, %c0_i32_0, %c0_i32_1 : i32, i32, i32
  }
  func.func @transform_2(%arg0: i32) -> (i32, i32, i32) {
    %c0_i32 = arith.constant 0 : i32
    %c0_i32_0 = arith.constant 0 : i32
    %c0_i32_1 = arith.constant 0 : i32
    %c0_i32_2 = arith.constant 0 : i32
    return %c0_i32, %c0_i32_0, %c0_i32_1 : i32, i32, i32
  }
  func.func @transform_3(%arg0: i32) -> (i32, i32, i32) {
    %c0_i32 = arith.constant 0 : i32
    %c0_i32_0 = arith.constant 0 : i32
    %c0_i32_1 = arith.constant 0 : i32
    %c0_i32_2 = arith.constant 0 : i32
    return %c0_i32, %c0_i32_0, %c0_i32_1 : i32, i32, i32
  }
  func.func @transform_4(%arg0: i32) -> (i32, i32, i32) {
    %c0_i32 = arith.constant 0 : i32
    %c0_i32_0 = arith.constant 0 : i32
    %c0_i32_1 = arith.constant 0 : i32
    %c0_i32_2 = arith.constant 0 : i32
    return %c0_i32, %c0_i32_0, %c0_i32_1 : i32, i32, i32
  }
  func.func @transform_5(%arg0: i32) -> (i32, i32, i32) {
    %c0_i32 = arith.constant 0 : i32
    %c0_i32_0 = arith.constant 0 : i32
    %c0_i32_1 = arith.constant 0 : i32
    %c0_i32_2 = arith.constant 0 : i32
    return %c0_i32, %c0_i32_0, %c0_i32_1 : i32, i32, i32
  }
  func.func @transform_6(%arg0: i32) -> (i32, i32, i32, i32) {
    %c0_i32 = arith.constant 0 : i32
    %c0_i32_0 = arith.constant 0 : i32
    %c0_i32_1 = arith.constant 0 : i32
    %c0_i32_2 = arith.constant 0 : i32
    %c0_i32_3 = arith.constant 0 : i32
    return %c0_i32, %c0_i32_0, %c0_i32_1, %c0_i32_2 : i32, i32, i32, i32
  }
  func.func @transform_7(%arg0: i32) -> (i32, i32, i32) {
    %c0_i32 = arith.constant 0 : i32
    %c0_i32_0 = arith.constant 0 : i32
    %c0_i32_1 = arith.constant 0 : i32
    return %arg0, %c0_i32, %c0_i32_0 : i32, i32, i32
  }
}

</mosaic_0001>

<llo_original>
// kernel: tpu_custom_call.1
$region0: #{tpu_custom_call.1}
  #allocation0 [shape = 'u32[]', space=smem, size = 0x4, offset = 0x4, fixed_abs, tag = 'smem constant byte address 0x4 - core index']
  #allocation1 [shape = 'u32[144,128]{1,0:T(1,128)}', space=vmem, size = 0x12000, scoped, tag = 'internal scratch']
  #allocation2 [shape = 'f32[256,128]{1,0:T(8,128)}', space=vmem, size = 0x20000, scoped, tag = 'scratch operand']
  #allocation3 [shape = 'f32[18,18,16]{2,1,0:T(8,128)}', space=vmem, size = 0x36000, scoped, tag = 'scratch operand']
  %s0 = inlined_call_operand.hbm [shape: f32[2,256,128], index: 0, kind: input, shape index: {}]
  %s1 = inlined_call_operand.vmem [shape: f32[3,1,128], index: 1, kind: input, shape index: {}]
  %s2 = inlined_call_operand.vmem [shape: f32[3,1,128], index: 2, kind: input, shape index: {}]
  %s3 = inlined_call_operand.vmem [shape: bf16[3,128,16], index: 3, kind: input, shape index: {}]
  %s4 = inlined_call_operand.vmem [shape: f32[3,1,16], index: 4, kind: input, shape index: {}]
  %s5 = inlined_call_operand.hbm [shape: f32[3,1,16], index: 5, kind: input, shape index: {}]
  %s6 = inlined_call_operand.vmem [shape: bf16[3,9,16,128], index: 6, kind: input, shape index: {}]
  %s7 = inlined_call_operand.hbm [shape: f32[2,256,128], index: 7, kind: output, shape index: {}]
  %s8 = sld [smem:[#allocation0]]
  $region69: #{tpu_custom_call.1} parent=0
    _
  %s10 = ssub.s32 1, %s8
  %s11 = scalar_select 0, %s10, %s8
  $region1: #{tpu_custom_call.1} parent=0
    #allocation4 [shape = 'u8[262144]{0}', space=vmem, size = 0x40000, scoped, tag = 'input window, operand 0']
    #allocation5 [shape = 's32[2]{0}', space=sflag, size = 0x8, scoped, tag = 'scoped memory for tpu_custom_call.1']
    #allocation6 [shape = 's32[2]{0}', space=sflag, size = 0x8, scoped, tag = 'scoped memory for tpu_custom_call.1']
    #allocation7 [shape = 'u8[1536]{0}', space=vmem, size = 0x800, scoped, tag = 'input window, operand 5, single buffered']
    #allocation8 [shape = 's32[1]{0}', space=sflag, size = 0x4, scoped, tag = 'scoped memory for tpu_custom_call.1']
    #allocation9 [shape = 'u8[262144]{0}', space=vmem, size = 0x40000, scoped, tag = 'output window, operand 0']
    %12 = vsyncpa [#allocation5], 0
    %s13 = scalar_lea.sflag [#allocation5], 1
    %14 = vsyncpa %s13, 0
    %15 = vsyncpa [#allocation8], 0
    %16 = vsyncpa [#allocation6], 0
    %s17 = scalar_lea.sflag [#allocation6], 1
    %18 = vsyncpa %s17, 0
    loop: start=0, step=1, limit=4
    $region2: #{tpu_custom_call.1} parent=1 // loop_pre_header
      _
    $region3: #{tpu_custom_call.1} parent=1 // loop_header
      %s20 = sphi 0, %s24
      %p21 = scmp.ge.s32.totalorder %s20, 4
      %s30 = sphi 0, %s32
      %s33 = sphi 0, %s30
      %s34 = sphi 0, %s33
      %s50 = sphi 0, %s34
      %s54 = sphi 0, %s54
      %s56 = sphi 0, %s54
      %s57 = sphi 0, %s56
      %s71 = sphi 0, %s57
      %s75 = sphi 0, %s75
      %s77 = sphi 0, %s75
      %s78 = sphi 0, %s77
      %s92 = sphi 0, %s78
      %s96 = sphi 0, %s96
      %s98 = sphi 0, %s96
      %s99 = sphi 0, %s98
      %s113 = sphi 0, %s99
      %s117 = sphi 0, %s117
      %s119 = sphi 0, %s117
      %s120 = sphi 0, %s119
      %s134 = sphi 0, %s120
      %s138 = sphi 0, %s138
      %s140 = sphi 0, %s138
      %s141 = sphi 0, %s140
      %s155 = sphi 0, %s141
      %s159 = sphi 0, %s159
      %s161 = sphi 0, %s159
      %s162 = sphi 0, %s161
      %s176 = sphi 0, %s162
      %s182 = sphi 0, %s184
      %s185 = sphi 0, %s182
      %s186 = sphi 0, %s185
      %s202 = sphi 0, %s186
    $region4: #{tpu_custom_call.1} parent=1 // loop_header_branch
      %23 = sbr.rel (%p21) target = $region8
    $region5: #{tpu_custom_call.1} parent=1 // loop_body
      %s25 = ssub.s32 %s20, 1
      %s26 = ssub.s32 %s20, 2
      %s27 = sadd.s32 %s20, 1
      %s28 = ssub.s32 %s20, %s27
      %p29 = scmp.eq.s32.totalorder %s28, 0
      %s31 = sadd.s32 %s30, 1
      %s32 = scalar_select %p29, %s30, %s31
      %p35 = pneg %p29
      %p36 = scmp.eq.s32.totalorder %s20, 1
      %p37 = por %p35, %p36
      %p38 = scmp.ne.s32.totalorder %s30, %s33
      %p39 = scmp.eq.s32.totalorder %s20, 0
      %p40 = por %p38, %p39
      %p41 = scmp.ne.s32.totalorder %s30, %s33
      %p42 = scmp.eq.s32.totalorder %s25, 1
      %p43 = por %p41, %p42
      %p44 = scmp.ne.s32.totalorder %s33, %s34
      %p45 = scmp.eq.s32.totalorder %s25, 0
      %p46 = por %p44, %p45
      %p47 = scmp.ne.s32.totalorder %s33, %s34
      %p48 = scmp.eq.s32.totalorder %s26, 1
      %p49 = por %p47, %p48
      %p51 = scmp.ne.s32.totalorder %s34, %s50
      %p52 = scmp.eq.s32.totalorder %s26, 0
      %p53 = por %p51, %p52
      %s55 = sadd.s32 %s54, 1
      %p58 = scmp.eq.s32.totalorder %s20, 1
      %p59 = scmp.ne.s32.totalorder %s54, %s56
      %p60 = scmp.eq.s32.totalorder %s20, 0
      %p61 = por %p59, %p60
      %p62 = scmp.ne.s32.totalorder %s54, %s56
      %p63 = scmp.eq.s32.totalorder %s25, 1
      %p64 = por %p62, %p63
      %p65 = scmp.ne.s32.totalorder %s56, %s57
      %p66 = scmp.eq.s32.totalorder %s25, 0
      %p67 = por %p65, %p66
      %p68 = scmp.ne.s32.totalorder %s56, %s57
      %p69 = scmp.eq.s32.totalorder %s26, 1
      %p70 = por %p68, %p69
      %p72 = scmp.ne.s32.totalorder %s57, %s71
      %p73 = scmp.eq.s32.totalorder %s26, 0
      %p74 = por %p72, %p73
      %s76 = sadd.s32 %s75, 1
      %p79 = scmp.eq.s32.totalorder %s20, 1
      %p80 = scmp.ne.s32.totalorder %s75, %s77
      %p81 = scmp.eq.s32.totalorder %s20, 0
      %p82 = por %p80, %p81
      %p83 = scmp.ne.s32.totalorder %s75, %s77
      %p84 = scmp.eq.s32.totalorder %s25, 1
      %p85 = por %p83, %p84
      %p86 = scmp.ne.s32.totalorder %s77, %s78
      %p87 = scmp.eq.s32.totalorder %s25, 0
      %p88 = por %p86, %p87
      %p89 = scmp.ne.s32.totalorder %s77, %s78
      %p90 = scmp.eq.s32.totalorder %s26, 1
      %p91 = por %p89, %p90
      %p93 = scmp.ne.s32.totalorder %s78, %s92
      %p94 = scmp.eq.s32.totalorder %s26, 0
      %p95 = por %p93, %p94
      %s97 = sadd.s32 %s96, 1
      %p100 = scmp.eq.s32.totalorder %s20, 1
      %p101 = scmp.ne.s32.totalorder %s96, %s98
      %p102 = scmp.eq.s32.totalorder %s20, 0
      %p103 = por %p101, %p102
      %p104 = scmp.ne.s32.totalorder %s96, %s98
      %p105 = scmp.eq.s32.totalorder %s25, 1
      %p106 = por %p104, %p105
      %p107 = scmp.ne.s32.totalorder %s98, %s99
      %p108 = scmp.eq.s32.totalorder %s25, 0
      %p109 = por %p107, %p108
      %p110 = scmp.ne.s32.totalorder %s98, %s99
      %p111 = scmp.eq.s32.totalorder %s26, 1
      %p112 = por %p110, %p111
      %p114 = scmp.ne.s32.totalorder %s99, %s113
      %p115 = scmp.eq.s32.totalorder %s26, 0
      %p116 = por %p114, %p115
      %s118 = sadd.s32 %s117, 1
      %p121 = scmp.eq.s32.totalorder %s20, 1
      %p122 = scmp.ne.s32.totalorder %s117, %s119
      %p123 = scmp.eq.s32.totalorder %s20, 0
      %p124 = por %p122, %p123
      %p125 = scmp.ne.s32.totalorder %s117, %s119
      %p126 = scmp.eq.s32.totalorder %s25, 1
      %p127 = por %p125, %p126
      %p128 = scmp.ne.s32.totalorder %s119, %s120
      %p129 = scmp.eq.s32.totalorder %s25, 0
      %p130 = por %p128, %p129
      %p131 = scmp.ne.s32.totalorder %s119, %s120
      %p132 = scmp.eq.s32.totalorder %s26, 1
      %p133 = por %p131, %p132
      %p135 = scmp.ne.s32.totalorder %s120, %s134
      %p136 = scmp.eq.s32.totalorder %s26, 0
      %p137 = por %p135, %p136
      %s139 = sadd.s32 %s138, 1
      %p142 = scmp.eq.s32.totalorder %s20, 1
      %p143 = scmp.ne.s32.totalorder %s138, %s140
      %p144 = scmp.eq.s32.totalorder %s20, 0
      %p145 = por %p143, %p144
      %p146 = scmp.ne.s32.totalorder %s138, %s140
      %p147 = scmp.eq.s32.totalorder %s25, 1
      %p148 = por %p146, %p147
      %p149 = scmp.ne.s32.totalorder %s140, %s141
      %p150 = scmp.eq.s32.totalorder %s25, 0
      %p151 = por %p149, %p150
      %p152 = scmp.ne.s32.totalorder %s140, %s141
      %p153 = scmp.eq.s32.totalorder %s26, 1
      %p154 = por %p152, %p153
      %p156 = scmp.ne.s32.totalorder %s141, %s155
      %p157 = scmp.eq.s32.totalorder %s26, 0
      %p158 = por %p156, %p157
      %s160 = sadd.s32 %s159, 1
      %p163 = scmp.eq.s32.totalorder %s20, 1
      %p164 = scmp.ne.s32.totalorder %s159, %s161
      %p165 = scmp.eq.s32.totalorder %s20, 0
      %p166 = por %p164, %p165
      %p167 = scmp.ne.s32.totalorder %s159, %s161
      %p168 = scmp.eq.s32.totalorder %s25, 1
      %p169 = por %p167, %p168
      %p170 = scmp.ne.s32.totalorder %s161, %s162
      %p171 = scmp.eq.s32.totalorder %s25, 0
      %p172 = por %p170, %p171
      %p173 = scmp.ne.s32.totalorder %s161, %s162
      %p174 = scmp.eq.s32.totalorder %s26, 1
      %p175 = por %p173, %p174
      %p177 = scmp.ne.s32.totalorder %s162, %s176
      %p178 = scmp.eq.s32.totalorder %s26, 0
      %p179 = por %p177, %p178
      %s180 = ssub.s32 %s20, %s27
      %p181 = scmp.eq.s32.totalorder %s180, 0
      %s183 = sadd.s32 %s182, 1
      %s184 = scalar_select %p181, %s182, %s183
      %p187 = pneg %p181
      %p188 = scmp.eq.s32.totalorder %s20, 1
      %p189 = por %p187, %p188
      %p190 = scmp.ne.s32.totalorder %s182, %s185
      %p191 = scmp.eq.s32.totalorder %s20, 0
      %p192 = por %p190, %p191
      %p193 = scmp.ne.s32.totalorder %s182, %s185
      %p194 = scmp.eq.s32.totalorder %s25, 1
      %p195 = por %p193, %p194
      %p196 = scmp.ne.s32.totalorder %s185, %s186
      %p197 = scmp.eq.s32.totalorder %s25, 0
      %p198 = por %p196, %p197
      %p199 = scmp.ne.s32.totalorder %s185, %s186
      %p200 = scmp.eq.s32.totalorder %s26, 1
      %p201 = por %p199, %p200
      %p203 = scmp.ne.s32.totalorder %s186, %s202
      %p204 = scmp.eq.s32.totalorder %s26, 0
      %p205 = por %p203, %p204
      %p206 = scmp.le.s32.totalorder 1, %s20
      %p207 = scmp.lt.s32.totalorder %s20, 3
      %p208 = pnand %p206, %p207
      %p209 = pneg %p208
      // Predicated region
      $region9: #{tpu_custom_call.1} parent=5 // pred_check
        _
      $region10: #{tpu_custom_call.1} parent=5 // pred_check_branch
        %211 = sbr.rel (%p208) target = $region12
      $region11: #{tpu_custom_call.1} parent=5 // pred_region
        %s212 = ssub.s32 %s20, 1
        // Predicated region
        $region13: #{tpu_custom_call.1} parent=11 // pred_check
          %p213 = pneg %p67
        $region14: #{tpu_custom_call.1} parent=11 // pred_check_branch
          %215 = sbr.rel (%p213) target = $region16
        $region15: #{tpu_custom_call.1} parent=11 // pred_region
          _
        $region16: #{tpu_custom_call.1} parent=11 // pred_fallthru
          _
        // Predicated region
        $region17: #{tpu_custom_call.1} parent=11 // pred_check
          %p216 = pneg %p88
        $region18: #{tpu_custom_call.1} parent=11 // pred_check_branch
          %218 = sbr.rel (%p216) target = $region20
        $region19: #{tpu_custom_call.1} parent=11 // pred_region
          _
        $region20: #{tpu_custom_call.1} parent=11 // pred_fallthru
          _
        // Predicated region
        $region21: #{tpu_custom_call.1} parent=11 // pred_check
          %p219 = pneg %p109
        $region22: #{tpu_custom_call.1} parent=11 // pred_check_branch
          %221 = sbr.rel (%p219) target = $region24
        $region23: #{tpu_custom_call.1} parent=11 // pred_region
          _
        $region24: #{tpu_custom_call.1} parent=11 // pred_fallthru
          _
        // Predicated region
        $region25: #{tpu_custom_call.1} parent=11 // pred_check
          %p222 = pneg %p130
        $region26: #{tpu_custom_call.1} parent=11 // pred_check_branch
          %224 = sbr.rel (%p222) target = $region28
        $region27: #{tpu_custom_call.1} parent=11 // pred_region
          _
        $region28: #{tpu_custom_call.1} parent=11 // pred_fallthru
          _
        // Predicated region
        $region29: #{tpu_custom_call.1} parent=11 // pred_check
          %p225 = pneg %p151
        $region30: #{tpu_custom_call.1} parent=11 // pred_check_branch
          %227 = sbr.rel (%p225) target = $region32
        $region31: #{tpu_custom_call.1} parent=11 // pred_region
          %s229 = ssub.s32 48, 48
          %230 = vsyncadd [#allocation8], %s229
          %s231 = sshll.u32 [#allocation7], 4
          %s232 = int_to_ptr.vmem [resolvable:$true] %s231
          %237 = dma.hbm_to_vmem [thread:$0]  %s5, 48, %s232, [#allocation8], 16, 16, 1
        $region32: #{tpu_custom_call.1} parent=11 // pred_fallthru
          _
        // Predicated region
        $region33: #{tpu_custom_call.1} parent=11 // pred_check
          %p238 = pneg %p172
        $region34: #{tpu_custom_call.1} parent=11 // pred_check_branch
          %240 = sbr.rel (%p238) target = $region36
        $region35: #{tpu_custom_call.1} parent=11 // pred_region
          _
        $region36: #{tpu_custom_call.1} parent=11 // pred_fallthru
          _
      $region12: #{tpu_custom_call.1} parent=5 // pred_fallthru
        _
      %p241 = scmp.lt.s32.totalorder %s20, 2
      // Predicated region
      $region37: #{tpu_custom_call.1} parent=5 // pred_check
        %p242 = pneg %p241
      $region38: #{tpu_custom_call.1} parent=5 // pred_check_branch
        %244 = sbr.rel (%p242) target = $region40
      $region39: #{tpu_custom_call.1} parent=5 // pred_region
        // Predicated region
        $region41: #{tpu_custom_call.1} parent=39 // pred_check
          %p245 = pneg %p40
        $region42: #{tpu_custom_call.1} parent=39 // pred_check_branch
          %247 = sbr.rel (%p245) target = $region44
        $region43: #{tpu_custom_call.1} parent=39 // pred_region
          %s248 = sand.u32 %s30, 1
          %s249 = scalar_lea.sflag [#allocation5], %s248
          %s250 = sand.u32 %s30, 1
          %s251 = smul.addr %s250, 256
          %s252 = scalar_lea.vmem [#allocation4], %s251
          %s254 = ssub.s32 4096, 4096
          %255 = vsyncadd %s249, %s254
          %s256 = smul.addr %s20, 32
          %s257 = smul.addr %s256, 128
          %s258 = scalar_lea.hbm %s0, %s257
          %s259 = sshll.u32 %s252, 4
          %s260 = int_to_ptr.vmem [resolvable:$true] %s259
          %265 = dma.hbm_to_vmem [thread:$0]  %s258, 4096, %s260, %s249, 128, 128, 8
        $region44: #{tpu_custom_call.1} parent=39 // pred_fallthru
          _
      $region40: #{tpu_custom_call.1} parent=5 // pred_fallthru
        _
      %p266 = scmp.le.s32.totalorder 1, %s20
      %p267 = scmp.lt.s32.totalorder %s20, 3
      %p268 = pnand %p266, %p267
      %p269 = pneg %p268
      // Predicated region
      $region45: #{tpu_custom_call.1} parent=5 // pred_check
        _
      $region46: #{tpu_custom_call.1} parent=5 // pred_check_branch
        %271 = sbr.rel (%p268) target = $region48
      $region47: #{tpu_custom_call.1} parent=5 // pred_region
        %s272 = ssub.s32 %s20, 1
        %s273 = sand.u32 %s33, 1
        %s274 = scalar_lea.sflag [#allocation5], %s273
        %s275 = sand.u32 %s33, 1
        %s276 = smul.addr %s275, 256
        %s277 = scalar_lea.vmem [#allocation4], %s276
        // Predicated region
        $region49: #{tpu_custom_call.1} parent=47 // pred_check
          %p278 = pneg %p46
        $region50: #{tpu_custom_call.1} parent=47 // pred_check_branch
          %280 = sbr.rel (%p278) target = $region52
        $region51: #{tpu_custom_call.1} parent=47 // pred_region
          %281 = dma.done %s274, 4096
        $region52: #{tpu_custom_call.1} parent=47 // pred_fallthru
          _
        // Predicated region
        $region53: #{tpu_custom_call.1} parent=47 // pred_check
          %p282 = pneg %p151
        $region54: #{tpu_custom_call.1} parent=47 // pred_check_branch
          %284 = sbr.rel (%p282) target = $region56
        $region55: #{tpu_custom_call.1} parent=47 // pred_region
          %285 = dma.done [#allocation8], 48
        $region56: #{tpu_custom_call.1} parent=47 // pred_fallthru
          _
        %s286 = sand.u32 %s33, 1
        %s287 = scalar_lea.sflag [#allocation5], %s286
        %s288 = sand.u32 %s33, 1
        %s289 = smul.addr %s288, 256
        %s290 = scalar_lea.vmem [#allocation4], %s289
        %p291 = pneg %p46
        %p292 = pneg %p43
        %p293 = pneg %p67
        %p294 = pneg %p64
        %p295 = pneg %p88
        %p296 = pneg %p85
        %p297 = pneg %p109
        %p298 = pneg %p106
        %p299 = pneg %p130
        %p300 = pneg %p127
        %p301 = pneg %p151
        %p302 = pneg %p148
        %p303 = pneg %p172
        %p304 = pneg %p169
        %p305 = pneg %p198
        %p306 = pneg %p195
        %s307 = sand.u32 %s185, 1
        %s308 = scalar_lea.sflag [#allocation6], %s307
        %s309 = sand.u32 %s185, 1
        %s310 = smul.addr %s309, 256
        %s311 = scalar_lea.vmem [#allocation9], %s310
        %v313 = vld [vmem:[%s277] sm:$0xff]
        %v314 = vld [vmem:[%s277 + $0x8] sm:$0xff]
        %v315 = vld [vmem:[%s277 + $0x10] sm:$0xff]
        %v316 = vld [vmem:[%s277 + $0x18] sm:$0xff]
        %v317 = vld [vmem:[%s277 + $0x20] sm:$0xff]
        %v318 = vld [vmem:[%s277 + $0x28] sm:$0xff]
        %v319 = vld [vmem:[%s277 + $0x30] sm:$0xff]
        %v320 = vld [vmem:[%s277 + $0x38] sm:$0xff]
        %v321 = vld [vmem:[%s277 + $0x40] sm:$0xff]
        %v322 = vld [vmem:[%s277 + $0x48] sm:$0xff]
        %v323 = vld [vmem:[%s277 + $0x50] sm:$0xff]
        %v324 = vld [vmem:[%s277 + $0x58] sm:$0xff]
        %v325 = vld [vmem:[%s277 + $0x60] sm:$0xff]
        %v326 = vld [vmem:[%s277 + $0x68] sm:$0xff]
        %v327 = vld [vmem:[%s277 + $0x70] sm:$0xff]
        %v328 = vld [vmem:[%s277 + $0x78] sm:$0xff]
        %v329 = vld [vmem:[%s277 + $0x80] sm:$0xff]
        %v330 = vld [vmem:[%s277 + $0x88] sm:$0xff]
        %v331 = vld [vmem:[%s277 + $0x90] sm:$0xff]
        %v332 = vld [vmem:[%s277 + $0x98] sm:$0xff]
        %v333 = vld [vmem:[%s277 + $0xa0] sm:$0xff]
        %v334 = vld [vmem:[%s277 + $0xa8] sm:$0xff]
        %v335 = vld [vmem:[%s277 + $0xb0] sm:$0xff]
        %v336 = vld [vmem:[%s277 + $0xb8] sm:$0xff]
        %v337 = vld [vmem:[%s277 + $0xc0] sm:$0xff]
        %v338 = vld [vmem:[%s277 + $0xc8] sm:$0xff]
        %v339 = vld [vmem:[%s277 + $0xd0] sm:$0xff]
        %v340 = vld [vmem:[%s277 + $0xd8] sm:$0xff]
        %v341 = vld [vmem:[%s277 + $0xe0] sm:$0xff]
        %v342 = vld [vmem:[%s277 + $0xe8] sm:$0xff]
        %v343 = vld [vmem:[%s277 + $0xf0] sm:$0xff]
        %v344 = vld [vmem:[%s277 + $0xf8] sm:$0xff]
        %345 = vst [vmem:[#allocation2] sm:$0xff] %v313
        %346 = vst [vmem:[#allocation2 + $0x8] sm:$0xff] %v314
        %347 = vst [vmem:[#allocation2 + $0x10] sm:$0xff] %v315
        %348 = vst [vmem:[#allocation2 + $0x18] sm:$0xff] %v316
        %349 = vst [vmem:[#allocation2 + $0x20] sm:$0xff] %v317
        %350 = vst [vmem:[#allocation2 + $0x28] sm:$0xff] %v318
        %351 = vst [vmem:[#allocation2 + $0x30] sm:$0xff] %v319
        %352 = vst [vmem:[#allocation2 + $0x38] sm:$0xff] %v320
        %353 = vst [vmem:[#allocation2 + $0x40] sm:$0xff] %v321
        %354 = vst [vmem:[#allocation2 + $0x48] sm:$0xff] %v322
        %355 = vst [vmem:[#allocation2 + $0x50] sm:$0xff] %v323
        %356 = vst [vmem:[#allocation2 + $0x58] sm:$0xff] %v324
        %357 = vst [vmem:[#allocation2 + $0x60] sm:$0xff] %v325
        %358 = vst [vmem:[#allocation2 + $0x68] sm:$0xff] %v326
        %359 = vst [vmem:[#allocation2 + $0x70] sm:$0xff] %v327
        %360 = vst [vmem:[#allocation2 + $0x78] sm:$0xff] %v328
        %361 = vst [vmem:[#allocation2 + $0x80] sm:$0xff] %v329
        %362 = vst [vmem:[#allocation2 + $0x88] sm:$0xff] %v330
        %363 = vst [vmem:[#allocation2 + $0x90] sm:$0xff] %v331
        %364 = vst [vmem:[#allocation2 + $0x98] sm:$0xff] %v332
        %365 = vst [vmem:[#allocation2 + $0xa0] sm:$0xff] %v333
        %366 = vst [vmem:[#allocation2 + $0xa8] sm:$0xff] %v334
        %367 = vst [vmem:[#allocation2 + $0xb0] sm:$0xff] %v335
        %368 = vst [vmem:[#allocation2 + $0xb8] sm:$0xff] %v336
        %369 = vst [vmem:[#allocation2 + $0xc0] sm:$0xff] %v337
        %370 = vst [vmem:[#allocation2 + $0xc8] sm:$0xff] %v338
        %371 = vst [vmem:[#allocation2 + $0xd0] sm:$0xff] %v339
        %372 = vst [vmem:[#allocation2 + $0xd8] sm:$0xff] %v340
        %373 = vst [vmem:[#allocation2 + $0xe0] sm:$0xff] %v341
        %374 = vst [vmem:[#allocation2 + $0xe8] sm:$0xff] %v342
        %375 = vst [vmem:[#allocation2 + $0xf0] sm:$0xff] %v343
        %376 = vst [vmem:[#allocation2 + $0xf8] sm:$0xff] %v344
        %vm377 = vcmask 130048
        %378 = vst.msk [vmem:[#allocation3] sm:$0xff] %vm377, 0.0
        %379 = vst.msk [vmem:[#allocation3 + $0x8] sm:$0xff] %vm377, 0.0
        %vm380 = vcmask 123904
        %381 = vst.msk [vmem:[#allocation3 + $0x10] sm:$0x3] %vm380, 0.0
        %s382 = scalar_lea.vmem [#allocation3], 408
        %383 = vst.msk [vmem:[%s382] sm:$0xff] %vm377, 0.0
        %384 = vst.msk [vmem:[%s382 + $0x8] sm:$0xff] %vm377, 0.0
        %385 = vst.msk [vmem:[%s382 + $0x10] sm:$0x3] %vm380, 0.0
        %vm386 = vcmask 122880
        %387 = vst.msk [vmem:[#allocation3] sm:$0x1] %vm386, 0.0
        %388 = vst.msk [vmem:[#allocation3 + $0x18] sm:$0x1] %vm386, 0.0
        %389 = vst.msk [vmem:[#allocation3 + $0x30] sm:$0x1] %vm386, 0.0
        %390 = vst.msk [vmem:[#allocation3 + $0x48] sm:$0x1] %vm386, 0.0
        %391 = vst.msk [vmem:[#allocation3 + $0x60] sm:$0x1] %vm386, 0.0
        %392 = vst.msk [vmem:[#allocation3 + $0x78] sm:$0x1] %vm386, 0.0
        %393 = vst.msk [vmem:[#allocation3 + $0x90] sm:$0x1] %vm386, 0.0
        %394 = vst.msk [vmem:[#allocation3 + $0xa8] sm:$0x1] %vm386, 0.0
        %395 = vst.msk [vmem:[#allocation3 + $0xc0] sm:$0x1] %vm386, 0.0
        %396 = vst.msk [vmem:[#allocation3 + $0xd8] sm:$0x1] %vm386, 0.0
        %397 = vst.msk [vmem:[#allocation3 + $0xf0] sm:$0x1] %vm386, 0.0
        %398 = vst.msk [vmem:[#allocation3 + $0x108] sm:$0x1] %vm386, 0.0
        %399 = vst.msk [vmem:[#allocation3 + $0x120] sm:$0x1] %vm386, 0.0
        %400 = vst.msk [vmem:[#allocation3 + $0x138] sm:$0x1] %vm386, 0.0
        %401 = vst.msk [vmem:[#allocation3 + $0x150] sm:$0x1] %vm386, 0.0
        %402 = vst.msk [vmem:[#allocation3 + $0x168] sm:$0x1] %vm386, 0.0
        %403 = vst.msk [vmem:[#allocation3 + $0x180] sm:$0x1] %vm386, 0.0
        %404 = vst.msk [vmem:[#allocation3 + $0x198] sm:$0x1] %vm386, 0.0
        %405 = vst.msk [vmem:[#allocation3 + $0x11] sm:$0x1] %vm386, 0.0
        %406 = vst.msk [vmem:[#allocation3 + $0x29] sm:$0x1] %vm386, 0.0
        %407 = vst.msk [vmem:[#allocation3 + $0x41] sm:$0x1] %vm386, 0.0
        %408 = vst.msk [vmem:[#allocation3 + $0x59] sm:$0x1] %vm386, 0.0
        %409 = vst.msk [vmem:[#allocation3 + $0x71] sm:$0x1] %vm386, 0.0
        %410 = vst.msk [vmem:[#allocation3 + $0x89] sm:$0x1] %vm386, 0.0
        %411 = vst.msk [vmem:[#allocation3 + $0xa1] sm:$0x1] %vm386, 0.0
        %412 = vst.msk [vmem:[#allocation3 + $0xb9] sm:$0x1] %vm386, 0.0
        %413 = vst.msk [vmem:[#allocation3 + $0xd1] sm:$0x1] %vm386, 0.0
        %414 = vst.msk [vmem:[#allocation3 + $0xe9] sm:$0x1] %vm386, 0.0
        %415 = vst.msk [vmem:[#allocation3 + $0x101] sm:$0x1] %vm386, 0.0
        %416 = vst.msk [vmem:[#allocation3 + $0x119] sm:$0x1] %vm386, 0.0
        %417 = vst.msk [vmem:[#allocation3 + $0x131] sm:$0x1] %vm386, 0.0
        %418 = vst.msk [vmem:[#allocation3 + $0x149] sm:$0x1] %vm386, 0.0
        %419 = vst.msk [vmem:[#allocation3 + $0x161] sm:$0x1] %vm386, 0.0
        %420 = vst.msk [vmem:[#allocation3 + $0x179] sm:$0x1] %vm386, 0.0
        %421 = vst.msk [vmem:[#allocation3 + $0x191] sm:$0x1] %vm386, 0.0
        %422 = vst.msk [vmem:[#allocation3 + $0x1a9] sm:$0x1] %vm386, 0.0
        %v423 = vld [vmem:[#allocation2] sm:$0xff]
        %v424 = vld [vmem:[#allocation2 + $0x8] sm:$0xff]
        %v425 = vld [vmem:[#allocation2 + $0x10] sm:$0xff]
        %v426 = vld [vmem:[#allocation2 + $0x18] sm:$0xff]
        %v427 = vld [vmem:[#allocation2 + $0x20] sm:$0xff]
        %v428 = vld [vmem:[#allocation2 + $0x28] sm:$0xff]
        %v429 = vld [vmem:[#allocation2 + $0x30] sm:$0xff]
        %v430 = vld [vmem:[#allocation2 + $0x38] sm:$0xff]
        %v431 = vld [vmem:[#allocation2 + $0x40] sm:$0xff]
        %v432 = vld [vmem:[#allocation2 + $0x48] sm:$0xff]
        %v433 = vld [vmem:[#allocation2 + $0x50] sm:$0xff]
        %v434 = vld [vmem:[#allocation2 + $0x58] sm:$0xff]
        %v435 = vld [vmem:[#allocation2 + $0x60] sm:$0xff]
        %v436 = vld [vmem:[#allocation2 + $0x68] sm:$0xff]
        %v437 = vld [vmem:[#allocation2 + $0x70] sm:$0xff]
        %v438 = vld [vmem:[#allocation2 + $0x78] sm:$0xff]
        %v439 = vld [vmem:[#allocation2 + $0x80] sm:$0xff]
        %v440 = vld [vmem:[#allocation2 + $0x88] sm:$0xff]
        %v441 = vld [vmem:[#allocation2 + $0x90] sm:$0xff]
        %v442 = vld [vmem:[#allocation2 + $0x98] sm:$0xff]
        %v443 = vld [vmem:[#allocation2 + $0xa0] sm:$0xff]
        %v444 = vld [vmem:[#allocation2 + $0xa8] sm:$0xff]
        %v445 = vld [vmem:[#allocation2 + $0xb0] sm:$0xff]
        %v446 = vld [vmem:[#allocation2 + $0xb8] sm:$0xff]
        %v447 = vld [vmem:[#allocation2 + $0xc0] sm:$0xff]
        %v448 = vld [vmem:[#allocation2 + $0xc8] sm:$0xff]
        %v449 = vld [vmem:[#allocation2 + $0xd0] sm:$0xff]
        %v450 = vld [vmem:[#allocation2 + $0xd8] sm:$0xff]
        %v451 = vld [vmem:[#allocation2 + $0xe0] sm:$0xff]
        %v452 = vld [vmem:[#allocation2 + $0xe8] sm:$0xff]
        %v453 = vld [vmem:[#allocation2 + $0xf0] sm:$0xff]
        %v454 = vld [vmem:[#allocation2 + $0xf8] sm:$0xff]
        %v455 = vld [vmem:[%s1] sm:$0x1]
        %v457 = vlaneseq
        %v458 = vshrl.u32 %v457, 7
        %v459 = vsub.s32 0, %v458
        %v460 = vrot.slane %v455, %v459
        %v462 = vmul.f32 %v423, %v460
        %v463 = vmul.f32 %v424, %v460
        %v464 = vmul.f32 %v425, %v460
        %v465 = vmul.f32 %v426, %v460
        %v466 = vmul.f32 %v427, %v460
        %v467 = vmul.f32 %v428, %v460
        %v468 = vmul.f32 %v429, %v460
        %v469 = vmul.f32 %v430, %v460
        %v470 = vmul.f32 %v431, %v460
        %v471 = vmul.f32 %v432, %v460
        %v472 = vmul.f32 %v433, %v460
        %v473 = vmul.f32 %v434, %v460
        %v474 = vmul.f32 %v435, %v460
        %v475 = vmul.f32 %v436, %v460
        %v476 = vmul.f32 %v437, %v460
        %v477 = vmul.f32 %v438, %v460
        %v478 = vmul.f32 %v439, %v460
        %v479 = vmul.f32 %v440, %v460
        %v480 = vmul.f32 %v441, %v460
        %v481 = vmul.f32 %v442, %v460
        %v482 = vmul.f32 %v443, %v460
        %v483 = vmul.f32 %v444, %v460
        %v484 = vmul.f32 %v445, %v460
        %v485 = vmul.f32 %v446, %v460
        %v486 = vmul.f32 %v447, %v460
        %v487 = vmul.f32 %v448, %v460
        %v488 = vmul.f32 %v449, %v460
        %v489 = vmul.f32 %v450, %v460
        %v490 = vmul.f32 %v451, %v460
        %v491 = vmul.f32 %v452, %v460
        %v492 = vmul.f32 %v453, %v460
        %v493 = vmul.f32 %v454, %v460
        %v494 = vld [vmem:[%s2] sm:$0x1]
        %v496 = vlaneseq
        %v497 = vshrl.u32 %v496, 7
        %v498 = vsub.s32 0, %v497
        %v499 = vrot.slane %v494, %v498
        %v501 = vadd.f32 %v462, %v499
        %v502 = vadd.f32 %v463, %v499
        %v503 = vadd.f32 %v464, %v499
        %v504 = vadd.f32 %v465, %v499
        %v505 = vadd.f32 %v466, %v499
        %v506 = vadd.f32 %v467, %v499
        %v507 = vadd.f32 %v468, %v499
        %v508 = vadd.f32 %v469, %v499
        %v509 = vadd.f32 %v470, %v499
        %v510 = vadd.f32 %v471, %v499
        %v511 = vadd.f32 %v472, %v499
        %v512 = vadd.f32 %v473, %v499
        %v513 = vadd.f32 %v474, %v499
        %v514 = vadd.f32 %v475, %v499
        %v515 = vadd.f32 %v476, %v499
        %v516 = vadd.f32 %v477, %v499
        %v517 = vadd.f32 %v478, %v499
        %v518 = vadd.f32 %v479, %v499
        %v519 = vadd.f32 %v480, %v499
        %v520 = vadd.f32 %v481, %v499
        %v521 = vadd.f32 %v482, %v499
        %v522 = vadd.f32 %v483, %v499
        %v523 = vadd.f32 %v484, %v499
        %v524 = vadd.f32 %v485, %v499
        %v525 = vadd.f32 %v486, %v499
        %v526 = vadd.f32 %v487, %v499
        %v527 = vadd.f32 %v488, %v499
        %v528 = vadd.f32 %v489, %v499
        %v529 = vadd.f32 %v490, %v499
        %v530 = vadd.f32 %v491, %v499
        %v531 = vadd.f32 %v492, %v499
        %v532 = vadd.f32 %v493, %v499
        %v533 = vmax.f32 %v501, 0.0
        %v534 = vmax.f32 %v502, 0.0
        %v535 = vmax.f32 %v503, 0.0
        %v536 = vmax.f32 %v504, 0.0
        %v537 = vmax.f32 %v505, 0.0
        %v538 = vmax.f32 %v506, 0.0
        %v539 = vmax.f32 %v507, 0.0
        %v540 = vmax.f32 %v508, 0.0
        %v541 = vmax.f32 %v509, 0.0
        %v542 = vmax.f32 %v510, 0.0
        %v543 = vmax.f32 %v511, 0.0
        %v544 = vmax.f32 %v512, 0.0
        %v545 = vmax.f32 %v513, 0.0
        %v546 = vmax.f32 %v514, 0.0
        %v547 = vmax.f32 %v515, 0.0
        %v548 = vmax.f32 %v516, 0.0
        %v549 = vmax.f32 %v517, 0.0
        %v550 = vmax.f32 %v518, 0.0
        %v551 = vmax.f32 %v519, 0.0
        %v552 = vmax.f32 %v520, 0.0
        %v553 = vmax.f32 %v521, 0.0
        %v554 = vmax.f32 %v522, 0.0
        %v555 = vmax.f32 %v523, 0.0
        %v556 = vmax.f32 %v524, 0.0
        %v557 = vmax.f32 %v525, 0.0
        %v558 = vmax.f32 %v526, 0.0
        %v559 = vmax.f32 %v527, 0.0
        %v560 = vmax.f32 %v528, 0.0
        %v561 = vmax.f32 %v529, 0.0
        %v562 = vmax.f32 %v530, 0.0
        %v563 = vmax.f32 %v531, 0.0
        %v564 = vmax.f32 %v532, 0.0
        %v565 = vpack.c.bf16 %v534, %v533
        %v566 = vpack.c.bf16 %v536, %v535
        %v567 = vpack.c.bf16 %v538, %v537
        %v568 = vpack.c.bf16 %v540, %v539
        %v569 = vpack.c.bf16 %v542, %v541
        %v570 = vpack.c.bf16 %v544, %v543
        %v571 = vpack.c.bf16 %v546, %v545
        %v572 = vpack.c.bf16 %v548, %v547
        %v573 = vpack.c.bf16 %v550, %v549
        %v574 = vpack.c.bf16 %v552, %v551
        %v575 = vpack.c.bf16 %v554, %v553
        %v576 = vpack.c.bf16 %v556, %v555
        %v577 = vpack.c.bf16 %v558, %v557
        %v578 = vpack.c.bf16 %v560, %v559
        %v579 = vpack.c.bf16 %v562, %v561
        %v580 = vpack.c.bf16 %v564, %v563
        %v581 = vld [vmem:[%s3] sm:$0xf]
        %v582 = vld [vmem:[%s3 + $0x4] sm:$0xf]
        %v583 = vld [vmem:[%s3 + $0x8] sm:$0xf]
        %v584 = vld [vmem:[%s3 + $0xc] sm:$0xf]
        %v585 = vld [vmem:[%s3 + $0x10] sm:$0xf]
        %v586 = vld [vmem:[%s3 + $0x14] sm:$0xf]
        %v587 = vld [vmem:[%s3 + $0x18] sm:$0xf]
        %v588 = vld [vmem:[%s3 + $0x1c] sm:$0xf]
        %v589 = vld [vmem:[%s3 + $0x20] sm:$0xf]
        %v590 = vld [vmem:[%s3 + $0x24] sm:$0xf]
        %v591 = vld [vmem:[%s3 + $0x28] sm:$0xf]
        %v592 = vld [vmem:[%s3 + $0x2c] sm:$0xf]
        %v593 = vld [vmem:[%s3 + $0x30] sm:$0xf]
        %v594 = vld [vmem:[%s3 + $0x34] sm:$0xf]
        %v595 = vld [vmem:[%s3 + $0x38] sm:$0xf]
        %v596 = vld [vmem:[%s3 + $0x3c] sm:$0xf]
        %v613 = vunpack.c.l.b16 %v581
        %v614 = vunpack.c.l.b16 %v582
        %v615 = vunpack.c.l.b16 %v583
        %v616 = vunpack.c.l.b16 %v584
        %v617 = vunpack.c.l.b16 %v585
        %v618 = vunpack.c.l.b16 %v586
        %v619 = vunpack.c.l.b16 %v587
        %v620 = vunpack.c.l.b16 %v588
        %v621 = vunpack.c.l.b16 %v589
        %v622 = vunpack.c.l.b16 %v590
        %v623 = vunpack.c.l.b16 %v591
        %v624 = vunpack.c.l.b16 %v592
        %v625 = vunpack.c.l.b16 %v593
        %v626 = vunpack.c.l.b16 %v594
        %v627 = vunpack.c.l.b16 %v595
        %v628 = vunpack.c.l.b16 %v596
        %v629 = vpack.c.b16 %v614, %v613
        %v630 = vpack.c.b16 %v616, %v615
        %v631 = vpack.c.b16 %v618, %v617
        %v632 = vpack.c.b16 %v620, %v619
        %v633 = vpack.c.b16 %v622, %v621
        %v634 = vpack.c.b16 %v624, %v623
        %v635 = vpack.c.b16 %v626, %v625
        %v636 = vpack.c.b16 %v628, %v627
        %645 = vmatprep.subr.bf16.mxu0 0
        %646 = vmatpush1.bf16.msra.mxu0 %v636
        %647 = vmatprep.subr.bf16.mxu0 0
        %648 = vmatpush1.bf16.msra.mxu0 %v635
        %649 = vmatprep.subr.bf16.mxu0 0
        %650 = vmatpush1.bf16.msra.mxu0 %v634
        %651 = vmatprep.subr.bf16.mxu0 0
        %652 = vmatpush1.bf16.msra.mxu0 %v633
        %653 = vmatprep.subr.bf16.mxu0 0
        %654 = vmatpush1.bf16.msra.mxu0 %v632
        %655 = vmatprep.subr.bf16.mxu0 0
        %656 = vmatpush1.bf16.msra.mxu0 %v631
        %657 = vmatprep.subr.bf16.mxu0 0
        %658 = vmatpush1.bf16.msra.mxu0 %v630
        %659 = vmatprep.subr.bf16.mxu0 0
        %660 = vmatpush1.bf16.msra.mxu0 %v629
        %661 = vmatprep.subr.bf16.mxu0 0
        %662 = vmatpush2.bf16.msra.mxu0 0
        %663 = vmatprep.subr.bf16.mxu0 0
        %664 = vmatpush2.bf16.msra.mxu0 0
        %665 = vmatprep.subr.bf16.mxu0 0
        %666 = vmatpush2.bf16.msra.mxu0 0
        %667 = vmatprep.subr.bf16.mxu0 0
        %668 = vmatpush2.bf16.msra.mxu0 0
        %669 = vmatprep.subr.bf16.mxu0 0
        %670 = vmatpush2.bf16.msra.mxu0 0
        %671 = vmatprep.subr.bf16.mxu0 0
        %672 = vmatpush2.bf16.msra.mxu0 0
        %673 = vmatprep.subr.bf16.mxu0 0
        %674 = vmatpush2.bf16.msra.mxu0 0
        %675 = vmatprep.subr.bf16.mxu0 0
        %676 = vmatpush2.bf16.msra.mxu0 0
        %677 = vmatprep.mubr.bf16.mxu0 0
        %678 = vmatmul.mubr.bf16.gmra.mxu0 %v565
        %v679 = vpop.f32.mrf.mxu0
        %v680 = vadd.f32 0.0, %v679
        %v681 = vpop.f32.mrf.mxu0
        %v682 = vpop.f32.mrf.mxu0
        %v683 = vadd.f32 0.0, %v682
        %v684 = vpop.f32.mrf.mxu0
        %685 = vmatprep.mubr.bf16.mxu0 0
        %686 = vmatmul.mubr.bf16.gmra.mxu0 %v566
        %v687 = vpop.f32.mrf.mxu0
        %v688 = vadd.f32 0.0, %v687
        %v689 = vpop.f32.mrf.mxu0
        %v690 = vpop.f32.mrf.mxu0
        %v691 = vadd.f32 0.0, %v690
        %v692 = vpop.f32.mrf.mxu0
        %693 = vmatprep.mubr.bf16.mxu0 0
        %694 = vmatmul.mubr.bf16.gmra.mxu0 %v567
        %v695 = vpop.f32.mrf.mxu0
        %v696 = vadd.f32 0.0, %v695
        %v697 = vpop.f32.mrf.mxu0
        %v698 = vpop.f32.mrf.mxu0
        %v699 = vadd.f32 0.0, %v698
        %v700 = vpop.f32.mrf.mxu0
        %701 = vmatprep.mubr.bf16.mxu0 0
        %702 = vmatmul.mubr.bf16.gmra.mxu0 %v568
        %v703 = vpop.f32.mrf.mxu0
        %v704 = vadd.f32 0.0, %v703
        %v705 = vpop.f32.mrf.mxu0
        %v706 = vpop.f32.mrf.mxu0
        %v707 = vadd.f32 0.0, %v706
        %v708 = vpop.f32.mrf.mxu0
        %709 = vmatprep.mubr.bf16.mxu0 0
        %710 = vmatmul.mubr.bf16.gmra.mxu0 %v569
        %v711 = vpop.f32.mrf.mxu0
        %v712 = vadd.f32 0.0, %v711
        %v713 = vpop.f32.mrf.mxu0
        %v714 = vpop.f32.mrf.mxu0
        %v715 = vadd.f32 0.0, %v714
        %v716 = vpop.f32.mrf.mxu0
        %717 = vmatprep.mubr.bf16.mxu0 0
        %718 = vmatmul.mubr.bf16.gmra.mxu0 %v570
        %v719 = vpop.f32.mrf.mxu0
        %v720 = vadd.f32 0.0, %v719
        %v721 = vpop.f32.mrf.mxu0
        %v722 = vpop.f32.mrf.mxu0
        %v723 = vadd.f32 0.0, %v722
        %v724 = vpop.f32.mrf.mxu0
        %725 = vmatprep.mubr.bf16.mxu0 0
        %726 = vmatmul.mubr.bf16.gmra.mxu0 %v571
        %v727 = vpop.f32.mrf.mxu0
        %v728 = vadd.f32 0.0, %v727
        %v729 = vpop.f32.mrf.mxu0
        %v730 = vpop.f32.mrf.mxu0
        %v731 = vadd.f32 0.0, %v730
        %v732 = vpop.f32.mrf.mxu0
        %733 = vmatprep.mubr.bf16.mxu0 0
        %734 = vmatmul.mubr.bf16.gmra.mxu0 %v572
        %v735 = vpop.f32.mrf.mxu0
        %v736 = vadd.f32 0.0, %v735
        %v737 = vpop.f32.mrf.mxu0
        %v738 = vpop.f32.mrf.mxu0
        %v739 = vadd.f32 0.0, %v738
        %v740 = vpop.f32.mrf.mxu0
        %741 = vmatprep.mubr.bf16.mxu0 0
        %742 = vmatmul.mubr.bf16.gmra.mxu0 %v573
        %v743 = vpop.f32.mrf.mxu0
        %v744 = vadd.f32 0.0, %v743
        %v745 = vpop.f32.mrf.mxu0
        %v746 = vpop.f32.mrf.mxu0
        %v747 = vadd.f32 0.0, %v746
        %v748 = vpop.f32.mrf.mxu0
        %749 = vmatprep.mubr.bf16.mxu0 0
        %750 = vmatmul.mubr.bf16.gmra.mxu0 %v574
        %v751 = vpop.f32.mrf.mxu0
        %v752 = vadd.f32 0.0, %v751
        %v753 = vpop.f32.mrf.mxu0
        %v754 = vpop.f32.mrf.mxu0
        %v755 = vadd.f32 0.0, %v754
        %v756 = vpop.f32.mrf.mxu0
        %757 = vmatprep.mubr.bf16.mxu0 0
        %758 = vmatmul.mubr.bf16.gmra.mxu0 %v575
        %v759 = vpop.f32.mrf.mxu0
        %v760 = vadd.f32 0.0, %v759
        %v761 = vpop.f32.mrf.mxu0
        %v762 = vpop.f32.mrf.mxu0
        %v763 = vadd.f32 0.0, %v762
        %v764 = vpop.f32.mrf.mxu0
        %765 = vmatprep.mubr.bf16.mxu0 0
        %766 = vmatmul.mubr.bf16.gmra.mxu0 %v576
        %v767 = vpop.f32.mrf.mxu0
        %v768 = vadd.f32 0.0, %v767
        %v769 = vpop.f32.mrf.mxu0
        %v770 = vpop.f32.mrf.mxu0
        %v771 = vadd.f32 0.0, %v770
        %v772 = vpop.f32.mrf.mxu0
        %773 = vmatprep.mubr.bf16.mxu0 0
        %774 = vmatmul.mubr.bf16.gmra.mxu0 %v577
        %v775 = vpop.f32.mrf.mxu0
        %v776 = vadd.f32 0.0, %v775
        %v777 = vpop.f32.mrf.mxu0
        %v778 = vpop.f32.mrf.mxu0
        %v779 = vadd.f32 0.0, %v778
        %v780 = vpop.f32.mrf.mxu0
        %781 = vmatprep.mubr.bf16.mxu0 0
        %782 = vmatmul.mubr.bf16.gmra.mxu0 %v578
        %v783 = vpop.f32.mrf.mxu0
        %v784 = vadd.f32 0.0, %v783
        %v785 = vpop.f32.mrf.mxu0
        %v786 = vpop.f32.mrf.mxu0
        %v787 = vadd.f32 0.0, %v786
        %v788 = vpop.f32.mrf.mxu0
        %789 = vmatprep.mubr.bf16.mxu0 0
        %790 = vmatmul.mubr.bf16.gmra.mxu0 %v579
        %v791 = vpop.f32.mrf.mxu0
        %v792 = vadd.f32 0.0, %v791
        %v793 = vpop.f32.mrf.mxu0
        %v794 = vpop.f32.mrf.mxu0
        %v795 = vadd.f32 0.0, %v794
        %v796 = vpop.f32.mrf.mxu0
        %797 = vmatprep.mubr.bf16.mxu0 0
        %798 = vmatmul.mubr.bf16.gmra.mxu0 %v580
        %v799 = vpop.f32.mrf.mxu0
        %v800 = vadd.f32 0.0, %v799
        %v801 = vpop.f32.mrf.mxu0
        %v802 = vpop.f32.mrf.mxu0
        %v803 = vadd.f32 0.0, %v802
        %v804 = vpop.f32.mrf.mxu0
        %805 = vdwg.mxu0
        %v806 = vld [vmem:[%s4] sm:$0x1]
        %v808 = vlaneseq
        %v809 = vshrl.u32 %v808, 7
        %v810 = vsub.s32 0, %v809
        %v811 = vrot.slane %v806, %v810
        %v813 = vmul.f32 %v680, %v811
        %v814 = vmul.f32 %v683, %v811
        %v815 = vmul.f32 %v688, %v811
        %v816 = vmul.f32 %v691, %v811
        %v817 = vmul.f32 %v696, %v811
        %v818 = vmul.f32 %v699, %v811
        %v819 = vmul.f32 %v704, %v811
        %v820 = vmul.f32 %v707, %v811
        %v821 = vmul.f32 %v712, %v811
        %v822 = vmul.f32 %v715, %v811
        %v823 = vmul.f32 %v720, %v811
        %v824 = vmul.f32 %v723, %v811
        %v825 = vmul.f32 %v728, %v811
        %v826 = vmul.f32 %v731, %v811
        %v827 = vmul.f32 %v736, %v811
        %v828 = vmul.f32 %v739, %v811
        %v829 = vmul.f32 %v744, %v811
        %v830 = vmul.f32 %v747, %v811
        %v831 = vmul.f32 %v752, %v811
        %v832 = vmul.f32 %v755, %v811
        %v833 = vmul.f32 %v760, %v811
        %v834 = vmul.f32 %v763, %v811
        %v835 = vmul.f32 %v768, %v811
        %v836 = vmul.f32 %v771, %v811
        %v837 = vmul.f32 %v776, %v811
        %v838 = vmul.f32 %v779, %v811
        %v839 = vmul.f32 %v784, %v811
        %v840 = vmul.f32 %v787, %v811
        %v841 = vmul.f32 %v792, %v811
        %v842 = vmul.f32 %v795, %v811
        %v843 = vmul.f32 %v800, %v811
        %v844 = vmul.f32 %v803, %v811
        %v845 = vld [vmem:[#allocation7] sm:$0x1]
        %v847 = vlaneseq
        %v848 = vshrl.u32 %v847, 7
        %v849 = vsub.s32 0, %v848
        %v850 = vrot.slane %v845, %v849
        %v852 = vadd.f32 %v813, %v850
        %v853 = vadd.f32 %v814, %v850
        %v854 = vadd.f32 %v815, %v850
        %v855 = vadd.f32 %v816, %v850
        %v856 = vadd.f32 %v817, %v850
        %v857 = vadd.f32 %v818, %v850
        %v858 = vadd.f32 %v819, %v850
        %v859 = vadd.f32 %v820, %v850
        %v860 = vadd.f32 %v821, %v850
        %v861 = vadd.f32 %v822, %v850
        %v862 = vadd.f32 %v823, %v850
        %v863 = vadd.f32 %v824, %v850
        %v864 = vadd.f32 %v825, %v850
        %v865 = vadd.f32 %v826, %v850
        %v866 = vadd.f32 %v827, %v850
        %v867 = vadd.f32 %v828, %v850
        %v868 = vadd.f32 %v829, %v850
        %v869 = vadd.f32 %v830, %v850
        %v870 = vadd.f32 %v831, %v850
        %v871 = vadd.f32 %v832, %v850
        %v872 = vadd.f32 %v833, %v850
        %v873 = vadd.f32 %v834, %v850
        %v874 = vadd.f32 %v835, %v850
        %v875 = vadd.f32 %v836, %v850
        %v876 = vadd.f32 %v837, %v850
        %v877 = vadd.f32 %v838, %v850
        %v878 = vadd.f32 %v839, %v850
        %v879 = vadd.f32 %v840, %v850
        %v880 = vadd.f32 %v841, %v850
        %v881 = vadd.f32 %v842, %v850
        %v882 = vadd.f32 %v843, %v850
        %v883 = vadd.f32 %v844, %v850
        %v884 = vmax.f32 %v852, 0.0
        %v885 = vmax.f32 %v853, 0.0
        %v886 = vmax.f32 %v854, 0.0
        %v887 = vmax.f32 %v855, 0.0
        %v888 = vmax.f32 %v856, 0.0
        %v889 = vmax.f32 %v857, 0.0
        %v890 = vmax.f32 %v858, 0.0
        %v891 = vmax.f32 %v859, 0.0
        %v892 = vmax.f32 %v860, 0.0
        %v893 = vmax.f32 %v861, 0.0
        %v894 = vmax.f32 %v862, 0.0
        %v895 = vmax.f32 %v863, 0.0
        %v896 = vmax.f32 %v864, 0.0
        %v897 = vmax.f32 %v865, 0.0
        %v898 = vmax.f32 %v866, 0.0
        %v899 = vmax.f32 %v867, 0.0
        %v900 = vmax.f32 %v868, 0.0
        %v901 = vmax.f32 %v869, 0.0
        %v902 = vmax.f32 %v870, 0.0
        %v903 = vmax.f32 %v871, 0.0
        %v904 = vmax.f32 %v872, 0.0
        %v905 = vmax.f32 %v873, 0.0
        %v906 = vmax.f32 %v874, 0.0
        %v907 = vmax.f32 %v875, 0.0
        %v908 = vmax.f32 %v876, 0.0
        %v909 = vmax.f32 %v877, 0.0
        %v910 = vmax.f32 %v878, 0.0
        %v911 = vmax.f32 %v879, 0.0
        %v912 = vmax.f32 %v880, 0.0
        %v913 = vmax.f32 %v881, 0.0
        %v914 = vmax.f32 %v882, 0.0
        %v915 = vmax.f32 %v883, 0.0
        %s916 = scalar_lea.vmem [#allocation3], 24
        %917 = vst.msk [vmem:[%s916 + $0x1] sm:$0xff] %vm377, %v884
        %918 = vst.msk [vmem:[%s916 + $0x9] sm:$0xff] %vm377, %v885
        %919 = vst.msk [vmem:[%s916 + $0x19] sm:$0xff] %vm377, %v886
        %920 = vst.msk [vmem:[%s916 + $0x21] sm:$0xff] %vm377, %v887
        %921 = vst.msk [vmem:[%s916 + $0x31] sm:$0xff] %vm377, %v888
        %922 = vst.msk [vmem:[%s916 + $0x39] sm:$0xff] %vm377, %v889
        %923 = vst.msk [vmem:[%s916 + $0x49] sm:$0xff] %vm377, %v890
        %924 = vst.msk [vmem:[%s916 + $0x51] sm:$0xff] %vm377, %v891
        %925 = vst.msk [vmem:[%s916 + $0x61] sm:$0xff] %vm377, %v892
        %926 = vst.msk [vmem:[%s916 + $0x69] sm:$0xff] %vm377, %v893
        %927 = vst.msk [vmem:[%s916 + $0x79] sm:$0xff] %vm377, %v894
        %928 = vst.msk [vmem:[%s916 + $0x81] sm:$0xff] %vm377, %v895
        %929 = vst.msk [vmem:[%s916 + $0x91] sm:$0xff] %vm377, %v896
        %930 = vst.msk [vmem:[%s916 + $0x99] sm:$0xff] %vm377, %v897
        %931 = vst.msk [vmem:[%s916 + $0xa9] sm:$0xff] %vm377, %v898
        %932 = vst.msk [vmem:[%s916 + $0xb1] sm:$0xff] %vm377, %v899
        %933 = vst.msk [vmem:[%s916 + $0xc1] sm:$0xff] %vm377, %v900
        %934 = vst.msk [vmem:[%s916 + $0xc9] sm:$0xff] %vm377, %v901
        %935 = vst.msk [vmem:[%s916 + $0xd9] sm:$0xff] %vm377, %v902
        %936 = vst.msk [vmem:[%s916 + $0xe1] sm:$0xff] %vm377, %v903
        %937 = vst.msk [vmem:[%s916 + $0xf1] sm:$0xff] %vm377, %v904
        %938 = vst.msk [vmem:[%s916 + $0xf9] sm:$0xff] %vm377, %v905
        %939 = vst.msk [vmem:[%s916 + $0x109] sm:$0xff] %vm377, %v906
        %940 = vst.msk [vmem:[%s916 + $0x111] sm:$0xff] %vm377, %v907
        %941 = vst.msk [vmem:[%s916 + $0x121] sm:$0xff] %vm377, %v908
        %942 = vst.msk [vmem:[%s916 + $0x129] sm:$0xff] %vm377, %v909
        %943 = vst.msk [vmem:[%s916 + $0x139] sm:$0xff] %vm377, %v910
        %944 = vst.msk [vmem:[%s916 + $0x141] sm:$0xff] %vm377, %v911
        %945 = vst.msk [vmem:[%s916 + $0x151] sm:$0xff] %vm377, %v912
        %946 = vst.msk [vmem:[%s916 + $0x159] sm:$0xff] %vm377, %v913
        %947 = vst.msk [vmem:[%s916 + $0x169] sm:$0xff] %vm377, %v914
        %948 = vst.msk [vmem:[%s916 + $0x171] sm:$0xff] %vm377, %v915
        %v949 = vld [vmem:[#allocation3] sm:$0xff]
        %v950 = vld [vmem:[#allocation3 + $0x8] sm:$0xff]
        %v951 = vld [vmem:[#allocation3 + $0x18] sm:$0xff]
        %v952 = vld [vmem:[#allocation3 + $0x20] sm:$0xff]
        %v953 = vld [vmem:[#allocation3 + $0x30] sm:$0xff]
        %v954 = vld [vmem:[#allocation3 + $0x38] sm:$0xff]
        %v955 = vld [vmem:[#allocation3 + $0x48] sm:$0xff]
        %v956 = vld [vmem:[#allocation3 + $0x50] sm:$0xff]
        %v957 = vld [vmem:[#allocation3 + $0x60] sm:$0xff]
        %v958 = vld [vmem:[#allocation3 + $0x68] sm:$0xff]
        %v959 = vld [vmem:[#allocation3 + $0x78] sm:$0xff]
        %v960 = vld [vmem:[#allocation3 + $0x80] sm:$0xff]
        %v961 = vld [vmem:[#allocation3 + $0x90] sm:$0xff]
        %v962 = vld [vmem:[#allocation3 + $0x98] sm:$0xff]
        %v963 = vld [vmem:[#allocation3 + $0xa8] sm:$0xff]
        %v964 = vld [vmem:[#allocation3 + $0xb0] sm:$0xff]
        %v965 = vld [vmem:[#allocation3 + $0xc0] sm:$0xff]
        %v966 = vld [vmem:[#allocation3 + $0xc8] sm:$0xff]
        %v967 = vld [vmem:[#allocation3 + $0xd8] sm:$0xff]
        %v968 = vld [vmem:[#allocation3 + $0xe0] sm:$0xff]
        %v969 = vld [vmem:[#allocation3 + $0xf0] sm:$0xff]
        %v970 = vld [vmem:[#allocation3 + $0xf8] sm:$0xff]
        %v971 = vld [vmem:[#allocation3 + $0x108] sm:$0xff]
        %v972 = vld [vmem:[#allocation3 + $0x110] sm:$0xff]
        %v973 = vld [vmem:[#allocation3 + $0x120] sm:$0xff]
        %v974 = vld [vmem:[#allocation3 + $0x128] sm:$0xff]
        %v975 = vld [vmem:[#allocation3 + $0x138] sm:$0xff]
        %v976 = vld [vmem:[#allocation3 + $0x140] sm:$0xff]
        %v977 = vld [vmem:[#allocation3 + $0x150] sm:$0xff]
        %v978 = vld [vmem:[#allocation3 + $0x158] sm:$0xff]
        %v979 = vld [vmem:[#allocation3 + $0x168] sm:$0xff]
        %v980 = vld [vmem:[#allocation3 + $0x170] sm:$0xff]
        %v981 = vpack.c.bf16 %v950, %v949
        %v982 = vpack.c.bf16 %v952, %v951
        %v983 = vpack.c.bf16 %v954, %v953
        %v984 = vpack.c.bf16 %v956, %v955
        %v985 = vpack.c.bf16 %v958, %v957
        %v986 = vpack.c.bf16 %v960, %v959
        %v987 = vpack.c.bf16 %v962, %v961
        %v988 = vpack.c.bf16 %v964, %v963
        %v989 = vpack.c.bf16 %v966, %v965
        %v990 = vpack.c.bf16 %v968, %v967
        %v991 = vpack.c.bf16 %v970, %v969
        %v992 = vpack.c.bf16 %v972, %v971
        %v993 = vpack.c.bf16 %v974, %v973
        %v994 = vpack.c.bf16 %v976, %v975
        %v995 = vpack.c.bf16 %v978, %v977
        %v996 = vpack.c.bf16 %v980, %v979
        %v997 = vld [vmem:[%s6] sm:$0xf]
        %v998 = vld [vmem:[%s6 + $0x4] sm:$0xf]
        %v999 = vld [vmem:[#allocation3 + $0x1] sm:$0xff]
        %v1000 = vld [vmem:[#allocation3 + $0x9] sm:$0xff]
        %v1001 = vld [vmem:[#allocation3 + $0x19] sm:$0xff]
        %v1002 = vld [vmem:[#allocation3 + $0x21] sm:$0xff]
        %v1003 = vld [vmem:[#allocation3 + $0x31] sm:$0xff]
        %v1004 = vld [vmem:[#allocation3 + $0x39] sm:$0xff]
        %v1005 = vld [vmem:[#allocation3 + $0x49] sm:$0xff]
        %v1006 = vld [vmem:[#allocation3 + $0x51] sm:$0xff]
        %v1007 = vld [vmem:[#allocation3 + $0x61] sm:$0xff]
        %v1008 = vld [vmem:[#allocation3 + $0x69] sm:$0xff]
        %v1009 = vld [vmem:[#allocation3 + $0x79] sm:$0xff]
        %v1010 = vld [vmem:[#allocation3 + $0x81] sm:$0xff]
        %v1011 = vld [vmem:[#allocation3 + $0x91] sm:$0xff]
        %v1012 = vld [vmem:[#allocation3 + $0x99] sm:$0xff]
        %v1013 = vld [vmem:[#allocation3 + $0xa9] sm:$0xff]
        %v1014 = vld [vmem:[#allocation3 + $0xb1] sm:$0xff]
        %v1015 = vld [vmem:[#allocation3 + $0xc1] sm:$0xff]
        %v1016 = vld [vmem:[#allocation3 + $0xc9] sm:$0xff]
        %v1017 = vld [vmem:[#allocation3 + $0xd9] sm:$0xff]
        %v1018 = vld [vmem:[#allocation3 + $0xe1] sm:$0xff]
        %v1019 = vld [vmem:[#allocation3 + $0xf1] sm:$0xff]
        %v1020 = vld [vmem:[#allocation3 + $0xf9] sm:$0xff]
        %v1021 = vld [vmem:[#allocation3 + $0x109] sm:$0xff]
        %v1022 = vld [vmem:[#allocation3 + $0x111] sm:$0xff]
        %v1023 = vld [vmem:[#allocation3 + $0x121] sm:$0xff]
        %v1024 = vld [vmem:[#allocation3 + $0x129] sm:$0xff]
        %v1025 = vld [vmem:[#allocation3 + $0x139] sm:$0xff]
        %v1026 = vld [vmem:[#allocation3 + $0x141] sm:$0xff]
        %v1027 = vld [vmem:[#allocation3 + $0x151] sm:$0xff]
        %v1028 = vld [vmem:[#allocation3 + $0x159] sm:$0xff]
        %v1029 = vld [vmem:[#allocation3 + $0x169] sm:$0xff]
        %v1030 = vld [vmem:[#allocation3 + $0x171] sm:$0xff]
        %v1031 = vpack.c.bf16 %v1000, %v999
        %v1032 = vpack.c.bf16 %v1002, %v1001
        %v1033 = vpack.c.bf16 %v1004, %v1003
        %v1034 = vpack.c.bf16 %v1006, %v1005
        %v1035 = vpack.c.bf16 %v1008, %v1007
        %v1036 = vpack.c.bf16 %v1010, %v1009
        %v1037 = vpack.c.bf16 %v1012, %v1011
        %v1038 = vpack.c.bf16 %v1014, %v1013
        %v1039 = vpack.c.bf16 %v1016, %v1015
        %v1040 = vpack.c.bf16 %v1018, %v1017
        %v1041 = vpack.c.bf16 %v1020, %v1019
        %v1042 = vpack.c.bf16 %v1022, %v1021
        %v1043 = vpack.c.bf16 %v1024, %v1023
        %v1044 = vpack.c.bf16 %v1026, %v1025
        %v1045 = vpack.c.bf16 %v1028, %v1027
        %v1046 = vpack.c.bf16 %v1030, %v1029
        %s1047 = scalar_lea.vmem %s6, 8
        %v1048 = vld [vmem:[%s1047] sm:$0xf]
        %v1049 = vld [vmem:[%s1047 + $0x4] sm:$0xf]
        %v1052 = vunpack.c.l.b16 %v1048
        %v1053 = vunpack.c.l.b16 %v1049
        %v1054 = vpack.c.b16 %v1053, %v1052
        %v1057 = vsel %vm377, %v1031, 0
        %v1060 = vsel %vm377, %v1032, 0
        %v1063 = vsel %vm377, %v1033, 0
        %v1066 = vsel %vm377, %v1034, 0
        %v1069 = vsel %vm377, %v1035, 0
        %v1072 = vsel %vm377, %v1036, 0
        %v1075 = vsel %vm377, %v1037, 0
        %v1078 = vsel %vm377, %v1038, 0
        %v1081 = vsel %vm377, %v1039, 0
        %v1084 = vsel %vm377, %v1040, 0
        %v1087 = vsel %vm377, %v1041, 0
        %v1090 = vsel %vm377, %v1042, 0
        %v1093 = vsel %vm377, %v1043, 0
        %v1096 = vsel %vm377, %v1044, 0
        %v1099 = vsel %vm377, %v1045, 0
        %v1102 = vsel %vm377, %v1046, 0
        %1104 = vmatprep.subr.bf16.mxu0 0
        %1105 = vmatpush1.bf16.msra.mxu0 0
        %1106 = vmatprep.subr.bf16.mxu0 0
        %1107 = vmatpush1.bf16.msra.mxu0 0
        %1108 = vmatprep.subr.bf16.mxu0 0
        %1109 = vmatpush1.bf16.msra.mxu0 0
        %1110 = vmatprep.subr.bf16.mxu0 0
        %1111 = vmatpush1.bf16.msra.mxu0 0
        %1112 = vmatprep.subr.bf16.mxu0 0
        %1113 = vmatpush1.bf16.msra.mxu0 0
        %1114 = vmatprep.subr.bf16.mxu0 0
        %1115 = vmatpush1.bf16.msra.mxu0 0
        %1116 = vmatprep.subr.bf16.mxu0 0
        %1117 = vmatpush1.bf16.msra.mxu0 0
        %1118 = vmatprep.subr.bf16.mxu0 0
        %1119 = vmatpush1.bf16.msra.mxu0 %v1054
        %1120 = vmatprep.subr.bf16.mxu0 0
        %1121 = vmatpush2.bf16.msra.mxu0 0
        %1122 = vmatprep.subr.bf16.mxu0 0
        %1123 = vmatpush2.bf16.msra.mxu0 0
        %1124 = vmatprep.subr.bf16.mxu0 0
        %1125 = vmatpush2.bf16.msra.mxu0 0
        %1126 = vmatprep.subr.bf16.mxu0 0
        %1127 = vmatpush2.bf16.msra.mxu0 0
        %1128 = vmatprep.subr.bf16.mxu0 0
        %1129 = vmatpush2.bf16.msra.mxu0 0
        %1130 = vmatprep.subr.bf16.mxu0 0
        %1131 = vmatpush2.bf16.msra.mxu0 0
        %1132 = vmatprep.subr.bf16.mxu0 0
        %1133 = vmatpush2.bf16.msra.mxu0 0
        %1134 = vmatprep.subr.bf16.mxu0 0
        %1135 = vmatpush2.bf16.msra.mxu0 0
        %1136 = vmatprep.mubr.bf16.mxu0 0
        %1137 = vmatmul.mubr.bf16.gmra.mxu0 %v1057
        %v1138 = vpop.f32.mrf.mxu0
        %v1139 = vadd.f32 0.0, %v1138
        %v1140 = vpop.f32.mrf.mxu0
        %v1141 = vpop.f32.mrf.mxu0
        %v1142 = vadd.f32 0.0, %v1141
        %v1143 = vpop.f32.mrf.mxu0
        %1144 = vmatprep.mubr.bf16.mxu0 0
        %1145 = vmatmul.mubr.bf16.gmra.mxu0 %v1060
        %v1146 = vpop.f32.mrf.mxu0
        %v1147 = vadd.f32 0.0, %v1146
        %v1148 = vpop.f32.mrf.mxu0
        %v1149 = vpop.f32.mrf.mxu0
        %v1150 = vadd.f32 0.0, %v1149
        %v1151 = vpop.f32.mrf.mxu0
        %1152 = vmatprep.mubr.bf16.mxu0 0
        %1153 = vmatmul.mubr.bf16.gmra.mxu0 %v1063
        %v1154 = vpop.f32.mrf.mxu0
        %v1155 = vadd.f32 0.0, %v1154
        %v1156 = vpop.f32.mrf.mxu0
        %v1157 = vpop.f32.mrf.mxu0
        %v1158 = vadd.f32 0.0, %v1157
        %v1159 = vpop.f32.mrf.mxu0
        %1160 = vmatprep.mubr.bf16.mxu0 0
        %1161 = vmatmul.mubr.bf16.gmra.mxu0 %v1066
        %v1162 = vpop.f32.mrf.mxu0
        %v1163 = vadd.f32 0.0, %v1162
        %v1164 = vpop.f32.mrf.mxu0
        %v1165 = vpop.f32.mrf.mxu0
        %v1166 = vadd.f32 0.0, %v1165
        %v1167 = vpop.f32.mrf.mxu0
        %1168 = vmatprep.mubr.bf16.mxu0 0
        %1169 = vmatmul.mubr.bf16.gmra.mxu0 %v1069
        %v1170 = vpop.f32.mrf.mxu0
        %v1171 = vadd.f32 0.0, %v1170
        %v1172 = vpop.f32.mrf.mxu0
        %v1173 = vpop.f32.mrf.mxu0
        %v1174 = vadd.f32 0.0, %v1173
        %v1175 = vpop.f32.mrf.mxu0
        %1176 = vmatprep.mubr.bf16.mxu0 0
        %1177 = vmatmul.mubr.bf16.gmra.mxu0 %v1072
        %v1178 = vpop.f32.mrf.mxu0
        %v1179 = vadd.f32 0.0, %v1178
        %v1180 = vpop.f32.mrf.mxu0
        %v1181 = vpop.f32.mrf.mxu0
        %v1182 = vadd.f32 0.0, %v1181
        %v1183 = vpop.f32.mrf.mxu0
        %1184 = vmatprep.mubr.bf16.mxu0 0
        %1185 = vmatmul.mubr.bf16.gmra.mxu0 %v1075
        %v1186 = vpop.f32.mrf.mxu0
        %v1187 = vadd.f32 0.0, %v1186
        %v1188 = vpop.f32.mrf.mxu0
        %v1189 = vpop.f32.mrf.mxu0
        %v1190 = vadd.f32 0.0, %v1189
        %v1191 = vpop.f32.mrf.mxu0
        %1192 = vmatprep.mubr.bf16.mxu0 0
        %1193 = vmatmul.mubr.bf16.gmra.mxu0 %v1078
        %v1194 = vpop.f32.mrf.mxu0
        %v1195 = vadd.f32 0.0, %v1194
        %v1196 = vpop.f32.mrf.mxu0
        %v1197 = vpop.f32.mrf.mxu0
        %v1198 = vadd.f32 0.0, %v1197
        %v1199 = vpop.f32.mrf.mxu0
        %1200 = vmatprep.mubr.bf16.mxu0 0
        %1201 = vmatmul.mubr.bf16.gmra.mxu0 %v1081
        %v1202 = vpop.f32.mrf.mxu0
        %v1203 = vadd.f32 0.0, %v1202
        %v1204 = vpop.f32.mrf.mxu0
        %v1205 = vpop.f32.mrf.mxu0
        %v1206 = vadd.f32 0.0, %v1205
        %v1207 = vpop.f32.mrf.mxu0
        %1208 = vmatprep.mubr.bf16.mxu0 0
        %1209 = vmatmul.mubr.bf16.gmra.mxu0 %v1084
        %v1210 = vpop.f32.mrf.mxu0
        %v1211 = vadd.f32 0.0, %v1210
        %v1212 = vpop.f32.mrf.mxu0
        %v1213 = vpop.f32.mrf.mxu0
        %v1214 = vadd.f32 0.0, %v1213
        %v1215 = vpop.f32.mrf.mxu0
        %1216 = vmatprep.mubr.bf16.mxu0 0
        %1217 = vmatmul.mubr.bf16.gmra.mxu0 %v1087
        %v1218 = vpop.f32.mrf.mxu0
        %v1219 = vadd.f32 0.0, %v1218
        %v1220 = vpop.f32.mrf.mxu0
        %v1221 = vpop.f32.mrf.mxu0
        %v1222 = vadd.f32 0.0, %v1221
        %v1223 = vpop.f32.mrf.mxu0
        %1224 = vmatprep.mubr.bf16.mxu0 0
        %1225 = vmatmul.mubr.bf16.gmra.mxu0 %v1090
        %v1226 = vpop.f32.mrf.mxu0
        %v1227 = vadd.f32 0.0, %v1226
        %v1228 = vpop.f32.mrf.mxu0
        %v1229 = vpop.f32.mrf.mxu0
        %v1230 = vadd.f32 0.0, %v1229
        %v1231 = vpop.f32.mrf.mxu0
        %1232 = vmatprep.mubr.bf16.mxu0 0
        %1233 = vmatmul.mubr.bf16.gmra.mxu0 %v1093
        %v1234 = vpop.f32.mrf.mxu0
        %v1235 = vadd.f32 0.0, %v1234
        %v1236 = vpop.f32.mrf.mxu0
        %v1237 = vpop.f32.mrf.mxu0
        %v1238 = vadd.f32 0.0, %v1237
        %v1239 = vpop.f32.mrf.mxu0
        %1240 = vmatprep.mubr.bf16.mxu0 0
        %1241 = vmatmul.mubr.bf16.gmra.mxu0 %v1096
        %v1242 = vpop.f32.mrf.mxu0
        %v1243 = vadd.f32 0.0, %v1242
        %v1244 = vpop.f32.mrf.mxu0
        %v1245 = vpop.f32.mrf.mxu0
        %v1246 = vadd.f32 0.0, %v1245
        %v1247 = vpop.f32.mrf.mxu0
        %1248 = vmatprep.mubr.bf16.mxu0 0
        %1249 = vmatmul.mubr.bf16.gmra.mxu0 %v1099
        %v1250 = vpop.f32.mrf.mxu0
        %v1251 = vadd.f32 0.0, %v1250
        %v1252 = vpop.f32.mrf.mxu0
        %v1253 = vpop.f32.mrf.mxu0
        %v1254 = vadd.f32 0.0, %v1253
        %v1255 = vpop.f32.mrf.mxu0
        %1256 = vmatprep.mubr.bf16.mxu0 0
        %1257 = vmatmul.mubr.bf16.gmra.mxu0 %v1102
        %v1258 = vpop.f32.mrf.mxu0
        %v1259 = vadd.f32 0.0, %v1258
        %v1260 = vpop.f32.mrf.mxu0
        %v1261 = vpop.f32.mrf.mxu0
        %v1262 = vadd.f32 0.0, %v1261
        %v1263 = vpop.f32.mrf.mxu0
        %1264 = vdwg.mxu0
        %v1267 = vunpack.c.l.b16 %v997
        %v1268 = vunpack.c.l.b16 %v998
        %v1269 = vpack.c.b16 %v1268, %v1267
        %v1272 = vsel %vm377, %v981, 0
        %v1275 = vsel %vm377, %v982, 0
        %v1278 = vsel %vm377, %v983, 0
        %v1281 = vsel %vm377, %v984, 0
        %v1284 = vsel %vm377, %v985, 0
        %v1287 = vsel %vm377, %v986, 0
        %v1290 = vsel %vm377, %v987, 0
        %v1293 = vsel %vm377, %v988, 0
        %v1296 = vsel %vm377, %v989, 0
        %v1299 = vsel %vm377, %v990, 0
        %v1302 = vsel %vm377, %v991, 0
        %v1305 = vsel %vm377, %v992, 0
        %v1308 = vsel %vm377, %v993, 0
        %v1311 = vsel %vm377, %v994, 0
        %v1314 = vsel %vm377, %v995, 0
        %v1317 = vsel %vm377, %v996, 0
        %1319 = vmatprep.subr.bf16.mxu0 0
        %1320 = vmatpush1.bf16.msra.mxu0 0
        %1321 = vmatprep.subr.bf16.mxu0 0
        %1322 = vmatpush1.bf16.msra.mxu0 0
        %1323 = vmatprep.subr.bf16.mxu0 0
        %1324 = vmatpush1.bf16.msra.mxu0 0
        %1325 = vmatprep.subr.bf16.mxu0 0
        %1326 = vmatpush1.bf16.msra.mxu0 0
        %1327 = vmatprep.subr.bf16.mxu0 0
        %1328 = vmatpush1.bf16.msra.mxu0 0
        %1329 = vmatprep.subr.bf16.mxu0 0
        %1330 = vmatpush1.bf16.msra.mxu0 0
        %1331 = vmatprep.subr.bf16.mxu0 0
        %1332 = vmatpush1.bf16.msra.mxu0 0
        %1333 = vmatprep.subr.bf16.mxu0 0
        %1334 = vmatpush1.bf16.msra.mxu0 %v1269
        %1335 = vmatprep.subr.bf16.mxu0 0
        %1336 = vmatpush2.bf16.msra.mxu0 0
        %1337 = vmatprep.subr.bf16.mxu0 0
        %1338 = vmatpush2.bf16.msra.mxu0 0
        %1339 = vmatprep.subr.bf16.mxu0 0
        %1340 = vmatpush2.bf16.msra.mxu0 0
        %1341 = vmatprep.subr.bf16.mxu0 0
        %1342 = vmatpush2.bf16.msra.mxu0 0
        %1343 = vmatprep.subr.bf16.mxu0 0
        %1344 = vmatpush2.bf16.msra.mxu0 0
        %1345 = vmatprep.subr.bf16.mxu0 0
        %1346 = vmatpush2.bf16.msra.mxu0 0
        %1347 = vmatprep.subr.bf16.mxu0 0
        %1348 = vmatpush2.bf16.msra.mxu0 0
        %1349 = vmatprep.subr.bf16.mxu0 0
        %1350 = vmatpush2.bf16.msra.mxu0 0
        %1351 = vmatprep.mubr.bf16.mxu0 0
        %1352 = vmatmul.mubr.bf16.gmra.mxu0 %v1272
        %v1353 = vpop.f32.mrf.mxu0
        %v1354 = vadd.f32 %v1139, %v1353
        %v1355 = vpop.f32.mrf.mxu0
        %v1356 = vpop.f32.mrf.mxu0
        %v1357 = vadd.f32 %v1142, %v1356
        %v1358 = vpop.f32.mrf.mxu0
        %1359 = vmatprep.mubr.bf16.mxu0 0
        %1360 = vmatmul.mubr.bf16.gmra.mxu0 %v1275
        %v1361 = vpop.f32.mrf.mxu0
        %v1362 = vadd.f32 %v1147, %v1361
        %v1363 = vpop.f32.mrf.mxu0
        %v1364 = vpop.f32.mrf.mxu0
        %v1365 = vadd.f32 %v1150, %v1364
        %v1366 = vpop.f32.mrf.mxu0
        %1367 = vmatprep.mubr.bf16.mxu0 0
        %1368 = vmatmul.mubr.bf16.gmra.mxu0 %v1278
        %v1369 = vpop.f32.mrf.mxu0
        %v1370 = vadd.f32 %v1155, %v1369
        %v1371 = vpop.f32.mrf.mxu0
        %v1372 = vpop.f32.mrf.mxu0
        %v1373 = vadd.f32 %v1158, %v1372
        %v1374 = vpop.f32.mrf.mxu0
        %1375 = vmatprep.mubr.bf16.mxu0 0
        %1376 = vmatmul.mubr.bf16.gmra.mxu0 %v1281
        %v1377 = vpop.f32.mrf.mxu0
        %v1378 = vadd.f32 %v1163, %v1377
        %v1379 = vpop.f32.mrf.mxu0
        %v1380 = vpop.f32.mrf.mxu0
        %v1381 = vadd.f32 %v1166, %v1380
        %v1382 = vpop.f32.mrf.mxu0
        %1383 = vmatprep.mubr.bf16.mxu0 0
        %1384 = vmatmul.mubr.bf16.gmra.mxu0 %v1284
        %v1385 = vpop.f32.mrf.mxu0
        %v1386 = vadd.f32 %v1171, %v1385
        %v1387 = vpop.f32.mrf.mxu0
        %v1388 = vpop.f32.mrf.mxu0
        %v1389 = vadd.f32 %v1174, %v1388
        %v1390 = vpop.f32.mrf.mxu0
        %1391 = vmatprep.mubr.bf16.mxu0 0
        %1392 = vmatmul.mubr.bf16.gmra.mxu0 %v1287
        %v1393 = vpop.f32.mrf.mxu0
        %v1394 = vadd.f32 %v1179, %v1393
        %v1395 = vpop.f32.mrf.mxu0
        %v1396 = vpop.f32.mrf.mxu0
        %v1397 = vadd.f32 %v1182, %v1396
        %v1398 = vpop.f32.mrf.mxu0
        %1399 = vmatprep.mubr.bf16.mxu0 0
        %1400 = vmatmul.mubr.bf16.gmra.mxu0 %v1290
        %v1401 = vpop.f32.mrf.mxu0
        %v1402 = vadd.f32 %v1187, %v1401
        %v1403 = vpop.f32.mrf.mxu0
        %v1404 = vpop.f32.mrf.mxu0
        %v1405 = vadd.f32 %v1190, %v1404
        %v1406 = vpop.f32.mrf.mxu0
        %1407 = vmatprep.mubr.bf16.mxu0 0
        %1408 = vmatmul.mubr.bf16.gmra.mxu0 %v1293
        %v1409 = vpop.f32.mrf.mxu0
        %v1410 = vadd.f32 %v1195, %v1409
        %v1411 = vpop.f32.mrf.mxu0
        %v1412 = vpop.f32.mrf.mxu0
        %v1413 = vadd.f32 %v1198, %v1412
        %v1414 = vpop.f32.mrf.mxu0
        %1415 = vmatprep.mubr.bf16.mxu0 0
        %1416 = vmatmul.mubr.bf16.gmra.mxu0 %v1296
        %v1417 = vpop.f32.mrf.mxu0
        %v1418 = vadd.f32 %v1203, %v1417
        %v1419 = vpop.f32.mrf.mxu0
        %v1420 = vpop.f32.mrf.mxu0
        %v1421 = vadd.f32 %v1206, %v1420
        %v1422 = vpop.f32.mrf.mxu0
        %1423 = vmatprep.mubr.bf16.mxu0 0
        %1424 = vmatmul.mubr.bf16.gmra.mxu0 %v1299
        %v1425 = vpop.f32.mrf.mxu0
        %v1426 = vadd.f32 %v1211, %v1425
        %v1427 = vpop.f32.mrf.mxu0
        %v1428 = vpop.f32.mrf.mxu0
        %v1429 = vadd.f32 %v1214, %v1428
        %v1430 = vpop.f32.mrf.mxu0
        %1431 = vmatprep.mubr.bf16.mxu0 0
        %1432 = vmatmul.mubr.bf16.gmra.mxu0 %v1302
        %v1433 = vpop.f32.mrf.mxu0
        %v1434 = vadd.f32 %v1219, %v1433
        %v1435 = vpop.f32.mrf.mxu0
        %v1436 = vpop.f32.mrf.mxu0
        %v1437 = vadd.f32 %v1222, %v1436
        %v1438 = vpop.f32.mrf.mxu0
        %1439 = vmatprep.mubr.bf16.mxu0 0
        %1440 = vmatmul.mubr.bf16.gmra.mxu0 %v1305
        %v1441 = vpop.f32.mrf.mxu0
        %v1442 = vadd.f32 %v1227, %v1441
        %v1443 = vpop.f32.mrf.mxu0
        %v1444 = vpop.f32.mrf.mxu0
        %v1445 = vadd.f32 %v1230, %v1444
        %v1446 = vpop.f32.mrf.mxu0
        %1447 = vmatprep.mubr.bf16.mxu0 0
        %1448 = vmatmul.mubr.bf16.gmra.mxu0 %v1308
        %v1449 = vpop.f32.mrf.mxu0
        %v1450 = vadd.f32 %v1235, %v1449
        %v1451 = vpop.f32.mrf.mxu0
        %v1452 = vpop.f32.mrf.mxu0
        %v1453 = vadd.f32 %v1238, %v1452
        %v1454 = vpop.f32.mrf.mxu0
        %1455 = vmatprep.mubr.bf16.mxu0 0
        %1456 = vmatmul.mubr.bf16.gmra.mxu0 %v1311
        %v1457 = vpop.f32.mrf.mxu0
        %v1458 = vadd.f32 %v1243, %v1457
        %v1459 = vpop.f32.mrf.mxu0
        %v1460 = vpop.f32.mrf.mxu0
        %v1461 = vadd.f32 %v1246, %v1460
        %v1462 = vpop.f32.mrf.mxu0
        %1463 = vmatprep.mubr.bf16.mxu0 0
        %1464 = vmatmul.mubr.bf16.gmra.mxu0 %v1314
        %v1465 = vpop.f32.mrf.mxu0
        %v1466 = vadd.f32 %v1251, %v1465
        %v1467 = vpop.f32.mrf.mxu0
        %v1468 = vpop.f32.mrf.mxu0
        %v1469 = vadd.f32 %v1254, %v1468
        %v1470 = vpop.f32.mrf.mxu0
        %1471 = vmatprep.mubr.bf16.mxu0 0
        %1472 = vmatmul.mubr.bf16.gmra.mxu0 %v1317
        %v1473 = vpop.f32.mrf.mxu0
        %v1474 = vadd.f32 %v1259, %v1473
        %v1475 = vpop.f32.mrf.mxu0
        %v1476 = vpop.f32.mrf.mxu0
        %v1477 = vadd.f32 %v1262, %v1476
        %v1478 = vpop.f32.mrf.mxu0
        %1479 = vdwg.mxu0
        %v1480 = vld [vmem:[#allocation3 + $0x2] sm:$0xff]
        %v1481 = vld [vmem:[#allocation3 + $0xa] sm:$0xff]
        %v1482 = vld [vmem:[#allocation3 + $0x1a] sm:$0xff]
        %v1483 = vld [vmem:[#allocation3 + $0x22] sm:$0xff]
        %v1484 = vld [vmem:[#allocation3 + $0x32] sm:$0xff]
        %v1485 = vld [vmem:[#allocation3 + $0x3a] sm:$0xff]
        %v1486 = vld [vmem:[#allocation3 + $0x4a] sm:$0xff]
        %v1487 = vld [vmem:[#allocation3 + $0x52] sm:$0xff]
        %v1488 = vld [vmem:[#allocation3 + $0x62] sm:$0xff]
        %v1489 = vld [vmem:[#allocation3 + $0x6a] sm:$0xff]
        %v1490 = vld [vmem:[#allocation3 + $0x7a] sm:$0xff]
        %v1491 = vld [vmem:[#allocation3 + $0x82] sm:$0xff]
        %v1492 = vld [vmem:[#allocation3 + $0x92] sm:$0xff]
        %v1493 = vld [vmem:[#allocation3 + $0x9a] sm:$0xff]
        %v1494 = vld [vmem:[#allocation3 + $0xaa] sm:$0xff]
        %v1495 = vld [vmem:[#allocation3 + $0xb2] sm:$0xff]
        %v1496 = vld [vmem:[#allocation3 + $0xc2] sm:$0xff]
        %v1497 = vld [vmem:[#allocation3 + $0xca] sm:$0xff]
        %v1498 = vld [vmem:[#allocation3 + $0xda] sm:$0xff]
        %v1499 = vld [vmem:[#allocation3 + $0xe2] sm:$0xff]
        %v1500 = vld [vmem:[#allocation3 + $0xf2] sm:$0xff]
        %v1501 = vld [vmem:[#allocation3 + $0xfa] sm:$0xff]
        %v1502 = vld [vmem:[#allocation3 + $0x10a] sm:$0xff]
        %v1503 = vld [vmem:[#allocation3 + $0x112] sm:$0xff]
        %v1504 = vld [vmem:[#allocation3 + $0x122] sm:$0xff]
        %v1505 = vld [vmem:[#allocation3 + $0x12a] sm:$0xff]
        %v1506 = vld [vmem:[#allocation3 + $0x13a] sm:$0xff]
        %v1507 = vld [vmem:[#allocation3 + $0x142] sm:$0xff]
        %v1508 = vld [vmem:[#allocation3 + $0x152] sm:$0xff]
        %v1509 = vld [vmem:[#allocation3 + $0x15a] sm:$0xff]
        %v1510 = vld [vmem:[#allocation3 + $0x16a] sm:$0xff]
        %v1511 = vld [vmem:[#allocation3 + $0x172] sm:$0xff]
        %v1512 = vpack.c.bf16 %v1481, %v1480
        %v1513 = vpack.c.bf16 %v1483, %v1482
        %v1514 = vpack.c.bf16 %v1485, %v1484
        %v1515 = vpack.c.bf16 %v1487, %v1486
        %v1516 = vpack.c.bf16 %v1489, %v1488
        %v1517 = vpack.c.bf16 %v1491, %v1490
        %v1518 = vpack.c.bf16 %v1493, %v1492
        %v1519 = vpack.c.bf16 %v1495, %v1494
        %v1520 = vpack.c.bf16 %v1497, %v1496
        %v1521 = vpack.c.bf16 %v1499, %v1498
        %v1522 = vpack.c.bf16 %v1501, %v1500
        %v1523 = vpack.c.bf16 %v1503, %v1502
        %v1524 = vpack.c.bf16 %v1505, %v1504
        %v1525 = vpack.c.bf16 %v1507, %v1506
        %v1526 = vpack.c.bf16 %v1509, %v1508
        %v1527 = vpack.c.bf16 %v1511, %v1510
        %s1528 = scalar_lea.vmem %s6, 16
        %v1529 = vld [vmem:[%s1528] sm:$0xf]
        %v1530 = vld [vmem:[%s1528 + $0x4] sm:$0xf]
        %v1533 = vunpack.c.l.b16 %v1529
        %v1534 = vunpack.c.l.b16 %v1530
        %v1535 = vpack.c.b16 %v1534, %v1533
        %v1538 = vsel %vm377, %v1512, 0
        %v1541 = vsel %vm377, %v1513, 0
        %v1544 = vsel %vm377, %v1514, 0
        %v1547 = vsel %vm377, %v1515, 0
        %v1550 = vsel %vm377, %v1516, 0
        %v1553 = vsel %vm377, %v1517, 0
        %v1556 = vsel %vm377, %v1518, 0
        %v1559 = vsel %vm377, %v1519, 0
        %v1562 = vsel %vm377, %v1520, 0
        %v1565 = vsel %vm377, %v1521, 0
        %v1568 = vsel %vm377, %v1522, 0
        %v1571 = vsel %vm377, %v1523, 0
        %v1574 = vsel %vm377, %v1524, 0
        %v1577 = vsel %vm377, %v1525, 0
        %v1580 = vsel %vm377, %v1526, 0
        %v1583 = vsel %vm377, %v1527, 0
        %1585 = vmatprep.subr.bf16.mxu0 0
        %1586 = vmatpush1.bf16.msra.mxu0 0
        %1587 = vmatprep.subr.bf16.mxu0 0
        %1588 = vmatpush1.bf16.msra.mxu0 0
        %1589 = vmatprep.subr.bf16.mxu0 0
        %1590 = vmatpush1.bf16.msra.mxu0 0
        %1591 = vmatprep.subr.bf16.mxu0 0
        %1592 = vmatpush1.bf16.msra.mxu0 0
        %1593 = vmatprep.subr.bf16.mxu0 0
        %1594 = vmatpush1.bf16.msra.mxu0 0
        %1595 = vmatprep.subr.bf16.mxu0 0
        %1596 = vmatpush1.bf16.msra.mxu0 0
        %1597 = vmatprep.subr.bf16.mxu0 0
        %1598 = vmatpush1.bf16.msra.mxu0 0
        %1599 = vmatprep.subr.bf16.mxu0 0
        %1600 = vmatpush1.bf16.msra.mxu0 %v1535
        %1601 = vmatprep.subr.bf16.mxu0 0
        %1602 = vmatpush2.bf16.msra.mxu0 0
        %1603 = vmatprep.subr.bf16.mxu0 0
        %1604 = vmatpush2.bf16.msra.mxu0 0
        %1605 = vmatprep.subr.bf16.mxu0 0
        %1606 = vmatpush2.bf16.msra.mxu0 0
        %1607 = vmatprep.subr.bf16.mxu0 0
        %1608 = vmatpush2.bf16.msra.mxu0 0
        %1609 = vmatprep.subr.bf16.mxu0 0
        %1610 = vmatpush2.bf16.msra.mxu0 0
        %1611 = vmatprep.subr.bf16.mxu0 0
        %1612 = vmatpush2.bf16.msra.mxu0 0
        %1613 = vmatprep.subr.bf16.mxu0 0
        %1614 = vmatpush2.bf16.msra.mxu0 0
        %1615 = vmatprep.subr.bf16.mxu0 0
        %1616 = vmatpush2.bf16.msra.mxu0 0
        %1617 = vmatprep.mubr.bf16.mxu0 0
        %1618 = vmatmul.mubr.bf16.gmra.mxu0 %v1538
        %v1619 = vpop.f32.mrf.mxu0
        %v1620 = vadd.f32 0.0, %v1619
        %v1621 = vpop.f32.mrf.mxu0
        %v1622 = vpop.f32.mrf.mxu0
        %v1623 = vadd.f32 0.0, %v1622
        %v1624 = vpop.f32.mrf.mxu0
        %1625 = vmatprep.mubr.bf16.mxu0 0
        %1626 = vmatmul.mubr.bf16.gmra.mxu0 %v1541
        %v1627 = vpop.f32.mrf.mxu0
        %v1628 = vadd.f32 0.0, %v1627
        %v1629 = vpop.f32.mrf.mxu0
        %v1630 = vpop.f32.mrf.mxu0
        %v1631 = vadd.f32 0.0, %v1630
        %v1632 = vpop.f32.mrf.mxu0
        %1633 = vmatprep.mubr.bf16.mxu0 0
        %1634 = vmatmul.mubr.bf16.gmra.mxu0 %v1544
        %v1635 = vpop.f32.mrf.mxu0
        %v1636 = vadd.f32 0.0, %v1635
        %v1637 = vpop.f32.mrf.mxu0
        %v1638 = vpop.f32.mrf.mxu0
        %v1639 = vadd.f32 0.0, %v1638
        %v1640 = vpop.f32.mrf.mxu0
        %1641 = vmatprep.mubr.bf16.mxu0 0
        %1642 = vmatmul.mubr.bf16.gmra.mxu0 %v1547
        %v1643 = vpop.f32.mrf.mxu0
        %v1644 = vadd.f32 0.0, %v1643
        %v1645 = vpop.f32.mrf.mxu0
        %v1646 = vpop.f32.mrf.mxu0
        %v1647 = vadd.f32 0.0, %v1646
        %v1648 = vpop.f32.mrf.mxu0
        %1649 = vmatprep.mubr.bf16.mxu0 0
        %1650 = vmatmul.mubr.bf16.gmra.mxu0 %v1550
        %v1651 = vpop.f32.mrf.mxu0
        %v1652 = vadd.f32 0.0, %v1651
        %v1653 = vpop.f32.mrf.mxu0
        %v1654 = vpop.f32.mrf.mxu0
        %v1655 = vadd.f32 0.0, %v1654
        %v1656 = vpop.f32.mrf.mxu0
        %1657 = vmatprep.mubr.bf16.mxu0 0
        %1658 = vmatmul.mubr.bf16.gmra.mxu0 %v1553
        %v1659 = vpop.f32.mrf.mxu0
        %v1660 = vadd.f32 0.0, %v1659
        %v1661 = vpop.f32.mrf.mxu0
        %v1662 = vpop.f32.mrf.mxu0
        %v1663 = vadd.f32 0.0, %v1662
        %v1664 = vpop.f32.mrf.mxu0
        %1665 = vmatprep.mubr.bf16.mxu0 0
        %1666 = vmatmul.mubr.bf16.gmra.mxu0 %v1556
        %v1667 = vpop.f32.mrf.mxu0
        %v1668 = vadd.f32 0.0, %v1667
        %v1669 = vpop.f32.mrf.mxu0
        %v1670 = vpop.f32.mrf.mxu0
        %v1671 = vadd.f32 0.0, %v1670
        %v1672 = vpop.f32.mrf.mxu0
        %1673 = vmatprep.mubr.bf16.mxu0 0
        %1674 = vmatmul.mubr.bf16.gmra.mxu0 %v1559
        %v1675 = vpop.f32.mrf.mxu0
        %v1676 = vadd.f32 0.0, %v1675
        %v1677 = vpop.f32.mrf.mxu0
        %v1678 = vpop.f32.mrf.mxu0
        %v1679 = vadd.f32 0.0, %v1678
        %v1680 = vpop.f32.mrf.mxu0
        %1681 = vmatprep.mubr.bf16.mxu0 0
        %1682 = vmatmul.mubr.bf16.gmra.mxu0 %v1562
        %v1683 = vpop.f32.mrf.mxu0
        %v1684 = vadd.f32 0.0, %v1683
        %v1685 = vpop.f32.mrf.mxu0
        %v1686 = vpop.f32.mrf.mxu0
        %v1687 = vadd.f32 0.0, %v1686
        %v1688 = vpop.f32.mrf.mxu0
        %1689 = vmatprep.mubr.bf16.mxu0 0
        %1690 = vmatmul.mubr.bf16.gmra.mxu0 %v1565
        %v1691 = vpop.f32.mrf.mxu0
        %v1692 = vadd.f32 0.0, %v1691
        %v1693 = vpop.f32.mrf.mxu0
        %v1694 = vpop.f32.mrf.mxu0
        %v1695 = vadd.f32 0.0, %v1694
        %v1696 = vpop.f32.mrf.mxu0
        %1697 = vmatprep.mubr.bf16.mxu0 0
        %1698 = vmatmul.mubr.bf16.gmra.mxu0 %v1568
        %v1699 = vpop.f32.mrf.mxu0
        %v1700 = vadd.f32 0.0, %v1699
        %v1701 = vpop.f32.mrf.mxu0
        %v1702 = vpop.f32.mrf.mxu0
        %v1703 = vadd.f32 0.0, %v1702
        %v1704 = vpop.f32.mrf.mxu0
        %1705 = vmatprep.mubr.bf16.mxu0 0
        %1706 = vmatmul.mubr.bf16.gmra.mxu0 %v1571
        %v1707 = vpop.f32.mrf.mxu0
        %v1708 = vadd.f32 0.0, %v1707
        %v1709 = vpop.f32.mrf.mxu0
        %v1710 = vpop.f32.mrf.mxu0
        %v1711 = vadd.f32 0.0, %v1710
        %v1712 = vpop.f32.mrf.mxu0
        %1713 = vmatprep.mubr.bf16.mxu0 0
        %1714 = vmatmul.mubr.bf16.gmra.mxu0 %v1574
        %v1715 = vpop.f32.mrf.mxu0
        %v1716 = vadd.f32 0.0, %v1715
        %v1717 = vpop.f32.mrf.mxu0
        %v1718 = vpop.f32.mrf.mxu0
        %v1719 = vadd.f32 0.0, %v1718
        %v1720 = vpop.f32.mrf.mxu0
        %1721 = vmatprep.mubr.bf16.mxu0 0
        %1722 = vmatmul.mubr.bf16.gmra.mxu0 %v1577
        %v1723 = vpop.f32.mrf.mxu0
        %v1724 = vadd.f32 0.0, %v1723
        %v1725 = vpop.f32.mrf.mxu0
        %v1726 = vpop.f32.mrf.mxu0
        %v1727 = vadd.f32 0.0, %v1726
        %v1728 = vpop.f32.mrf.mxu0
        %1729 = vmatprep.mubr.bf16.mxu0 0
        %1730 = vmatmul.mubr.bf16.gmra.mxu0 %v1580
        %v1731 = vpop.f32.mrf.mxu0
        %v1732 = vadd.f32 0.0, %v1731
        %v1733 = vpop.f32.mrf.mxu0
        %v1734 = vpop.f32.mrf.mxu0
        %v1735 = vadd.f32 0.0, %v1734
        %v1736 = vpop.f32.mrf.mxu0
        %1737 = vmatprep.mubr.bf16.mxu0 0
        %1738 = vmatmul.mubr.bf16.gmra.mxu0 %v1583
        %v1739 = vpop.f32.mrf.mxu0
        %v1740 = vadd.f32 0.0, %v1739
        %v1741 = vpop.f32.mrf.mxu0
        %v1742 = vpop.f32.mrf.mxu0
        %v1743 = vadd.f32 0.0, %v1742
        %v1744 = vpop.f32.mrf.mxu0
        %1745 = vdwg.mxu0
        %v1746 = vadd.f32 %v1354, %v1620
        %v1747 = vadd.f32 %v1357, %v1623
        %v1748 = vadd.f32 %v1362, %v1628
        %v1749 = vadd.f32 %v1365, %v1631
        %v1750 = vadd.f32 %v1370, %v1636
        %v1751 = vadd.f32 %v1373, %v1639
        %v1752 = vadd.f32 %v1378, %v1644
        %v1753 = vadd.f32 %v1381, %v1647
        %v1754 = vadd.f32 %v1386, %v1652
        %v1755 = vadd.f32 %v1389, %v1655
        %v1756 = vadd.f32 %v1394, %v1660
        %v1757 = vadd.f32 %v1397, %v1663
        %v1758 = vadd.f32 %v1402, %v1668
        %v1759 = vadd.f32 %v1405, %v1671
        %v1760 = vadd.f32 %v1410, %v1676
        %v1761 = vadd.f32 %v1413, %v1679
        %v1762 = vadd.f32 %v1418, %v1684
        %v1763 = vadd.f32 %v1421, %v1687
        %v1764 = vadd.f32 %v1426, %v1692
        %v1765 = vadd.f32 %v1429, %v1695
        %v1766 = vadd.f32 %v1434, %v1700
        %v1767 = vadd.f32 %v1437, %v1703
        %v1768 = vadd.f32 %v1442, %v1708
        %v1769 = vadd.f32 %v1445, %v1711
        %v1770 = vadd.f32 %v1450, %v1716
        %v1771 = vadd.f32 %v1453, %v1719
        %v1772 = vadd.f32 %v1458, %v1724
        %v1773 = vadd.f32 %v1461, %v1727
        %v1774 = vadd.f32 %v1466, %v1732
        %v1775 = vadd.f32 %v1469, %v1735
        %v1776 = vadd.f32 %v1474, %v1740
        %v1777 = vadd.f32 %v1477, %v1743
        %v1778 = vld [vmem:[%s916] sm:$0xff]
        %v1779 = vld [vmem:[%s916 + $0x8] sm:$0xff]
        %v1780 = vld [vmem:[%s916 + $0x18] sm:$0xff]
        %v1781 = vld [vmem:[%s916 + $0x20] sm:$0xff]
        %v1782 = vld [vmem:[%s916 + $0x30] sm:$0xff]
        %v1783 = vld [vmem:[%s916 + $0x38] sm:$0xff]
        %v1784 = vld [vmem:[%s916 + $0x48] sm:$0xff]
        %v1785 = vld [vmem:[%s916 + $0x50] sm:$0xff]
        %v1786 = vld [vmem:[%s916 + $0x60] sm:$0xff]
        %v1787 = vld [vmem:[%s916 + $0x68] sm:$0xff]
        %v1788 = vld [vmem:[%s916 + $0x78] sm:$0xff]
        %v1789 = vld [vmem:[%s916 + $0x80] sm:$0xff]
        %v1790 = vld [vmem:[%s916 + $0x90] sm:$0xff]
        %v1791 = vld [vmem:[%s916 + $0x98] sm:$0xff]
        %v1792 = vld [vmem:[%s916 + $0xa8] sm:$0xff]
        %v1793 = vld [vmem:[%s916 + $0xb0] sm:$0xff]
        %v1794 = vld [vmem:[%s916 + $0xc0] sm:$0xff]
        %v1795 = vld [vmem:[%s916 + $0xc8] sm:$0xff]
        %v1796 = vld [vmem:[%s916 + $0xd8] sm:$0xff]
        %v1797 = vld [vmem:[%s916 + $0xe0] sm:$0xff]
        %v1798 = vld [vmem:[%s916 + $0xf0] sm:$0xff]
        %v1799 = vld [vmem:[%s916 + $0xf8] sm:$0xff]
        %v1800 = vld [vmem:[%s916 + $0x108] sm:$0xff]
        %v1801 = vld [vmem:[%s916 + $0x110] sm:$0xff]
        %v1802 = vld [vmem:[%s916 + $0x120] sm:$0xff]
        %v1803 = vld [vmem:[%s916 + $0x128] sm:$0xff]
        %v1804 = vld [vmem:[%s916 + $0x138] sm:$0xff]
        %v1805 = vld [vmem:[%s916 + $0x140] sm:$0xff]
        %v1806 = vld [vmem:[%s916 + $0x150] sm:$0xff]
        %v1807 = vld [vmem:[%s916 + $0x158] sm:$0xff]
        %v1808 = vld [vmem:[%s916 + $0x168] sm:$0xff]
        %v1809 = vld [vmem:[%s916 + $0x170] sm:$0xff]
        %v1810 = vpack.c.bf16 %v1779, %v1778
        %v1811 = vpack.c.bf16 %v1781, %v1780
        %v1812 = vpack.c.bf16 %v1783, %v1782
        %v1813 = vpack.c.bf16 %v1785, %v1784
        %v1814 = vpack.c.bf16 %v1787, %v1786
        %v1815 = vpack.c.bf16 %v1789, %v1788
        %v1816 = vpack.c.bf16 %v1791, %v1790
        %v1817 = vpack.c.bf16 %v1793, %v1792
        %v1818 = vpack.c.bf16 %v1795, %v1794
        %v1819 = vpack.c.bf16 %v1797, %v1796
        %v1820 = vpack.c.bf16 %v1799, %v1798
        %v1821 = vpack.c.bf16 %v1801, %v1800
        %v1822 = vpack.c.bf16 %v1803, %v1802
        %v1823 = vpack.c.bf16 %v1805, %v1804
        %v1824 = vpack.c.bf16 %v1807, %v1806
        %v1825 = vpack.c.bf16 %v1809, %v1808
        %s1826 = scalar_lea.vmem %s6, 24
        %v1827 = vld [vmem:[%s1826] sm:$0xf]
        %v1828 = vld [vmem:[%s1826 + $0x4] sm:$0xf]
        %v1831 = vunpack.c.l.b16 %v1827
        %v1832 = vunpack.c.l.b16 %v1828
        %v1833 = vpack.c.b16 %v1832, %v1831
        %v1836 = vsel %vm377, %v1810, 0
        %v1839 = vsel %vm377, %v1811, 0
        %v1842 = vsel %vm377, %v1812, 0
        %v1845 = vsel %vm377, %v1813, 0
        %v1848 = vsel %vm377, %v1814, 0
        %v1851 = vsel %vm377, %v1815, 0
        %v1854 = vsel %vm377, %v1816, 0
        %v1857 = vsel %vm377, %v1817, 0
        %v1860 = vsel %vm377, %v1818, 0
        %v1863 = vsel %vm377, %v1819, 0
        %v1866 = vsel %vm377, %v1820, 0
        %v1869 = vsel %vm377, %v1821, 0
        %v1872 = vsel %vm377, %v1822, 0
        %v1875 = vsel %vm377, %v1823, 0
        %v1878 = vsel %vm377, %v1824, 0
        %v1881 = vsel %vm377, %v1825, 0
        %1883 = vmatprep.subr.bf16.mxu0 0
        %1884 = vmatpush1.bf16.msra.mxu0 0
        %1885 = vmatprep.subr.bf16.mxu0 0
        %1886 = vmatpush1.bf16.msra.mxu0 0
        %1887 = vmatprep.subr.bf16.mxu0 0
        %1888 = vmatpush1.bf16.msra.mxu0 0
        %1889 = vmatprep.subr.bf16.mxu0 0
        %1890 = vmatpush1.bf16.msra.mxu0 0
        %1891 = vmatprep.subr.bf16.mxu0 0
        %1892 = vmatpush1.bf16.msra.mxu0 0
        %1893 = vmatprep.subr.bf16.mxu0 0
        %1894 = vmatpush1.bf16.msra.mxu0 0
        %1895 = vmatprep.subr.bf16.mxu0 0
        %1896 = vmatpush1.bf16.msra.mxu0 0
        %1897 = vmatprep.subr.bf16.mxu0 0
        %1898 = vmatpush1.bf16.msra.mxu0 %v1833
        %1899 = vmatprep.subr.bf16.mxu0 0
        %1900 = vmatpush2.bf16.msra.mxu0 0
        %1901 = vmatprep.subr.bf16.mxu0 0
        %1902 = vmatpush2.bf16.msra.mxu0 0
        %1903 = vmatprep.subr.bf16.mxu0 0
        %1904 = vmatpush2.bf16.msra.mxu0 0
        %1905 = vmatprep.subr.bf16.mxu0 0
        %1906 = vmatpush2.bf16.msra.mxu0 0
        %1907 = vmatprep.subr.bf16.mxu0 0
        %1908 = vmatpush2.bf16.msra.mxu0 0
        %1909 = vmatprep.subr.bf16.mxu0 0
        %1910 = vmatpush2.bf16.msra.mxu0 0
        %1911 = vmatprep.subr.bf16.mxu0 0
        %1912 = vmatpush2.bf16.msra.mxu0 0
        %1913 = vmatprep.subr.bf16.mxu0 0
        %1914 = vmatpush2.bf16.msra.mxu0 0
        %1915 = vmatprep.mubr.bf16.mxu0 0
        %1916 = vmatmul.mubr.bf16.gmra.mxu0 %v1836
        %v1917 = vpop.f32.mrf.mxu0
        %v1918 = vadd.f32 0.0, %v1917
        %v1919 = vpop.f32.mrf.mxu0
        %v1920 = vpop.f32.mrf.mxu0
        %v1921 = vadd.f32 0.0, %v1920
        %v1922 = vpop.f32.mrf.mxu0
        %1923 = vmatprep.mubr.bf16.mxu0 0
        %1924 = vmatmul.mubr.bf16.gmra.mxu0 %v1839
        %v1925 = vpop.f32.mrf.mxu0
        %v1926 = vadd.f32 0.0, %v1925
        %v1927 = vpop.f32.mrf.mxu0
        %v1928 = vpop.f32.mrf.mxu0
        %v1929 = vadd.f32 0.0, %v1928
        %v1930 = vpop.f32.mrf.mxu0
        %1931 = vmatprep.mubr.bf16.mxu0 0
        %1932 = vmatmul.mubr.bf16.gmra.mxu0 %v1842
        %v1933 = vpop.f32.mrf.mxu0
        %v1934 = vadd.f32 0.0, %v1933
        %v1935 = vpop.f32.mrf.mxu0
        %v1936 = vpop.f32.mrf.mxu0
        %v1937 = vadd.f32 0.0, %v1936
        %v1938 = vpop.f32.mrf.mxu0
        %1939 = vmatprep.mubr.bf16.mxu0 0
        %1940 = vmatmul.mubr.bf16.gmra.mxu0 %v1845
        %v1941 = vpop.f32.mrf.mxu0
        %v1942 = vadd.f32 0.0, %v1941
        %v1943 = vpop.f32.mrf.mxu0
        %v1944 = vpop.f32.mrf.mxu0
        %v1945 = vadd.f32 0.0, %v1944
        %v1946 = vpop.f32.mrf.mxu0
        %1947 = vmatprep.mubr.bf16.mxu0 0
        %1948 = vmatmul.mubr.bf16.gmra.mxu0 %v1848
        %v1949 = vpop.f32.mrf.mxu0
        %v1950 = vadd.f32 0.0, %v1949
        %v1951 = vpop.f32.mrf.mxu0
        %v1952 = vpop.f32.mrf.mxu0
        %v1953 = vadd.f32 0.0, %v1952
        %v1954 = vpop.f32.mrf.mxu0
        %1955 = vmatprep.mubr.bf16.mxu0 0
        %1956 = vmatmul.mubr.bf16.gmra.mxu0 %v1851
        %v1957 = vpop.f32.mrf.mxu0
        %v1958 = vadd.f32 0.0, %v1957
        %v1959 = vpop.f32.mrf.mxu0
        %v1960 = vpop.f32.mrf.mxu0
        %v1961 = vadd.f32 0.0, %v1960
        %v1962 = vpop.f32.mrf.mxu0
        %1963 = vmatprep.mubr.bf16.mxu0 0
        %1964 = vmatmul.mubr.bf16.gmra.mxu0 %v1854
        %v1965 = vpop.f32.mrf.mxu0
        %v1966 = vadd.f32 0.0, %v1965
        %v1967 = vpop.f32.mrf.mxu0
        %v1968 = vpop.f32.mrf.mxu0
        %v1969 = vadd.f32 0.0, %v1968
        %v1970 = vpop.f32.mrf.mxu0
        %1971 = vmatprep.mubr.bf16.mxu0 0
        %1972 = vmatmul.mubr.bf16.gmra.mxu0 %v1857
        %v1973 = vpop.f32.mrf.mxu0
        %v1974 = vadd.f32 0.0, %v1973
        %v1975 = vpop.f32.mrf.mxu0
        %v1976 = vpop.f32.mrf.mxu0
        %v1977 = vadd.f32 0.0, %v1976
        %v1978 = vpop.f32.mrf.mxu0
        %1979 = vmatprep.mubr.bf16.mxu0 0
        %1980 = vmatmul.mubr.bf16.gmra.mxu0 %v1860
        %v1981 = vpop.f32.mrf.mxu0
        %v1982 = vadd.f32 0.0, %v1981
        %v1983 = vpop.f32.mrf.mxu0
        %v1984 = vpop.f32.mrf.mxu0
        %v1985 = vadd.f32 0.0, %v1984
        %v1986 = vpop.f32.mrf.mxu0
        %1987 = vmatprep.mubr.bf16.mxu0 0
        %1988 = vmatmul.mubr.bf16.gmra.mxu0 %v1863
        %v1989 = vpop.f32.mrf.mxu0
        %v1990 = vadd.f32 0.0, %v1989
        %v1991 = vpop.f32.mrf.mxu0
        %v1992 = vpop.f32.mrf.mxu0
        %v1993 = vadd.f32 0.0, %v1992
        %v1994 = vpop.f32.mrf.mxu0
        %1995 = vmatprep.mubr.bf16.mxu0 0
        %1996 = vmatmul.mubr.bf16.gmra.mxu0 %v1866
        %v1997 = vpop.f32.mrf.mxu0
        %v1998 = vadd.f32 0.0, %v1997
        %v1999 = vpop.f32.mrf.mxu0
        %v2000 = vpop.f32.mrf.mxu0
        %v2001 = vadd.f32 0.0, %v2000
        %v2002 = vpop.f32.mrf.mxu0
        %2003 = vmatprep.mubr.bf16.mxu0 0
        %2004 = vmatmul.mubr.bf16.gmra.mxu0 %v1869
        %v2005 = vpop.f32.mrf.mxu0
        %v2006 = vadd.f32 0.0, %v2005
        %v2007 = vpop.f32.mrf.mxu0
        %v2008 = vpop.f32.mrf.mxu0
        %v2009 = vadd.f32 0.0, %v2008
        %v2010 = vpop.f32.mrf.mxu0
        %2011 = vmatprep.mubr.bf16.mxu0 0
        %2012 = vmatmul.mubr.bf16.gmra.mxu0 %v1872
        %v2013 = vpop.f32.mrf.mxu0
        %v2014 = vadd.f32 0.0, %v2013
        %v2015 = vpop.f32.mrf.mxu0
        %v2016 = vpop.f32.mrf.mxu0
        %v2017 = vadd.f32 0.0, %v2016
        %v2018 = vpop.f32.mrf.mxu0
        %2019 = vmatprep.mubr.bf16.mxu0 0
        %2020 = vmatmul.mubr.bf16.gmra.mxu0 %v1875
        %v2021 = vpop.f32.mrf.mxu0
        %v2022 = vadd.f32 0.0, %v2021
        %v2023 = vpop.f32.mrf.mxu0
        %v2024 = vpop.f32.mrf.mxu0
        %v2025 = vadd.f32 0.0, %v2024
        %v2026 = vpop.f32.mrf.mxu0
        %2027 = vmatprep.mubr.bf16.mxu0 0
        %2028 = vmatmul.mubr.bf16.gmra.mxu0 %v1878
        %v2029 = vpop.f32.mrf.mxu0
        %v2030 = vadd.f32 0.0, %v2029
        %v2031 = vpop.f32.mrf.mxu0
        %v2032 = vpop.f32.mrf.mxu0
        %v2033 = vadd.f32 0.0, %v2032
        %v2034 = vpop.f32.mrf.mxu0
        %2035 = vmatprep.mubr.bf16.mxu0 0
        %2036 = vmatmul.mubr.bf16.gmra.mxu0 %v1881
        %v2037 = vpop.f32.mrf.mxu0
        %v2038 = vadd.f32 0.0, %v2037
        %v2039 = vpop.f32.mrf.mxu0
        %v2040 = vpop.f32.mrf.mxu0
        %v2041 = vadd.f32 0.0, %v2040
        %v2042 = vpop.f32.mrf.mxu0
        %2043 = vdwg.mxu0
        %v2044 = vadd.f32 %v1746, %v1918
        %v2045 = vadd.f32 %v1747, %v1921
        %v2046 = vadd.f32 %v1748, %v1926
        %v2047 = vadd.f32 %v1749, %v1929
        %v2048 = vadd.f32 %v1750, %v1934
        %v2049 = vadd.f32 %v1751, %v1937
        %v2050 = vadd.f32 %v1752, %v1942
        %v2051 = vadd.f32 %v1753, %v1945
        %v2052 = vadd.f32 %v1754, %v1950
        %v2053 = vadd.f32 %v1755, %v1953
        %v2054 = vadd.f32 %v1756, %v1958
        %v2055 = vadd.f32 %v1757, %v1961
        %v2056 = vadd.f32 %v1758, %v1966
        %v2057 = vadd.f32 %v1759, %v1969
        %v2058 = vadd.f32 %v1760, %v1974
        %v2059 = vadd.f32 %v1761, %v1977
        %v2060 = vadd.f32 %v1762, %v1982
        %v2061 = vadd.f32 %v1763, %v1985
        %v2062 = vadd.f32 %v1764, %v1990
        %v2063 = vadd.f32 %v1765, %v1993
        %v2064 = vadd.f32 %v1766, %v1998
        %v2065 = vadd.f32 %v1767, %v2001
        %v2066 = vadd.f32 %v1768, %v2006
        %v2067 = vadd.f32 %v1769, %v2009
        %v2068 = vadd.f32 %v1770, %v2014
        %v2069 = vadd.f32 %v1771, %v2017
        %v2070 = vadd.f32 %v1772, %v2022
        %v2071 = vadd.f32 %v1773, %v2025
        %v2072 = vadd.f32 %v1774, %v2030
        %v2073 = vadd.f32 %v1775, %v2033
        %v2074 = vadd.f32 %v1776, %v2038
        %v2075 = vadd.f32 %v1777, %v2041
        %v2076 = vld [vmem:[%s916 + $0x1] sm:$0xff]
        %v2077 = vld [vmem:[%s916 + $0x9] sm:$0xff]
        %v2078 = vld [vmem:[%s916 + $0x19] sm:$0xff]
        %v2079 = vld [vmem:[%s916 + $0x21] sm:$0xff]
        %v2080 = vld [vmem:[%s916 + $0x31] sm:$0xff]
        %v2081 = vld [vmem:[%s916 + $0x39] sm:$0xff]
        %v2082 = vld [vmem:[%s916 + $0x49] sm:$0xff]
        %v2083 = vld [vmem:[%s916 + $0x51] sm:$0xff]
        %v2084 = vld [vmem:[%s916 + $0x61] sm:$0xff]
        %v2085 = vld [vmem:[%s916 + $0x69] sm:$0xff]
        %v2086 = vld [vmem:[%s916 + $0x79] sm:$0xff]
        %v2087 = vld [vmem:[%s916 + $0x81] sm:$0xff]
        %v2088 = vld [vmem:[%s916 + $0x91] sm:$0xff]
        %v2089 = vld [vmem:[%s916 + $0x99] sm:$0xff]
        %v2090 = vld [vmem:[%s916 + $0xa9] sm:$0xff]
        %v2091 = vld [vmem:[%s916 + $0xb1] sm:$0xff]
        %v2092 = vld [vmem:[%s916 + $0xc1] sm:$0xff]
        %v2093 = vld [vmem:[%s916 + $0xc9] sm:$0xff]
        %v2094 = vld [vmem:[%s916 + $0xd9] sm:$0xff]
        %v2095 = vld [vmem:[%s916 + $0xe1] sm:$0xff]
        %v2096 = vld [vmem:[%s916 + $0xf1] sm:$0xff]
        %v2097 = vld [vmem:[%s916 + $0xf9] sm:$0xff]
        %v2098 = vld [vmem:[%s916 + $0x109] sm:$0xff]
        %v2099 = vld [vmem:[%s916 + $0x111] sm:$0xff]
        %v2100 = vld [vmem:[%s916 + $0x121] sm:$0xff]
        %v2101 = vld [vmem:[%s916 + $0x129] sm:$0xff]
        %v2102 = vld [vmem:[%s916 + $0x139] sm:$0xff]
        %v2103 = vld [vmem:[%s916 + $0x141] sm:$0xff]
        %v2104 = vld [vmem:[%s916 + $0x151] sm:$0xff]
        %v2105 = vld [vmem:[%s916 + $0x159] sm:$0xff]
        %v2106 = vld [vmem:[%s916 + $0x169] sm:$0xff]
        %v2107 = vld [vmem:[%s916 + $0x171] sm:$0xff]
        %v2108 = vpack.c.bf16 %v2077, %v2076
        %v2109 = vpack.c.bf16 %v2079, %v2078
        %v2110 = vpack.c.bf16 %v2081, %v2080
        %v2111 = vpack.c.bf16 %v2083, %v2082
        %v2112 = vpack.c.bf16 %v2085, %v2084
        %v2113 = vpack.c.bf16 %v2087, %v2086
        %v2114 = vpack.c.bf16 %v2089, %v2088
        %v2115 = vpack.c.bf16 %v2091, %v2090
        %v2116 = vpack.c.bf16 %v2093, %v2092
        %v2117 = vpack.c.bf16 %v2095, %v2094
        %v2118 = vpack.c.bf16 %v2097, %v2096
        %v2119 = vpack.c.bf16 %v2099, %v2098
        %v2120 = vpack.c.bf16 %v2101, %v2100
        %v2121 = vpack.c.bf16 %v2103, %v2102
        %v2122 = vpack.c.bf16 %v2105, %v2104
        %v2123 = vpack.c.bf16 %v2107, %v2106
        %s2124 = scalar_lea.vmem %s6, 32
        %v2125 = vld [vmem:[%s2124] sm:$0xf]
        %v2126 = vld [vmem:[%s2124 + $0x4] sm:$0xf]
        %v2129 = vunpack.c.l.b16 %v2125
        %v2130 = vunpack.c.l.b16 %v2126
        %v2131 = vpack.c.b16 %v2130, %v2129
        %v2134 = vsel %vm377, %v2108, 0
        %v2137 = vsel %vm377, %v2109, 0
        %v2140 = vsel %vm377, %v2110, 0
        %v2143 = vsel %vm377, %v2111, 0
        %v2146 = vsel %vm377, %v2112, 0
        %v2149 = vsel %vm377, %v2113, 0
        %v2152 = vsel %vm377, %v2114, 0
        %v2155 = vsel %vm377, %v2115, 0
        %v2158 = vsel %vm377, %v2116, 0
        %v2161 = vsel %vm377, %v2117, 0
        %v2164 = vsel %vm377, %v2118, 0
        %v2167 = vsel %vm377, %v2119, 0
        %v2170 = vsel %vm377, %v2120, 0
        %v2173 = vsel %vm377, %v2121, 0
        %v2176 = vsel %vm377, %v2122, 0
        %v2179 = vsel %vm377, %v2123, 0
        %2181 = vmatprep.subr.bf16.mxu0 0
        %2182 = vmatpush1.bf16.msra.mxu0 0
        %2183 = vmatprep.subr.bf16.mxu0 0
        %2184 = vmatpush1.bf16.msra.mxu0 0
        %2185 = vmatprep.subr.bf16.mxu0 0
        %2186 = vmatpush1.bf16.msra.mxu0 0
        %2187 = vmatprep.subr.bf16.mxu0 0
        %2188 = vmatpush1.bf16.msra.mxu0 0
        %2189 = vmatprep.subr.bf16.mxu0 0
        %2190 = vmatpush1.bf16.msra.mxu0 0
        %2191 = vmatprep.subr.bf16.mxu0 0
        %2192 = vmatpush1.bf16.msra.mxu0 0
        %2193 = vmatprep.subr.bf16.mxu0 0
        %2194 = vmatpush1.bf16.msra.mxu0 0
        %2195 = vmatprep.subr.bf16.mxu0 0
        %2196 = vmatpush1.bf16.msra.mxu0 %v2131
        %2197 = vmatprep.subr.bf16.mxu0 0
        %2198 = vmatpush2.bf16.msra.mxu0 0
        %2199 = vmatprep.subr.bf16.mxu0 0
        %2200 = vmatpush2.bf16.msra.mxu0 0
        %2201 = vmatprep.subr.bf16.mxu0 0
        %2202 = vmatpush2.bf16.msra.mxu0 0
        %2203 = vmatprep.subr.bf16.mxu0 0
        %2204 = vmatpush2.bf16.msra.mxu0 0
        %2205 = vmatprep.subr.bf16.mxu0 0
        %2206 = vmatpush2.bf16.msra.mxu0 0
        %2207 = vmatprep.subr.bf16.mxu0 0
        %2208 = vmatpush2.bf16.msra.mxu0 0
        %2209 = vmatprep.subr.bf16.mxu0 0
        %2210 = vmatpush2.bf16.msra.mxu0 0
        %2211 = vmatprep.subr.bf16.mxu0 0
        %2212 = vmatpush2.bf16.msra.mxu0 0
        %2213 = vmatprep.mubr.bf16.mxu0 0
        %2214 = vmatmul.mubr.bf16.gmra.mxu0 %v2134
        %v2215 = vpop.f32.mrf.mxu0
        %v2216 = vadd.f32 0.0, %v2215
        %v2217 = vpop.f32.mrf.mxu0
        %v2218 = vpop.f32.mrf.mxu0
        %v2219 = vadd.f32 0.0, %v2218
        %v2220 = vpop.f32.mrf.mxu0
        %2221 = vmatprep.mubr.bf16.mxu0 0
        %2222 = vmatmul.mubr.bf16.gmra.mxu0 %v2137
        %v2223 = vpop.f32.mrf.mxu0
        %v2224 = vadd.f32 0.0, %v2223
        %v2225 = vpop.f32.mrf.mxu0
        %v2226 = vpop.f32.mrf.mxu0
        %v2227 = vadd.f32 0.0, %v2226
        %v2228 = vpop.f32.mrf.mxu0
        %2229 = vmatprep.mubr.bf16.mxu0 0
        %2230 = vmatmul.mubr.bf16.gmra.mxu0 %v2140
        %v2231 = vpop.f32.mrf.mxu0
        %v2232 = vadd.f32 0.0, %v2231
        %v2233 = vpop.f32.mrf.mxu0
        %v2234 = vpop.f32.mrf.mxu0
        %v2235 = vadd.f32 0.0, %v2234
        %v2236 = vpop.f32.mrf.mxu0
        %2237 = vmatprep.mubr.bf16.mxu0 0
        %2238 = vmatmul.mubr.bf16.gmra.mxu0 %v2143
        %v2239 = vpop.f32.mrf.mxu0
        %v2240 = vadd.f32 0.0, %v2239
        %v2241 = vpop.f32.mrf.mxu0
        %v2242 = vpop.f32.mrf.mxu0
        %v2243 = vadd.f32 0.0, %v2242
        %v2244 = vpop.f32.mrf.mxu0
        %2245 = vmatprep.mubr.bf16.mxu0 0
        %2246 = vmatmul.mubr.bf16.gmra.mxu0 %v2146
        %v2247 = vpop.f32.mrf.mxu0
        %v2248 = vadd.f32 0.0, %v2247
        %v2249 = vpop.f32.mrf.mxu0
        %v2250 = vpop.f32.mrf.mxu0
        %v2251 = vadd.f32 0.0, %v2250
        %v2252 = vpop.f32.mrf.mxu0
        %2253 = vmatprep.mubr.bf16.mxu0 0
        %2254 = vmatmul.mubr.bf16.gmra.mxu0 %v2149
        %v2255 = vpop.f32.mrf.mxu0
        %v2256 = vadd.f32 0.0, %v2255
        %v2257 = vpop.f32.mrf.mxu0
        %v2258 = vpop.f32.mrf.mxu0
        %v2259 = vadd.f32 0.0, %v2258
        %v2260 = vpop.f32.mrf.mxu0
        %2261 = vmatprep.mubr.bf16.mxu0 0
        %2262 = vmatmul.mubr.bf16.gmra.mxu0 %v2152
        %v2263 = vpop.f32.mrf.mxu0
        %v2264 = vadd.f32 0.0, %v2263
        %v2265 = vpop.f32.mrf.mxu0
        %v2266 = vpop.f32.mrf.mxu0
        %v2267 = vadd.f32 0.0, %v2266
        %v2268 = vpop.f32.mrf.mxu0
        %2269 = vmatprep.mubr.bf16.mxu0 0
        %2270 = vmatmul.mubr.bf16.gmra.mxu0 %v2155
        %v2271 = vpop.f32.mrf.mxu0
        %v2272 = vadd.f32 0.0, %v2271
        %v2273 = vpop.f32.mrf.mxu0
        %v2274 = vpop.f32.mrf.mxu0
        %v2275 = vadd.f32 0.0, %v2274
        %v2276 = vpop.f32.mrf.mxu0
        %2277 = vmatprep.mubr.bf16.mxu0 0
        %2278 = vmatmul.mubr.bf16.gmra.mxu0 %v2158
        %v2279 = vpop.f32.mrf.mxu0
        %v2280 = vadd.f32 0.0, %v2279
        %v2281 = vpop.f32.mrf.mxu0
        %v2282 = vpop.f32.mrf.mxu0
        %v2283 = vadd.f32 0.0, %v2282
        %v2284 = vpop.f32.mrf.mxu0
        %2285 = vmatprep.mubr.bf16.mxu0 0
        %2286 = vmatmul.mubr.bf16.gmra.mxu0 %v2161
        %v2287 = vpop.f32.mrf.mxu0
        %v2288 = vadd.f32 0.0, %v2287
        %v2289 = vpop.f32.mrf.mxu0
        %v2290 = vpop.f32.mrf.mxu0
        %v2291 = vadd.f32 0.0, %v2290
        %v2292 = vpop.f32.mrf.mxu0
        %2293 = vmatprep.mubr.bf16.mxu0 0
        %2294 = vmatmul.mubr.bf16.gmra.mxu0 %v2164
        %v2295 = vpop.f32.mrf.mxu0
        %v2296 = vadd.f32 0.0, %v2295
        %v2297 = vpop.f32.mrf.mxu0
        %v2298 = vpop.f32.mrf.mxu0
        %v2299 = vadd.f32 0.0, %v2298
        %v2300 = vpop.f32.mrf.mxu0
        %2301 = vmatprep.mubr.bf16.mxu0 0
        %2302 = vmatmul.mubr.bf16.gmra.mxu0 %v2167
        %v2303 = vpop.f32.mrf.mxu0
        %v2304 = vadd.f32 0.0, %v2303
        %v2305 = vpop.f32.mrf.mxu0
        %v2306 = vpop.f32.mrf.mxu0
        %v2307 = vadd.f32 0.0, %v2306
        %v2308 = vpop.f32.mrf.mxu0
        %2309 = vmatprep.mubr.bf16.mxu0 0
        %2310 = vmatmul.mubr.bf16.gmra.mxu0 %v2170
        %v2311 = vpop.f32.mrf.mxu0
        %v2312 = vadd.f32 0.0, %v2311
        %v2313 = vpop.f32.mrf.mxu0
        %v2314 = vpop.f32.mrf.mxu0
        %v2315 = vadd.f32 0.0, %v2314
        %v2316 = vpop.f32.mrf.mxu0
        %2317 = vmatprep.mubr.bf16.mxu0 0
        %2318 = vmatmul.mubr.bf16.gmra.mxu0 %v2173
        %v2319 = vpop.f32.mrf.mxu0
        %v2320 = vadd.f32 0.0, %v2319
        %v2321 = vpop.f32.mrf.mxu0
        %v2322 = vpop.f32.mrf.mxu0
        %v2323 = vadd.f32 0.0, %v2322
        %v2324 = vpop.f32.mrf.mxu0
        %2325 = vmatprep.mubr.bf16.mxu0 0
        %2326 = vmatmul.mubr.bf16.gmra.mxu0 %v2176
        %v2327 = vpop.f32.mrf.mxu0
        %v2328 = vadd.f32 0.0, %v2327
        %v2329 = vpop.f32.mrf.mxu0
        %v2330 = vpop.f32.mrf.mxu0
        %v2331 = vadd.f32 0.0, %v2330
        %v2332 = vpop.f32.mrf.mxu0
        %2333 = vmatprep.mubr.bf16.mxu0 0
        %2334 = vmatmul.mubr.bf16.gmra.mxu0 %v2179
        %v2335 = vpop.f32.mrf.mxu0
        %v2336 = vadd.f32 0.0, %v2335
        %v2337 = vpop.f32.mrf.mxu0
        %v2338 = vpop.f32.mrf.mxu0
        %v2339 = vadd.f32 0.0, %v2338
        %v2340 = vpop.f32.mrf.mxu0
        %2341 = vdwg.mxu0
        %v2342 = vadd.f32 %v2044, %v2216
        %v2343 = vadd.f32 %v2045, %v2219
        %v2344 = vadd.f32 %v2046, %v2224
        %v2345 = vadd.f32 %v2047, %v2227
        %v2346 = vadd.f32 %v2048, %v2232
        %v2347 = vadd.f32 %v2049, %v2235
        %v2348 = vadd.f32 %v2050, %v2240
        %v2349 = vadd.f32 %v2051, %v2243
        %v2350 = vadd.f32 %v2052, %v2248
        %v2351 = vadd.f32 %v2053, %v2251
        %v2352 = vadd.f32 %v2054, %v2256
        %v2353 = vadd.f32 %v2055, %v2259
        %v2354 = vadd.f32 %v2056, %v2264
        %v2355 = vadd.f32 %v2057, %v2267
        %v2356 = vadd.f32 %v2058, %v2272
        %v2357 = vadd.f32 %v2059, %v2275
        %v2358 = vadd.f32 %v2060, %v2280
        %v2359 = vadd.f32 %v2061, %v2283
        %v2360 = vadd.f32 %v2062, %v2288
        %v2361 = vadd.f32 %v2063, %v2291
        %v2362 = vadd.f32 %v2064, %v2296
        %v2363 = vadd.f32 %v2065, %v2299
        %v2364 = vadd.f32 %v2066, %v2304
        %v2365 = vadd.f32 %v2067, %v2307
        %v2366 = vadd.f32 %v2068, %v2312
        %v2367 = vadd.f32 %v2069, %v2315
        %v2368 = vadd.f32 %v2070, %v2320
        %v2369 = vadd.f32 %v2071, %v2323
        %v2370 = vadd.f32 %v2072, %v2328
        %v2371 = vadd.f32 %v2073, %v2331
        %v2372 = vadd.f32 %v2074, %v2336
        %v2373 = vadd.f32 %v2075, %v2339
        %v2374 = vld [vmem:[%s916 + $0x2] sm:$0xff]
        %v2375 = vld [vmem:[%s916 + $0xa] sm:$0xff]
        %v2376 = vld [vmem:[%s916 + $0x1a] sm:$0xff]
        %v2377 = vld [vmem:[%s916 + $0x22] sm:$0xff]
        %v2378 = vld [vmem:[%s916 + $0x32] sm:$0xff]
        %v2379 = vld [vmem:[%s916 + $0x3a] sm:$0xff]
        %v2380 = vld [vmem:[%s916 + $0x4a] sm:$0xff]
        %v2381 = vld [vmem:[%s916 + $0x52] sm:$0xff]
        %v2382 = vld [vmem:[%s916 + $0x62] sm:$0xff]
        %v2383 = vld [vmem:[%s916 + $0x6a] sm:$0xff]
        %v2384 = vld [vmem:[%s916 + $0x7a] sm:$0xff]
        %v2385 = vld [vmem:[%s916 + $0x82] sm:$0xff]
        %v2386 = vld [vmem:[%s916 + $0x92] sm:$0xff]
        %v2387 = vld [vmem:[%s916 + $0x9a] sm:$0xff]
        %v2388 = vld [vmem:[%s916 + $0xaa] sm:$0xff]
        %v2389 = vld [vmem:[%s916 + $0xb2] sm:$0xff]
        %v2390 = vld [vmem:[%s916 + $0xc2] sm:$0xff]
        %v2391 = vld [vmem:[%s916 + $0xca] sm:$0xff]
        %v2392 = vld [vmem:[%s916 + $0xda] sm:$0xff]
        %v2393 = vld [vmem:[%s916 + $0xe2] sm:$0xff]
        %v2394 = vld [vmem:[%s916 + $0xf2] sm:$0xff]
        %v2395 = vld [vmem:[%s916 + $0xfa] sm:$0xff]
        %v2396 = vld [vmem:[%s916 + $0x10a] sm:$0xff]
        %v2397 = vld [vmem:[%s916 + $0x112] sm:$0xff]
        %v2398 = vld [vmem:[%s916 + $0x122] sm:$0xff]
        %v2399 = vld [vmem:[%s916 + $0x12a] sm:$0xff]
        %v2400 = vld [vmem:[%s916 + $0x13a] sm:$0xff]
        %v2401 = vld [vmem:[%s916 + $0x142] sm:$0xff]
        %v2402 = vld [vmem:[%s916 + $0x152] sm:$0xff]
        %v2403 = vld [vmem:[%s916 + $0x15a] sm:$0xff]
        %v2404 = vld [vmem:[%s916 + $0x16a] sm:$0xff]
        %v2405 = vld [vmem:[%s916 + $0x172] sm:$0xff]
        %v2406 = vpack.c.bf16 %v2375, %v2374
        %v2407 = vpack.c.bf16 %v2377, %v2376
        %v2408 = vpack.c.bf16 %v2379, %v2378
        %v2409 = vpack.c.bf16 %v2381, %v2380
        %v2410 = vpack.c.bf16 %v2383, %v2382
        %v2411 = vpack.c.bf16 %v2385, %v2384
        %v2412 = vpack.c.bf16 %v2387, %v2386
        %v2413 = vpack.c.bf16 %v2389, %v2388
        %v2414 = vpack.c.bf16 %v2391, %v2390
        %v2415 = vpack.c.bf16 %v2393, %v2392
        %v2416 = vpack.c.bf16 %v2395, %v2394
        %v2417 = vpack.c.bf16 %v2397, %v2396
        %v2418 = vpack.c.bf16 %v2399, %v2398
        %v2419 = vpack.c.bf16 %v2401, %v2400
        %v2420 = vpack.c.bf16 %v2403, %v2402
        %v2421 = vpack.c.bf16 %v2405, %v2404
        %s2422 = scalar_lea.vmem %s6, 40
        %v2423 = vld [vmem:[%s2422] sm:$0xf]
        %v2424 = vld [vmem:[%s2422 + $0x4] sm:$0xf]
        %v2427 = vunpack.c.l.b16 %v2423
        %v2428 = vunpack.c.l.b16 %v2424
        %v2429 = vpack.c.b16 %v2428, %v2427
        %v2432 = vsel %vm377, %v2406, 0
        %v2435 = vsel %vm377, %v2407, 0
        %v2438 = vsel %vm377, %v2408, 0
        %v2441 = vsel %vm377, %v2409, 0
        %v2444 = vsel %vm377, %v2410, 0
        %v2447 = vsel %vm377, %v2411, 0
        %v2450 = vsel %vm377, %v2412, 0
        %v2453 = vsel %vm377, %v2413, 0
        %v2456 = vsel %vm377, %v2414, 0
        %v2459 = vsel %vm377, %v2415, 0
        %v2462 = vsel %vm377, %v2416, 0
        %v2465 = vsel %vm377, %v2417, 0
        %v2468 = vsel %vm377, %v2418, 0
        %v2471 = vsel %vm377, %v2419, 0
        %v2474 = vsel %vm377, %v2420, 0
        %v2477 = vsel %vm377, %v2421, 0
        %2479 = vmatprep.subr.bf16.mxu0 0
        %2480 = vmatpush1.bf16.msra.mxu0 0
        %2481 = vmatprep.subr.bf16.mxu0 0
        %2482 = vmatpush1.bf16.msra.mxu0 0
        %2483 = vmatprep.subr.bf16.mxu0 0
        %2484 = vmatpush1.bf16.msra.mxu0 0
        %2485 = vmatprep.subr.bf16.mxu0 0
        %2486 = vmatpush1.bf16.msra.mxu0 0
        %2487 = vmatprep.subr.bf16.mxu0 0
        %2488 = vmatpush1.bf16.msra.mxu0 0
        %2489 = vmatprep.subr.bf16.mxu0 0
        %2490 = vmatpush1.bf16.msra.mxu0 0
        %2491 = vmatprep.subr.bf16.mxu0 0
        %2492 = vmatpush1.bf16.msra.mxu0 0
        %2493 = vmatprep.subr.bf16.mxu0 0
        %2494 = vmatpush1.bf16.msra.mxu0 %v2429
        %2495 = vmatprep.subr.bf16.mxu0 0
        %2496 = vmatpush2.bf16.msra.mxu0 0
        %2497 = vmatprep.subr.bf16.mxu0 0
        %2498 = vmatpush2.bf16.msra.mxu0 0
        %2499 = vmatprep.subr.bf16.mxu0 0
        %2500 = vmatpush2.bf16.msra.mxu0 0
        %2501 = vmatprep.subr.bf16.mxu0 0
        %2502 = vmatpush2.bf16.msra.mxu0 0
        %2503 = vmatprep.subr.bf16.mxu0 0
        %2504 = vmatpush2.bf16.msra.mxu0 0
        %2505 = vmatprep.subr.bf16.mxu0 0
        %2506 = vmatpush2.bf16.msra.mxu0 0
        %2507 = vmatprep.subr.bf16.mxu0 0
        %2508 = vmatpush2.bf16.msra.mxu0 0
        %2509 = vmatprep.subr.bf16.mxu0 0
        %2510 = vmatpush2.bf16.msra.mxu0 0
        %2511 = vmatprep.mubr.bf16.mxu0 0
        %2512 = vmatmul.mubr.bf16.gmra.mxu0 %v2432
        %v2513 = vpop.f32.mrf.mxu0
        %v2514 = vadd.f32 0.0, %v2513
        %v2515 = vpop.f32.mrf.mxu0
        %v2516 = vpop.f32.mrf.mxu0
        %v2517 = vadd.f32 0.0, %v2516
        %v2518 = vpop.f32.mrf.mxu0
        %2519 = vmatprep.mubr.bf16.mxu0 0
        %2520 = vmatmul.mubr.bf16.gmra.mxu0 %v2435
        %v2521 = vpop.f32.mrf.mxu0
        %v2522 = vadd.f32 0.0, %v2521
        %v2523 = vpop.f32.mrf.mxu0
        %v2524 = vpop.f32.mrf.mxu0
        %v2525 = vadd.f32 0.0, %v2524
        %v2526 = vpop.f32.mrf.mxu0
        %2527 = vmatprep.mubr.bf16.mxu0 0
        %2528 = vmatmul.mubr.bf16.gmra.mxu0 %v2438
        %v2529 = vpop.f32.mrf.mxu0
        %v2530 = vadd.f32 0.0, %v2529
        %v2531 = vpop.f32.mrf.mxu0
        %v2532 = vpop.f32.mrf.mxu0
        %v2533 = vadd.f32 0.0, %v2532
        %v2534 = vpop.f32.mrf.mxu0
        %2535 = vmatprep.mubr.bf16.mxu0 0
        %2536 = vmatmul.mubr.bf16.gmra.mxu0 %v2441
        %v2537 = vpop.f32.mrf.mxu0
        %v2538 = vadd.f32 0.0, %v2537
        %v2539 = vpop.f32.mrf.mxu0
        %v2540 = vpop.f32.mrf.mxu0
        %v2541 = vadd.f32 0.0, %v2540
        %v2542 = vpop.f32.mrf.mxu0
        %2543 = vmatprep.mubr.bf16.mxu0 0
        %2544 = vmatmul.mubr.bf16.gmra.mxu0 %v2444
        %v2545 = vpop.f32.mrf.mxu0
        %v2546 = vadd.f32 0.0, %v2545
        %v2547 = vpop.f32.mrf.mxu0
        %v2548 = vpop.f32.mrf.mxu0
        %v2549 = vadd.f32 0.0, %v2548
        %v2550 = vpop.f32.mrf.mxu0
        %2551 = vmatprep.mubr.bf16.mxu0 0
        %2552 = vmatmul.mubr.bf16.gmra.mxu0 %v2447
        %v2553 = vpop.f32.mrf.mxu0
        %v2554 = vadd.f32 0.0, %v2553
        %v2555 = vpop.f32.mrf.mxu0
        %v2556 = vpop.f32.mrf.mxu0
        %v2557 = vadd.f32 0.0, %v2556
        %v2558 = vpop.f32.mrf.mxu0
        %2559 = vmatprep.mubr.bf16.mxu0 0
        %2560 = vmatmul.mubr.bf16.gmra.mxu0 %v2450
        %v2561 = vpop.f32.mrf.mxu0
        %v2562 = vadd.f32 0.0, %v2561
        %v2563 = vpop.f32.mrf.mxu0
        %v2564 = vpop.f32.mrf.mxu0
        %v2565 = vadd.f32 0.0, %v2564
        %v2566 = vpop.f32.mrf.mxu0
        %2567 = vmatprep.mubr.bf16.mxu0 0
        %2568 = vmatmul.mubr.bf16.gmra.mxu0 %v2453
        %v2569 = vpop.f32.mrf.mxu0
        %v2570 = vadd.f32 0.0, %v2569
        %v2571 = vpop.f32.mrf.mxu0
        %v2572 = vpop.f32.mrf.mxu0
        %v2573 = vadd.f32 0.0, %v2572
        %v2574 = vpop.f32.mrf.mxu0
        %2575 = vmatprep.mubr.bf16.mxu0 0
        %2576 = vmatmul.mubr.bf16.gmra.mxu0 %v2456
        %v2577 = vpop.f32.mrf.mxu0
        %v2578 = vadd.f32 0.0, %v2577
        %v2579 = vpop.f32.mrf.mxu0
        %v2580 = vpop.f32.mrf.mxu0
        %v2581 = vadd.f32 0.0, %v2580
        %v2582 = vpop.f32.mrf.mxu0
        %2583 = vmatprep.mubr.bf16.mxu0 0
        %2584 = vmatmul.mubr.bf16.gmra.mxu0 %v2459
        %v2585 = vpop.f32.mrf.mxu0
        %v2586 = vadd.f32 0.0, %v2585
        %v2587 = vpop.f32.mrf.mxu0
        %v2588 = vpop.f32.mrf.mxu0
        %v2589 = vadd.f32 0.0, %v2588
        %v2590 = vpop.f32.mrf.mxu0
        %2591 = vmatprep.mubr.bf16.mxu0 0
        %2592 = vmatmul.mubr.bf16.gmra.mxu0 %v2462
        %v2593 = vpop.f32.mrf.mxu0
        %v2594 = vadd.f32 0.0, %v2593
        %v2595 = vpop.f32.mrf.mxu0
        %v2596 = vpop.f32.mrf.mxu0
        %v2597 = vadd.f32 0.0, %v2596
        %v2598 = vpop.f32.mrf.mxu0
        %2599 = vmatprep.mubr.bf16.mxu0 0
        %2600 = vmatmul.mubr.bf16.gmra.mxu0 %v2465
        %v2601 = vpop.f32.mrf.mxu0
        %v2602 = vadd.f32 0.0, %v2601
        %v2603 = vpop.f32.mrf.mxu0
        %v2604 = vpop.f32.mrf.mxu0
        %v2605 = vadd.f32 0.0, %v2604
        %v2606 = vpop.f32.mrf.mxu0
        %2607 = vmatprep.mubr.bf16.mxu0 0
        %2608 = vmatmul.mubr.bf16.gmra.mxu0 %v2468
        %v2609 = vpop.f32.mrf.mxu0
        %v2610 = vadd.f32 0.0, %v2609
        %v2611 = vpop.f32.mrf.mxu0
        %v2612 = vpop.f32.mrf.mxu0
        %v2613 = vadd.f32 0.0, %v2612
        %v2614 = vpop.f32.mrf.mxu0
        %2615 = vmatprep.mubr.bf16.mxu0 0
        %2616 = vmatmul.mubr.bf16.gmra.mxu0 %v2471
        %v2617 = vpop.f32.mrf.mxu0
        %v2618 = vadd.f32 0.0, %v2617
        %v2619 = vpop.f32.mrf.mxu0
        %v2620 = vpop.f32.mrf.mxu0
        %v2621 = vadd.f32 0.0, %v2620
        %v2622 = vpop.f32.mrf.mxu0
        %2623 = vmatprep.mubr.bf16.mxu0 0
        %2624 = vmatmul.mubr.bf16.gmra.mxu0 %v2474
        %v2625 = vpop.f32.mrf.mxu0
        %v2626 = vadd.f32 0.0, %v2625
        %v2627 = vpop.f32.mrf.mxu0
        %v2628 = vpop.f32.mrf.mxu0
        %v2629 = vadd.f32 0.0, %v2628
        %v2630 = vpop.f32.mrf.mxu0
        %2631 = vmatprep.mubr.bf16.mxu0 0
        %2632 = vmatmul.mubr.bf16.gmra.mxu0 %v2477
        %v2633 = vpop.f32.mrf.mxu0
        %v2634 = vadd.f32 0.0, %v2633
        %v2635 = vpop.f32.mrf.mxu0
        %v2636 = vpop.f32.mrf.mxu0
        %v2637 = vadd.f32 0.0, %v2636
        %v2638 = vpop.f32.mrf.mxu0
        %2639 = vdwg.mxu0
        %v2640 = vadd.f32 %v2342, %v2514
        %v2641 = vadd.f32 %v2343, %v2517
        %v2642 = vadd.f32 %v2344, %v2522
        %v2643 = vadd.f32 %v2345, %v2525
        %v2644 = vadd.f32 %v2346, %v2530
        %v2645 = vadd.f32 %v2347, %v2533
        %v2646 = vadd.f32 %v2348, %v2538
        %v2647 = vadd.f32 %v2349, %v2541
        %v2648 = vadd.f32 %v2350, %v2546
        %v2649 = vadd.f32 %v2351, %v2549
        %v2650 = vadd.f32 %v2352, %v2554
        %v2651 = vadd.f32 %v2353, %v2557
        %v2652 = vadd.f32 %v2354, %v2562
        %v2653 = vadd.f32 %v2355, %v2565
        %v2654 = vadd.f32 %v2356, %v2570
        %v2655 = vadd.f32 %v2357, %v2573
        %v2656 = vadd.f32 %v2358, %v2578
        %v2657 = vadd.f32 %v2359, %v2581
        %v2658 = vadd.f32 %v2360, %v2586
        %v2659 = vadd.f32 %v2361, %v2589
        %v2660 = vadd.f32 %v2362, %v2594
        %v2661 = vadd.f32 %v2363, %v2597
        %v2662 = vadd.f32 %v2364, %v2602
        %v2663 = vadd.f32 %v2365, %v2605
        %v2664 = vadd.f32 %v2366, %v2610
        %v2665 = vadd.f32 %v2367, %v2613
        %v2666 = vadd.f32 %v2368, %v2618
        %v2667 = vadd.f32 %v2369, %v2621
        %v2668 = vadd.f32 %v2370, %v2626
        %v2669 = vadd.f32 %v2371, %v2629
        %v2670 = vadd.f32 %v2372, %v2634
        %v2671 = vadd.f32 %v2373, %v2637
        %s2672 = scalar_lea.vmem [#allocation3], 48
        %v2673 = vld [vmem:[%s2672] sm:$0xff]
        %v2674 = vld [vmem:[%s2672 + $0x8] sm:$0xff]
        %v2675 = vld [vmem:[%s2672 + $0x18] sm:$0xff]
        %v2676 = vld [vmem:[%s2672 + $0x20] sm:$0xff]
        %v2677 = vld [vmem:[%s2672 + $0x30] sm:$0xff]
        %v2678 = vld [vmem:[%s2672 + $0x38] sm:$0xff]
        %v2679 = vld [vmem:[%s2672 + $0x48] sm:$0xff]
        %v2680 = vld [vmem:[%s2672 + $0x50] sm:$0xff]
        %v2681 = vld [vmem:[%s2672 + $0x60] sm:$0xff]
        %v2682 = vld [vmem:[%s2672 + $0x68] sm:$0xff]
        %v2683 = vld [vmem:[%s2672 + $0x78] sm:$0xff]
        %v2684 = vld [vmem:[%s2672 + $0x80] sm:$0xff]
        %v2685 = vld [vmem:[%s2672 + $0x90] sm:$0xff]
        %v2686 = vld [vmem:[%s2672 + $0x98] sm:$0xff]
        %v2687 = vld [vmem:[%s2672 + $0xa8] sm:$0xff]
        %v2688 = vld [vmem:[%s2672 + $0xb0] sm:$0xff]
        %v2689 = vld [vmem:[%s2672 + $0xc0] sm:$0xff]
        %v2690 = vld [vmem:[%s2672 + $0xc8] sm:$0xff]
        %v2691 = vld [vmem:[%s2672 + $0xd8] sm:$0xff]
        %v2692 = vld [vmem:[%s2672 + $0xe0] sm:$0xff]
        %v2693 = vld [vmem:[%s2672 + $0xf0] sm:$0xff]
        %v2694 = vld [vmem:[%s2672 + $0xf8] sm:$0xff]
        %v2695 = vld [vmem:[%s2672 + $0x108] sm:$0xff]
        %v2696 = vld [vmem:[%s2672 + $0x110] sm:$0xff]
        %v2697 = vld [vmem:[%s2672 + $0x120] sm:$0xff]
        %v2698 = vld [vmem:[%s2672 + $0x128] sm:$0xff]
        %v2699 = vld [vmem:[%s2672 + $0x138] sm:$0xff]
        %v2700 = vld [vmem:[%s2672 + $0x140] sm:$0xff]
        %v2701 = vld [vmem:[%s2672 + $0x150] sm:$0xff]
        %v2702 = vld [vmem:[%s2672 + $0x158] sm:$0xff]
        %v2703 = vld [vmem:[%s2672 + $0x168] sm:$0xff]
        %v2704 = vld [vmem:[%s2672 + $0x170] sm:$0xff]
        %v2705 = vpack.c.bf16 %v2674, %v2673
        %v2706 = vpack.c.bf16 %v2676, %v2675
        %v2707 = vpack.c.bf16 %v2678, %v2677
        %v2708 = vpack.c.bf16 %v2680, %v2679
        %v2709 = vpack.c.bf16 %v2682, %v2681
        %v2710 = vpack.c.bf16 %v2684, %v2683
        %v2711 = vpack.c.bf16 %v2686, %v2685
        %v2712 = vpack.c.bf16 %v2688, %v2687
        %v2713 = vpack.c.bf16 %v2690, %v2689
        %v2714 = vpack.c.bf16 %v2692, %v2691
        %v2715 = vpack.c.bf16 %v2694, %v2693
        %v2716 = vpack.c.bf16 %v2696, %v2695
        %v2717 = vpack.c.bf16 %v2698, %v2697
        %v2718 = vpack.c.bf16 %v2700, %v2699
        %v2719 = vpack.c.bf16 %v2702, %v2701
        %v2720 = vpack.c.bf16 %v2704, %v2703
        %s2721 = scalar_lea.vmem %s6, 48
        %v2722 = vld [vmem:[%s2721] sm:$0xf]
        %v2723 = vld [vmem:[%s2721 + $0x4] sm:$0xf]
        %v2726 = vunpack.c.l.b16 %v2722
        %v2727 = vunpack.c.l.b16 %v2723
        %v2728 = vpack.c.b16 %v2727, %v2726
        %v2731 = vsel %vm377, %v2705, 0
        %v2734 = vsel %vm377, %v2706, 0
        %v2737 = vsel %vm377, %v2707, 0
        %v2740 = vsel %vm377, %v2708, 0
        %v2743 = vsel %vm377, %v2709, 0
        %v2746 = vsel %vm377, %v2710, 0
        %v2749 = vsel %vm377, %v2711, 0
        %v2752 = vsel %vm377, %v2712, 0
        %v2755 = vsel %vm377, %v2713, 0
        %v2758 = vsel %vm377, %v2714, 0
        %v2761 = vsel %vm377, %v2715, 0
        %v2764 = vsel %vm377, %v2716, 0
        %v2767 = vsel %vm377, %v2717, 0
        %v2770 = vsel %vm377, %v2718, 0
        %v2773 = vsel %vm377, %v2719, 0
        %v2776 = vsel %vm377, %v2720, 0
        %2778 = vmatprep.subr.bf16.mxu0 0
        %2779 = vmatpush1.bf16.msra.mxu0 0
        %2780 = vmatprep.subr.bf16.mxu0 0
        %2781 = vmatpush1.bf16.msra.mxu0 0
        %2782 = vmatprep.subr.bf16.mxu0 0
        %2783 = vmatpush1.bf16.msra.mxu0 0
        %2784 = vmatprep.subr.bf16.mxu0 0
        %2785 = vmatpush1.bf16.msra.mxu0 0
        %2786 = vmatprep.subr.bf16.mxu0 0
        %2787 = vmatpush1.bf16.msra.mxu0 0
        %2788 = vmatprep.subr.bf16.mxu0 0
        %2789 = vmatpush1.bf16.msra.mxu0 0
        %2790 = vmatprep.subr.bf16.mxu0 0
        %2791 = vmatpush1.bf16.msra.mxu0 0
        %2792 = vmatprep.subr.bf16.mxu0 0
        %2793 = vmatpush1.bf16.msra.mxu0 %v2728
        %2794 = vmatprep.subr.bf16.mxu0 0
        %2795 = vmatpush2.bf16.msra.mxu0 0
        %2796 = vmatprep.subr.bf16.mxu0 0
        %2797 = vmatpush2.bf16.msra.mxu0 0
        %2798 = vmatprep.subr.bf16.mxu0 0
        %2799 = vmatpush2.bf16.msra.mxu0 0
        %2800 = vmatprep.subr.bf16.mxu0 0
        %2801 = vmatpush2.bf16.msra.mxu0 0
        %2802 = vmatprep.subr.bf16.mxu0 0
        %2803 = vmatpush2.bf16.msra.mxu0 0
        %2804 = vmatprep.subr.bf16.mxu0 0
        %2805 = vmatpush2.bf16.msra.mxu0 0
        %2806 = vmatprep.subr.bf16.mxu0 0
        %2807 = vmatpush2.bf16.msra.mxu0 0
        %2808 = vmatprep.subr.bf16.mxu0 0
        %2809 = vmatpush2.bf16.msra.mxu0 0
        %2810 = vmatprep.mubr.bf16.mxu0 0
        %2811 = vmatmul.mubr.bf16.gmra.mxu0 %v2731
        %v2812 = vpop.f32.mrf.mxu0
        %v2813 = vadd.f32 0.0, %v2812
        %v2814 = vpop.f32.mrf.mxu0
        %v2815 = vpop.f32.mrf.mxu0
        %v2816 = vadd.f32 0.0, %v2815
        %v2817 = vpop.f32.mrf.mxu0
        %2818 = vmatprep.mubr.bf16.mxu0 0
        %2819 = vmatmul.mubr.bf16.gmra.mxu0 %v2734
        %v2820 = vpop.f32.mrf.mxu0
        %v2821 = vadd.f32 0.0, %v2820
        %v2822 = vpop.f32.mrf.mxu0
        %v2823 = vpop.f32.mrf.mxu0
        %v2824 = vadd.f32 0.0, %v2823
        %v2825 = vpop.f32.mrf.mxu0
        %2826 = vmatprep.mubr.bf16.mxu0 0
        %2827 = vmatmul.mubr.bf16.gmra.mxu0 %v2737
        %v2828 = vpop.f32.mrf.mxu0
        %v2829 = vadd.f32 0.0, %v2828
        %v2830 = vpop.f32.mrf.mxu0
        %v2831 = vpop.f32.mrf.mxu0
        %v2832 = vadd.f32 0.0, %v2831
        %v2833 = vpop.f32.mrf.mxu0
        %2834 = vmatprep.mubr.bf16.mxu0 0
        %2835 = vmatmul.mubr.bf16.gmra.mxu0 %v2740
        %v2836 = vpop.f32.mrf.mxu0
        %v2837 = vadd.f32 0.0, %v2836
        %v2838 = vpop.f32.mrf.mxu0
        %v2839 = vpop.f32.mrf.mxu0
        %v2840 = vadd.f32 0.0, %v2839
        %v2841 = vpop.f32.mrf.mxu0
        %2842 = vmatprep.mubr.bf16.mxu0 0
        %2843 = vmatmul.mubr.bf16.gmra.mxu0 %v2743
        %v2844 = vpop.f32.mrf.mxu0
        %v2845 = vadd.f32 0.0, %v2844
        %v2846 = vpop.f32.mrf.mxu0
        %v2847 = vpop.f32.mrf.mxu0
        %v2848 = vadd.f32 0.0, %v2847
        %v2849 = vpop.f32.mrf.mxu0
        %2850 = vmatprep.mubr.bf16.mxu0 0
        %2851 = vmatmul.mubr.bf16.gmra.mxu0 %v2746
        %v2852 = vpop.f32.mrf.mxu0
        %v2853 = vadd.f32 0.0, %v2852
        %v2854 = vpop.f32.mrf.mxu0
        %v2855 = vpop.f32.mrf.mxu0
        %v2856 = vadd.f32 0.0, %v2855
        %v2857 = vpop.f32.mrf.mxu0
        %2858 = vmatprep.mubr.bf16.mxu0 0
        %2859 = vmatmul.mubr.bf16.gmra.mxu0 %v2749
        %v2860 = vpop.f32.mrf.mxu0
        %v2861 = vadd.f32 0.0, %v2860
        %v2862 = vpop.f32.mrf.mxu0
        %v2863 = vpop.f32.mrf.mxu0
        %v2864 = vadd.f32 0.0, %v2863
        %v2865 = vpop.f32.mrf.mxu0
        %2866 = vmatprep.mubr.bf16.mxu0 0
        %2867 = vmatmul.mubr.bf16.gmra.mxu0 %v2752
        %v2868 = vpop.f32.mrf.mxu0
        %v2869 = vadd.f32 0.0, %v2868
        %v2870 = vpop.f32.mrf.mxu0
        %v2871 = vpop.f32.mrf.mxu0
        %v2872 = vadd.f32 0.0, %v2871
        %v2873 = vpop.f32.mrf.mxu0
        %2874 = vmatprep.mubr.bf16.mxu0 0
        %2875 = vmatmul.mubr.bf16.gmra.mxu0 %v2755
        %v2876 = vpop.f32.mrf.mxu0
        %v2877 = vadd.f32 0.0, %v2876
        %v2878 = vpop.f32.mrf.mxu0
        %v2879 = vpop.f32.mrf.mxu0
        %v2880 = vadd.f32 0.0, %v2879
        %v2881 = vpop.f32.mrf.mxu0
        %2882 = vmatprep.mubr.bf16.mxu0 0
        %2883 = vmatmul.mubr.bf16.gmra.mxu0 %v2758
        %v2884 = vpop.f32.mrf.mxu0
        %v2885 = vadd.f32 0.0, %v2884
        %v2886 = vpop.f32.mrf.mxu0
        %v2887 = vpop.f32.mrf.mxu0
        %v2888 = vadd.f32 0.0, %v2887
        %v2889 = vpop.f32.mrf.mxu0
        %2890 = vmatprep.mubr.bf16.mxu0 0
        %2891 = vmatmul.mubr.bf16.gmra.mxu0 %v2761
        %v2892 = vpop.f32.mrf.mxu0
        %v2893 = vadd.f32 0.0, %v2892
        %v2894 = vpop.f32.mrf.mxu0
        %v2895 = vpop.f32.mrf.mxu0
        %v2896 = vadd.f32 0.0, %v2895
        %v2897 = vpop.f32.mrf.mxu0
        %2898 = vmatprep.mubr.bf16.mxu0 0
        %2899 = vmatmul.mubr.bf16.gmra.mxu0 %v2764
        %v2900 = vpop.f32.mrf.mxu0
        %v2901 = vadd.f32 0.0, %v2900
        %v2902 = vpop.f32.mrf.mxu0
        %v2903 = vpop.f32.mrf.mxu0
        %v2904 = vadd.f32 0.0, %v2903
        %v2905 = vpop.f32.mrf.mxu0
        %2906 = vmatprep.mubr.bf16.mxu0 0
        %2907 = vmatmul.mubr.bf16.gmra.mxu0 %v2767
        %v2908 = vpop.f32.mrf.mxu0
        %v2909 = vadd.f32 0.0, %v2908
        %v2910 = vpop.f32.mrf.mxu0
        %v2911 = vpop.f32.mrf.mxu0
        %v2912 = vadd.f32 0.0, %v2911
        %v2913 = vpop.f32.mrf.mxu0
        %2914 = vmatprep.mubr.bf16.mxu0 0
        %2915 = vmatmul.mubr.bf16.gmra.mxu0 %v2770
        %v2916 = vpop.f32.mrf.mxu0
        %v2917 = vadd.f32 0.0, %v2916
        %v2918 = vpop.f32.mrf.mxu0
        %v2919 = vpop.f32.mrf.mxu0
        %v2920 = vadd.f32 0.0, %v2919
        %v2921 = vpop.f32.mrf.mxu0
        %2922 = vmatprep.mubr.bf16.mxu0 0
        %2923 = vmatmul.mubr.bf16.gmra.mxu0 %v2773
        %v2924 = vpop.f32.mrf.mxu0
        %v2925 = vadd.f32 0.0, %v2924
        %v2926 = vpop.f32.mrf.mxu0
        %v2927 = vpop.f32.mrf.mxu0
        %v2928 = vadd.f32 0.0, %v2927
        %v2929 = vpop.f32.mrf.mxu0
        %2930 = vmatprep.mubr.bf16.mxu0 0
        %2931 = vmatmul.mubr.bf16.gmra.mxu0 %v2776
        %v2932 = vpop.f32.mrf.mxu0
        %v2933 = vadd.f32 0.0, %v2932
        %v2934 = vpop.f32.mrf.mxu0
        %v2935 = vpop.f32.mrf.mxu0
        %v2936 = vadd.f32 0.0, %v2935
        %v2937 = vpop.f32.mrf.mxu0
        %2938 = vdwg.mxu0
        %v2939 = vadd.f32 %v2640, %v2813
        %v2940 = vadd.f32 %v2641, %v2816
        %v2941 = vadd.f32 %v2642, %v2821
        %v2942 = vadd.f32 %v2643, %v2824
        %v2943 = vadd.f32 %v2644, %v2829
        %v2944 = vadd.f32 %v2645, %v2832
        %v2945 = vadd.f32 %v2646, %v2837
        %v2946 = vadd.f32 %v2647, %v2840
        %v2947 = vadd.f32 %v2648, %v2845
        %v2948 = vadd.f32 %v2649, %v2848
        %v2949 = vadd.f32 %v2650, %v2853
        %v2950 = vadd.f32 %v2651, %v2856
        %v2951 = vadd.f32 %v2652, %v2861
        %v2952 = vadd.f32 %v2653, %v2864
        %v2953 = vadd.f32 %v2654, %v2869
        %v2954 = vadd.f32 %v2655, %v2872
        %v2955 = vadd.f32 %v2656, %v2877
        %v2956 = vadd.f32 %v2657, %v2880
        %v2957 = vadd.f32 %v2658, %v2885
        %v2958 = vadd.f32 %v2659, %v2888
        %v2959 = vadd.f32 %v2660, %v2893
        %v2960 = vadd.f32 %v2661, %v2896
        %v2961 = vadd.f32 %v2662, %v2901
        %v2962 = vadd.f32 %v2663, %v2904
        %v2963 = vadd.f32 %v2664, %v2909
        %v2964 = vadd.f32 %v2665, %v2912
        %v2965 = vadd.f32 %v2666, %v2917
        %v2966 = vadd.f32 %v2667, %v2920
        %v2967 = vadd.f32 %v2668, %v2925
        %v2968 = vadd.f32 %v2669, %v2928
        %v2969 = vadd.f32 %v2670, %v2933
        %v2970 = vadd.f32 %v2671, %v2936
        %v2971 = vld [vmem:[%s2672 + $0x1] sm:$0xff]
        %v2972 = vld [vmem:[%s2672 + $0x9] sm:$0xff]
        %v2973 = vld [vmem:[%s2672 + $0x19] sm:$0xff]
        %v2974 = vld [vmem:[%s2672 + $0x21] sm:$0xff]
        %v2975 = vld [vmem:[%s2672 + $0x31] sm:$0xff]
        %v2976 = vld [vmem:[%s2672 + $0x39] sm:$0xff]
        %v2977 = vld [vmem:[%s2672 + $0x49] sm:$0xff]
        %v2978 = vld [vmem:[%s2672 + $0x51] sm:$0xff]
        %v2979 = vld [vmem:[%s2672 + $0x61] sm:$0xff]
        %v2980 = vld [vmem:[%s2672 + $0x69] sm:$0xff]
        %v2981 = vld [vmem:[%s2672 + $0x79] sm:$0xff]
        %v2982 = vld [vmem:[%s2672 + $0x81] sm:$0xff]
        %v2983 = vld [vmem:[%s2672 + $0x91] sm:$0xff]
        %v2984 = vld [vmem:[%s2672 + $0x99] sm:$0xff]
        %v2985 = vld [vmem:[%s2672 + $0xa9] sm:$0xff]
        %v2986 = vld [vmem:[%s2672 + $0xb1] sm:$0xff]
        %v2987 = vld [vmem:[%s2672 + $0xc1] sm:$0xff]
        %v2988 = vld [vmem:[%s2672 + $0xc9] sm:$0xff]
        %v2989 = vld [vmem:[%s2672 + $0xd9] sm:$0xff]
        %v2990 = vld [vmem:[%s2672 + $0xe1] sm:$0xff]
        %v2991 = vld [vmem:[%s2672 + $0xf1] sm:$0xff]
        %v2992 = vld [vmem:[%s2672 + $0xf9] sm:$0xff]
        %v2993 = vld [vmem:[%s2672 + $0x109] sm:$0xff]
        %v2994 = vld [vmem:[%s2672 + $0x111] sm:$0xff]
        %v2995 = vld [vmem:[%s2672 + $0x121] sm:$0xff]
        %v2996 = vld [vmem:[%s2672 + $0x129] sm:$0xff]
        %v2997 = vld [vmem:[%s2672 + $0x139] sm:$0xff]
        %v2998 = vld [vmem:[%s2672 + $0x141] sm:$0xff]
        %v2999 = vld [vmem:[%s2672 + $0x151] sm:$0xff]
        %v3000 = vld [vmem:[%s2672 + $0x159] sm:$0xff]
        %v3001 = vld [vmem:[%s2672 + $0x169] sm:$0xff]
        %v3002 = vld [vmem:[%s2672 + $0x171] sm:$0xff]
        %v3003 = vpack.c.bf16 %v2972, %v2971
        %v3004 = vpack.c.bf16 %v2974, %v2973
        %v3005 = vpack.c.bf16 %v2976, %v2975
        %v3006 = vpack.c.bf16 %v2978, %v2977
        %v3007 = vpack.c.bf16 %v2980, %v2979
        %v3008 = vpack.c.bf16 %v2982, %v2981
        %v3009 = vpack.c.bf16 %v2984, %v2983
        %v3010 = vpack.c.bf16 %v2986, %v2985
        %v3011 = vpack.c.bf16 %v2988, %v2987
        %v3012 = vpack.c.bf16 %v2990, %v2989
        %v3013 = vpack.c.bf16 %v2992, %v2991
        %v3014 = vpack.c.bf16 %v2994, %v2993
        %v3015 = vpack.c.bf16 %v2996, %v2995
        %v3016 = vpack.c.bf16 %v2998, %v2997
        %v3017 = vpack.c.bf16 %v3000, %v2999
        %v3018 = vpack.c.bf16 %v3002, %v3001
        %s3019 = scalar_lea.vmem %s6, 56
        %v3020 = vld [vmem:[%s3019] sm:$0xf]
        %v3021 = vld [vmem:[%s3019 + $0x4] sm:$0xf]
        %v3024 = vunpack.c.l.b16 %v3020
        %v3025 = vunpack.c.l.b16 %v3021
        %v3026 = vpack.c.b16 %v3025, %v3024
        %v3029 = vsel %vm377, %v3003, 0
        %v3032 = vsel %vm377, %v3004, 0
        %v3035 = vsel %vm377, %v3005, 0
        %v3038 = vsel %vm377, %v3006, 0
        %v3041 = vsel %vm377, %v3007, 0
        %v3044 = vsel %vm377, %v3008, 0
        %v3047 = vsel %vm377, %v3009, 0
        %v3050 = vsel %vm377, %v3010, 0
        %v3053 = vsel %vm377, %v3011, 0
        %v3056 = vsel %vm377, %v3012, 0
        %v3059 = vsel %vm377, %v3013, 0
        %v3062 = vsel %vm377, %v3014, 0
        %v3065 = vsel %vm377, %v3015, 0
        %v3068 = vsel %vm377, %v3016, 0
        %v3071 = vsel %vm377, %v3017, 0
        %v3074 = vsel %vm377, %v3018, 0
        %3076 = vmatprep.subr.bf16.mxu0 0
        %3077 = vmatpush1.bf16.msra.mxu0 0
        %3078 = vmatprep.subr.bf16.mxu0 0
        %3079 = vmatpush1.bf16.msra.mxu0 0
        %3080 = vmatprep.subr.bf16.mxu0 0
        %3081 = vmatpush1.bf16.msra.mxu0 0
        %3082 = vmatprep.subr.bf16.mxu0 0
        %3083 = vmatpush1.bf16.msra.mxu0 0
        %3084 = vmatprep.subr.bf16.mxu0 0
        %3085 = vmatpush1.bf16.msra.mxu0 0
        %3086 = vmatprep.subr.bf16.mxu0 0
        %3087 = vmatpush1.bf16.msra.mxu0 0
        %3088 = vmatprep.subr.bf16.mxu0 0
        %3089 = vmatpush1.bf16.msra.mxu0 0
        %3090 = vmatprep.subr.bf16.mxu0 0
        %3091 = vmatpush1.bf16.msra.mxu0 %v3026
        %3092 = vmatprep.subr.bf16.mxu0 0
        %3093 = vmatpush2.bf16.msra.mxu0 0
        %3094 = vmatprep.subr.bf16.mxu0 0
        %3095 = vmatpush2.bf16.msra.mxu0 0
        %3096 = vmatprep.subr.bf16.mxu0 0
        %3097 = vmatpush2.bf16.msra.mxu0 0
        %3098 = vmatprep.subr.bf16.mxu0 0
        %3099 = vmatpush2.bf16.msra.mxu0 0
        %3100 = vmatprep.subr.bf16.mxu0 0
        %3101 = vmatpush2.bf16.msra.mxu0 0
        %3102 = vmatprep.subr.bf16.mxu0 0
        %3103 = vmatpush2.bf16.msra.mxu0 0
        %3104 = vmatprep.subr.bf16.mxu0 0
        %3105 = vmatpush2.bf16.msra.mxu0 0
        %3106 = vmatprep.subr.bf16.mxu0 0
        %3107 = vmatpush2.bf16.msra.mxu0 0
        %3108 = vmatprep.mubr.bf16.mxu0 0
        %3109 = vmatmul.mubr.bf16.gmra.mxu0 %v3029
        %v3110 = vpop.f32.mrf.mxu0
        %v3111 = vadd.f32 0.0, %v3110
        %v3112 = vpop.f32.mrf.mxu0
        %v3113 = vpop.f32.mrf.mxu0
        %v3114 = vadd.f32 0.0, %v3113
        %v3115 = vpop.f32.mrf.mxu0
        %3116 = vmatprep.mubr.bf16.mxu0 0
        %3117 = vmatmul.mubr.bf16.gmra.mxu0 %v3032
        %v3118 = vpop.f32.mrf.mxu0
        %v3119 = vadd.f32 0.0, %v3118
        %v3120 = vpop.f32.mrf.mxu0
        %v3121 = vpop.f32.mrf.mxu0
        %v3122 = vadd.f32 0.0, %v3121
        %v3123 = vpop.f32.mrf.mxu0
        %3124 = vmatprep.mubr.bf16.mxu0 0
        %3125 = vmatmul.mubr.bf16.gmra.mxu0 %v3035
        %v3126 = vpop.f32.mrf.mxu0
        %v3127 = vadd.f32 0.0, %v3126
        %v3128 = vpop.f32.mrf.mxu0
        %v3129 = vpop.f32.mrf.mxu0
        %v3130 = vadd.f32 0.0, %v3129
        %v3131 = vpop.f32.mrf.mxu0
        %3132 = vmatprep.mubr.bf16.mxu0 0
        %3133 = vmatmul.mubr.bf16.gmra.mxu0 %v3038
        %v3134 = vpop.f32.mrf.mxu0
        %v3135 = vadd.f32 0.0, %v3134
        %v3136 = vpop.f32.mrf.mxu0
        %v3137 = vpop.f32.mrf.mxu0
        %v3138 = vadd.f32 0.0, %v3137
        %v3139 = vpop.f32.mrf.mxu0
        %3140 = vmatprep.mubr.bf16.mxu0 0
        %3141 = vmatmul.mubr.bf16.gmra.mxu0 %v3041
        %v3142 = vpop.f32.mrf.mxu0
        %v3143 = vadd.f32 0.0, %v3142
        %v3144 = vpop.f32.mrf.mxu0
        %v3145 = vpop.f32.mrf.mxu0
        %v3146 = vadd.f32 0.0, %v3145
        %v3147 = vpop.f32.mrf.mxu0
        %3148 = vmatprep.mubr.bf16.mxu0 0
        %3149 = vmatmul.mubr.bf16.gmra.mxu0 %v3044
        %v3150 = vpop.f32.mrf.mxu0
        %v3151 = vadd.f32 0.0, %v3150
        %v3152 = vpop.f32.mrf.mxu0
        %v3153 = vpop.f32.mrf.mxu0
        %v3154 = vadd.f32 0.0, %v3153
        %v3155 = vpop.f32.mrf.mxu0
        %3156 = vmatprep.mubr.bf16.mxu0 0
        %3157 = vmatmul.mubr.bf16.gmra.mxu0 %v3047
        %v3158 = vpop.f32.mrf.mxu0
        %v3159 = vadd.f32 0.0, %v3158
        %v3160 = vpop.f32.mrf.mxu0
        %v3161 = vpop.f32.mrf.mxu0
        %v3162 = vadd.f32 0.0, %v3161
        %v3163 = vpop.f32.mrf.mxu0
        %3164 = vmatprep.mubr.bf16.mxu0 0
        %3165 = vmatmul.mubr.bf16.gmra.mxu0 %v3050
        %v3166 = vpop.f32.mrf.mxu0
        %v3167 = vadd.f32 0.0, %v3166
        %v3168 = vpop.f32.mrf.mxu0
        %v3169 = vpop.f32.mrf.mxu0
        %v3170 = vadd.f32 0.0, %v3169
        %v3171 = vpop.f32.mrf.mxu0
        %3172 = vmatprep.mubr.bf16.mxu0 0
        %3173 = vmatmul.mubr.bf16.gmra.mxu0 %v3053
        %v3174 = vpop.f32.mrf.mxu0
        %v3175 = vadd.f32 0.0, %v3174
        %v3176 = vpop.f32.mrf.mxu0
        %v3177 = vpop.f32.mrf.mxu0
        %v3178 = vadd.f32 0.0, %v3177
        %v3179 = vpop.f32.mrf.mxu0
        %3180 = vmatprep.mubr.bf16.mxu0 0
        %3181 = vmatmul.mubr.bf16.gmra.mxu0 %v3056
        %v3182 = vpop.f32.mrf.mxu0
        %v3183 = vadd.f32 0.0, %v3182
        %v3184 = vpop.f32.mrf.mxu0
        %v3185 = vpop.f32.mrf.mxu0
        %v3186 = vadd.f32 0.0, %v3185
        %v3187 = vpop.f32.mrf.mxu0
        %3188 = vmatprep.mubr.bf16.mxu0 0
        %3189 = vmatmul.mubr.bf16.gmra.mxu0 %v3059
        %v3190 = vpop.f32.mrf.mxu0
        %v3191 = vadd.f32 0.0, %v3190
        %v3192 = vpop.f32.mrf.mxu0
        %v3193 = vpop.f32.mrf.mxu0
        %v3194 = vadd.f32 0.0, %v3193
        %v3195 = vpop.f32.mrf.mxu0
        %3196 = vmatprep.mubr.bf16.mxu0 0
        %3197 = vmatmul.mubr.bf16.gmra.mxu0 %v3062
        %v3198 = vpop.f32.mrf.mxu0
        %v3199 = vadd.f32 0.0, %v3198
        %v3200 = vpop.f32.mrf.mxu0
        %v3201 = vpop.f32.mrf.mxu0
        %v3202 = vadd.f32 0.0, %v3201
        %v3203 = vpop.f32.mrf.mxu0
        %3204 = vmatprep.mubr.bf16.mxu0 0
        %3205 = vmatmul.mubr.bf16.gmra.mxu0 %v3065
        %v3206 = vpop.f32.mrf.mxu0
        %v3207 = vadd.f32 0.0, %v3206
        %v3208 = vpop.f32.mrf.mxu0
        %v3209 = vpop.f32.mrf.mxu0
        %v3210 = vadd.f32 0.0, %v3209
        %v3211 = vpop.f32.mrf.mxu0
        %3212 = vmatprep.mubr.bf16.mxu0 0
        %3213 = vmatmul.mubr.bf16.gmra.mxu0 %v3068
        %v3214 = vpop.f32.mrf.mxu0
        %v3215 = vadd.f32 0.0, %v3214
        %v3216 = vpop.f32.mrf.mxu0
        %v3217 = vpop.f32.mrf.mxu0
        %v3218 = vadd.f32 0.0, %v3217
        %v3219 = vpop.f32.mrf.mxu0
        %3220 = vmatprep.mubr.bf16.mxu0 0
        %3221 = vmatmul.mubr.bf16.gmra.mxu0 %v3071
        %v3222 = vpop.f32.mrf.mxu0
        %v3223 = vadd.f32 0.0, %v3222
        %v3224 = vpop.f32.mrf.mxu0
        %v3225 = vpop.f32.mrf.mxu0
        %v3226 = vadd.f32 0.0, %v3225
        %v3227 = vpop.f32.mrf.mxu0
        %3228 = vmatprep.mubr.bf16.mxu0 0
        %3229 = vmatmul.mubr.bf16.gmra.mxu0 %v3074
        %v3230 = vpop.f32.mrf.mxu0
        %v3231 = vadd.f32 0.0, %v3230
        %v3232 = vpop.f32.mrf.mxu0
        %v3233 = vpop.f32.mrf.mxu0
        %v3234 = vadd.f32 0.0, %v3233
        %v3235 = vpop.f32.mrf.mxu0
        %3236 = vdwg.mxu0
        %v3237 = vadd.f32 %v2939, %v3111
        %v3238 = vadd.f32 %v2940, %v3114
        %v3239 = vadd.f32 %v2941, %v3119
        %v3240 = vadd.f32 %v2942, %v3122
        %v3241 = vadd.f32 %v2943, %v3127
        %v3242 = vadd.f32 %v2944, %v3130
        %v3243 = vadd.f32 %v2945, %v3135
        %v3244 = vadd.f32 %v2946, %v3138
        %v3245 = vadd.f32 %v2947, %v3143
        %v3246 = vadd.f32 %v2948, %v3146
        %v3247 = vadd.f32 %v2949, %v3151
        %v3248 = vadd.f32 %v2950, %v3154
        %v3249 = vadd.f32 %v2951, %v3159
        %v3250 = vadd.f32 %v2952, %v3162
        %v3251 = vadd.f32 %v2953, %v3167
        %v3252 = vadd.f32 %v2954, %v3170
        %v3253 = vadd.f32 %v2955, %v3175
        %v3254 = vadd.f32 %v2956, %v3178
        %v3255 = vadd.f32 %v2957, %v3183
        %v3256 = vadd.f32 %v2958, %v3186
        %v3257 = vadd.f32 %v2959, %v3191
        %v3258 = vadd.f32 %v2960, %v3194
        %v3259 = vadd.f32 %v2961, %v3199
        %v3260 = vadd.f32 %v2962, %v3202
        %v3261 = vadd.f32 %v2963, %v3207
        %v3262 = vadd.f32 %v2964, %v3210
        %v3263 = vadd.f32 %v2965, %v3215
        %v3264 = vadd.f32 %v2966, %v3218
        %v3265 = vadd.f32 %v2967, %v3223
        %v3266 = vadd.f32 %v2968, %v3226
        %v3267 = vadd.f32 %v2969, %v3231
        %v3268 = vadd.f32 %v2970, %v3234
        %v3269 = vld [vmem:[%s2672 + $0x2] sm:$0xff]
        %v3270 = vld [vmem:[%s2672 + $0xa] sm:$0xff]
        %v3271 = vld [vmem:[%s2672 + $0x1a] sm:$0xff]
        %v3272 = vld [vmem:[%s2672 + $0x22] sm:$0xff]
        %v3273 = vld [vmem:[%s2672 + $0x32] sm:$0xff]
        %v3274 = vld [vmem:[%s2672 + $0x3a] sm:$0xff]
        %v3275 = vld [vmem:[%s2672 + $0x4a] sm:$0xff]
        %v3276 = vld [vmem:[%s2672 + $0x52] sm:$0xff]
        %v3277 = vld [vmem:[%s2672 + $0x62] sm:$0xff]
        %v3278 = vld [vmem:[%s2672 + $0x6a] sm:$0xff]
        %v3279 = vld [vmem:[%s2672 + $0x7a] sm:$0xff]
        %v3280 = vld [vmem:[%s2672 + $0x82] sm:$0xff]
        %v3281 = vld [vmem:[%s2672 + $0x92] sm:$0xff]
        %v3282 = vld [vmem:[%s2672 + $0x9a] sm:$0xff]
        %v3283 = vld [vmem:[%s2672 + $0xaa] sm:$0xff]
        %v3284 = vld [vmem:[%s2672 + $0xb2] sm:$0xff]
        %v3285 = vld [vmem:[%s2672 + $0xc2] sm:$0xff]
        %v3286 = vld [vmem:[%s2672 + $0xca] sm:$0xff]
        %v3287 = vld [vmem:[%s2672 + $0xda] sm:$0xff]
        %v3288 = vld [vmem:[%s2672 + $0xe2] sm:$0xff]
        %v3289 = vld [vmem:[%s2672 + $0xf2] sm:$0xff]
        %v3290 = vld [vmem:[%s2672 + $0xfa] sm:$0xff]
        %v3291 = vld [vmem:[%s2672 + $0x10a] sm:$0xff]
        %v3292 = vld [vmem:[%s2672 + $0x112] sm:$0xff]
        %v3293 = vld [vmem:[%s2672 + $0x122] sm:$0xff]
        %v3294 = vld [vmem:[%s2672 + $0x12a] sm:$0xff]
        %v3295 = vld [vmem:[%s2672 + $0x13a] sm:$0xff]
        %v3296 = vld [vmem:[%s2672 + $0x142] sm:$0xff]
        %v3297 = vld [vmem:[%s2672 + $0x152] sm:$0xff]
        %v3298 = vld [vmem:[%s2672 + $0x15a] sm:$0xff]
        %v3299 = vld [vmem:[%s2672 + $0x16a] sm:$0xff]
        %v3300 = vld [vmem:[%s2672 + $0x172] sm:$0xff]
        %v3301 = vpack.c.bf16 %v3270, %v3269
        %v3302 = vpack.c.bf16 %v3272, %v3271
        %v3303 = vpack.c.bf16 %v3274, %v3273
        %v3304 = vpack.c.bf16 %v3276, %v3275
        %v3305 = vpack.c.bf16 %v3278, %v3277
        %v3306 = vpack.c.bf16 %v3280, %v3279
        %v3307 = vpack.c.bf16 %v3282, %v3281
        %v3308 = vpack.c.bf16 %v3284, %v3283
        %v3309 = vpack.c.bf16 %v3286, %v3285
        %v3310 = vpack.c.bf16 %v3288, %v3287
        %v3311 = vpack.c.bf16 %v3290, %v3289
        %v3312 = vpack.c.bf16 %v3292, %v3291
        %v3313 = vpack.c.bf16 %v3294, %v3293
        %v3314 = vpack.c.bf16 %v3296, %v3295
        %v3315 = vpack.c.bf16 %v3298, %v3297
        %v3316 = vpack.c.bf16 %v3300, %v3299
        %s3317 = scalar_lea.vmem %s6, 64
        %v3318 = vld [vmem:[%s3317] sm:$0xf]
        %v3319 = vld [vmem:[%s3317 + $0x4] sm:$0xf]
        %v3322 = vunpack.c.l.b16 %v3318
        %v3323 = vunpack.c.l.b16 %v3319
        %v3324 = vpack.c.b16 %v3323, %v3322
        %v3327 = vsel %vm377, %v3301, 0
        %v3330 = vsel %vm377, %v3302, 0
        %v3333 = vsel %vm377, %v3303, 0
        %v3336 = vsel %vm377, %v3304, 0
        %v3339 = vsel %vm377, %v3305, 0
        %v3342 = vsel %vm377, %v3306, 0
        %v3345 = vsel %vm377, %v3307, 0
        %v3348 = vsel %vm377, %v3308, 0
        %v3351 = vsel %vm377, %v3309, 0
        %v3354 = vsel %vm377, %v3310, 0
        %v3357 = vsel %vm377, %v3311, 0
        %v3360 = vsel %vm377, %v3312, 0
        %v3363 = vsel %vm377, %v3313, 0
        %v3366 = vsel %vm377, %v3314, 0
        %v3369 = vsel %vm377, %v3315, 0
        %v3372 = vsel %vm377, %v3316, 0
        %3374 = vmatprep.subr.bf16.mxu0 0
        %3375 = vmatpush1.bf16.msra.mxu0 0
        %3376 = vmatprep.subr.bf16.mxu0 0
        %3377 = vmatpush1.bf16.msra.mxu0 0
        %3378 = vmatprep.subr.bf16.mxu0 0
        %3379 = vmatpush1.bf16.msra.mxu0 0
        %3380 = vmatprep.subr.bf16.mxu0 0
        %3381 = vmatpush1.bf16.msra.mxu0 0
        %3382 = vmatprep.subr.bf16.mxu0 0
        %3383 = vmatpush1.bf16.msra.mxu0 0
        %3384 = vmatprep.subr.bf16.mxu0 0
        %3385 = vmatpush1.bf16.msra.mxu0 0
        %3386 = vmatprep.subr.bf16.mxu0 0
        %3387 = vmatpush1.bf16.msra.mxu0 0
        %3388 = vmatprep.subr.bf16.mxu0 0
        %3389 = vmatpush1.bf16.msra.mxu0 %v3324
        %3390 = vmatprep.subr.bf16.mxu0 0
        %3391 = vmatpush2.bf16.msra.mxu0 0
        %3392 = vmatprep.subr.bf16.mxu0 0
        %3393 = vmatpush2.bf16.msra.mxu0 0
        %3394 = vmatprep.subr.bf16.mxu0 0
        %3395 = vmatpush2.bf16.msra.mxu0 0
        %3396 = vmatprep.subr.bf16.mxu0 0
        %3397 = vmatpush2.bf16.msra.mxu0 0
        %3398 = vmatprep.subr.bf16.mxu0 0
        %3399 = vmatpush2.bf16.msra.mxu0 0
        %3400 = vmatprep.subr.bf16.mxu0 0
        %3401 = vmatpush2.bf16.msra.mxu0 0
        %3402 = vmatprep.subr.bf16.mxu0 0
        %3403 = vmatpush2.bf16.msra.mxu0 0
        %3404 = vmatprep.subr.bf16.mxu0 0
        %3405 = vmatpush2.bf16.msra.mxu0 0
        %3406 = vmatprep.mubr.bf16.mxu0 0
        %3407 = vmatmul.mubr.bf16.gmra.mxu0 %v3327
        %v3408 = vpop.f32.mrf.mxu0
        %v3409 = vadd.f32 0.0, %v3408
        %v3410 = vpop.f32.mrf.mxu0
        %v3411 = vpop.f32.mrf.mxu0
        %v3412 = vadd.f32 0.0, %v3411
        %v3413 = vpop.f32.mrf.mxu0
        %3414 = vmatprep.mubr.bf16.mxu0 0
        %3415 = vmatmul.mubr.bf16.gmra.mxu0 %v3330
        %v3416 = vpop.f32.mrf.mxu0
        %v3417 = vadd.f32 0.0, %v3416
        %v3418 = vpop.f32.mrf.mxu0
        %v3419 = vpop.f32.mrf.mxu0
        %v3420 = vadd.f32 0.0, %v3419
        %v3421 = vpop.f32.mrf.mxu0
        %3422 = vmatprep.mubr.bf16.mxu0 0
        %3423 = vmatmul.mubr.bf16.gmra.mxu0 %v3333
        %v3424 = vpop.f32.mrf.mxu0
        %v3425 = vadd.f32 0.0, %v3424
        %v3426 = vpop.f32.mrf.mxu0
        %v3427 = vpop.f32.mrf.mxu0
        %v3428 = vadd.f32 0.0, %v3427
        %v3429 = vpop.f32.mrf.mxu0
        %3430 = vmatprep.mubr.bf16.mxu0 0
        %3431 = vmatmul.mubr.bf16.gmra.mxu0 %v3336
        %v3432 = vpop.f32.mrf.mxu0
        %v3433 = vadd.f32 0.0, %v3432
        %v3434 = vpop.f32.mrf.mxu0
        %v3435 = vpop.f32.mrf.mxu0
        %v3436 = vadd.f32 0.0, %v3435
        %v3437 = vpop.f32.mrf.mxu0
        %3438 = vmatprep.mubr.bf16.mxu0 0
        %3439 = vmatmul.mubr.bf16.gmra.mxu0 %v3339
        %v3440 = vpop.f32.mrf.mxu0
        %v3441 = vadd.f32 0.0, %v3440
        %v3442 = vpop.f32.mrf.mxu0
        %v3443 = vpop.f32.mrf.mxu0
        %v3444 = vadd.f32 0.0, %v3443
        %v3445 = vpop.f32.mrf.mxu0
        %3446 = vmatprep.mubr.bf16.mxu0 0
        %3447 = vmatmul.mubr.bf16.gmra.mxu0 %v3342
        %v3448 = vpop.f32.mrf.mxu0
        %v3449 = vadd.f32 0.0, %v3448
        %v3450 = vpop.f32.mrf.mxu0
        %v3451 = vpop.f32.mrf.mxu0
        %v3452 = vadd.f32 0.0, %v3451
        %v3453 = vpop.f32.mrf.mxu0
        %3454 = vmatprep.mubr.bf16.mxu0 0
        %3455 = vmatmul.mubr.bf16.gmra.mxu0 %v3345
        %v3456 = vpop.f32.mrf.mxu0
        %v3457 = vadd.f32 0.0, %v3456
        %v3458 = vpop.f32.mrf.mxu0
        %v3459 = vpop.f32.mrf.mxu0
        %v3460 = vadd.f32 0.0, %v3459
        %v3461 = vpop.f32.mrf.mxu0
        %3462 = vmatprep.mubr.bf16.mxu0 0
        %3463 = vmatmul.mubr.bf16.gmra.mxu0 %v3348
        %v3464 = vpop.f32.mrf.mxu0
        %v3465 = vadd.f32 0.0, %v3464
        %v3466 = vpop.f32.mrf.mxu0
        %v3467 = vpop.f32.mrf.mxu0
        %v3468 = vadd.f32 0.0, %v3467
        %v3469 = vpop.f32.mrf.mxu0
        %3470 = vmatprep.mubr.bf16.mxu0 0
        %3471 = vmatmul.mubr.bf16.gmra.mxu0 %v3351
        %v3472 = vpop.f32.mrf.mxu0
        %v3473 = vadd.f32 0.0, %v3472
        %v3474 = vpop.f32.mrf.mxu0
        %v3475 = vpop.f32.mrf.mxu0
        %v3476 = vadd.f32 0.0, %v3475
        %v3477 = vpop.f32.mrf.mxu0
        %3478 = vmatprep.mubr.bf16.mxu0 0
        %3479 = vmatmul.mubr.bf16.gmra.mxu0 %v3354
        %v3480 = vpop.f32.mrf.mxu0
        %v3481 = vadd.f32 0.0, %v3480
        %v3482 = vpop.f32.mrf.mxu0
        %v3483 = vpop.f32.mrf.mxu0
        %v3484 = vadd.f32 0.0, %v3483
        %v3485 = vpop.f32.mrf.mxu0
        %3486 = vmatprep.mubr.bf16.mxu0 0
        %3487 = vmatmul.mubr.bf16.gmra.mxu0 %v3357
        %v3488 = vpop.f32.mrf.mxu0
        %v3489 = vadd.f32 0.0, %v3488
        %v3490 = vpop.f32.mrf.mxu0
        %v3491 = vpop.f32.mrf.mxu0
        %v3492 = vadd.f32 0.0, %v3491
        %v3493 = vpop.f32.mrf.mxu0
        %3494 = vmatprep.mubr.bf16.mxu0 0
        %3495 = vmatmul.mubr.bf16.gmra.mxu0 %v3360
        %v3496 = vpop.f32.mrf.mxu0
        %v3497 = vadd.f32 0.0, %v3496
        %v3498 = vpop.f32.mrf.mxu0
        %v3499 = vpop.f32.mrf.mxu0
        %v3500 = vadd.f32 0.0, %v3499
        %v3501 = vpop.f32.mrf.mxu0
        %3502 = vmatprep.mubr.bf16.mxu0 0
        %3503 = vmatmul.mubr.bf16.gmra.mxu0 %v3363
        %v3504 = vpop.f32.mrf.mxu0
        %v3505 = vadd.f32 0.0, %v3504
        %v3506 = vpop.f32.mrf.mxu0
        %v3507 = vpop.f32.mrf.mxu0
        %v3508 = vadd.f32 0.0, %v3507
        %v3509 = vpop.f32.mrf.mxu0
        %3510 = vmatprep.mubr.bf16.mxu0 0
        %3511 = vmatmul.mubr.bf16.gmra.mxu0 %v3366
        %v3512 = vpop.f32.mrf.mxu0
        %v3513 = vadd.f32 0.0, %v3512
        %v3514 = vpop.f32.mrf.mxu0
        %v3515 = vpop.f32.mrf.mxu0
        %v3516 = vadd.f32 0.0, %v3515
        %v3517 = vpop.f32.mrf.mxu0
        %3518 = vmatprep.mubr.bf16.mxu0 0
        %3519 = vmatmul.mubr.bf16.gmra.mxu0 %v3369
        %v3520 = vpop.f32.mrf.mxu0
        %v3521 = vadd.f32 0.0, %v3520
        %v3522 = vpop.f32.mrf.mxu0
        %v3523 = vpop.f32.mrf.mxu0
        %v3524 = vadd.f32 0.0, %v3523
        %v3525 = vpop.f32.mrf.mxu0
        %3526 = vmatprep.mubr.bf16.mxu0 0
        %3527 = vmatmul.mubr.bf16.gmra.mxu0 %v3372
        %v3528 = vpop.f32.mrf.mxu0
        %v3529 = vadd.f32 0.0, %v3528
        %v3530 = vpop.f32.mrf.mxu0
        %v3531 = vpop.f32.mrf.mxu0
        %v3532 = vadd.f32 0.0, %v3531
        %v3533 = vpop.f32.mrf.mxu0
        %3534 = vdwg.mxu0
        %v3535 = vadd.f32 %v3237, %v3409
        %v3536 = vadd.f32 %v3238, %v3412
        %v3537 = vadd.f32 %v3239, %v3417
        %v3538 = vadd.f32 %v3240, %v3420
        %v3539 = vadd.f32 %v3241, %v3425
        %v3540 = vadd.f32 %v3242, %v3428
        %v3541 = vadd.f32 %v3243, %v3433
        %v3542 = vadd.f32 %v3244, %v3436
        %v3543 = vadd.f32 %v3245, %v3441
        %v3544 = vadd.f32 %v3246, %v3444
        %v3545 = vadd.f32 %v3247, %v3449
        %v3546 = vadd.f32 %v3248, %v3452
        %v3547 = vadd.f32 %v3249, %v3457
        %v3548 = vadd.f32 %v3250, %v3460
        %v3549 = vadd.f32 %v3251, %v3465
        %v3550 = vadd.f32 %v3252, %v3468
        %v3551 = vadd.f32 %v3253, %v3473
        %v3552 = vadd.f32 %v3254, %v3476
        %v3553 = vadd.f32 %v3255, %v3481
        %v3554 = vadd.f32 %v3256, %v3484
        %v3555 = vadd.f32 %v3257, %v3489
        %v3556 = vadd.f32 %v3258, %v3492
        %v3557 = vadd.f32 %v3259, %v3497
        %v3558 = vadd.f32 %v3260, %v3500
        %v3559 = vadd.f32 %v3261, %v3505
        %v3560 = vadd.f32 %v3262, %v3508
        %v3561 = vadd.f32 %v3263, %v3513
        %v3562 = vadd.f32 %v3264, %v3516
        %v3563 = vadd.f32 %v3265, %v3521
        %v3564 = vadd.f32 %v3266, %v3524
        %v3565 = vadd.f32 %v3267, %v3529
        %v3566 = vadd.f32 %v3268, %v3532
        %v3567 = vld [vmem:[#allocation2] sm:$0xff]
        %v3568 = vld [vmem:[#allocation2 + $0x8] sm:$0xff]
        %v3569 = vld [vmem:[#allocation2 + $0x10] sm:$0xff]
        %v3570 = vld [vmem:[#allocation2 + $0x18] sm:$0xff]
        %v3571 = vld [vmem:[#allocation2 + $0x20] sm:$0xff]
        %v3572 = vld [vmem:[#allocation2 + $0x28] sm:$0xff]
        %v3573 = vld [vmem:[#allocation2 + $0x30] sm:$0xff]
        %v3574 = vld [vmem:[#allocation2 + $0x38] sm:$0xff]
        %v3575 = vld [vmem:[#allocation2 + $0x40] sm:$0xff]
        %v3576 = vld [vmem:[#allocation2 + $0x48] sm:$0xff]
        %v3577 = vld [vmem:[#allocation2 + $0x50] sm:$0xff]
        %v3578 = vld [vmem:[#allocation2 + $0x58] sm:$0xff]
        %v3579 = vld [vmem:[#allocation2 + $0x60] sm:$0xff]
        %v3580 = vld [vmem:[#allocation2 + $0x68] sm:$0xff]
        %v3581 = vld [vmem:[#allocation2 + $0x70] sm:$0xff]
        %v3582 = vld [vmem:[#allocation2 + $0x78] sm:$0xff]
        %v3583 = vld [vmem:[#allocation2 + $0x80] sm:$0xff]
        %v3584 = vld [vmem:[#allocation2 + $0x88] sm:$0xff]
        %v3585 = vld [vmem:[#allocation2 + $0x90] sm:$0xff]
        %v3586 = vld [vmem:[#allocation2 + $0x98] sm:$0xff]
        %v3587 = vld [vmem:[#allocation2 + $0xa0] sm:$0xff]
        %v3588 = vld [vmem:[#allocation2 + $0xa8] sm:$0xff]
        %v3589 = vld [vmem:[#allocation2 + $0xb0] sm:$0xff]
        %v3590 = vld [vmem:[#allocation2 + $0xb8] sm:$0xff]
        %v3591 = vld [vmem:[#allocation2 + $0xc0] sm:$0xff]
        %v3592 = vld [vmem:[#allocation2 + $0xc8] sm:$0xff]
        %v3593 = vld [vmem:[#allocation2 + $0xd0] sm:$0xff]
        %v3594 = vld [vmem:[#allocation2 + $0xd8] sm:$0xff]
        %v3595 = vld [vmem:[#allocation2 + $0xe0] sm:$0xff]
        %v3596 = vld [vmem:[#allocation2 + $0xe8] sm:$0xff]
        %v3597 = vld [vmem:[#allocation2 + $0xf0] sm:$0xff]
        %v3598 = vld [vmem:[#allocation2 + $0xf8] sm:$0xff]
        %v3599 = vadd.f32 %v3567, %v3535
        %v3600 = vadd.f32 %v3568, %v3536
        %v3601 = vadd.f32 %v3569, %v3537
        %v3602 = vadd.f32 %v3570, %v3538
        %v3603 = vadd.f32 %v3571, %v3539
        %v3604 = vadd.f32 %v3572, %v3540
        %v3605 = vadd.f32 %v3573, %v3541
        %v3606 = vadd.f32 %v3574, %v3542
        %v3607 = vadd.f32 %v3575, %v3543
        %v3608 = vadd.f32 %v3576, %v3544
        %v3609 = vadd.f32 %v3577, %v3545
        %v3610 = vadd.f32 %v3578, %v3546
        %v3611 = vadd.f32 %v3579, %v3547
        %v3612 = vadd.f32 %v3580, %v3548
        %v3613 = vadd.f32 %v3581, %v3549
        %v3614 = vadd.f32 %v3582, %v3550
        %v3615 = vadd.f32 %v3583, %v3551
        %v3616 = vadd.f32 %v3584, %v3552
        %v3617 = vadd.f32 %v3585, %v3553
        %v3618 = vadd.f32 %v3586, %v3554
        %v3619 = vadd.f32 %v3587, %v3555
        %v3620 = vadd.f32 %v3588, %v3556
        %v3621 = vadd.f32 %v3589, %v3557
        %v3622 = vadd.f32 %v3590, %v3558
        %v3623 = vadd.f32 %v3591, %v3559
        %v3624 = vadd.f32 %v3592, %v3560
        %v3625 = vadd.f32 %v3593, %v3561
        %v3626 = vadd.f32 %v3594, %v3562
        %v3627 = vadd.f32 %v3595, %v3563
        %v3628 = vadd.f32 %v3596, %v3564
        %v3629 = vadd.f32 %v3597, %v3565
        %v3630 = vadd.f32 %v3598, %v3566
        %3631 = vst [vmem:[#allocation2] sm:$0xff] %v3599
        %3632 = vst [vmem:[#allocation2 + $0x8] sm:$0xff] %v3600
        %3633 = vst [vmem:[#allocation2 + $0x10] sm:$0xff] %v3601
        %3634 = vst [vmem:[#allocation2 + $0x18] sm:$0xff] %v3602
        %3635 = vst [vmem:[#allocation2 + $0x20] sm:$0xff] %v3603
        %3636 = vst [vmem:[#allocation2 + $0x28] sm:$0xff] %v3604
        %3637 = vst [vmem:[#allocation2 + $0x30] sm:$0xff] %v3605
        %3638 = vst [vmem:[#allocation2 + $0x38] sm:$0xff] %v3606
        %3639 = vst [vmem:[#allocation2 + $0x40] sm:$0xff] %v3607
        %3640 = vst [vmem:[#allocation2 + $0x48] sm:$0xff] %v3608
        %3641 = vst [vmem:[#allocation2 + $0x50] sm:$0xff] %v3609
        %3642 = vst [vmem:[#allocation2 + $0x58] sm:$0xff] %v3610
        %3643 = vst [vmem:[#allocation2 + $0x60] sm:$0xff] %v3611
        %3644 = vst [vmem:[#allocation2 + $0x68] sm:$0xff] %v3612
        %3645 = vst [vmem:[#allocation2 + $0x70] sm:$0xff] %v3613
        %3646 = vst [vmem:[#allocation2 + $0x78] sm:$0xff] %v3614
        %3647 = vst [vmem:[#allocation2 + $0x80] sm:$0xff] %v3615
        %3648 = vst [vmem:[#allocation2 + $0x88] sm:$0xff] %v3616
        %3649 = vst [vmem:[#allocation2 + $0x90] sm:$0xff] %v3617
        %3650 = vst [vmem:[#allocation2 + $0x98] sm:$0xff] %v3618
        %3651 = vst [vmem:[#allocation2 + $0xa0] sm:$0xff] %v3619
        %3652 = vst [vmem:[#allocation2 + $0xa8] sm:$0xff] %v3620
        %3653 = vst [vmem:[#allocation2 + $0xb0] sm:$0xff] %v3621
        %3654 = vst [vmem:[#allocation2 + $0xb8] sm:$0xff] %v3622
        %3655 = vst [vmem:[#allocation2 + $0xc0] sm:$0xff] %v3623
        %3656 = vst [vmem:[#allocation2 + $0xc8] sm:$0xff] %v3624
        %3657 = vst [vmem:[#allocation2 + $0xd0] sm:$0xff] %v3625
        %3658 = vst [vmem:[#allocation2 + $0xd8] sm:$0xff] %v3626
        %3659 = vst [vmem:[#allocation2 + $0xe0] sm:$0xff] %v3627
        %3660 = vst [vmem:[#allocation2 + $0xe8] sm:$0xff] %v3628
        %3661 = vst [vmem:[#allocation2 + $0xf0] sm:$0xff] %v3629
        %3662 = vst [vmem:[#allocation2 + $0xf8] sm:$0xff] %v3630
        %v3663 = vld [vmem:[#allocation2] sm:$0xff]
        %v3664 = vld [vmem:[#allocation2 + $0x8] sm:$0xff]
        %v3665 = vld [vmem:[#allocation2 + $0x10] sm:$0xff]
        %v3666 = vld [vmem:[#allocation2 + $0x18] sm:$0xff]
        %v3667 = vld [vmem:[#allocation2 + $0x20] sm:$0xff]
        %v3668 = vld [vmem:[#allocation2 + $0x28] sm:$0xff]
        %v3669 = vld [vmem:[#allocation2 + $0x30] sm:$0xff]
        %v3670 = vld [vmem:[#allocation2 + $0x38] sm:$0xff]
        %v3671 = vld [vmem:[#allocation2 + $0x40] sm:$0xff]
        %v3672 = vld [vmem:[#allocation2 + $0x48] sm:$0xff]
        %v3673 = vld [vmem:[#allocation2 + $0x50] sm:$0xff]
        %v3674 = vld [vmem:[#allocation2 + $0x58] sm:$0xff]
        %v3675 = vld [vmem:[#allocation2 + $0x60] sm:$0xff]
        %v3676 = vld [vmem:[#allocation2 + $0x68] sm:$0xff]
        %v3677 = vld [vmem:[#allocation2 + $0x70] sm:$0xff]
        %v3678 = vld [vmem:[#allocation2 + $0x78] sm:$0xff]
        %v3679 = vld [vmem:[#allocation2 + $0x80] sm:$0xff]
        %v3680 = vld [vmem:[#allocation2 + $0x88] sm:$0xff]
        %v3681 = vld [vmem:[#allocation2 + $0x90] sm:$0xff]
        %v3682 = vld [vmem:[#allocation2 + $0x98] sm:$0xff]
        %v3683 = vld [vmem:[#allocation2 + $0xa0] sm:$0xff]
        %v3684 = vld [vmem:[#allocation2 + $0xa8] sm:$0xff]
        %v3685 = vld [vmem:[#allocation2 + $0xb0] sm:$0xff]
        %v3686 = vld [vmem:[#allocation2 + $0xb8] sm:$0xff]
        %v3687 = vld [vmem:[#allocation2 + $0xc0] sm:$0xff]
        %v3688 = vld [vmem:[#allocation2 + $0xc8] sm:$0xff]
        %v3689 = vld [vmem:[#allocation2 + $0xd0] sm:$0xff]
        %v3690 = vld [vmem:[#allocation2 + $0xd8] sm:$0xff]
        %v3691 = vld [vmem:[#allocation2 + $0xe0] sm:$0xff]
        %v3692 = vld [vmem:[#allocation2 + $0xe8] sm:$0xff]
        %v3693 = vld [vmem:[#allocation2 + $0xf0] sm:$0xff]
        %v3694 = vld [vmem:[#allocation2 + $0xf8] sm:$0xff]
        %s3695 = scalar_lea.vmem %s1, 1
        %v3696 = vld [vmem:[%s3695] sm:$0x1]
        %v3698 = vlaneseq
        %v3699 = vshrl.u32 %v3698, 7
        %v3700 = vsub.s32 0, %v3699
        %v3701 = vrot.slane %v3696, %v3700
        %v3703 = vmul.f32 %v3663, %v3701
        %v3704 = vmul.f32 %v3664, %v3701
        %v3705 = vmul.f32 %v3665, %v3701
        %v3706 = vmul.f32 %v3666, %v3701
        %v3707 = vmul.f32 %v3667, %v3701
        %v3708 = vmul.f32 %v3668, %v3701
        %v3709 = vmul.f32 %v3669, %v3701
        %v3710 = vmul.f32 %v3670, %v3701
        %v3711 = vmul.f32 %v3671, %v3701
        %v3712 = vmul.f32 %v3672, %v3701
        %v3713 = vmul.f32 %v3673, %v3701
        %v3714 = vmul.f32 %v3674, %v3701
        %v3715 = vmul.f32 %v3675, %v3701
        %v3716 = vmul.f32 %v3676, %v3701
        %v3717 = vmul.f32 %v3677, %v3701
        %v3718 = vmul.f32 %v3678, %v3701
        %v3719 = vmul.f32 %v3679, %v3701
        %v3720 = vmul.f32 %v3680, %v3701
        %v3721 = vmul.f32 %v3681, %v3701
        %v3722 = vmul.f32 %v3682, %v3701
        %v3723 = vmul.f32 %v3683, %v3701
        %v3724 = vmul.f32 %v3684, %v3701
        %v3725 = vmul.f32 %v3685, %v3701
        %v3726 = vmul.f32 %v3686, %v3701
        %v3727 = vmul.f32 %v3687, %v3701
        %v3728 = vmul.f32 %v3688, %v3701
        %v3729 = vmul.f32 %v3689, %v3701
        %v3730 = vmul.f32 %v3690, %v3701
        %v3731 = vmul.f32 %v3691, %v3701
        %v3732 = vmul.f32 %v3692, %v3701
        %v3733 = vmul.f32 %v3693, %v3701
        %v3734 = vmul.f32 %v3694, %v3701
        %s3735 = scalar_lea.vmem %s2, 1
        %v3736 = vld [vmem:[%s3735] sm:$0x1]
        %v3738 = vlaneseq
        %v3739 = vshrl.u32 %v3738, 7
        %v3740 = vsub.s32 0, %v3739
        %v3741 = vrot.slane %v3736, %v3740
        %v3743 = vadd.f32 %v3703, %v3741
        %v3744 = vadd.f32 %v3704, %v3741
        %v3745 = vadd.f32 %v3705, %v3741
        %v3746 = vadd.f32 %v3706, %v3741
        %v3747 = vadd.f32 %v3707, %v3741
        %v3748 = vadd.f32 %v3708, %v3741
        %v3749 = vadd.f32 %v3709, %v3741
        %v3750 = vadd.f32 %v3710, %v3741
        %v3751 = vadd.f32 %v3711, %v3741
        %v3752 = vadd.f32 %v3712, %v3741
        %v3753 = vadd.f32 %v3713, %v3741
        %v3754 = vadd.f32 %v3714, %v3741
        %v3755 = vadd.f32 %v3715, %v3741
        %v3756 = vadd.f32 %v3716, %v3741
        %v3757 = vadd.f32 %v3717, %v3741
        %v3758 = vadd.f32 %v3718, %v3741
        %v3759 = vadd.f32 %v3719, %v3741
        %v3760 = vadd.f32 %v3720, %v3741
        %v3761 = vadd.f32 %v3721, %v3741
        %v3762 = vadd.f32 %v3722, %v3741
        %v3763 = vadd.f32 %v3723, %v3741
        %v3764 = vadd.f32 %v3724, %v3741
        %v3765 = vadd.f32 %v3725, %v3741
        %v3766 = vadd.f32 %v3726, %v3741
        %v3767 = vadd.f32 %v3727, %v3741
        %v3768 = vadd.f32 %v3728, %v3741
        %v3769 = vadd.f32 %v3729, %v3741
        %v3770 = vadd.f32 %v3730, %v3741
        %v3771 = vadd.f32 %v3731, %v3741
        %v3772 = vadd.f32 %v3732, %v3741
        %v3773 = vadd.f32 %v3733, %v3741
        %v3774 = vadd.f32 %v3734, %v3741
        %v3775 = vmax.f32 %v3743, 0.0
        %v3776 = vmax.f32 %v3744, 0.0
        %v3777 = vmax.f32 %v3745, 0.0
        %v3778 = vmax.f32 %v3746, 0.0
        %v3779 = vmax.f32 %v3747, 0.0
        %v3780 = vmax.f32 %v3748, 0.0
        %v3781 = vmax.f32 %v3749, 0.0
        %v3782 = vmax.f32 %v3750, 0.0
        %v3783 = vmax.f32 %v3751, 0.0
        %v3784 = vmax.f32 %v3752, 0.0
        %v3785 = vmax.f32 %v3753, 0.0
        %v3786 = vmax.f32 %v3754, 0.0
        %v3787 = vmax.f32 %v3755, 0.0
        %v3788 = vmax.f32 %v3756, 0.0
        %v3789 = vmax.f32 %v3757, 0.0
        %v3790 = vmax.f32 %v3758, 0.0
        %v3791 = vmax.f32 %v3759, 0.0
        %v3792 = vmax.f32 %v3760, 0.0
        %v3793 = vmax.f32 %v3761, 0.0
        %v3794 = vmax.f32 %v3762, 0.0
        %v3795 = vmax.f32 %v3763, 0.0
        %v3796 = vmax.f32 %v3764, 0.0
        %v3797 = vmax.f32 %v3765, 0.0
        %v3798 = vmax.f32 %v3766, 0.0
        %v3799 = vmax.f32 %v3767, 0.0
        %v3800 = vmax.f32 %v3768, 0.0
        %v3801 = vmax.f32 %v3769, 0.0
        %v3802 = vmax.f32 %v3770, 0.0
        %v3803 = vmax.f32 %v3771, 0.0
        %v3804 = vmax.f32 %v3772, 0.0
        %v3805 = vmax.f32 %v3773, 0.0
        %v3806 = vmax.f32 %v3774, 0.0
        %v3807 = vpack.c.bf16 %v3776, %v3775
        %v3808 = vpack.c.bf16 %v3778, %v3777
        %v3809 = vpack.c.bf16 %v3780, %v3779
        %v3810 = vpack.c.bf16 %v3782, %v3781
        %v3811 = vpack.c.bf16 %v3784, %v3783
        %v3812 = vpack.c.bf16 %v3786, %v3785
        %v3813 = vpack.c.bf16 %v3788, %v3787
        %v3814 = vpack.c.bf16 %v3790, %v3789
        %v3815 = vpack.c.bf16 %v3792, %v3791
        %v3816 = vpack.c.bf16 %v3794, %v3793
        %v3817 = vpack.c.bf16 %v3796, %v3795
        %v3818 = vpack.c.bf16 %v3798, %v3797
        %v3819 = vpack.c.bf16 %v3800, %v3799
        %v3820 = vpack.c.bf16 %v3802, %v3801
        %v3821 = vpack.c.bf16 %v3804, %v3803
        %v3822 = vpack.c.bf16 %v3806, %v3805
        %s3823 = scalar_lea.vmem %s3, 64
        %v3824 = vld [vmem:[%s3823] sm:$0xf]
        %v3825 = vld [vmem:[%s3823 + $0x4] sm:$0xf]
        %v3826 = vld [vmem:[%s3823 + $0x8] sm:$0xf]
        %v3827 = vld [vmem:[%s3823 + $0xc] sm:$0xf]
        %v3828 = vld [vmem:[%s3823 + $0x10] sm:$0xf]
        %v3829 = vld [vmem:[%s3823 + $0x14] sm:$0xf]
        %v3830 = vld [vmem:[%s3823 + $0x18] sm:$0xf]
        %v3831 = vld [vmem:[%s3823 + $0x1c] sm:$0xf]
        %v3832 = vld [vmem:[%s3823 + $0x20] sm:$0xf]
        %v3833 = vld [vmem:[%s3823 + $0x24] sm:$0xf]
        %v3834 = vld [vmem:[%s3823 + $0x28] sm:$0xf]
        %v3835 = vld [vmem:[%s3823 + $0x2c] sm:$0xf]
        %v3836 = vld [vmem:[%s3823 + $0x30] sm:$0xf]
        %v3837 = vld [vmem:[%s3823 + $0x34] sm:$0xf]
        %v3838 = vld [vmem:[%s3823 + $0x38] sm:$0xf]
        %v3839 = vld [vmem:[%s3823 + $0x3c] sm:$0xf]
        %v3856 = vunpack.c.l.b16 %v3824
        %v3857 = vunpack.c.l.b16 %v3825
        %v3858 = vunpack.c.l.b16 %v3826
        %v3859 = vunpack.c.l.b16 %v3827
        %v3860 = vunpack.c.l.b16 %v3828
        %v3861 = vunpack.c.l.b16 %v3829
        %v3862 = vunpack.c.l.b16 %v3830
        %v3863 = vunpack.c.l.b16 %v3831
        %v3864 = vunpack.c.l.b16 %v3832
        %v3865 = vunpack.c.l.b16 %v3833
        %v3866 = vunpack.c.l.b16 %v3834
        %v3867 = vunpack.c.l.b16 %v3835
        %v3868 = vunpack.c.l.b16 %v3836
        %v3869 = vunpack.c.l.b16 %v3837
        %v3870 = vunpack.c.l.b16 %v3838
        %v3871 = vunpack.c.l.b16 %v3839
        %v3872 = vpack.c.b16 %v3857, %v3856
        %v3873 = vpack.c.b16 %v3859, %v3858
        %v3874 = vpack.c.b16 %v3861, %v3860
        %v3875 = vpack.c.b16 %v3863, %v3862
        %v3876 = vpack.c.b16 %v3865, %v3864
        %v3877 = vpack.c.b16 %v3867, %v3866
        %v3878 = vpack.c.b16 %v3869, %v3868
        %v3879 = vpack.c.b16 %v3871, %v3870
        %3888 = vmatprep.subr.bf16.mxu0 0
        %3889 = vmatpush1.bf16.msra.mxu0 %v3879
        %3890 = vmatprep.subr.bf16.mxu0 0
        %3891 = vmatpush1.bf16.msra.mxu0 %v3878
        %3892 = vmatprep.subr.bf16.mxu0 0
        %3893 = vmatpush1.bf16.msra.mxu0 %v3877
        %3894 = vmatprep.subr.bf16.mxu0 0
        %3895 = vmatpush1.bf16.msra.mxu0 %v3876
        %3896 = vmatprep.subr.bf16.mxu0 0
        %3897 = vmatpush1.bf16.msra.mxu0 %v3875
        %3898 = vmatprep.subr.bf16.mxu0 0
        %3899 = vmatpush1.bf16.msra.mxu0 %v3874
        %3900 = vmatprep.subr.bf16.mxu0 0
        %3901 = vmatpush1.bf16.msra.mxu0 %v3873
        %3902 = vmatprep.subr.bf16.mxu0 0
        %3903 = vmatpush1.bf16.msra.mxu0 %v3872
        %3904 = vmatprep.subr.bf16.mxu0 0
        %3905 = vmatpush2.bf16.msra.mxu0 0
        %3906 = vmatprep.subr.bf16.mxu0 0
        %3907 = vmatpush2.bf16.msra.mxu0 0
        %3908 = vmatprep.subr.bf16.mxu0 0
        %3909 = vmatpush2.bf16.msra.mxu0 0
        %3910 = vmatprep.subr.bf16.mxu0 0
        %3911 = vmatpush2.bf16.msra.mxu0 0
        %3912 = vmatprep.subr.bf16.mxu0 0
        %3913 = vmatpush2.bf16.msra.mxu0 0
        %3914 = vmatprep.subr.bf16.mxu0 0
        %3915 = vmatpush2.bf16.msra.mxu0 0
        %3916 = vmatprep.subr.bf16.mxu0 0
        %3917 = vmatpush2.bf16.msra.mxu0 0
        %3918 = vmatprep.subr.bf16.mxu0 0
        %3919 = vmatpush2.bf16.msra.mxu0 0
        %3920 = vmatprep.mubr.bf16.mxu0 0
        %3921 = vmatmul.mubr.bf16.gmra.mxu0 %v3807
        %v3922 = vpop.f32.mrf.mxu0
        %v3923 = vadd.f32 0.0, %v3922
        %v3924 = vpop.f32.mrf.mxu0
        %v3925 = vpop.f32.mrf.mxu0
        %v3926 = vadd.f32 0.0, %v3925
        %v3927 = vpop.f32.mrf.mxu0
        %3928 = vmatprep.mubr.bf16.mxu0 0
        %3929 = vmatmul.mubr.bf16.gmra.mxu0 %v3808
        %v3930 = vpop.f32.mrf.mxu0
        %v3931 = vadd.f32 0.0, %v3930
        %v3932 = vpop.f32.mrf.mxu0
        %v3933 = vpop.f32.mrf.mxu0
        %v3934 = vadd.f32 0.0, %v3933
        %v3935 = vpop.f32.mrf.mxu0
        %3936 = vmatprep.mubr.bf16.mxu0 0
        %3937 = vmatmul.mubr.bf16.gmra.mxu0 %v3809
        %v3938 = vpop.f32.mrf.mxu0
        %v3939 = vadd.f32 0.0, %v3938
        %v3940 = vpop.f32.mrf.mxu0
        %v3941 = vpop.f32.mrf.mxu0
        %v3942 = vadd.f32 0.0, %v3941
        %v3943 = vpop.f32.mrf.mxu0
        %3944 = vmatprep.mubr.bf16.mxu0 0
        %3945 = vmatmul.mubr.bf16.gmra.mxu0 %v3810
        %v3946 = vpop.f32.mrf.mxu0
        %v3947 = vadd.f32 0.0, %v3946
        %v3948 = vpop.f32.mrf.mxu0
        %v3949 = vpop.f32.mrf.mxu0
        %v3950 = vadd.f32 0.0, %v3949
        %v3951 = vpop.f32.mrf.mxu0
        %3952 = vmatprep.mubr.bf16.mxu0 0
        %3953 = vmatmul.mubr.bf16.gmra.mxu0 %v3811
        %v3954 = vpop.f32.mrf.mxu0
        %v3955 = vadd.f32 0.0, %v3954
        %v3956 = vpop.f32.mrf.mxu0
        %v3957 = vpop.f32.mrf.mxu0
        %v3958 = vadd.f32 0.0, %v3957
        %v3959 = vpop.f32.mrf.mxu0
        %3960 = vmatprep.mubr.bf16.mxu0 0
        %3961 = vmatmul.mubr.bf16.gmra.mxu0 %v3812
        %v3962 = vpop.f32.mrf.mxu0
        %v3963 = vadd.f32 0.0, %v3962
        %v3964 = vpop.f32.mrf.mxu0
        %v3965 = vpop.f32.mrf.mxu0
        %v3966 = vadd.f32 0.0, %v3965
        %v3967 = vpop.f32.mrf.mxu0
        %3968 = vmatprep.mubr.bf16.mxu0 0
        %3969 = vmatmul.mubr.bf16.gmra.mxu0 %v3813
        %v3970 = vpop.f32.mrf.mxu0
        %v3971 = vadd.f32 0.0, %v3970
        %v3972 = vpop.f32.mrf.mxu0
        %v3973 = vpop.f32.mrf.mxu0
        %v3974 = vadd.f32 0.0, %v3973
        %v3975 = vpop.f32.mrf.mxu0
        %3976 = vmatprep.mubr.bf16.mxu0 0
        %3977 = vmatmul.mubr.bf16.gmra.mxu0 %v3814
        %v3978 = vpop.f32.mrf.mxu0
        %v3979 = vadd.f32 0.0, %v3978
        %v3980 = vpop.f32.mrf.mxu0
        %v3981 = vpop.f32.mrf.mxu0
        %v3982 = vadd.f32 0.0, %v3981
        %v3983 = vpop.f32.mrf.mxu0
        %3984 = vmatprep.mubr.bf16.mxu0 0
        %3985 = vmatmul.mubr.bf16.gmra.mxu0 %v3815
        %v3986 = vpop.f32.mrf.mxu0
        %v3987 = vadd.f32 0.0, %v3986
        %v3988 = vpop.f32.mrf.mxu0
        %v3989 = vpop.f32.mrf.mxu0
        %v3990 = vadd.f32 0.0, %v3989
        %v3991 = vpop.f32.mrf.mxu0
        %3992 = vmatprep.mubr.bf16.mxu0 0
        %3993 = vmatmul.mubr.bf16.gmra.mxu0 %v3816
        %v3994 = vpop.f32.mrf.mxu0
        %v3995 = vadd.f32 0.0, %v3994
        %v3996 = vpop.f32.mrf.mxu0
        %v3997 = vpop.f32.mrf.mxu0
        %v3998 = vadd.f32 0.0, %v3997
        %v3999 = vpop.f32.mrf.mxu0
        %4000 = vmatprep.mubr.bf16.mxu0 0
        %4001 = vmatmul.mubr.bf16.gmra.mxu0 %v3817
        %v4002 = vpop.f32.mrf.mxu0
        %v4003 = vadd.f32 0.0, %v4002
        %v4004 = vpop.f32.mrf.mxu0
        %v4005 = vpop.f32.mrf.mxu0
        %v4006 = vadd.f32 0.0, %v4005
        %v4007 = vpop.f32.mrf.mxu0
        %4008 = vmatprep.mubr.bf16.mxu0 0
        %4009 = vmatmul.mubr.bf16.gmra.mxu0 %v3818
        %v4010 = vpop.f32.mrf.mxu0
        %v4011 = vadd.f32 0.0, %v4010
        %v4012 = vpop.f32.mrf.mxu0
        %v4013 = vpop.f32.mrf.mxu0
        %v4014 = vadd.f32 0.0, %v4013
        %v4015 = vpop.f32.mrf.mxu0
        %4016 = vmatprep.mubr.bf16.mxu0 0
        %4017 = vmatmul.mubr.bf16.gmra.mxu0 %v3819
        %v4018 = vpop.f32.mrf.mxu0
        %v4019 = vadd.f32 0.0, %v4018
        %v4020 = vpop.f32.mrf.mxu0
        %v4021 = vpop.f32.mrf.mxu0
        %v4022 = vadd.f32 0.0, %v4021
        %v4023 = vpop.f32.mrf.mxu0
        %4024 = vmatprep.mubr.bf16.mxu0 0
        %4025 = vmatmul.mubr.bf16.gmra.mxu0 %v3820
        %v4026 = vpop.f32.mrf.mxu0
        %v4027 = vadd.f32 0.0, %v4026
        %v4028 = vpop.f32.mrf.mxu0
        %v4029 = vpop.f32.mrf.mxu0
        %v4030 = vadd.f32 0.0, %v4029
        %v4031 = vpop.f32.mrf.mxu0
        %4032 = vmatprep.mubr.bf16.mxu0 0
        %4033 = vmatmul.mubr.bf16.gmra.mxu0 %v3821
        %v4034 = vpop.f32.mrf.mxu0
        %v4035 = vadd.f32 0.0, %v4034
        %v4036 = vpop.f32.mrf.mxu0
        %v4037 = vpop.f32.mrf.mxu0
        %v4038 = vadd.f32 0.0, %v4037
        %v4039 = vpop.f32.mrf.mxu0
        %4040 = vmatprep.mubr.bf16.mxu0 0
        %4041 = vmatmul.mubr.bf16.gmra.mxu0 %v3822
        %v4042 = vpop.f32.mrf.mxu0
        %v4043 = vadd.f32 0.0, %v4042
        %v4044 = vpop.f32.mrf.mxu0
        %v4045 = vpop.f32.mrf.mxu0
        %v4046 = vadd.f32 0.0, %v4045
        %v4047 = vpop.f32.mrf.mxu0
        %4048 = vdwg.mxu0
        %s4049 = scalar_lea.vmem %s4, 1
        %v4050 = vld [vmem:[%s4049] sm:$0x1]
        %v4052 = vlaneseq
        %v4053 = vshrl.u32 %v4052, 7
        %v4054 = vsub.s32 0, %v4053
        %v4055 = vrot.slane %v4050, %v4054
        %v4057 = vmul.f32 %v3923, %v4055
        %v4058 = vmul.f32 %v3926, %v4055
        %v4059 = vmul.f32 %v3931, %v4055
        %v4060 = vmul.f32 %v3934, %v4055
        %v4061 = vmul.f32 %v3939, %v4055
        %v4062 = vmul.f32 %v3942, %v4055
        %v4063 = vmul.f32 %v3947, %v4055
        %v4064 = vmul.f32 %v3950, %v4055
        %v4065 = vmul.f32 %v3955, %v4055
        %v4066 = vmul.f32 %v3958, %v4055
        %v4067 = vmul.f32 %v3963, %v4055
        %v4068 = vmul.f32 %v3966, %v4055
        %v4069 = vmul.f32 %v3971, %v4055
        %v4070 = vmul.f32 %v3974, %v4055
        %v4071 = vmul.f32 %v3979, %v4055
        %v4072 = vmul.f32 %v3982, %v4055
        %v4073 = vmul.f32 %v3987, %v4055
        %v4074 = vmul.f32 %v3990, %v4055
        %v4075 = vmul.f32 %v3995, %v4055
        %v4076 = vmul.f32 %v3998, %v4055
        %v4077 = vmul.f32 %v4003, %v4055
        %v4078 = vmul.f32 %v4006, %v4055
        %v4079 = vmul.f32 %v4011, %v4055
        %v4080 = vmul.f32 %v4014, %v4055
        %v4081 = vmul.f32 %v4019, %v4055
        %v4082 = vmul.f32 %v4022, %v4055
        %v4083 = vmul.f32 %v4027, %v4055
        %v4084 = vmul.f32 %v4030, %v4055
        %v4085 = vmul.f32 %v4035, %v4055
        %v4086 = vmul.f32 %v4038, %v4055
        %v4087 = vmul.f32 %v4043, %v4055
        %v4088 = vmul.f32 %v4046, %v4055
        %s4089 = scalar_lea.vmem [#allocation7], 1
        %v4090 = vld [vmem:[%s4089] sm:$0x1]
        %v4092 = vlaneseq
        %v4093 = vshrl.u32 %v4092, 7
        %v4094 = vsub.s32 0, %v4093
        %v4095 = vrot.slane %v4090, %v4094
        %v4097 = vadd.f32 %v4057, %v4095
        %v4098 = vadd.f32 %v4058, %v4095
        %v4099 = vadd.f32 %v4059, %v4095
        %v4100 = vadd.f32 %v4060, %v4095
        %v4101 = vadd.f32 %v4061, %v4095
        %v4102 = vadd.f32 %v4062, %v4095
        %v4103 = vadd.f32 %v4063, %v4095
        %v4104 = vadd.f32 %v4064, %v4095
        %v4105 = vadd.f32 %v4065, %v4095
        %v4106 = vadd.f32 %v4066, %v4095
        %v4107 = vadd.f32 %v4067, %v4095
        %v4108 = vadd.f32 %v4068, %v4095
        %v4109 = vadd.f32 %v4069, %v4095
        %v4110 = vadd.f32 %v4070, %v4095
        %v4111 = vadd.f32 %v4071, %v4095
        %v4112 = vadd.f32 %v4072, %v4095
        %v4113 = vadd.f32 %v4073, %v4095
        %v4114 = vadd.f32 %v4074, %v4095
        %v4115 = vadd.f32 %v4075, %v4095
        %v4116 = vadd.f32 %v4076, %v4095
        %v4117 = vadd.f32 %v4077, %v4095
        %v4118 = vadd.f32 %v4078, %v4095
        %v4119 = vadd.f32 %v4079, %v4095
        %v4120 = vadd.f32 %v4080, %v4095
        %v4121 = vadd.f32 %v4081, %v4095
        %v4122 = vadd.f32 %v4082, %v4095
        %v4123 = vadd.f32 %v4083, %v4095
        %v4124 = vadd.f32 %v4084, %v4095
        %v4125 = vadd.f32 %v4085, %v4095
        %v4126 = vadd.f32 %v4086, %v4095
        %v4127 = vadd.f32 %v4087, %v4095
        %v4128 = vadd.f32 %v4088, %v4095
        %v4129 = vmax.f32 %v4097, 0.0
        %v4130 = vmax.f32 %v4098, 0.0
        %v4131 = vmax.f32 %v4099, 0.0
        %v4132 = vmax.f32 %v4100, 0.0
        %v4133 = vmax.f32 %v4101, 0.0
        %v4134 = vmax.f32 %v4102, 0.0
        %v4135 = vmax.f32 %v4103, 0.0
        %v4136 = vmax.f32 %v4104, 0.0
        %v4137 = vmax.f32 %v4105, 0.0
        %v4138 = vmax.f32 %v4106, 0.0
        %v4139 = vmax.f32 %v4107, 0.0
        %v4140 = vmax.f32 %v4108, 0.0
        %v4141 = vmax.f32 %v4109, 0.0
        %v4142 = vmax.f32 %v4110, 0.0
        %v4143 = vmax.f32 %v4111, 0.0
        %v4144 = vmax.f32 %v4112, 0.0
        %v4145 = vmax.f32 %v4113, 0.0
        %v4146 = vmax.f32 %v4114, 0.0
        %v4147 = vmax.f32 %v4115, 0.0
        %v4148 = vmax.f32 %v4116, 0.0
        %v4149 = vmax.f32 %v4117, 0.0
        %v4150 = vmax.f32 %v4118, 0.0
        %v4151 = vmax.f32 %v4119, 0.0
        %v4152 = vmax.f32 %v4120, 0.0
        %v4153 = vmax.f32 %v4121, 0.0
        %v4154 = vmax.f32 %v4122, 0.0
        %v4155 = vmax.f32 %v4123, 0.0
        %v4156 = vmax.f32 %v4124, 0.0
        %v4157 = vmax.f32 %v4125, 0.0
        %v4158 = vmax.f32 %v4126, 0.0
        %v4159 = vmax.f32 %v4127, 0.0
        %v4160 = vmax.f32 %v4128, 0.0
        %4161 = vst.msk [vmem:[%s916 + $0x1] sm:$0xff] %vm377, %v4129
        %4162 = vst.msk [vmem:[%s916 + $0x9] sm:$0xff] %vm377, %v4130
        %4163 = vst.msk [vmem:[%s916 + $0x19] sm:$0xff] %vm377, %v4131
        %4164 = vst.msk [vmem:[%s916 + $0x21] sm:$0xff] %vm377, %v4132
        %4165 = vst.msk [vmem:[%s916 + $0x31] sm:$0xff] %vm377, %v4133
        %4166 = vst.msk [vmem:[%s916 + $0x39] sm:$0xff] %vm377, %v4134
        %4167 = vst.msk [vmem:[%s916 + $0x49] sm:$0xff] %vm377, %v4135
        %4168 = vst.msk [vmem:[%s916 + $0x51] sm:$0xff] %vm377, %v4136
        %4169 = vst.msk [vmem:[%s916 + $0x61] sm:$0xff] %vm377, %v4137
        %4170 = vst.msk [vmem:[%s916 + $0x69] sm:$0xff] %vm377, %v4138
        %4171 = vst.msk [vmem:[%s916 + $0x79] sm:$0xff] %vm377, %v4139
        %4172 = vst.msk [vmem:[%s916 + $0x81] sm:$0xff] %vm377, %v4140
        %4173 = vst.msk [vmem:[%s916 + $0x91] sm:$0xff] %vm377, %v4141
        %4174 = vst.msk [vmem:[%s916 + $0x99] sm:$0xff] %vm377, %v4142
        %4175 = vst.msk [vmem:[%s916 + $0xa9] sm:$0xff] %vm377, %v4143
        %4176 = vst.msk [vmem:[%s916 + $0xb1] sm:$0xff] %vm377, %v4144
        %4177 = vst.msk [vmem:[%s916 + $0xc1] sm:$0xff] %vm377, %v4145
        %4178 = vst.msk [vmem:[%s916 + $0xc9] sm:$0xff] %vm377, %v4146
        %4179 = vst.msk [vmem:[%s916 + $0xd9] sm:$0xff] %vm377, %v4147
        %4180 = vst.msk [vmem:[%s916 + $0xe1] sm:$0xff] %vm377, %v4148
        %4181 = vst.msk [vmem:[%s916 + $0xf1] sm:$0xff] %vm377, %v4149
        %4182 = vst.msk [vmem:[%s916 + $0xf9] sm:$0xff] %vm377, %v4150
        %4183 = vst.msk [vmem:[%s916 + $0x109] sm:$0xff] %vm377, %v4151
        %4184 = vst.msk [vmem:[%s916 + $0x111] sm:$0xff] %vm377, %v4152
        %4185 = vst.msk [vmem:[%s916 + $0x121] sm:$0xff] %vm377, %v4153
        %4186 = vst.msk [vmem:[%s916 + $0x129] sm:$0xff] %vm377, %v4154
        %4187 = vst.msk [vmem:[%s916 + $0x139] sm:$0xff] %vm377, %v4155
        %4188 = vst.msk [vmem:[%s916 + $0x141] sm:$0xff] %vm377, %v4156
        %4189 = vst.msk [vmem:[%s916 + $0x151] sm:$0xff] %vm377, %v4157
        %4190 = vst.msk [vmem:[%s916 + $0x159] sm:$0xff] %vm377, %v4158
        %4191 = vst.msk [vmem:[%s916 + $0x169] sm:$0xff] %vm377, %v4159
        %4192 = vst.msk [vmem:[%s916 + $0x171] sm:$0xff] %vm377, %v4160
        %v4193 = vld [vmem:[#allocation3] sm:$0xff]
        %v4194 = vld [vmem:[#allocation3 + $0x8] sm:$0xff]
        %v4195 = vld [vmem:[#allocation3 + $0x18] sm:$0xff]
        %v4196 = vld [vmem:[#allocation3 + $0x20] sm:$0xff]
        %v4197 = vld [vmem:[#allocation3 + $0x30] sm:$0xff]
        %v4198 = vld [vmem:[#allocation3 + $0x38] sm:$0xff]
        %v4199 = vld [vmem:[#allocation3 + $0x48] sm:$0xff]
        %v4200 = vld [vmem:[#allocation3 + $0x50] sm:$0xff]
        %v4201 = vld [vmem:[#allocation3 + $0x60] sm:$0xff]
        %v4202 = vld [vmem:[#allocation3 + $0x68] sm:$0xff]
        %v4203 = vld [vmem:[#allocation3 + $0x78] sm:$0xff]
        %v4204 = vld [vmem:[#allocation3 + $0x80] sm:$0xff]
        %v4205 = vld [vmem:[#allocation3 + $0x90] sm:$0xff]
        %v4206 = vld [vmem:[#allocation3 + $0x98] sm:$0xff]
        %v4207 = vld [vmem:[#allocation3 + $0xa8] sm:$0xff]
        %v4208 = vld [vmem:[#allocation3 + $0xb0] sm:$0xff]
        %v4209 = vld [vmem:[#allocation3 + $0xc0] sm:$0xff]
        %v4210 = vld [vmem:[#allocation3 + $0xc8] sm:$0xff]
        %v4211 = vld [vmem:[#allocation3 + $0xd8] sm:$0xff]
        %v4212 = vld [vmem:[#allocation3 + $0xe0] sm:$0xff]
        %v4213 = vld [vmem:[#allocation3 + $0xf0] sm:$0xff]
        %v4214 = vld [vmem:[#allocation3 + $0xf8] sm:$0xff]
        %v4215 = vld [vmem:[#allocation3 + $0x108] sm:$0xff]
        %v4216 = vld [vmem:[#allocation3 + $0x110] sm:$0xff]
        %v4217 = vld [vmem:[#allocation3 + $0x120] sm:$0xff]
        %v4218 = vld [vmem:[#allocation3 + $0x128] sm:$0xff]
        %v4219 = vld [vmem:[#allocation3 + $0x138] sm:$0xff]
        %v4220 = vld [vmem:[#allocation3 + $0x140] sm:$0xff]
        %v4221 = vld [vmem:[#allocation3 + $0x150] sm:$0xff]
        %v4222 = vld [vmem:[#allocation3 + $0x158] sm:$0xff]
        %v4223 = vld [vmem:[#allocation3 + $0x168] sm:$0xff]
        %v4224 = vld [vmem:[#allocation3 + $0x170] sm:$0xff]
        %v4225 = vpack.c.bf16 %v4194, %v4193
        %v4226 = vpack.c.bf16 %v4196, %v4195
        %v4227 = vpack.c.bf16 %v4198, %v4197
        %v4228 = vpack.c.bf16 %v4200, %v4199
        %v4229 = vpack.c.bf16 %v4202, %v4201
        %v4230 = vpack.c.bf16 %v4204, %v4203
        %v4231 = vpack.c.bf16 %v4206, %v4205
        %v4232 = vpack.c.bf16 %v4208, %v4207
        %v4233 = vpack.c.bf16 %v4210, %v4209
        %v4234 = vpack.c.bf16 %v4212, %v4211
        %v4235 = vpack.c.bf16 %v4214, %v4213
        %v4236 = vpack.c.bf16 %v4216, %v4215
        %v4237 = vpack.c.bf16 %v4218, %v4217
        %v4238 = vpack.c.bf16 %v4220, %v4219
        %v4239 = vpack.c.bf16 %v4222, %v4221
        %v4240 = vpack.c.bf16 %v4224, %v4223
        %s4241 = scalar_lea.vmem %s6, 72
        %v4242 = vld [vmem:[%s4241] sm:$0xf]
        %v4243 = vld [vmem:[%s4241 + $0x4] sm:$0xf]
        %v4244 = vld [vmem:[#allocation3 + $0x1] sm:$0xff]
        %v4245 = vld [vmem:[#allocation3 + $0x9] sm:$0xff]
        %v4246 = vld [vmem:[#allocation3 + $0x19] sm:$0xff]
        %v4247 = vld [vmem:[#allocation3 + $0x21] sm:$0xff]
        %v4248 = vld [vmem:[#allocation3 + $0x31] sm:$0xff]
        %v4249 = vld [vmem:[#allocation3 + $0x39] sm:$0xff]
        %v4250 = vld [vmem:[#allocation3 + $0x49] sm:$0xff]
        %v4251 = vld [vmem:[#allocation3 + $0x51] sm:$0xff]
        %v4252 = vld [vmem:[#allocation3 + $0x61] sm:$0xff]
        %v4253 = vld [vmem:[#allocation3 + $0x69] sm:$0xff]
        %v4254 = vld [vmem:[#allocation3 + $0x79] sm:$0xff]
        %v4255 = vld [vmem:[#allocation3 + $0x81] sm:$0xff]
        %v4256 = vld [vmem:[#allocation3 + $0x91] sm:$0xff]
        %v4257 = vld [vmem:[#allocation3 + $0x99] sm:$0xff]
        %v4258 = vld [vmem:[#allocation3 + $0xa9] sm:$0xff]
        %v4259 = vld [vmem:[#allocation3 + $0xb1] sm:$0xff]
        %v4260 = vld [vmem:[#allocation3 + $0xc1] sm:$0xff]
        %v4261 = vld [vmem:[#allocation3 + $0xc9] sm:$0xff]
        %v4262 = vld [vmem:[#allocation3 + $0xd9] sm:$0xff]
        %v4263 = vld [vmem:[#allocation3 + $0xe1] sm:$0xff]
        %v4264 = vld [vmem:[#allocation3 + $0xf1] sm:$0xff]
        %v4265 = vld [vmem:[#allocation3 + $0xf9] sm:$0xff]
        %v4266 = vld [vmem:[#allocation3 + $0x109] sm:$0xff]
        %v4267 = vld [vmem:[#allocation3 + $0x111] sm:$0xff]
        %v4268 = vld [vmem:[#allocation3 + $0x121] sm:$0xff]
        %v4269 = vld [vmem:[#allocation3 + $0x129] sm:$0xff]
        %v4270 = vld [vmem:[#allocation3 + $0x139] sm:$0xff]
        %v4271 = vld [vmem:[#allocation3 + $0x141] sm:$0xff]
        %v4272 = vld [vmem:[#allocation3 + $0x151] sm:$0xff]
        %v4273 = vld [vmem:[#allocation3 + $0x159] sm:$0xff]
        %v4274 = vld [vmem:[#allocation3 + $0x169] sm:$0xff]
        %v4275 = vld [vmem:[#allocation3 + $0x171] sm:$0xff]
        %v4276 = vpack.c.bf16 %v4245, %v4244
        %v4277 = vpack.c.bf16 %v4247, %v4246
        %v4278 = vpack.c.bf16 %v4249, %v4248
        %v4279 = vpack.c.bf16 %v4251, %v4250
        %v4280 = vpack.c.bf16 %v4253, %v4252
        %v4281 = vpack.c.bf16 %v4255, %v4254
        %v4282 = vpack.c.bf16 %v4257, %v4256
        %v4283 = vpack.c.bf16 %v4259, %v4258
        %v4284 = vpack.c.bf16 %v4261, %v4260
        %v4285 = vpack.c.bf16 %v4263, %v4262
        %v4286 = vpack.c.bf16 %v4265, %v4264
        %v4287 = vpack.c.bf16 %v4267, %v4266
        %v4288 = vpack.c.bf16 %v4269, %v4268
        %v4289 = vpack.c.bf16 %v4271, %v4270
        %v4290 = vpack.c.bf16 %v4273, %v4272
        %v4291 = vpack.c.bf16 %v4275, %v4274
        %s4292 = scalar_lea.vmem %s6, 80
        %v4293 = vld [vmem:[%s4292] sm:$0xf]
        %v4294 = vld [vmem:[%s4292 + $0x4] sm:$0xf]
        %v4297 = vunpack.c.l.b16 %v4293
        %v4298 = vunpack.c.l.b16 %v4294
        %v4299 = vpack.c.b16 %v4298, %v4297
        %v4302 = vsel %vm377, %v4276, 0
        %v4305 = vsel %vm377, %v4277, 0
        %v4308 = vsel %vm377, %v4278, 0
        %v4311 = vsel %vm377, %v4279, 0
        %v4314 = vsel %vm377, %v4280, 0
        %v4317 = vsel %vm377, %v4281, 0
        %v4320 = vsel %vm377, %v4282, 0
        %v4323 = vsel %vm377, %v4283, 0
        %v4326 = vsel %vm377, %v4284, 0
        %v4329 = vsel %vm377, %v4285, 0
        %v4332 = vsel %vm377, %v4286, 0
        %v4335 = vsel %vm377, %v4287, 0
        %v4338 = vsel %vm377, %v4288, 0
        %v4341 = vsel %vm377, %v4289, 0
        %v4344 = vsel %vm377, %v4290, 0
        %v4347 = vsel %vm377, %v4291, 0
        %4349 = vmatprep.subr.bf16.mxu0 0
        %4350 = vmatpush1.bf16.msra.mxu0 0
        %4351 = vmatprep.subr.bf16.mxu0 0
        %4352 = vmatpush1.bf16.msra.mxu0 0
        %4353 = vmatprep.subr.bf16.mxu0 0
        %4354 = vmatpush1.bf16.msra.mxu0 0
        %4355 = vmatprep.subr.bf16.mxu0 0
        %4356 = vmatpush1.bf16.msra.mxu0 0
        %4357 = vmatprep.subr.bf16.mxu0 0
        %4358 = vmatpush1.bf16.msra.mxu0 0
        %4359 = vmatprep.subr.bf16.mxu0 0
        %4360 = vmatpush1.bf16.msra.mxu0 0
        %4361 = vmatprep.subr.bf16.mxu0 0
        %4362 = vmatpush1.bf16.msra.mxu0 0
        %4363 = vmatprep.subr.bf16.mxu0 0
        %4364 = vmatpush1.bf16.msra.mxu0 %v4299
        %4365 = vmatprep.subr.bf16.mxu0 0
        %4366 = vmatpush2.bf16.msra.mxu0 0
        %4367 = vmatprep.subr.bf16.mxu0 0
        %4368 = vmatpush2.bf16.msra.mxu0 0
        %4369 = vmatprep.subr.bf16.mxu0 0
        %4370 = vmatpush2.bf16.msra.mxu0 0
        %4371 = vmatprep.subr.bf16.mxu0 0
        %4372 = vmatpush2.bf16.msra.mxu0 0
        %4373 = vmatprep.subr.bf16.mxu0 0
        %4374 = vmatpush2.bf16.msra.mxu0 0
        %4375 = vmatprep.subr.bf16.mxu0 0
        %4376 = vmatpush2.bf16.msra.mxu0 0
        %4377 = vmatprep.subr.bf16.mxu0 0
        %4378 = vmatpush2.bf16.msra.mxu0 0
        %4379 = vmatprep.subr.bf16.mxu0 0
        %4380 = vmatpush2.bf16.msra.mxu0 0
        %4381 = vmatprep.mubr.bf16.mxu0 0
        %4382 = vmatmul.mubr.bf16.gmra.mxu0 %v4302
        %v4383 = vpop.f32.mrf.mxu0
        %v4384 = vadd.f32 0.0, %v4383
        %v4385 = vpop.f32.mrf.mxu0
        %v4386 = vpop.f32.mrf.mxu0
        %v4387 = vadd.f32 0.0, %v4386
        %v4388 = vpop.f32.mrf.mxu0
        %4389 = vmatprep.mubr.bf16.mxu0 0
        %4390 = vmatmul.mubr.bf16.gmra.mxu0 %v4305
        %v4391 = vpop.f32.mrf.mxu0
        %v4392 = vadd.f32 0.0, %v4391
        %v4393 = vpop.f32.mrf.mxu0
        %v4394 = vpop.f32.mrf.mxu0
        %v4395 = vadd.f32 0.0, %v4394
        %v4396 = vpop.f32.mrf.mxu0
        %4397 = vmatprep.mubr.bf16.mxu0 0
        %4398 = vmatmul.mubr.bf16.gmra.mxu0 %v4308
        %v4399 = vpop.f32.mrf.mxu0
        %v4400 = vadd.f32 0.0, %v4399
        %v4401 = vpop.f32.mrf.mxu0
        %v4402 = vpop.f32.mrf.mxu0
        %v4403 = vadd.f32 0.0, %v4402
        %v4404 = vpop.f32.mrf.mxu0
        %4405 = vmatprep.mubr.bf16.mxu0 0
        %4406 = vmatmul.mubr.bf16.gmra.mxu0 %v4311
        %v4407 = vpop.f32.mrf.mxu0
        %v4408 = vadd.f32 0.0, %v4407
        %v4409 = vpop.f32.mrf.mxu0
        %v4410 = vpop.f32.mrf.mxu0
        %v4411 = vadd.f32 0.0, %v4410
        %v4412 = vpop.f32.mrf.mxu0
        %4413 = vmatprep.mubr.bf16.mxu0 0
        %4414 = vmatmul.mubr.bf16.gmra.mxu0 %v4314
        %v4415 = vpop.f32.mrf.mxu0
        %v4416 = vadd.f32 0.0, %v4415
        %v4417 = vpop.f32.mrf.mxu0
        %v4418 = vpop.f32.mrf.mxu0
        %v4419 = vadd.f32 0.0, %v4418
        %v4420 = vpop.f32.mrf.mxu0
        %4421 = vmatprep.mubr.bf16.mxu0 0
        %4422 = vmatmul.mubr.bf16.gmra.mxu0 %v4317
        %v4423 = vpop.f32.mrf.mxu0
        %v4424 = vadd.f32 0.0, %v4423
        %v4425 = vpop.f32.mrf.mxu0
        %v4426 = vpop.f32.mrf.mxu0
        %v4427 = vadd.f32 0.0, %v4426
        %v4428 = vpop.f32.mrf.mxu0
        %4429 = vmatprep.mubr.bf16.mxu0 0
        %4430 = vmatmul.mubr.bf16.gmra.mxu0 %v4320
        %v4431 = vpop.f32.mrf.mxu0
        %v4432 = vadd.f32 0.0, %v4431
        %v4433 = vpop.f32.mrf.mxu0
        %v4434 = vpop.f32.mrf.mxu0
        %v4435 = vadd.f32 0.0, %v4434
        %v4436 = vpop.f32.mrf.mxu0
        %4437 = vmatprep.mubr.bf16.mxu0 0
        %4438 = vmatmul.mubr.bf16.gmra.mxu0 %v4323
        %v4439 = vpop.f32.mrf.mxu0
        %v4440 = vadd.f32 0.0, %v4439
        %v4441 = vpop.f32.mrf.mxu0
        %v4442 = vpop.f32.mrf.mxu0
        %v4443 = vadd.f32 0.0, %v4442
        %v4444 = vpop.f32.mrf.mxu0
        %4445 = vmatprep.mubr.bf16.mxu0 0
        %4446 = vmatmul.mubr.bf16.gmra.mxu0 %v4326
        %v4447 = vpop.f32.mrf.mxu0
        %v4448 = vadd.f32 0.0, %v4447
        %v4449 = vpop.f32.mrf.mxu0
        %v4450 = vpop.f32.mrf.mxu0
        %v4451 = vadd.f32 0.0, %v4450
        %v4452 = vpop.f32.mrf.mxu0
        %4453 = vmatprep.mubr.bf16.mxu0 0
        %4454 = vmatmul.mubr.bf16.gmra.mxu0 %v4329
        %v4455 = vpop.f32.mrf.mxu0
        %v4456 = vadd.f32 0.0, %v4455
        %v4457 = vpop.f32.mrf.mxu0
        %v4458 = vpop.f32.mrf.mxu0
        %v4459 = vadd.f32 0.0, %v4458
        %v4460 = vpop.f32.mrf.mxu0
        %4461 = vmatprep.mubr.bf16.mxu0 0
        %4462 = vmatmul.mubr.bf16.gmra.mxu0 %v4332
        %v4463 = vpop.f32.mrf.mxu0
        %v4464 = vadd.f32 0.0, %v4463
        %v4465 = vpop.f32.mrf.mxu0
        %v4466 = vpop.f32.mrf.mxu0
        %v4467 = vadd.f32 0.0, %v4466
        %v4468 = vpop.f32.mrf.mxu0
        %4469 = vmatprep.mubr.bf16.mxu0 0
        %4470 = vmatmul.mubr.bf16.gmra.mxu0 %v4335
        %v4471 = vpop.f32.mrf.mxu0
        %v4472 = vadd.f32 0.0, %v4471
        %v4473 = vpop.f32.mrf.mxu0
        %v4474 = vpop.f32.mrf.mxu0
        %v4475 = vadd.f32 0.0, %v4474
        %v4476 = vpop.f32.mrf.mxu0
        %4477 = vmatprep.mubr.bf16.mxu0 0
        %4478 = vmatmul.mubr.bf16.gmra.mxu0 %v4338
        %v4479 = vpop.f32.mrf.mxu0
        %v4480 = vadd.f32 0.0, %v4479
        %v4481 = vpop.f32.mrf.mxu0
        %v4482 = vpop.f32.mrf.mxu0
        %v4483 = vadd.f32 0.0, %v4482
        %v4484 = vpop.f32.mrf.mxu0
        %4485 = vmatprep.mubr.bf16.mxu0 0
        %4486 = vmatmul.mubr.bf16.gmra.mxu0 %v4341
        %v4487 = vpop.f32.mrf.mxu0
        %v4488 = vadd.f32 0.0, %v4487
        %v4489 = vpop.f32.mrf.mxu0
        %v4490 = vpop.f32.mrf.mxu0
        %v4491 = vadd.f32 0.0, %v4490
        %v4492 = vpop.f32.mrf.mxu0
        %4493 = vmatprep.mubr.bf16.mxu0 0
        %4494 = vmatmul.mubr.bf16.gmra.mxu0 %v4344
        %v4495 = vpop.f32.mrf.mxu0
        %v4496 = vadd.f32 0.0, %v4495
        %v4497 = vpop.f32.mrf.mxu0
        %v4498 = vpop.f32.mrf.mxu0
        %v4499 = vadd.f32 0.0, %v4498
        %v4500 = vpop.f32.mrf.mxu0
        %4501 = vmatprep.mubr.bf16.mxu0 0
        %4502 = vmatmul.mubr.bf16.gmra.mxu0 %v4347
        %v4503 = vpop.f32.mrf.mxu0
        %v4504 = vadd.f32 0.0, %v4503
        %v4505 = vpop.f32.mrf.mxu0
        %v4506 = vpop.f32.mrf.mxu0
        %v4507 = vadd.f32 0.0, %v4506
        %v4508 = vpop.f32.mrf.mxu0
        %4509 = vdwg.mxu0
        %v4512 = vunpack.c.l.b16 %v4242
        %v4513 = vunpack.c.l.b16 %v4243
        %v4514 = vpack.c.b16 %v4513, %v4512
        %v4517 = vsel %vm377, %v4225, 0
        %v4520 = vsel %vm377, %v4226, 0
        %v4523 = vsel %vm377, %v4227, 0
        %v4526 = vsel %vm377, %v4228, 0
        %v4529 = vsel %vm377, %v4229, 0
        %v4532 = vsel %vm377, %v4230, 0
        %v4535 = vsel %vm377, %v4231, 0
        %v4538 = vsel %vm377, %v4232, 0
        %v4541 = vsel %vm377, %v4233, 0
        %v4544 = vsel %vm377, %v4234, 0
        %v4547 = vsel %vm377, %v4235, 0
        %v4550 = vsel %vm377, %v4236, 0
        %v4553 = vsel %vm377, %v4237, 0
        %v4556 = vsel %vm377, %v4238, 0
        %v4559 = vsel %vm377, %v4239, 0
        %v4562 = vsel %vm377, %v4240, 0
        %4564 = vmatprep.subr.bf16.mxu0 0
        %4565 = vmatpush1.bf16.msra.mxu0 0
        %4566 = vmatprep.subr.bf16.mxu0 0
        %4567 = vmatpush1.bf16.msra.mxu0 0
        %4568 = vmatprep.subr.bf16.mxu0 0
        %4569 = vmatpush1.bf16.msra.mxu0 0
        %4570 = vmatprep.subr.bf16.mxu0 0
        %4571 = vmatpush1.bf16.msra.mxu0 0
        %4572 = vmatprep.subr.bf16.mxu0 0
        %4573 = vmatpush1.bf16.msra.mxu0 0
        %4574 = vmatprep.subr.bf16.mxu0 0
        %4575 = vmatpush1.bf16.msra.mxu0 0
        %4576 = vmatprep.subr.bf16.mxu0 0
        %4577 = vmatpush1.bf16.msra.mxu0 0
        %4578 = vmatprep.subr.bf16.mxu0 0
        %4579 = vmatpush1.bf16.msra.mxu0 %v4514
        %4580 = vmatprep.subr.bf16.mxu0 0
        %4581 = vmatpush2.bf16.msra.mxu0 0
        %4582 = vmatprep.subr.bf16.mxu0 0
        %4583 = vmatpush2.bf16.msra.mxu0 0
        %4584 = vmatprep.subr.bf16.mxu0 0
        %4585 = vmatpush2.bf16.msra.mxu0 0
        %4586 = vmatprep.subr.bf16.mxu0 0
        %4587 = vmatpush2.bf16.msra.mxu0 0
        %4588 = vmatprep.subr.bf16.mxu0 0
        %4589 = vmatpush2.bf16.msra.mxu0 0
        %4590 = vmatprep.subr.bf16.mxu0 0
        %4591 = vmatpush2.bf16.msra.mxu0 0
        %4592 = vmatprep.subr.bf16.mxu0 0
        %4593 = vmatpush2.bf16.msra.mxu0 0
        %4594 = vmatprep.subr.bf16.mxu0 0
        %4595 = vmatpush2.bf16.msra.mxu0 0
        %4596 = vmatprep.mubr.bf16.mxu0 0
        %4597 = vmatmul.mubr.bf16.gmra.mxu0 %v4517
        %v4598 = vpop.f32.mrf.mxu0
        %v4599 = vadd.f32 %v4384, %v4598
        %v4600 = vpop.f32.mrf.mxu0
        %v4601 = vpop.f32.mrf.mxu0
        %v4602 = vadd.f32 %v4387, %v4601
        %v4603 = vpop.f32.mrf.mxu0
        %4604 = vmatprep.mubr.bf16.mxu0 0
        %4605 = vmatmul.mubr.bf16.gmra.mxu0 %v4520
        %v4606 = vpop.f32.mrf.mxu0
        %v4607 = vadd.f32 %v4392, %v4606
        %v4608 = vpop.f32.mrf.mxu0
        %v4609 = vpop.f32.mrf.mxu0
        %v4610 = vadd.f32 %v4395, %v4609
        %v4611 = vpop.f32.mrf.mxu0
        %4612 = vmatprep.mubr.bf16.mxu0 0
        %4613 = vmatmul.mubr.bf16.gmra.mxu0 %v4523
        %v4614 = vpop.f32.mrf.mxu0
        %v4615 = vadd.f32 %v4400, %v4614
        %v4616 = vpop.f32.mrf.mxu0
        %v4617 = vpop.f32.mrf.mxu0
        %v4618 = vadd.f32 %v4403, %v4617
        %v4619 = vpop.f32.mrf.mxu0
        %4620 = vmatprep.mubr.bf16.mxu0 0
        %4621 = vmatmul.mubr.bf16.gmra.mxu0 %v4526
        %v4622 = vpop.f32.mrf.mxu0
        %v4623 = vadd.f32 %v4408, %v4622
        %v4624 = vpop.f32.mrf.mxu0
        %v4625 = vpop.f32.mrf.mxu0
        %v4626 = vadd.f32 %v4411, %v4625
        %v4627 = vpop.f32.mrf.mxu0
        %4628 = vmatprep.mubr.bf16.mxu0 0
        %4629 = vmatmul.mubr.bf16.gmra.mxu0 %v4529
        %v4630 = vpop.f32.mrf.mxu0
        %v4631 = vadd.f32 %v4416, %v4630
        %v4632 = vpop.f32.mrf.mxu0
        %v4633 = vpop.f32.mrf.mxu0
        %v4634 = vadd.f32 %v4419, %v4633
        %v4635 = vpop.f32.mrf.mxu0
        %4636 = vmatprep.mubr.bf16.mxu0 0
        %4637 = vmatmul.mubr.bf16.gmra.mxu0 %v4532
        %v4638 = vpop.f32.mrf.mxu0
        %v4639 = vadd.f32 %v4424, %v4638
        %v4640 = vpop.f32.mrf.mxu0
        %v4641 = vpop.f32.mrf.mxu0
        %v4642 = vadd.f32 %v4427, %v4641
        %v4643 = vpop.f32.mrf.mxu0
        %4644 = vmatprep.mubr.bf16.mxu0 0
        %4645 = vmatmul.mubr.bf16.gmra.mxu0 %v4535
        %v4646 = vpop.f32.mrf.mxu0
        %v4647 = vadd.f32 %v4432, %v4646
        %v4648 = vpop.f32.mrf.mxu0
        %v4649 = vpop.f32.mrf.mxu0
        %v4650 = vadd.f32 %v4435, %v4649
        %v4651 = vpop.f32.mrf.mxu0
        %4652 = vmatprep.mubr.bf16.mxu0 0
        %4653 = vmatmul.mubr.bf16.gmra.mxu0 %v4538
        %v4654 = vpop.f32.mrf.mxu0
        %v4655 = vadd.f32 %v4440, %v4654
        %v4656 = vpop.f32.mrf.mxu0
        %v4657 = vpop.f32.mrf.mxu0
        %v4658 = vadd.f32 %v4443, %v4657
        %v4659 = vpop.f32.mrf.mxu0
        %4660 = vmatprep.mubr.bf16.mxu0 0
        %4661 = vmatmul.mubr.bf16.gmra.mxu0 %v4541
        %v4662 = vpop.f32.mrf.mxu0
        %v4663 = vadd.f32 %v4448, %v4662
        %v4664 = vpop.f32.mrf.mxu0
        %v4665 = vpop.f32.mrf.mxu0
        %v4666 = vadd.f32 %v4451, %v4665
        %v4667 = vpop.f32.mrf.mxu0
        %4668 = vmatprep.mubr.bf16.mxu0 0
        %4669 = vmatmul.mubr.bf16.gmra.mxu0 %v4544
        %v4670 = vpop.f32.mrf.mxu0
        %v4671 = vadd.f32 %v4456, %v4670
        %v4672 = vpop.f32.mrf.mxu0
        %v4673 = vpop.f32.mrf.mxu0
        %v4674 = vadd.f32 %v4459, %v4673
        %v4675 = vpop.f32.mrf.mxu0
        %4676 = vmatprep.mubr.bf16.mxu0 0
        %4677 = vmatmul.mubr.bf16.gmra.mxu0 %v4547
        %v4678 = vpop.f32.mrf.mxu0
        %v4679 = vadd.f32 %v4464, %v4678
        %v4680 = vpop.f32.mrf.mxu0
        %v4681 = vpop.f32.mrf.mxu0
        %v4682 = vadd.f32 %v4467, %v4681
        %v4683 = vpop.f32.mrf.mxu0
        %4684 = vmatprep.mubr.bf16.mxu0 0
        %4685 = vmatmul.mubr.bf16.gmra.mxu0 %v4550
        %v4686 = vpop.f32.mrf.mxu0
        %v4687 = vadd.f32 %v4472, %v4686
        %v4688 = vpop.f32.mrf.mxu0
        %v4689 = vpop.f32.mrf.mxu0
        %v4690 = vadd.f32 %v4475, %v4689
        %v4691 = vpop.f32.mrf.mxu0
        %4692 = vmatprep.mubr.bf16.mxu0 0
        %4693 = vmatmul.mubr.bf16.gmra.mxu0 %v4553
        %v4694 = vpop.f32.mrf.mxu0
        %v4695 = vadd.f32 %v4480, %v4694
        %v4696 = vpop.f32.mrf.mxu0
        %v4697 = vpop.f32.mrf.mxu0
        %v4698 = vadd.f32 %v4483, %v4697
        %v4699 = vpop.f32.mrf.mxu0
        %4700 = vmatprep.mubr.bf16.mxu0 0
        %4701 = vmatmul.mubr.bf16.gmra.mxu0 %v4556
        %v4702 = vpop.f32.mrf.mxu0
        %v4703 = vadd.f32 %v4488, %v4702
        %v4704 = vpop.f32.mrf.mxu0
        %v4705 = vpop.f32.mrf.mxu0
        %v4706 = vadd.f32 %v4491, %v4705
        %v4707 = vpop.f32.mrf.mxu0
        %4708 = vmatprep.mubr.bf16.mxu0 0
        %4709 = vmatmul.mubr.bf16.gmra.mxu0 %v4559
        %v4710 = vpop.f32.mrf.mxu0
        %v4711 = vadd.f32 %v4496, %v4710
        %v4712 = vpop.f32.mrf.mxu0
        %v4713 = vpop.f32.mrf.mxu0
        %v4714 = vadd.f32 %v4499, %v4713
        %v4715 = vpop.f32.mrf.mxu0
        %4716 = vmatprep.mubr.bf16.mxu0 0
        %4717 = vmatmul.mubr.bf16.gmra.mxu0 %v4562
        %v4718 = vpop.f32.mrf.mxu0
        %v4719 = vadd.f32 %v4504, %v4718
        %v4720 = vpop.f32.mrf.mxu0
        %v4721 = vpop.f32.mrf.mxu0
        %v4722 = vadd.f32 %v4507, %v4721
        %v4723 = vpop.f32.mrf.mxu0
        %4724 = vdwg.mxu0
        %v4725 = vld [vmem:[#allocation3 + $0x2] sm:$0xff]
        %v4726 = vld [vmem:[#allocation3 + $0xa] sm:$0xff]
        %v4727 = vld [vmem:[#allocation3 + $0x1a] sm:$0xff]
        %v4728 = vld [vmem:[#allocation3 + $0x22] sm:$0xff]
        %v4729 = vld [vmem:[#allocation3 + $0x32] sm:$0xff]
        %v4730 = vld [vmem:[#allocation3 + $0x3a] sm:$0xff]
        %v4731 = vld [vmem:[#allocation3 + $0x4a] sm:$0xff]
        %v4732 = vld [vmem:[#allocation3 + $0x52] sm:$0xff]
        %v4733 = vld [vmem:[#allocation3 + $0x62] sm:$0xff]
        %v4734 = vld [vmem:[#allocation3 + $0x6a] sm:$0xff]
        %v4735 = vld [vmem:[#allocation3 + $0x7a] sm:$0xff]
        %v4736 = vld [vmem:[#allocation3 + $0x82] sm:$0xff]
        %v4737 = vld [vmem:[#allocation3 + $0x92] sm:$0xff]
        %v4738 = vld [vmem:[#allocation3 + $0x9a] sm:$0xff]
        %v4739 = vld [vmem:[#allocation3 + $0xaa] sm:$0xff]
        %v4740 = vld [vmem:[#allocation3 + $0xb2] sm:$0xff]
        %v4741 = vld [vmem:[#allocation3 + $0xc2] sm:$0xff]
        %v4742 = vld [vmem:[#allocation3 + $0xca] sm:$0xff]
        %v4743 = vld [vmem:[#allocation3 + $0xda] sm:$0xff]
        %v4744 = vld [vmem:[#allocation3 + $0xe2] sm:$0xff]
        %v4745 = vld [vmem:[#allocation3 + $0xf2] sm:$0xff]
        %v4746 = vld [vmem:[#allocation3 + $0xfa] sm:$0xff]
        %v4747 = vld [vmem:[#allocation3 + $0x10a] sm:$0xff]
        %v4748 = vld [vmem:[#allocation3 + $0x112] sm:$0xff]
        %v4749 = vld [vmem:[#allocation3 + $0x122] sm:$0xff]
        %v4750 = vld [vmem:[#allocation3 + $0x12a] sm:$0xff]
        %v4751 = vld [vmem:[#allocation3 + $0x13a] sm:$0xff]
        %v4752 = vld [vmem:[#allocation3 + $0x142] sm:$0xff]
        %v4753 = vld [vmem:[#allocation3 + $0x152] sm:$0xff]
        %v4754 = vld [vmem:[#allocation3 + $0x15a] sm:$0xff]
        %v4755 = vld [vmem:[#allocation3 + $0x16a] sm:$0xff]
        %v4756 = vld [vmem:[#allocation3 + $0x172] sm:$0xff]
        %v4757 = vpack.c.bf16 %v4726, %v4725
        %v4758 = vpack.c.bf16 %v4728, %v4727
        %v4759 = vpack.c.bf16 %v4730, %v4729
        %v4760 = vpack.c.bf16 %v4732, %v4731
        %v4761 = vpack.c.bf16 %v4734, %v4733
        %v4762 = vpack.c.bf16 %v4736, %v4735
        %v4763 = vpack.c.bf16 %v4738, %v4737
        %v4764 = vpack.c.bf16 %v4740, %v4739
        %v4765 = vpack.c.bf16 %v4742, %v4741
        %v4766 = vpack.c.bf16 %v4744, %v4743
        %v4767 = vpack.c.bf16 %v4746, %v4745
        %v4768 = vpack.c.bf16 %v4748, %v4747
        %v4769 = vpack.c.bf16 %v4750, %v4749
        %v4770 = vpack.c.bf16 %v4752, %v4751
        %v4771 = vpack.c.bf16 %v4754, %v4753
        %v4772 = vpack.c.bf16 %v4756, %v4755
        %s4773 = scalar_lea.vmem %s6, 88
        %v4774 = vld [vmem:[%s4773] sm:$0xf]
        %v4775 = vld [vmem:[%s4773 + $0x4] sm:$0xf]
        %v4778 = vunpack.c.l.b16 %v4774
        %v4779 = vunpack.c.l.b16 %v4775
        %v4780 = vpack.c.b16 %v4779, %v4778
        %v4783 = vsel %vm377, %v4757, 0
        %v4786 = vsel %vm377, %v4758, 0
        %v4789 = vsel %vm377, %v4759, 0
        %v4792 = vsel %vm377, %v4760, 0
        %v4795 = vsel %vm377, %v4761, 0
        %v4798 = vsel %vm377, %v4762, 0
        %v4801 = vsel %vm377, %v4763, 0
        %v4804 = vsel %vm377, %v4764, 0
        %v4807 = vsel %vm377, %v4765, 0
        %v4810 = vsel %vm377, %v4766, 0
        %v4813 = vsel %vm377, %v4767, 0
        %v4816 = vsel %vm377, %v4768, 0
        %v4819 = vsel %vm377, %v4769, 0
        %v4822 = vsel %vm377, %v4770, 0
        %v4825 = vsel %vm377, %v4771, 0
        %v4828 = vsel %vm377, %v4772, 0
        %4830 = vmatprep.subr.bf16.mxu0 0
        %4831 = vmatpush1.bf16.msra.mxu0 0
        %4832 = vmatprep.subr.bf16.mxu0 0
        %4833 = vmatpush1.bf16.msra.mxu0 0
        %4834 = vmatprep.subr.bf16.mxu0 0
        %4835 = vmatpush1.bf16.msra.mxu0 0
        %4836 = vmatprep.subr.bf16.mxu0 0
        %4837 = vmatpush1.bf16.msra.mxu0 0
        %4838 = vmatprep.subr.bf16.mxu0 0
        %4839 = vmatpush1.bf16.msra.mxu0 0
        %4840 = vmatprep.subr.bf16.mxu0 0
        %4841 = vmatpush1.bf16.msra.mxu0 0
        %4842 = vmatprep.subr.bf16.mxu0 0
        %4843 = vmatpush1.bf16.msra.mxu0 0
        %4844 = vmatprep.subr.bf16.mxu0 0
        %4845 = vmatpush1.bf16.msra.mxu0 %v4780
        %4846 = vmatprep.subr.bf16.mxu0 0
        %4847 = vmatpush2.bf16.msra.mxu0 0
        %4848 = vmatprep.subr.bf16.mxu0 0
        %4849 = vmatpush2.bf16.msra.mxu0 0
        %4850 = vmatprep.subr.bf16.mxu0 0
        %4851 = vmatpush2.bf16.msra.mxu0 0
        %4852 = vmatprep.subr.bf16.mxu0 0
        %4853 = vmatpush2.bf16.msra.mxu0 0
        %4854 = vmatprep.subr.bf16.mxu0 0
        %4855 = vmatpush2.bf16.msra.mxu0 0
        %4856 = vmatprep.subr.bf16.mxu0 0
        %4857 = vmatpush2.bf16.msra.mxu0 0
        %4858 = vmatprep.subr.bf16.mxu0 0
        %4859 = vmatpush2.bf16.msra.mxu0 0
        %4860 = vmatprep.subr.bf16.mxu0 0
        %4861 = vmatpush2.bf16.msra.mxu0 0
        %4862 = vmatprep.mubr.bf16.mxu0 0
        %4863 = vmatmul.mubr.bf16.gmra.mxu0 %v4783
        %v4864 = vpop.f32.mrf.mxu0
        %v4865 = vadd.f32 0.0, %v4864
        %v4866 = vpop.f32.mrf.mxu0
        %v4867 = vpop.f32.mrf.mxu0
        %v4868 = vadd.f32 0.0, %v4867
        %v4869 = vpop.f32.mrf.mxu0
        %4870 = vmatprep.mubr.bf16.mxu0 0
        %4871 = vmatmul.mubr.bf16.gmra.mxu0 %v4786
        %v4872 = vpop.f32.mrf.mxu0
        %v4873 = vadd.f32 0.0, %v4872
        %v4874 = vpop.f32.mrf.mxu0
        %v4875 = vpop.f32.mrf.mxu0
        %v4876 = vadd.f32 0.0, %v4875
        %v4877 = vpop.f32.mrf.mxu0
        %4878 = vmatprep.mubr.bf16.mxu0 0
        %4879 = vmatmul.mubr.bf16.gmra.mxu0 %v4789
        %v4880 = vpop.f32.mrf.mxu0
        %v4881 = vadd.f32 0.0, %v4880
        %v4882 = vpop.f32.mrf.mxu0
        %v4883 = vpop.f32.mrf.mxu0
        %v4884 = vadd.f32 0.0, %v4883
        %v4885 = vpop.f32.mrf.mxu0
        %4886 = vmatprep.mubr.bf16.mxu0 0
        %4887 = vmatmul.mubr.bf16.gmra.mxu0 %v4792
        %v4888 = vpop.f32.mrf.mxu0
        %v4889 = vadd.f32 0.0, %v4888
        %v4890 = vpop.f32.mrf.mxu0
        %v4891 = vpop.f32.mrf.mxu0
        %v4892 = vadd.f32 0.0, %v4891
        %v4893 = vpop.f32.mrf.mxu0
        %4894 = vmatprep.mubr.bf16.mxu0 0
        %4895 = vmatmul.mubr.bf16.gmra.mxu0 %v4795
        %v4896 = vpop.f32.mrf.mxu0
        %v4897 = vadd.f32 0.0, %v4896
        %v4898 = vpop.f32.mrf.mxu0
        %v4899 = vpop.f32.mrf.mxu0
        %v4900 = vadd.f32 0.0, %v4899
        %v4901 = vpop.f32.mrf.mxu0
        %4902 = vmatprep.mubr.bf16.mxu0 0
        %4903 = vmatmul.mubr.bf16.gmra.mxu0 %v4798
        %v4904 = vpop.f32.mrf.mxu0
        %v4905 = vadd.f32 0.0, %v4904
        %v4906 = vpop.f32.mrf.mxu0
        %v4907 = vpop.f32.mrf.mxu0
        %v4908 = vadd.f32 0.0, %v4907
        %v4909 = vpop.f32.mrf.mxu0
        %4910 = vmatprep.mubr.bf16.mxu0 0
        %4911 = vmatmul.mubr.bf16.gmra.mxu0 %v4801
        %v4912 = vpop.f32.mrf.mxu0
        %v4913 = vadd.f32 0.0, %v4912
        %v4914 = vpop.f32.mrf.mxu0
        %v4915 = vpop.f32.mrf.mxu0
        %v4916 = vadd.f32 0.0, %v4915
        %v4917 = vpop.f32.mrf.mxu0
        %4918 = vmatprep.mubr.bf16.mxu0 0
        %4919 = vmatmul.mubr.bf16.gmra.mxu0 %v4804
        %v4920 = vpop.f32.mrf.mxu0
        %v4921 = vadd.f32 0.0, %v4920
        %v4922 = vpop.f32.mrf.mxu0
        %v4923 = vpop.f32.mrf.mxu0
        %v4924 = vadd.f32 0.0, %v4923
        %v4925 = vpop.f32.mrf.mxu0
        %4926 = vmatprep.mubr.bf16.mxu0 0
        %4927 = vmatmul.mubr.bf16.gmra.mxu0 %v4807
        %v4928 = vpop.f32.mrf.mxu0
        %v4929 = vadd.f32 0.0, %v4928
        %v4930 = vpop.f32.mrf.mxu0
        %v4931 = vpop.f32.mrf.mxu0
        %v4932 = vadd.f32 0.0, %v4931
        %v4933 = vpop.f32.mrf.mxu0
        %4934 = vmatprep.mubr.bf16.mxu0 0
        %4935 = vmatmul.mubr.bf16.gmra.mxu0 %v4810
        %v4936 = vpop.f32.mrf.mxu0
        %v4937 = vadd.f32 0.0, %v4936
        %v4938 = vpop.f32.mrf.mxu0
        %v4939 = vpop.f32.mrf.mxu0
        %v4940 = vadd.f32 0.0, %v4939
        %v4941 = vpop.f32.mrf.mxu0
        %4942 = vmatprep.mubr.bf16.mxu0 0
        %4943 = vmatmul.mubr.bf16.gmra.mxu0 %v4813
        %v4944 = vpop.f32.mrf.mxu0
        %v4945 = vadd.f32 0.0, %v4944
        %v4946 = vpop.f32.mrf.mxu0
        %v4947 = vpop.f32.mrf.mxu0
        %v4948 = vadd.f32 0.0, %v4947
        %v4949 = vpop.f32.mrf.mxu0
        %4950 = vmatprep.mubr.bf16.mxu0 0
        %4951 = vmatmul.mubr.bf16.gmra.mxu0 %v4816
        %v4952 = vpop.f32.mrf.mxu0
        %v4953 = vadd.f32 0.0, %v4952
        %v4954 = vpop.f32.mrf.mxu0
        %v4955 = vpop.f32.mrf.mxu0
        %v4956 = vadd.f32 0.0, %v4955
        %v4957 = vpop.f32.mrf.mxu0
        %4958 = vmatprep.mubr.bf16.mxu0 0
        %4959 = vmatmul.mubr.bf16.gmra.mxu0 %v4819
        %v4960 = vpop.f32.mrf.mxu0
        %v4961 = vadd.f32 0.0, %v4960
        %v4962 = vpop.f32.mrf.mxu0
        %v4963 = vpop.f32.mrf.mxu0
        %v4964 = vadd.f32 0.0, %v4963
        %v4965 = vpop.f32.mrf.mxu0
        %4966 = vmatprep.mubr.bf16.mxu0 0
        %4967 = vmatmul.mubr.bf16.gmra.mxu0 %v4822
        %v4968 = vpop.f32.mrf.mxu0
        %v4969 = vadd.f32 0.0, %v4968
        %v4970 = vpop.f32.mrf.mxu0
        %v4971 = vpop.f32.mrf.mxu0
        %v4972 = vadd.f32 0.0, %v4971
        %v4973 = vpop.f32.mrf.mxu0
        %4974 = vmatprep.mubr.bf16.mxu0 0
        %4975 = vmatmul.mubr.bf16.gmra.mxu0 %v4825
        %v4976 = vpop.f32.mrf.mxu0
        %v4977 = vadd.f32 0.0, %v4976
        %v4978 = vpop.f32.mrf.mxu0
        %v4979 = vpop.f32.mrf.mxu0
        %v4980 = vadd.f32 0.0, %v4979
        %v4981 = vpop.f32.mrf.mxu0
        %4982 = vmatprep.mubr.bf16.mxu0 0
        %4983 = vmatmul.mubr.bf16.gmra.mxu0 %v4828
        %v4984 = vpop.f32.mrf.mxu0
        %v4985 = vadd.f32 0.0, %v4984
        %v4986 = vpop.f32.mrf.mxu0
        %v4987 = vpop.f32.mrf.mxu0
        %v4988 = vadd.f32 0.0, %v4987
        %v4989 = vpop.f32.mrf.mxu0
        %4990 = vdwg.mxu0
        %v4991 = vadd.f32 %v4599, %v4865
        %v4992 = vadd.f32 %v4602, %v4868
        %v4993 = vadd.f32 %v4607, %v4873
        %v4994 = vadd.f32 %v4610, %v4876
        %v4995 = vadd.f32 %v4615, %v4881
        %v4996 = vadd.f32 %v4618, %v4884
        %v4997 = vadd.f32 %v4623, %v4889
        %v4998 = vadd.f32 %v4626, %v4892
        %v4999 = vadd.f32 %v4631, %v4897
        %v5000 = vadd.f32 %v4634, %v4900
        %v5001 = vadd.f32 %v4639, %v4905
        %v5002 = vadd.f32 %v4642, %v4908
        %v5003 = vadd.f32 %v4647, %v4913
        %v5004 = vadd.f32 %v4650, %v4916
        %v5005 = vadd.f32 %v4655, %v4921
        %v5006 = vadd.f32 %v4658, %v4924
        %v5007 = vadd.f32 %v4663, %v4929
        %v5008 = vadd.f32 %v4666, %v4932
        %v5009 = vadd.f32 %v4671, %v4937
        %v5010 = vadd.f32 %v4674, %v4940
        %v5011 = vadd.f32 %v4679, %v4945
        %v5012 = vadd.f32 %v4682, %v4948
        %v5013 = vadd.f32 %v4687, %v4953
        %v5014 = vadd.f32 %v4690, %v4956
        %v5015 = vadd.f32 %v4695, %v4961
        %v5016 = vadd.f32 %v4698, %v4964
        %v5017 = vadd.f32 %v4703, %v4969
        %v5018 = vadd.f32 %v4706, %v4972
        %v5019 = vadd.f32 %v4711, %v4977
        %v5020 = vadd.f32 %v4714, %v4980
        %v5021 = vadd.f32 %v4719, %v4985
        %v5022 = vadd.f32 %v4722, %v4988
        %v5023 = vld [vmem:[%s916] sm:$0xff]
        %v5024 = vld [vmem:[%s916 + $0x8] sm:$0xff]
        %v5025 = vld [vmem:[%s916 + $0x18] sm:$0xff]
        %v5026 = vld [vmem:[%s916 + $0x20] sm:$0xff]
        %v5027 = vld [vmem:[%s916 + $0x30] sm:$0xff]
        %v5028 = vld [vmem:[%s916 + $0x38] sm:$0xff]
        %v5029 = vld [vmem:[%s916 + $0x48] sm:$0xff]
        %v5030 = vld [vmem:[%s916 + $0x50] sm:$0xff]
        %v5031 = vld [vmem:[%s916 + $0x60] sm:$0xff]
        %v5032 = vld [vmem:[%s916 + $0x68] sm:$0xff]
        %v5033 = vld [vmem:[%s916 + $0x78] sm:$0xff]
        %v5034 = vld [vmem:[%s916 + $0x80] sm:$0xff]
        %v5035 = vld [vmem:[%s916 + $0x90] sm:$0xff]
        %v5036 = vld [vmem:[%s916 + $0x98] sm:$0xff]
        %v5037 = vld [vmem:[%s916 + $0xa8] sm:$0xff]
        %v5038 = vld [vmem:[%s916 + $0xb0] sm:$0xff]
        %v5039 = vld [vmem:[%s916 + $0xc0] sm:$0xff]
        %v5040 = vld [vmem:[%s916 + $0xc8] sm:$0xff]
        %v5041 = vld [vmem:[%s916 + $0xd8] sm:$0xff]
        %v5042 = vld [vmem:[%s916 + $0xe0] sm:$0xff]
        %v5043 = vld [vmem:[%s916 + $0xf0] sm:$0xff]
        %v5044 = vld [vmem:[%s916 + $0xf8] sm:$0xff]
        %v5045 = vld [vmem:[%s916 + $0x108] sm:$0xff]
        %v5046 = vld [vmem:[%s916 + $0x110] sm:$0xff]
        %v5047 = vld [vmem:[%s916 + $0x120] sm:$0xff]
        %v5048 = vld [vmem:[%s916 + $0x128] sm:$0xff]
        %v5049 = vld [vmem:[%s916 + $0x138] sm:$0xff]
        %v5050 = vld [vmem:[%s916 + $0x140] sm:$0xff]
        %v5051 = vld [vmem:[%s916 + $0x150] sm:$0xff]
        %v5052 = vld [vmem:[%s916 + $0x158] sm:$0xff]
        %v5053 = vld [vmem:[%s916 + $0x168] sm:$0xff]
        %v5054 = vld [vmem:[%s916 + $0x170] sm:$0xff]
        %v5055 = vpack.c.bf16 %v5024, %v5023
        %v5056 = vpack.c.bf16 %v5026, %v5025
        %v5057 = vpack.c.bf16 %v5028, %v5027
        %v5058 = vpack.c.bf16 %v5030, %v5029
        %v5059 = vpack.c.bf16 %v5032, %v5031
        %v5060 = vpack.c.bf16 %v5034, %v5033
        %v5061 = vpack.c.bf16 %v5036, %v5035
        %v5062 = vpack.c.bf16 %v5038, %v5037
        %v5063 = vpack.c.bf16 %v5040, %v5039
        %v5064 = vpack.c.bf16 %v5042, %v5041
        %v5065 = vpack.c.bf16 %v5044, %v5043
        %v5066 = vpack.c.bf16 %v5046, %v5045
        %v5067 = vpack.c.bf16 %v5048, %v5047
        %v5068 = vpack.c.bf16 %v5050, %v5049
        %v5069 = vpack.c.bf16 %v5052, %v5051
        %v5070 = vpack.c.bf16 %v5054, %v5053
        %s5071 = scalar_lea.vmem %s6, 96
        %v5072 = vld [vmem:[%s5071] sm:$0xf]
        %v5073 = vld [vmem:[%s5071 + $0x4] sm:$0xf]
        %v5076 = vunpack.c.l.b16 %v5072
        %v5077 = vunpack.c.l.b16 %v5073
        %v5078 = vpack.c.b16 %v5077, %v5076
        %v5081 = vsel %vm377, %v5055, 0
        %v5084 = vsel %vm377, %v5056, 0
        %v5087 = vsel %vm377, %v5057, 0
        %v5090 = vsel %vm377, %v5058, 0
        %v5093 = vsel %vm377, %v5059, 0
        %v5096 = vsel %vm377, %v5060, 0
        %v5099 = vsel %vm377, %v5061, 0
        %v5102 = vsel %vm377, %v5062, 0
        %v5105 = vsel %vm377, %v5063, 0
        %v5108 = vsel %vm377, %v5064, 0
        %v5111 = vsel %vm377, %v5065, 0
        %v5114 = vsel %vm377, %v5066, 0
        %v5117 = vsel %vm377, %v5067, 0
        %v5120 = vsel %vm377, %v5068, 0
        %v5123 = vsel %vm377, %v5069, 0
        %v5126 = vsel %vm377, %v5070, 0
        %5128 = vmatprep.subr.bf16.mxu0 0
        %5129 = vmatpush1.bf16.msra.mxu0 0
        %5130 = vmatprep.subr.bf16.mxu0 0
        %5131 = vmatpush1.bf16.msra.mxu0 0
        %5132 = vmatprep.subr.bf16.mxu0 0
        %5133 = vmatpush1.bf16.msra.mxu0 0
        %5134 = vmatprep.subr.bf16.mxu0 0
        %5135 = vmatpush1.bf16.msra.mxu0 0
        %5136 = vmatprep.subr.bf16.mxu0 0
        %5137 = vmatpush1.bf16.msra.mxu0 0
        %5138 = vmatprep.subr.bf16.mxu0 0
        %5139 = vmatpush1.bf16.msra.mxu0 0
        %5140 = vmatprep.subr.bf16.mxu0 0
        %5141 = vmatpush1.bf16.msra.mxu0 0
        %5142 = vmatprep.subr.bf16.mxu0 0
        %5143 = vmatpush1.bf16.msra.mxu0 %v5078
        %5144 = vmatprep.subr.bf16.mxu0 0
        %5145 = vmatpush2.bf16.msra.mxu0 0
        %5146 = vmatprep.subr.bf16.mxu0 0
        %5147 = vmatpush2.bf16.msra.mxu0 0
        %5148 = vmatprep.subr.bf16.mxu0 0
        %5149 = vmatpush2.bf16.msra.mxu0 0
        %5150 = vmatprep.subr.bf16.mxu0 0
        %5151 = vmatpush2.bf16.msra.mxu0 0
        %5152 = vmatprep.subr.bf16.mxu0 0
        %5153 = vmatpush2.bf16.msra.mxu0 0
        %5154 = vmatprep.subr.bf16.mxu0 0
        %5155 = vmatpush2.bf16.msra.mxu0 0
        %5156 = vmatprep.subr.bf16.mxu0 0
        %5157 = vmatpush2.bf16.msra.mxu0 0
        %5158 = vmatprep.subr.bf16.mxu0 0
        %5159 = vmatpush2.bf16.msra.mxu0 0
        %5160 = vmatprep.mubr.bf16.mxu0 0
        %5161 = vmatmul.mubr.bf16.gmra.mxu0 %v5081
        %v5162 = vpop.f32.mrf.mxu0
        %v5163 = vadd.f32 0.0, %v5162
        %v5164 = vpop.f32.mrf.mxu0
        %v5165 = vpop.f32.mrf.mxu0
        %v5166 = vadd.f32 0.0, %v5165
        %v5167 = vpop.f32.mrf.mxu0
        %5168 = vmatprep.mubr.bf16.mxu0 0
        %5169 = vmatmul.mubr.bf16.gmra.mxu0 %v5084
        %v5170 = vpop.f32.mrf.mxu0
        %v5171 = vadd.f32 0.0, %v5170
        %v5172 = vpop.f32.mrf.mxu0
        %v5173 = vpop.f32.mrf.mxu0
        %v5174 = vadd.f32 0.0, %v5173
        %v5175 = vpop.f32.mrf.mxu0
        %5176 = vmatprep.mubr.bf16.mxu0 0
        %5177 = vmatmul.mubr.bf16.gmra.mxu0 %v5087
        %v5178 = vpop.f32.mrf.mxu0
        %v5179 = vadd.f32 0.0, %v5178
        %v5180 = vpop.f32.mrf.mxu0
        %v5181 = vpop.f32.mrf.mxu0
        %v5182 = vadd.f32 0.0, %v5181
        %v5183 = vpop.f32.mrf.mxu0
        %5184 = vmatprep.mubr.bf16.mxu0 0
        %5185 = vmatmul.mubr.bf16.gmra.mxu0 %v5090
        %v5186 = vpop.f32.mrf.mxu0
        %v5187 = vadd.f32 0.0, %v5186
        %v5188 = vpop.f32.mrf.mxu0
        %v5189 = vpop.f32.mrf.mxu0
        %v5190 = vadd.f32 0.0, %v5189
        %v5191 = vpop.f32.mrf.mxu0
        %5192 = vmatprep.mubr.bf16.mxu0 0
        %5193 = vmatmul.mubr.bf16.gmra.mxu0 %v5093
        %v5194 = vpop.f32.mrf.mxu0
        %v5195 = vadd.f32 0.0, %v5194
        %v5196 = vpop.f32.mrf.mxu0
        %v5197 = vpop.f32.mrf.mxu0
        %v5198 = vadd.f32 0.0, %v5197
        %v5199 = vpop.f32.mrf.mxu0
        %5200 = vmatprep.mubr.bf16.mxu0 0
        %5201 = vmatmul.mubr.bf16.gmra.mxu0 %v5096
        %v5202 = vpop.f32.mrf.mxu0
        %v5203 = vadd.f32 0.0, %v5202
        %v5204 = vpop.f32.mrf.mxu0
        %v5205 = vpop.f32.mrf.mxu0
        %v5206 = vadd.f32 0.0, %v5205
        %v5207 = vpop.f32.mrf.mxu0
        %5208 = vmatprep.mubr.bf16.mxu0 0
        %5209 = vmatmul.mubr.bf16.gmra.mxu0 %v5099
        %v5210 = vpop.f32.mrf.mxu0
        %v5211 = vadd.f32 0.0, %v5210
        %v5212 = vpop.f32.mrf.mxu0
        %v5213 = vpop.f32.mrf.mxu0
        %v5214 = vadd.f32 0.0, %v5213
        %v5215 = vpop.f32.mrf.mxu0
        %5216 = vmatprep.mubr.bf16.mxu0 0
        %5217 = vmatmul.mubr.bf16.gmra.mxu0 %v5102
        %v5218 = vpop.f32.mrf.mxu0
        %v5219 = vadd.f32 0.0, %v5218
        %v5220 = vpop.f32.mrf.mxu0
        %v5221 = vpop.f32.mrf.mxu0
        %v5222 = vadd.f32 0.0, %v5221
        %v5223 = vpop.f32.mrf.mxu0
        %5224 = vmatprep.mubr.bf16.mxu0 0
        %5225 = vmatmul.mubr.bf16.gmra.mxu0 %v5105
        %v5226 = vpop.f32.mrf.mxu0
        %v5227 = vadd.f32 0.0, %v5226
        %v5228 = vpop.f32.mrf.mxu0
        %v5229 = vpop.f32.mrf.mxu0
        %v5230 = vadd.f32 0.0, %v5229
        %v5231 = vpop.f32.mrf.mxu0
        %5232 = vmatprep.mubr.bf16.mxu0 0
        %5233 = vmatmul.mubr.bf16.gmra.mxu0 %v5108
        %v5234 = vpop.f32.mrf.mxu0
        %v5235 = vadd.f32 0.0, %v5234
        %v5236 = vpop.f32.mrf.mxu0
        %v5237 = vpop.f32.mrf.mxu0
        %v5238 = vadd.f32 0.0, %v5237
        %v5239 = vpop.f32.mrf.mxu0
        %5240 = vmatprep.mubr.bf16.mxu0 0
        %5241 = vmatmul.mubr.bf16.gmra.mxu0 %v5111
        %v5242 = vpop.f32.mrf.mxu0
        %v5243 = vadd.f32 0.0, %v5242
        %v5244 = vpop.f32.mrf.mxu0
        %v5245 = vpop.f32.mrf.mxu0
        %v5246 = vadd.f32 0.0, %v5245
        %v5247 = vpop.f32.mrf.mxu0
        %5248 = vmatprep.mubr.bf16.mxu0 0
        %5249 = vmatmul.mubr.bf16.gmra.mxu0 %v5114
        %v5250 = vpop.f32.mrf.mxu0
        %v5251 = vadd.f32 0.0, %v5250
        %v5252 = vpop.f32.mrf.mxu0
        %v5253 = vpop.f32.mrf.mxu0
        %v5254 = vadd.f32 0.0, %v5253
        %v5255 = vpop.f32.mrf.mxu0
        %5256 = vmatprep.mubr.bf16.mxu0 0
        %5257 = vmatmul.mubr.bf16.gmra.mxu0 %v5117
        %v5258 = vpop.f32.mrf.mxu0
        %v5259 = vadd.f32 0.0, %v5258
        %v5260 = vpop.f32.mrf.mxu0
        %v5261 = vpop.f32.mrf.mxu0
        %v5262 = vadd.f32 0.0, %v5261
        %v5263 = vpop.f32.mrf.mxu0
        %5264 = vmatprep.mubr.bf16.mxu0 0
        %5265 = vmatmul.mubr.bf16.gmra.mxu0 %v5120
        %v5266 = vpop.f32.mrf.mxu0
        %v5267 = vadd.f32 0.0, %v5266
        %v5268 = vpop.f32.mrf.mxu0
        %v5269 = vpop.f32.mrf.mxu0
        %v5270 = vadd.f32 0.0, %v5269
        %v5271 = vpop.f32.mrf.mxu0
        %5272 = vmatprep.mubr.bf16.mxu0 0
        %5273 = vmatmul.mubr.bf16.gmra.mxu0 %v5123
        %v5274 = vpop.f32.mrf.mxu0
        %v5275 = vadd.f32 0.0, %v5274
        %v5276 = vpop.f32.mrf.mxu0
        %v5277 = vpop.f32.mrf.mxu0
        %v5278 = vadd.f32 0.0, %v5277
        %v5279 = vpop.f32.mrf.mxu0
        %5280 = vmatprep.mubr.bf16.mxu0 0
        %5281 = vmatmul.mubr.bf16.gmra.mxu0 %v5126
        %v5282 = vpop.f32.mrf.mxu0
        %v5283 = vadd.f32 0.0, %v5282
        %v5284 = vpop.f32.mrf.mxu0
        %v5285 = vpop.f32.mrf.mxu0
        %v5286 = vadd.f32 0.0, %v5285
        %v5287 = vpop.f32.mrf.mxu0
        %5288 = vdwg.mxu0
        %v5289 = vadd.f32 %v4991, %v5163
        %v5290 = vadd.f32 %v4992, %v5166
        %v5291 = vadd.f32 %v4993, %v5171
        %v5292 = vadd.f32 %v4994, %v5174
        %v5293 = vadd.f32 %v4995, %v5179
        %v5294 = vadd.f32 %v4996, %v5182
        %v5295 = vadd.f32 %v4997, %v5187
        %v5296 = vadd.f32 %v4998, %v5190
        %v5297 = vadd.f32 %v4999, %v5195
        %v5298 = vadd.f32 %v5000, %v5198
        %v5299 = vadd.f32 %v5001, %v5203
        %v5300 = vadd.f32 %v5002, %v5206
        %v5301 = vadd.f32 %v5003, %v5211
        %v5302 = vadd.f32 %v5004, %v5214
        %v5303 = vadd.f32 %v5005, %v5219
        %v5304 = vadd.f32 %v5006, %v5222
        %v5305 = vadd.f32 %v5007, %v5227
        %v5306 = vadd.f32 %v5008, %v5230
        %v5307 = vadd.f32 %v5009, %v5235
        %v5308 = vadd.f32 %v5010, %v5238
        %v5309 = vadd.f32 %v5011, %v5243
        %v5310 = vadd.f32 %v5012, %v5246
        %v5311 = vadd.f32 %v5013, %v5251
        %v5312 = vadd.f32 %v5014, %v5254
        %v5313 = vadd.f32 %v5015, %v5259
        %v5314 = vadd.f32 %v5016, %v5262
        %v5315 = vadd.f32 %v5017, %v5267
        %v5316 = vadd.f32 %v5018, %v5270
        %v5317 = vadd.f32 %v5019, %v5275
        %v5318 = vadd.f32 %v5020, %v5278
        %v5319 = vadd.f32 %v5021, %v5283
        %v5320 = vadd.f32 %v5022, %v5286
        %v5321 = vld [vmem:[%s916 + $0x1] sm:$0xff]
        %v5322 = vld [vmem:[%s916 + $0x9] sm:$0xff]
        %v5323 = vld [vmem:[%s916 + $0x19] sm:$0xff]
        %v5324 = vld [vmem:[%s916 + $0x21] sm:$0xff]
        %v5325 = vld [vmem:[%s916 + $0x31] sm:$0xff]
        %v5326 = vld [vmem:[%s916 + $0x39] sm:$0xff]
        %v5327 = vld [vmem:[%s916 + $0x49] sm:$0xff]
        %v5328 = vld [vmem:[%s916 + $0x51] sm:$0xff]
        %v5329 = vld [vmem:[%s916 + $0x61] sm:$0xff]
        %v5330 = vld [vmem:[%s916 + $0x69] sm:$0xff]
        %v5331 = vld [vmem:[%s916 + $0x79] sm:$0xff]
        %v5332 = vld [vmem:[%s916 + $0x81] sm:$0xff]
        %v5333 = vld [vmem:[%s916 + $0x91] sm:$0xff]
        %v5334 = vld [vmem:[%s916 + $0x99] sm:$0xff]
        %v5335 = vld [vmem:[%s916 + $0xa9] sm:$0xff]
        %v5336 = vld [vmem:[%s916 + $0xb1] sm:$0xff]
        %v5337 = vld [vmem:[%s916 + $0xc1] sm:$0xff]
        %v5338 = vld [vmem:[%s916 + $0xc9] sm:$0xff]
        %v5339 = vld [vmem:[%s916 + $0xd9] sm:$0xff]
        %v5340 = vld [vmem:[%s916 + $0xe1] sm:$0xff]
        %v5341 = vld [vmem:[%s916 + $0xf1] sm:$0xff]
        %v5342 = vld [vmem:[%s916 + $0xf9] sm:$0xff]
        %v5343 = vld [vmem:[%s916 + $0x109] sm:$0xff]
        %v5344 = vld [vmem:[%s916 + $0x111] sm:$0xff]
        %v5345 = vld [vmem:[%s916 + $0x121] sm:$0xff]
        %v5346 = vld [vmem:[%s916 + $0x129] sm:$0xff]
        %v5347 = vld [vmem:[%s916 + $0x139] sm:$0xff]
        %v5348 = vld [vmem:[%s916 + $0x141] sm:$0xff]
        %v5349 = vld [vmem:[%s916 + $0x151] sm:$0xff]
        %v5350 = vld [vmem:[%s916 + $0x159] sm:$0xff]
        %v5351 = vld [vmem:[%s916 + $0x169] sm:$0xff]
        %v5352 = vld [vmem:[%s916 + $0x171] sm:$0xff]
        %v5353 = vpack.c.bf16 %v5322, %v5321
        %v5354 = vpack.c.bf16 %v5324, %v5323
        %v5355 = vpack.c.bf16 %v5326, %v5325
        %v5356 = vpack.c.bf16 %v5328, %v5327
        %v5357 = vpack.c.bf16 %v5330, %v5329
        %v5358 = vpack.c.bf16 %v5332, %v5331
        %v5359 = vpack.c.bf16 %v5334, %v5333
        %v5360 = vpack.c.bf16 %v5336, %v5335
        %v5361 = vpack.c.bf16 %v5338, %v5337
        %v5362 = vpack.c.bf16 %v5340, %v5339
        %v5363 = vpack.c.bf16 %v5342, %v5341
        %v5364 = vpack.c.bf16 %v5344, %v5343
        %v5365 = vpack.c.bf16 %v5346, %v5345
        %v5366 = vpack.c.bf16 %v5348, %v5347
        %v5367 = vpack.c.bf16 %v5350, %v5349
        %v5368 = vpack.c.bf16 %v5352, %v5351
        %s5369 = scalar_lea.vmem %s6, 104
        %v5370 = vld [vmem:[%s5369] sm:$0xf]
        %v5371 = vld [vmem:[%s5369 + $0x4] sm:$0xf]
        %v5374 = vunpack.c.l.b16 %v5370
        %v5375 = vunpack.c.l.b16 %v5371
        %v5376 = vpack.c.b16 %v5375, %v5374
        %v5379 = vsel %vm377, %v5353, 0
        %v5382 = vsel %vm377, %v5354, 0
        %v5385 = vsel %vm377, %v5355, 0
        %v5388 = vsel %vm377, %v5356, 0
        %v5391 = vsel %vm377, %v5357, 0
        %v5394 = vsel %vm377, %v5358, 0
        %v5397 = vsel %vm377, %v5359, 0
        %v5400 = vsel %vm377, %v5360, 0
        %v5403 = vsel %vm377, %v5361, 0
        %v5406 = vsel %vm377, %v5362, 0
        %v5409 = vsel %vm377, %v5363, 0
        %v5412 = vsel %vm377, %v5364, 0
        %v5415 = vsel %vm377, %v5365, 0
        %v5418 = vsel %vm377, %v5366, 0
        %v5421 = vsel %vm377, %v5367, 0
        %v5424 = vsel %vm377, %v5368, 0
        %5426 = vmatprep.subr.bf16.mxu0 0
        %5427 = vmatpush1.bf16.msra.mxu0 0
        %5428 = vmatprep.subr.bf16.mxu0 0
        %5429 = vmatpush1.bf16.msra.mxu0 0
        %5430 = vmatprep.subr.bf16.mxu0 0
        %5431 = vmatpush1.bf16.msra.mxu0 0
        %5432 = vmatprep.subr.bf16.mxu0 0
        %5433 = vmatpush1.bf16.msra.mxu0 0
        %5434 = vmatprep.subr.bf16.mxu0 0
        %5435 = vmatpush1.bf16.msra.mxu0 0
        %5436 = vmatprep.subr.bf16.mxu0 0
        %5437 = vmatpush1.bf16.msra.mxu0 0
        %5438 = vmatprep.subr.bf16.mxu0 0
        %5439 = vmatpush1.bf16.msra.mxu0 0
        %5440 = vmatprep.subr.bf16.mxu0 0
        %5441 = vmatpush1.bf16.msra.mxu0 %v5376
        %5442 = vmatprep.subr.bf16.mxu0 0
        %5443 = vmatpush2.bf16.msra.mxu0 0
        %5444 = vmatprep.subr.bf16.mxu0 0
        %5445 = vmatpush2.bf16.msra.mxu0 0
        %5446 = vmatprep.subr.bf16.mxu0 0
        %5447 = vmatpush2.bf16.msra.mxu0 0
        %5448 = vmatprep.subr.bf16.mxu0 0
        %5449 = vmatpush2.bf16.msra.mxu0 0
        %5450 = vmatprep.subr.bf16.mxu0 0
        %5451 = vmatpush2.bf16.msra.mxu0 0
        %5452 = vmatprep.subr.bf16.mxu0 0
        %5453 = vmatpush2.bf16.msra.mxu0 0
        %5454 = vmatprep.subr.bf16.mxu0 0
        %5455 = vmatpush2.bf16.msra.mxu0 0
        %5456 = vmatprep.subr.bf16.mxu0 0
        %5457 = vmatpush2.bf16.msra.mxu0 0
        %5458 = vmatprep.mubr.bf16.mxu0 0
        %5459 = vmatmul.mubr.bf16.gmra.mxu0 %v5379
        %v5460 = vpop.f32.mrf.mxu0
        %v5461 = vadd.f32 0.0, %v5460
        %v5462 = vpop.f32.mrf.mxu0
        %v5463 = vpop.f32.mrf.mxu0
        %v5464 = vadd.f32 0.0, %v5463
        %v5465 = vpop.f32.mrf.mxu0
        %5466 = vmatprep.mubr.bf16.mxu0 0
        %5467 = vmatmul.mubr.bf16.gmra.mxu0 %v5382
        %v5468 = vpop.f32.mrf.mxu0
        %v5469 = vadd.f32 0.0, %v5468
        %v5470 = vpop.f32.mrf.mxu0
        %v5471 = vpop.f32.mrf.mxu0
        %v5472 = vadd.f32 0.0, %v5471
        %v5473 = vpop.f32.mrf.mxu0
        %5474 = vmatprep.mubr.bf16.mxu0 0
        %5475 = vmatmul.mubr.bf16.gmra.mxu0 %v5385
        %v5476 = vpop.f32.mrf.mxu0
        %v5477 = vadd.f32 0.0, %v5476
        %v5478 = vpop.f32.mrf.mxu0
        %v5479 = vpop.f32.mrf.mxu0
        %v5480 = vadd.f32 0.0, %v5479
        %v5481 = vpop.f32.mrf.mxu0
        %5482 = vmatprep.mubr.bf16.mxu0 0
        %5483 = vmatmul.mubr.bf16.gmra.mxu0 %v5388
        %v5484 = vpop.f32.mrf.mxu0
        %v5485 = vadd.f32 0.0, %v5484
        %v5486 = vpop.f32.mrf.mxu0
        %v5487 = vpop.f32.mrf.mxu0
        %v5488 = vadd.f32 0.0, %v5487
        %v5489 = vpop.f32.mrf.mxu0
        %5490 = vmatprep.mubr.bf16.mxu0 0
        %5491 = vmatmul.mubr.bf16.gmra.mxu0 %v5391
        %v5492 = vpop.f32.mrf.mxu0
        %v5493 = vadd.f32 0.0, %v5492
        %v5494 = vpop.f32.mrf.mxu0
        %v5495 = vpop.f32.mrf.mxu0
        %v5496 = vadd.f32 0.0, %v5495
        %v5497 = vpop.f32.mrf.mxu0
        %5498 = vmatprep.mubr.bf16.mxu0 0
        %5499 = vmatmul.mubr.bf16.gmra.mxu0 %v5394
        %v5500 = vpop.f32.mrf.mxu0
        %v5501 = vadd.f32 0.0, %v5500
        %v5502 = vpop.f32.mrf.mxu0
        %v5503 = vpop.f32.mrf.mxu0
        %v5504 = vadd.f32 0.0, %v5503
        %v5505 = vpop.f32.mrf.mxu0
        %5506 = vmatprep.mubr.bf16.mxu0 0
        %5507 = vmatmul.mubr.bf16.gmra.mxu0 %v5397
        %v5508 = vpop.f32.mrf.mxu0
        %v5509 = vadd.f32 0.0, %v5508
        %v5510 = vpop.f32.mrf.mxu0
        %v5511 = vpop.f32.mrf.mxu0
        %v5512 = vadd.f32 0.0, %v5511
        %v5513 = vpop.f32.mrf.mxu0
        %5514 = vmatprep.mubr.bf16.mxu0 0
        %5515 = vmatmul.mubr.bf16.gmra.mxu0 %v5400
        %v5516 = vpop.f32.mrf.mxu0
        %v5517 = vadd.f32 0.0, %v5516
        %v5518 = vpop.f32.mrf.mxu0
        %v5519 = vpop.f32.mrf.mxu0
        %v5520 = vadd.f32 0.0, %v5519
        %v5521 = vpop.f32.mrf.mxu0
        %5522 = vmatprep.mubr.bf16.mxu0 0
        %5523 = vmatmul.mubr.bf16.gmra.mxu0 %v5403
        %v5524 = vpop.f32.mrf.mxu0
        %v5525 = vadd.f32 0.0, %v5524
        %v5526 = vpop.f32.mrf.mxu0
        %v5527 = vpop.f32.mrf.mxu0
        %v5528 = vadd.f32 0.0, %v5527
        %v5529 = vpop.f32.mrf.mxu0
        %5530 = vmatprep.mubr.bf16.mxu0 0
        %5531 = vmatmul.mubr.bf16.gmra.mxu0 %v5406
        %v5532 = vpop.f32.mrf.mxu0
        %v5533 = vadd.f32 0.0, %v5532
        %v5534 = vpop.f32.mrf.mxu0
        %v5535 = vpop.f32.mrf.mxu0
        %v5536 = vadd.f32 0.0, %v5535
        %v5537 = vpop.f32.mrf.mxu0
        %5538 = vmatprep.mubr.bf16.mxu0 0
        %5539 = vmatmul.mubr.bf16.gmra.mxu0 %v5409
        %v5540 = vpop.f32.mrf.mxu0
        %v5541 = vadd.f32 0.0, %v5540
        %v5542 = vpop.f32.mrf.mxu0
        %v5543 = vpop.f32.mrf.mxu0
        %v5544 = vadd.f32 0.0, %v5543
        %v5545 = vpop.f32.mrf.mxu0
        %5546 = vmatprep.mubr.bf16.mxu0 0
        %5547 = vmatmul.mubr.bf16.gmra.mxu0 %v5412
        %v5548 = vpop.f32.mrf.mxu0
        %v5549 = vadd.f32 0.0, %v5548
        %v5550 = vpop.f32.mrf.mxu0
        %v5551 = vpop.f32.mrf.mxu0
        %v5552 = vadd.f32 0.0, %v5551
        %v5553 = vpop.f32.mrf.mxu0
        %5554 = vmatprep.mubr.bf16.mxu0 0
        %5555 = vmatmul.mubr.bf16.gmra.mxu0 %v5415
        %v5556 = vpop.f32.mrf.mxu0
        %v5557 = vadd.f32 0.0, %v5556
        %v5558 = vpop.f32.mrf.mxu0
        %v5559 = vpop.f32.mrf.mxu0
        %v5560 = vadd.f32 0.0, %v5559
        %v5561 = vpop.f32.mrf.mxu0
        %5562 = vmatprep.mubr.bf16.mxu0 0
        %5563 = vmatmul.mubr.bf16.gmra.mxu0 %v5418
        %v5564 = vpop.f32.mrf.mxu0
        %v5565 = vadd.f32 0.0, %v5564
        %v5566 = vpop.f32.mrf.mxu0
        %v5567 = vpop.f32.mrf.mxu0
        %v5568 = vadd.f32 0.0, %v5567
        %v5569 = vpop.f32.mrf.mxu0
        %5570 = vmatprep.mubr.bf16.mxu0 0
        %5571 = vmatmul.mubr.bf16.gmra.mxu0 %v5421
        %v5572 = vpop.f32.mrf.mxu0
        %v5573 = vadd.f32 0.0, %v5572
        %v5574 = vpop.f32.mrf.mxu0
        %v5575 = vpop.f32.mrf.mxu0
        %v5576 = vadd.f32 0.0, %v5575
        %v5577 = vpop.f32.mrf.mxu0
        %5578 = vmatprep.mubr.bf16.mxu0 0
        %5579 = vmatmul.mubr.bf16.gmra.mxu0 %v5424
        %v5580 = vpop.f32.mrf.mxu0
        %v5581 = vadd.f32 0.0, %v5580
        %v5582 = vpop.f32.mrf.mxu0
        %v5583 = vpop.f32.mrf.mxu0
        %v5584 = vadd.f32 0.0, %v5583
        %v5585 = vpop.f32.mrf.mxu0
        %5586 = vdwg.mxu0
        %v5587 = vadd.f32 %v5289, %v5461
        %v5588 = vadd.f32 %v5290, %v5464
        %v5589 = vadd.f32 %v5291, %v5469
        %v5590 = vadd.f32 %v5292, %v5472
        %v5591 = vadd.f32 %v5293, %v5477
        %v5592 = vadd.f32 %v5294, %v5480
        %v5593 = vadd.f32 %v5295, %v5485
        %v5594 = vadd.f32 %v5296, %v5488
        %v5595 = vadd.f32 %v5297, %v5493
        %v5596 = vadd.f32 %v5298, %v5496
        %v5597 = vadd.f32 %v5299, %v5501
        %v5598 = vadd.f32 %v5300, %v5504
        %v5599 = vadd.f32 %v5301, %v5509
        %v5600 = vadd.f32 %v5302, %v5512
        %v5601 = vadd.f32 %v5303, %v5517
        %v5602 = vadd.f32 %v5304, %v5520
        %v5603 = vadd.f32 %v5305, %v5525
        %v5604 = vadd.f32 %v5306, %v5528
        %v5605 = vadd.f32 %v5307, %v5533
        %v5606 = vadd.f32 %v5308, %v5536
        %v5607 = vadd.f32 %v5309, %v5541
        %v5608 = vadd.f32 %v5310, %v5544
        %v5609 = vadd.f32 %v5311, %v5549
        %v5610 = vadd.f32 %v5312, %v5552
        %v5611 = vadd.f32 %v5313, %v5557
        %v5612 = vadd.f32 %v5314, %v5560
        %v5613 = vadd.f32 %v5315, %v5565
        %v5614 = vadd.f32 %v5316, %v5568
        %v5615 = vadd.f32 %v5317, %v5573
        %v5616 = vadd.f32 %v5318, %v5576
        %v5617 = vadd.f32 %v5319, %v5581
        %v5618 = vadd.f32 %v5320, %v5584
        %v5619 = vld [vmem:[%s916 + $0x2] sm:$0xff]
        %v5620 = vld [vmem:[%s916 + $0xa] sm:$0xff]
        %v5621 = vld [vmem:[%s916 + $0x1a] sm:$0xff]
        %v5622 = vld [vmem:[%s916 + $0x22] sm:$0xff]
        %v5623 = vld [vmem:[%s916 + $0x32] sm:$0xff]
        %v5624 = vld [vmem:[%s916 + $0x3a] sm:$0xff]
        %v5625 = vld [vmem:[%s916 + $0x4a] sm:$0xff]
        %v5626 = vld [vmem:[%s916 + $0x52] sm:$0xff]
        %v5627 = vld [vmem:[%s916 + $0x62] sm:$0xff]
        %v5628 = vld [vmem:[%s916 + $0x6a] sm:$0xff]
        %v5629 = vld [vmem:[%s916 + $0x7a] sm:$0xff]
        %v5630 = vld [vmem:[%s916 + $0x82] sm:$0xff]
        %v5631 = vld [vmem:[%s916 + $0x92] sm:$0xff]
        %v5632 = vld [vmem:[%s916 + $0x9a] sm:$0xff]
        %v5633 = vld [vmem:[%s916 + $0xaa] sm:$0xff]
        %v5634 = vld [vmem:[%s916 + $0xb2] sm:$0xff]
        %v5635 = vld [vmem:[%s916 + $0xc2] sm:$0xff]
        %v5636 = vld [vmem:[%s916 + $0xca] sm:$0xff]
        %v5637 = vld [vmem:[%s916 + $0xda] sm:$0xff]
        %v5638 = vld [vmem:[%s916 + $0xe2] sm:$0xff]
        %v5639 = vld [vmem:[%s916 + $0xf2] sm:$0xff]
        %v5640 = vld [vmem:[%s916 + $0xfa] sm:$0xff]
        %v5641 = vld [vmem:[%s916 + $0x10a] sm:$0xff]
        %v5642 = vld [vmem:[%s916 + $0x112] sm:$0xff]
        %v5643 = vld [vmem:[%s916 + $0x122] sm:$0xff]
        %v5644 = vld [vmem:[%s916 + $0x12a] sm:$0xff]
        %v5645 = vld [vmem:[%s916 + $0x13a] sm:$0xff]
        %v5646 = vld [vmem:[%s916 + $0x142] sm:$0xff]
        %v5647 = vld [vmem:[%s916 + $0x152] sm:$0xff]
        %v5648 = vld [vmem:[%s916 + $0x15a] sm:$0xff]
        %v5649 = vld [vmem:[%s916 + $0x16a] sm:$0xff]
        %v5650 = vld [vmem:[%s916 + $0x172] sm:$0xff]
        %v5651 = vpack.c.bf16 %v5620, %v5619
        %v5652 = vpack.c.bf16 %v5622, %v5621
        %v5653 = vpack.c.bf16 %v5624, %v5623
        %v5654 = vpack.c.bf16 %v5626, %v5625
        %v5655 = vpack.c.bf16 %v5628, %v5627
        %v5656 = vpack.c.bf16 %v5630, %v5629
        %v5657 = vpack.c.bf16 %v5632, %v5631
        %v5658 = vpack.c.bf16 %v5634, %v5633
        %v5659 = vpack.c.bf16 %v5636, %v5635
        %v5660 = vpack.c.bf16 %v5638, %v5637
        %v5661 = vpack.c.bf16 %v5640, %v5639
        %v5662 = vpack.c.bf16 %v5642, %v5641
        %v5663 = vpack.c.bf16 %v5644, %v5643
        %v5664 = vpack.c.bf16 %v5646, %v5645
        %v5665 = vpack.c.bf16 %v5648, %v5647
        %v5666 = vpack.c.bf16 %v5650, %v5649
        %s5667 = scalar_lea.vmem %s6, 112
        %v5668 = vld [vmem:[%s5667] sm:$0xf]
        %v5669 = vld [vmem:[%s5667 + $0x4] sm:$0xf]
        %v5672 = vunpack.c.l.b16 %v5668
        %v5673 = vunpack.c.l.b16 %v5669
        %v5674 = vpack.c.b16 %v5673, %v5672
        %v5677 = vsel %vm377, %v5651, 0
        %v5680 = vsel %vm377, %v5652, 0
        %v5683 = vsel %vm377, %v5653, 0
        %v5686 = vsel %vm377, %v5654, 0
        %v5689 = vsel %vm377, %v5655, 0
        %v5692 = vsel %vm377, %v5656, 0
        %v5695 = vsel %vm377, %v5657, 0
        %v5698 = vsel %vm377, %v5658, 0
        %v5701 = vsel %vm377, %v5659, 0
        %v5704 = vsel %vm377, %v5660, 0
        %v5707 = vsel %vm377, %v5661, 0
        %v5710 = vsel %vm377, %v5662, 0
        %v5713 = vsel %vm377, %v5663, 0
        %v5716 = vsel %vm377, %v5664, 0
        %v5719 = vsel %vm377, %v5665, 0
        %v5722 = vsel %vm377, %v5666, 0
        %5724 = vmatprep.subr.bf16.mxu0 0
        %5725 = vmatpush1.bf16.msra.mxu0 0
        %5726 = vmatprep.subr.bf16.mxu0 0
        %5727 = vmatpush1.bf16.msra.mxu0 0
        %5728 = vmatprep.subr.bf16.mxu0 0
        %5729 = vmatpush1.bf16.msra.mxu0 0
        %5730 = vmatprep.subr.bf16.mxu0 0
        %5731 = vmatpush1.bf16.msra.mxu0 0
        %5732 = vmatprep.subr.bf16.mxu0 0
        %5733 = vmatpush1.bf16.msra.mxu0 0
        %5734 = vmatprep.subr.bf16.mxu0 0
        %5735 = vmatpush1.bf16.msra.mxu0 0
        %5736 = vmatprep.subr.bf16.mxu0 0
        %5737 = vmatpush1.bf16.msra.mxu0 0
        %5738 = vmatprep.subr.bf16.mxu0 0
        %5739 = vmatpush1.bf16.msra.mxu0 %v5674
        %5740 = vmatprep.subr.bf16.mxu0 0
        %5741 = vmatpush2.bf16.msra.mxu0 0
        %5742 = vmatprep.subr.bf16.mxu0 0
        %5743 = vmatpush2.bf16.msra.mxu0 0
        %5744 = vmatprep.subr.bf16.mxu0 0
        %5745 = vmatpush2.bf16.msra.mxu0 0
        %5746 = vmatprep.subr.bf16.mxu0 0
        %5747 = vmatpush2.bf16.msra.mxu0 0
        %5748 = vmatprep.subr.bf16.mxu0 0
        %5749 = vmatpush2.bf16.msra.mxu0 0
        %5750 = vmatprep.subr.bf16.mxu0 0
        %5751 = vmatpush2.bf16.msra.mxu0 0
        %5752 = vmatprep.subr.bf16.mxu0 0
        %5753 = vmatpush2.bf16.msra.mxu0 0
        %5754 = vmatprep.subr.bf16.mxu0 0
        %5755 = vmatpush2.bf16.msra.mxu0 0
        %5756 = vmatprep.mubr.bf16.mxu0 0
        %5757 = vmatmul.mubr.bf16.gmra.mxu0 %v5677
        %v5758 = vpop.f32.mrf.mxu0
        %v5759 = vadd.f32 0.0, %v5758
        %v5760 = vpop.f32.mrf.mxu0
        %v5761 = vpop.f32.mrf.mxu0
        %v5762 = vadd.f32 0.0, %v5761
        %v5763 = vpop.f32.mrf.mxu0
        %5764 = vmatprep.mubr.bf16.mxu0 0
        %5765 = vmatmul.mubr.bf16.gmra.mxu0 %v5680
        %v5766 = vpop.f32.mrf.mxu0
        %v5767 = vadd.f32 0.0, %v5766
        %v5768 = vpop.f32.mrf.mxu0
        %v5769 = vpop.f32.mrf.mxu0
        %v5770 = vadd.f32 0.0, %v5769
        %v5771 = vpop.f32.mrf.mxu0
        %5772 = vmatprep.mubr.bf16.mxu0 0
        %5773 = vmatmul.mubr.bf16.gmra.mxu0 %v5683
        %v5774 = vpop.f32.mrf.mxu0
        %v5775 = vadd.f32 0.0, %v5774
        %v5776 = vpop.f32.mrf.mxu0
        %v5777 = vpop.f32.mrf.mxu0
        %v5778 = vadd.f32 0.0, %v5777
        %v5779 = vpop.f32.mrf.mxu0
        %5780 = vmatprep.mubr.bf16.mxu0 0
        %5781 = vmatmul.mubr.bf16.gmra.mxu0 %v5686
        %v5782 = vpop.f32.mrf.mxu0
        %v5783 = vadd.f32 0.0, %v5782
        %v5784 = vpop.f32.mrf.mxu0
        %v5785 = vpop.f32.mrf.mxu0
        %v5786 = vadd.f32 0.0, %v5785
        %v5787 = vpop.f32.mrf.mxu0
        %5788 = vmatprep.mubr.bf16.mxu0 0
        %5789 = vmatmul.mubr.bf16.gmra.mxu0 %v5689
        %v5790 = vpop.f32.mrf.mxu0
        %v5791 = vadd.f32 0.0, %v5790
        %v5792 = vpop.f32.mrf.mxu0
        %v5793 = vpop.f32.mrf.mxu0
        %v5794 = vadd.f32 0.0, %v5793
        %v5795 = vpop.f32.mrf.mxu0
        %5796 = vmatprep.mubr.bf16.mxu0 0
        %5797 = vmatmul.mubr.bf16.gmra.mxu0 %v5692
        %v5798 = vpop.f32.mrf.mxu0
        %v5799 = vadd.f32 0.0, %v5798
        %v5800 = vpop.f32.mrf.mxu0
        %v5801 = vpop.f32.mrf.mxu0
        %v5802 = vadd.f32 0.0, %v5801
        %v5803 = vpop.f32.mrf.mxu0
        %5804 = vmatprep.mubr.bf16.mxu0 0
        %5805 = vmatmul.mubr.bf16.gmra.mxu0 %v5695
        %v5806 = vpop.f32.mrf.mxu0
        %v5807 = vadd.f32 0.0, %v5806
        %v5808 = vpop.f32.mrf.mxu0
        %v5809 = vpop.f32.mrf.mxu0
        %v5810 = vadd.f32 0.0, %v5809
        %v5811 = vpop.f32.mrf.mxu0
        %5812 = vmatprep.mubr.bf16.mxu0 0
        %5813 = vmatmul.mubr.bf16.gmra.mxu0 %v5698
        %v5814 = vpop.f32.mrf.mxu0
        %v5815 = vadd.f32 0.0, %v5814
        %v5816 = vpop.f32.mrf.mxu0
        %v5817 = vpop.f32.mrf.mxu0
        %v5818 = vadd.f32 0.0, %v5817
        %v5819 = vpop.f32.mrf.mxu0
        %5820 = vmatprep.mubr.bf16.mxu0 0
        %5821 = vmatmul.mubr.bf16.gmra.mxu0 %v5701
        %v5822 = vpop.f32.mrf.mxu0
        %v5823 = vadd.f32 0.0, %v5822
        %v5824 = vpop.f32.mrf.mxu0
        %v5825 = vpop.f32.mrf.mxu0
        %v5826 = vadd.f32 0.0, %v5825
        %v5827 = vpop.f32.mrf.mxu0
        %5828 = vmatprep.mubr.bf16.mxu0 0
        %5829 = vmatmul.mubr.bf16.gmra.mxu0 %v5704
        %v5830 = vpop.f32.mrf.mxu0
        %v5831 = vadd.f32 0.0, %v5830
        %v5832 = vpop.f32.mrf.mxu0
        %v5833 = vpop.f32.mrf.mxu0
        %v5834 = vadd.f32 0.0, %v5833
        %v5835 = vpop.f32.mrf.mxu0
        %5836 = vmatprep.mubr.bf16.mxu0 0
        %5837 = vmatmul.mubr.bf16.gmra.mxu0 %v5707
        %v5838 = vpop.f32.mrf.mxu0
        %v5839 = vadd.f32 0.0, %v5838
        %v5840 = vpop.f32.mrf.mxu0
        %v5841 = vpop.f32.mrf.mxu0
        %v5842 = vadd.f32 0.0, %v5841
        %v5843 = vpop.f32.mrf.mxu0
        %5844 = vmatprep.mubr.bf16.mxu0 0
        %5845 = vmatmul.mubr.bf16.gmra.mxu0 %v5710
        %v5846 = vpop.f32.mrf.mxu0
        %v5847 = vadd.f32 0.0, %v5846
        %v5848 = vpop.f32.mrf.mxu0
        %v5849 = vpop.f32.mrf.mxu0
        %v5850 = vadd.f32 0.0, %v5849
        %v5851 = vpop.f32.mrf.mxu0
        %5852 = vmatprep.mubr.bf16.mxu0 0
        %5853 = vmatmul.mubr.bf16.gmra.mxu0 %v5713
        %v5854 = vpop.f32.mrf.mxu0
        %v5855 = vadd.f32 0.0, %v5854
        %v5856 = vpop.f32.mrf.mxu0
        %v5857 = vpop.f32.mrf.mxu0
        %v5858 = vadd.f32 0.0, %v5857
        %v5859 = vpop.f32.mrf.mxu0
        %5860 = vmatprep.mubr.bf16.mxu0 0
        %5861 = vmatmul.mubr.bf16.gmra.mxu0 %v5716
        %v5862 = vpop.f32.mrf.mxu0
        %v5863 = vadd.f32 0.0, %v5862
        %v5864 = vpop.f32.mrf.mxu0
        %v5865 = vpop.f32.mrf.mxu0
        %v5866 = vadd.f32 0.0, %v5865
        %v5867 = vpop.f32.mrf.mxu0
        %5868 = vmatprep.mubr.bf16.mxu0 0
        %5869 = vmatmul.mubr.bf16.gmra.mxu0 %v5719
        %v5870 = vpop.f32.mrf.mxu0
        %v5871 = vadd.f32 0.0, %v5870
        %v5872 = vpop.f32.mrf.mxu0
        %v5873 = vpop.f32.mrf.mxu0
        %v5874 = vadd.f32 0.0, %v5873
        %v5875 = vpop.f32.mrf.mxu0
        %5876 = vmatprep.mubr.bf16.mxu0 0
        %5877 = vmatmul.mubr.bf16.gmra.mxu0 %v5722
        %v5878 = vpop.f32.mrf.mxu0
        %v5879 = vadd.f32 0.0, %v5878
        %v5880 = vpop.f32.mrf.mxu0
        %v5881 = vpop.f32.mrf.mxu0
        %v5882 = vadd.f32 0.0, %v5881
        %v5883 = vpop.f32.mrf.mxu0
        %5884 = vdwg.mxu0
        %v5885 = vadd.f32 %v5587, %v5759
        %v5886 = vadd.f32 %v5588, %v5762
        %v5887 = vadd.f32 %v5589, %v5767
        %v5888 = vadd.f32 %v5590, %v5770
        %v5889 = vadd.f32 %v5591, %v5775
        %v5890 = vadd.f32 %v5592, %v5778
        %v5891 = vadd.f32 %v5593, %v5783
        %v5892 = vadd.f32 %v5594, %v5786
        %v5893 = vadd.f32 %v5595, %v5791
        %v5894 = vadd.f32 %v5596, %v5794
        %v5895 = vadd.f32 %v5597, %v5799
        %v5896 = vadd.f32 %v5598, %v5802
        %v5897 = vadd.f32 %v5599, %v5807
        %v5898 = vadd.f32 %v5600, %v5810
        %v5899 = vadd.f32 %v5601, %v5815
        %v5900 = vadd.f32 %v5602, %v5818
        %v5901 = vadd.f32 %v5603, %v5823
        %v5902 = vadd.f32 %v5604, %v5826
        %v5903 = vadd.f32 %v5605, %v5831
        %v5904 = vadd.f32 %v5606, %v5834
        %v5905 = vadd.f32 %v5607, %v5839
        %v5906 = vadd.f32 %v5608, %v5842
        %v5907 = vadd.f32 %v5609, %v5847
        %v5908 = vadd.f32 %v5610, %v5850
        %v5909 = vadd.f32 %v5611, %v5855
        %v5910 = vadd.f32 %v5612, %v5858
        %v5911 = vadd.f32 %v5613, %v5863
        %v5912 = vadd.f32 %v5614, %v5866
        %v5913 = vadd.f32 %v5615, %v5871
        %v5914 = vadd.f32 %v5616, %v5874
        %v5915 = vadd.f32 %v5617, %v5879
        %v5916 = vadd.f32 %v5618, %v5882
        %v5917 = vld [vmem:[%s2672] sm:$0xff]
        %v5918 = vld [vmem:[%s2672 + $0x8] sm:$0xff]
        %v5919 = vld [vmem:[%s2672 + $0x18] sm:$0xff]
        %v5920 = vld [vmem:[%s2672 + $0x20] sm:$0xff]
        %v5921 = vld [vmem:[%s2672 + $0x30] sm:$0xff]
        %v5922 = vld [vmem:[%s2672 + $0x38] sm:$0xff]
        %v5923 = vld [vmem:[%s2672 + $0x48] sm:$0xff]
        %v5924 = vld [vmem:[%s2672 + $0x50] sm:$0xff]
        %v5925 = vld [vmem:[%s2672 + $0x60] sm:$0xff]
        %v5926 = vld [vmem:[%s2672 + $0x68] sm:$0xff]
        %v5927 = vld [vmem:[%s2672 + $0x78] sm:$0xff]
        %v5928 = vld [vmem:[%s2672 + $0x80] sm:$0xff]
        %v5929 = vld [vmem:[%s2672 + $0x90] sm:$0xff]
        %v5930 = vld [vmem:[%s2672 + $0x98] sm:$0xff]
        %v5931 = vld [vmem:[%s2672 + $0xa8] sm:$0xff]
        %v5932 = vld [vmem:[%s2672 + $0xb0] sm:$0xff]
        %v5933 = vld [vmem:[%s2672 + $0xc0] sm:$0xff]
        %v5934 = vld [vmem:[%s2672 + $0xc8] sm:$0xff]
        %v5935 = vld [vmem:[%s2672 + $0xd8] sm:$0xff]
        %v5936 = vld [vmem:[%s2672 + $0xe0] sm:$0xff]
        %v5937 = vld [vmem:[%s2672 + $0xf0] sm:$0xff]
        %v5938 = vld [vmem:[%s2672 + $0xf8] sm:$0xff]
        %v5939 = vld [vmem:[%s2672 + $0x108] sm:$0xff]
        %v5940 = vld [vmem:[%s2672 + $0x110] sm:$0xff]
        %v5941 = vld [vmem:[%s2672 + $0x120] sm:$0xff]
        %v5942 = vld [vmem:[%s2672 + $0x128] sm:$0xff]
        %v5943 = vld [vmem:[%s2672 + $0x138] sm:$0xff]
        %v5944 = vld [vmem:[%s2672 + $0x140] sm:$0xff]
        %v5945 = vld [vmem:[%s2672 + $0x150] sm:$0xff]
        %v5946 = vld [vmem:[%s2672 + $0x158] sm:$0xff]
        %v5947 = vld [vmem:[%s2672 + $0x168] sm:$0xff]
        %v5948 = vld [vmem:[%s2672 + $0x170] sm:$0xff]
        %v5949 = vpack.c.bf16 %v5918, %v5917
        %v5950 = vpack.c.bf16 %v5920, %v5919
        %v5951 = vpack.c.bf16 %v5922, %v5921
        %v5952 = vpack.c.bf16 %v5924, %v5923
        %v5953 = vpack.c.bf16 %v5926, %v5925
        %v5954 = vpack.c.bf16 %v5928, %v5927
        %v5955 = vpack.c.bf16 %v5930, %v5929
        %v5956 = vpack.c.bf16 %v5932, %v5931
        %v5957 = vpack.c.bf16 %v5934, %v5933
        %v5958 = vpack.c.bf16 %v5936, %v5935
        %v5959 = vpack.c.bf16 %v5938, %v5937
        %v5960 = vpack.c.bf16 %v5940, %v5939
        %v5961 = vpack.c.bf16 %v5942, %v5941
        %v5962 = vpack.c.bf16 %v5944, %v5943
        %v5963 = vpack.c.bf16 %v5946, %v5945
        %v5964 = vpack.c.bf16 %v5948, %v5947
        %s5965 = scalar_lea.vmem %s6, 120
        %v5966 = vld [vmem:[%s5965] sm:$0xf]
        %v5967 = vld [vmem:[%s5965 + $0x4] sm:$0xf]
        %v5970 = vunpack.c.l.b16 %v5966
        %v5971 = vunpack.c.l.b16 %v5967
        %v5972 = vpack.c.b16 %v5971, %v5970
        %v5975 = vsel %vm377, %v5949, 0
        %v5978 = vsel %vm377, %v5950, 0
        %v5981 = vsel %vm377, %v5951, 0
        %v5984 = vsel %vm377, %v5952, 0
        %v5987 = vsel %vm377, %v5953, 0
        %v5990 = vsel %vm377, %v5954, 0
        %v5993 = vsel %vm377, %v5955, 0
        %v5996 = vsel %vm377, %v5956, 0
        %v5999 = vsel %vm377, %v5957, 0
        %v6002 = vsel %vm377, %v5958, 0
        %v6005 = vsel %vm377, %v5959, 0
        %v6008 = vsel %vm377, %v5960, 0
        %v6011 = vsel %vm377, %v5961, 0
        %v6014 = vsel %vm377, %v5962, 0
        %v6017 = vsel %vm377, %v5963, 0
        %v6020 = vsel %vm377, %v5964, 0
        %6022 = vmatprep.subr.bf16.mxu0 0
        %6023 = vmatpush1.bf16.msra.mxu0 0
        %6024 = vmatprep.subr.bf16.mxu0 0
        %6025 = vmatpush1.bf16.msra.mxu0 0
        %6026 = vmatprep.subr.bf16.mxu0 0
        %6027 = vmatpush1.bf16.msra.mxu0 0
        %6028 = vmatprep.subr.bf16.mxu0 0
        %6029 = vmatpush1.bf16.msra.mxu0 0
        %6030 = vmatprep.subr.bf16.mxu0 0
        %6031 = vmatpush1.bf16.msra.mxu0 0
        %6032 = vmatprep.subr.bf16.mxu0 0
        %6033 = vmatpush1.bf16.msra.mxu0 0
        %6034 = vmatprep.subr.bf16.mxu0 0
        %6035 = vmatpush1.bf16.msra.mxu0 0
        %6036 = vmatprep.subr.bf16.mxu0 0
        %6037 = vmatpush1.bf16.msra.mxu0 %v5972
        %6038 = vmatprep.subr.bf16.mxu0 0
        %6039 = vmatpush2.bf16.msra.mxu0 0
        %6040 = vmatprep.subr.bf16.mxu0 0
        %6041 = vmatpush2.bf16.msra.mxu0 0
        %6042 = vmatprep.subr.bf16.mxu0 0
        %6043 = vmatpush2.bf16.msra.mxu0 0
        %6044 = vmatprep.subr.bf16.mxu0 0
        %6045 = vmatpush2.bf16.msra.mxu0 0
        %6046 = vmatprep.subr.bf16.mxu0 0
        %6047 = vmatpush2.bf16.msra.mxu0 0
        %6048 = vmatprep.subr.bf16.mxu0 0
        %6049 = vmatpush2.bf16.msra.mxu0 0
        %6050 = vmatprep.subr.bf16.mxu0 0
        %6051 = vmatpush2.bf16.msra.mxu0 0
        %6052 = vmatprep.subr.bf16.mxu0 0
        %6053 = vmatpush2.bf16.msra.mxu0 0
        %6054 = vmatprep.mubr.bf16.mxu0 0
        %6055 = vmatmul.mubr.bf16.gmra.mxu0 %v5975
        %v6056 = vpop.f32.mrf.mxu0
        %v6057 = vadd.f32 0.0, %v6056
        %v6058 = vpop.f32.mrf.mxu0
        %v6059 = vpop.f32.mrf.mxu0
        %v6060 = vadd.f32 0.0, %v6059
        %v6061 = vpop.f32.mrf.mxu0
        %6062 = vmatprep.mubr.bf16.mxu0 0
        %6063 = vmatmul.mubr.bf16.gmra.mxu0 %v5978
        %v6064 = vpop.f32.mrf.mxu0
        %v6065 = vadd.f32 0.0, %v6064
        %v6066 = vpop.f32.mrf.mxu0
        %v6067 = vpop.f32.mrf.mxu0
        %v6068 = vadd.f32 0.0, %v6067
        %v6069 = vpop.f32.mrf.mxu0
        %6070 = vmatprep.mubr.bf16.mxu0 0
        %6071 = vmatmul.mubr.bf16.gmra.mxu0 %v5981
        %v6072 = vpop.f32.mrf.mxu0
        %v6073 = vadd.f32 0.0, %v6072
        %v6074 = vpop.f32.mrf.mxu0
        %v6075 = vpop.f32.mrf.mxu0
        %v6076 = vadd.f32 0.0, %v6075
        %v6077 = vpop.f32.mrf.mxu0
        %6078 = vmatprep.mubr.bf16.mxu0 0
        %6079 = vmatmul.mubr.bf16.gmra.mxu0 %v5984
        %v6080 = vpop.f32.mrf.mxu0
        %v6081 = vadd.f32 0.0, %v6080
        %v6082 = vpop.f32.mrf.mxu0
        %v6083 = vpop.f32.mrf.mxu0
        %v6084 = vadd.f32 0.0, %v6083
        %v6085 = vpop.f32.mrf.mxu0
        %6086 = vmatprep.mubr.bf16.mxu0 0
        %6087 = vmatmul.mubr.bf16.gmra.mxu0 %v5987
        %v6088 = vpop.f32.mrf.mxu0
        %v6089 = vadd.f32 0.0, %v6088
        %v6090 = vpop.f32.mrf.mxu0
        %v6091 = vpop.f32.mrf.mxu0
        %v6092 = vadd.f32 0.0, %v6091
        %v6093 = vpop.f32.mrf.mxu0
        %6094 = vmatprep.mubr.bf16.mxu0 0
        %6095 = vmatmul.mubr.bf16.gmra.mxu0 %v5990
        %v6096 = vpop.f32.mrf.mxu0
        %v6097 = vadd.f32 0.0, %v6096
        %v6098 = vpop.f32.mrf.mxu0
        %v6099 = vpop.f32.mrf.mxu0
        %v6100 = vadd.f32 0.0, %v6099
        %v6101 = vpop.f32.mrf.mxu0
        %6102 = vmatprep.mubr.bf16.mxu0 0
        %6103 = vmatmul.mubr.bf16.gmra.mxu0 %v5993
        %v6104 = vpop.f32.mrf.mxu0
        %v6105 = vadd.f32 0.0, %v6104
        %v6106 = vpop.f32.mrf.mxu0
        %v6107 = vpop.f32.mrf.mxu0
        %v6108 = vadd.f32 0.0, %v6107
        %v6109 = vpop.f32.mrf.mxu0
        %6110 = vmatprep.mubr.bf16.mxu0 0
        %6111 = vmatmul.mubr.bf16.gmra.mxu0 %v5996
        %v6112 = vpop.f32.mrf.mxu0
        %v6113 = vadd.f32 0.0, %v6112
        %v6114 = vpop.f32.mrf.mxu0
        %v6115 = vpop.f32.mrf.mxu0
        %v6116 = vadd.f32 0.0, %v6115
        %v6117 = vpop.f32.mrf.mxu0
        %6118 = vmatprep.mubr.bf16.mxu0 0
        %6119 = vmatmul.mubr.bf16.gmra.mxu0 %v5999
        %v6120 = vpop.f32.mrf.mxu0
        %v6121 = vadd.f32 0.0, %v6120
        %v6122 = vpop.f32.mrf.mxu0
        %v6123 = vpop.f32.mrf.mxu0
        %v6124 = vadd.f32 0.0, %v6123
        %v6125 = vpop.f32.mrf.mxu0
        %6126 = vmatprep.mubr.bf16.mxu0 0
        %6127 = vmatmul.mubr.bf16.gmra.mxu0 %v6002
        %v6128 = vpop.f32.mrf.mxu0
        %v6129 = vadd.f32 0.0, %v6128
        %v6130 = vpop.f32.mrf.mxu0
        %v6131 = vpop.f32.mrf.mxu0
        %v6132 = vadd.f32 0.0, %v6131
        %v6133 = vpop.f32.mrf.mxu0
        %6134 = vmatprep.mubr.bf16.mxu0 0
        %6135 = vmatmul.mubr.bf16.gmra.mxu0 %v6005
        %v6136 = vpop.f32.mrf.mxu0
        %v6137 = vadd.f32 0.0, %v6136
        %v6138 = vpop.f32.mrf.mxu0
        %v6139 = vpop.f32.mrf.mxu0
        %v6140 = vadd.f32 0.0, %v6139
        %v6141 = vpop.f32.mrf.mxu0
        %6142 = vmatprep.mubr.bf16.mxu0 0
        %6143 = vmatmul.mubr.bf16.gmra.mxu0 %v6008
        %v6144 = vpop.f32.mrf.mxu0
        %v6145 = vadd.f32 0.0, %v6144
        %v6146 = vpop.f32.mrf.mxu0
        %v6147 = vpop.f32.mrf.mxu0
        %v6148 = vadd.f32 0.0, %v6147
        %v6149 = vpop.f32.mrf.mxu0
        %6150 = vmatprep.mubr.bf16.mxu0 0
        %6151 = vmatmul.mubr.bf16.gmra.mxu0 %v6011
        %v6152 = vpop.f32.mrf.mxu0
        %v6153 = vadd.f32 0.0, %v6152
        %v6154 = vpop.f32.mrf.mxu0
        %v6155 = vpop.f32.mrf.mxu0
        %v6156 = vadd.f32 0.0, %v6155
        %v6157 = vpop.f32.mrf.mxu0
        %6158 = vmatprep.mubr.bf16.mxu0 0
        %6159 = vmatmul.mubr.bf16.gmra.mxu0 %v6014
        %v6160 = vpop.f32.mrf.mxu0
        %v6161 = vadd.f32 0.0, %v6160
        %v6162 = vpop.f32.mrf.mxu0
        %v6163 = vpop.f32.mrf.mxu0
        %v6164 = vadd.f32 0.0, %v6163
        %v6165 = vpop.f32.mrf.mxu0
        %6166 = vmatprep.mubr.bf16.mxu0 0
        %6167 = vmatmul.mubr.bf16.gmra.mxu0 %v6017
        %v6168 = vpop.f32.mrf.mxu0
        %v6169 = vadd.f32 0.0, %v6168
        %v6170 = vpop.f32.mrf.mxu0
        %v6171 = vpop.f32.mrf.mxu0
        %v6172 = vadd.f32 0.0, %v6171
        %v6173 = vpop.f32.mrf.mxu0
        %6174 = vmatprep.mubr.bf16.mxu0 0
        %6175 = vmatmul.mubr.bf16.gmra.mxu0 %v6020
        %v6176 = vpop.f32.mrf.mxu0
        %v6177 = vadd.f32 0.0, %v6176
        %v6178 = vpop.f32.mrf.mxu0
        %v6179 = vpop.f32.mrf.mxu0
        %v6180 = vadd.f32 0.0, %v6179
        %v6181 = vpop.f32.mrf.mxu0
        %6182 = vdwg.mxu0
        %v6183 = vadd.f32 %v5885, %v6057
        %v6184 = vadd.f32 %v5886, %v6060
        %v6185 = vadd.f32 %v5887, %v6065
        %v6186 = vadd.f32 %v5888, %v6068
        %v6187 = vadd.f32 %v5889, %v6073
        %v6188 = vadd.f32 %v5890, %v6076
        %v6189 = vadd.f32 %v5891, %v6081
        %v6190 = vadd.f32 %v5892, %v6084
        %v6191 = vadd.f32 %v5893, %v6089
        %v6192 = vadd.f32 %v5894, %v6092
        %v6193 = vadd.f32 %v5895, %v6097
        %v6194 = vadd.f32 %v5896, %v6100
        %v6195 = vadd.f32 %v5897, %v6105
        %v6196 = vadd.f32 %v5898, %v6108
        %v6197 = vadd.f32 %v5899, %v6113
        %v6198 = vadd.f32 %v5900, %v6116
        %v6199 = vadd.f32 %v5901, %v6121
        %v6200 = vadd.f32 %v5902, %v6124
        %v6201 = vadd.f32 %v5903, %v6129
        %v6202 = vadd.f32 %v5904, %v6132
        %v6203 = vadd.f32 %v5905, %v6137
        %v6204 = vadd.f32 %v5906, %v6140
        %v6205 = vadd.f32 %v5907, %v6145
        %v6206 = vadd.f32 %v5908, %v6148
        %v6207 = vadd.f32 %v5909, %v6153
        %v6208 = vadd.f32 %v5910, %v6156
        %v6209 = vadd.f32 %v5911, %v6161
        %v6210 = vadd.f32 %v5912, %v6164
        %v6211 = vadd.f32 %v5913, %v6169
        %v6212 = vadd.f32 %v5914, %v6172
        %v6213 = vadd.f32 %v5915, %v6177
        %v6214 = vadd.f32 %v5916, %v6180
        %v6215 = vld [vmem:[%s2672 + $0x1] sm:$0xff]
        %v6216 = vld [vmem:[%s2672 + $0x9] sm:$0xff]
        %v6217 = vld [vmem:[%s2672 + $0x19] sm:$0xff]
        %v6218 = vld [vmem:[%s2672 + $0x21] sm:$0xff]
        %v6219 = vld [vmem:[%s2672 + $0x31] sm:$0xff]
        %v6220 = vld [vmem:[%s2672 + $0x39] sm:$0xff]
        %v6221 = vld [vmem:[%s2672 + $0x49] sm:$0xff]
        %v6222 = vld [vmem:[%s2672 + $0x51] sm:$0xff]
        %v6223 = vld [vmem:[%s2672 + $0x61] sm:$0xff]
        %v6224 = vld [vmem:[%s2672 + $0x69] sm:$0xff]
        %v6225 = vld [vmem:[%s2672 + $0x79] sm:$0xff]
        %v6226 = vld [vmem:[%s2672 + $0x81] sm:$0xff]
        %v6227 = vld [vmem:[%s2672 + $0x91] sm:$0xff]
        %v6228 = vld [vmem:[%s2672 + $0x99] sm:$0xff]
        %v6229 = vld [vmem:[%s2672 + $0xa9] sm:$0xff]
        %v6230 = vld [vmem:[%s2672 + $0xb1] sm:$0xff]
        %v6231 = vld [vmem:[%s2672 + $0xc1] sm:$0xff]
        %v6232 = vld [vmem:[%s2672 + $0xc9] sm:$0xff]
        %v6233 = vld [vmem:[%s2672 + $0xd9] sm:$0xff]
        %v6234 = vld [vmem:[%s2672 + $0xe1] sm:$0xff]
        %v6235 = vld [vmem:[%s2672 + $0xf1] sm:$0xff]
        %v6236 = vld [vmem:[%s2672 + $0xf9] sm:$0xff]
        %v6237 = vld [vmem:[%s2672 + $0x109] sm:$0xff]
        %v6238 = vld [vmem:[%s2672 + $0x111] sm:$0xff]
        %v6239 = vld [vmem:[%s2672 + $0x121] sm:$0xff]
        %v6240 = vld [vmem:[%s2672 + $0x129] sm:$0xff]
        %v6241 = vld [vmem:[%s2672 + $0x139] sm:$0xff]
        %v6242 = vld [vmem:[%s2672 + $0x141] sm:$0xff]
        %v6243 = vld [vmem:[%s2672 + $0x151] sm:$0xff]
        %v6244 = vld [vmem:[%s2672 + $0x159] sm:$0xff]
        %v6245 = vld [vmem:[%s2672 + $0x169] sm:$0xff]
        %v6246 = vld [vmem:[%s2672 + $0x171] sm:$0xff]
        %v6247 = vpack.c.bf16 %v6216, %v6215
        %v6248 = vpack.c.bf16 %v6218, %v6217
        %v6249 = vpack.c.bf16 %v6220, %v6219
        %v6250 = vpack.c.bf16 %v6222, %v6221
        %v6251 = vpack.c.bf16 %v6224, %v6223
        %v6252 = vpack.c.bf16 %v6226, %v6225
        %v6253 = vpack.c.bf16 %v6228, %v6227
        %v6254 = vpack.c.bf16 %v6230, %v6229
        %v6255 = vpack.c.bf16 %v6232, %v6231
        %v6256 = vpack.c.bf16 %v6234, %v6233
        %v6257 = vpack.c.bf16 %v6236, %v6235
        %v6258 = vpack.c.bf16 %v6238, %v6237
        %v6259 = vpack.c.bf16 %v6240, %v6239
        %v6260 = vpack.c.bf16 %v6242, %v6241
        %v6261 = vpack.c.bf16 %v6244, %v6243
        %v6262 = vpack.c.bf16 %v6246, %v6245
        %s6263 = scalar_lea.vmem %s6, 128
        %v6264 = vld [vmem:[%s6263] sm:$0xf]
        %v6265 = vld [vmem:[%s6263 + $0x4] sm:$0xf]
        %v6268 = vunpack.c.l.b16 %v6264
        %v6269 = vunpack.c.l.b16 %v6265
        %v6270 = vpack.c.b16 %v6269, %v6268
        %v6273 = vsel %vm377, %v6247, 0
        %v6276 = vsel %vm377, %v6248, 0
        %v6279 = vsel %vm377, %v6249, 0
        %v6282 = vsel %vm377, %v6250, 0
        %v6285 = vsel %vm377, %v6251, 0
        %v6288 = vsel %vm377, %v6252, 0
        %v6291 = vsel %vm377, %v6253, 0
        %v6294 = vsel %vm377, %v6254, 0
        %v6297 = vsel %vm377, %v6255, 0
        %v6300 = vsel %vm377, %v6256, 0
        %v6303 = vsel %vm377, %v6257, 0
        %v6306 = vsel %vm377, %v6258, 0
        %v6309 = vsel %vm377, %v6259, 0
        %v6312 = vsel %vm377, %v6260, 0
        %v6315 = vsel %vm377, %v6261, 0
        %v6318 = vsel %vm377, %v6262, 0
        %6320 = vmatprep.subr.bf16.mxu0 0
        %6321 = vmatpush1.bf16.msra.mxu0 0
        %6322 = vmatprep.subr.bf16.mxu0 0
        %6323 = vmatpush1.bf16.msra.mxu0 0
        %6324 = vmatprep.subr.bf16.mxu0 0
        %6325 = vmatpush1.bf16.msra.mxu0 0
        %6326 = vmatprep.subr.bf16.mxu0 0
        %6327 = vmatpush1.bf16.msra.mxu0 0
        %6328 = vmatprep.subr.bf16.mxu0 0
        %6329 = vmatpush1.bf16.msra.mxu0 0
        %6330 = vmatprep.subr.bf16.mxu0 0
        %6331 = vmatpush1.bf16.msra.mxu0 0
        %6332 = vmatprep.subr.bf16.mxu0 0
        %6333 = vmatpush1.bf16.msra.mxu0 0
        %6334 = vmatprep.subr.bf16.mxu0 0
        %6335 = vmatpush1.bf16.msra.mxu0 %v6270
        %6336 = vmatprep.subr.bf16.mxu0 0
        %6337 = vmatpush2.bf16.msra.mxu0 0
        %6338 = vmatprep.subr.bf16.mxu0 0
        %6339 = vmatpush2.bf16.msra.mxu0 0
        %6340 = vmatprep.subr.bf16.mxu0 0
        %6341 = vmatpush2.bf16.msra.mxu0 0
        %6342 = vmatprep.subr.bf16.mxu0 0
        %6343 = vmatpush2.bf16.msra.mxu0 0
        %6344 = vmatprep.subr.bf16.mxu0 0
        %6345 = vmatpush2.bf16.msra.mxu0 0
        %6346 = vmatprep.subr.bf16.mxu0 0
        %6347 = vmatpush2.bf16.msra.mxu0 0
        %6348 = vmatprep.subr.bf16.mxu0 0
        %6349 = vmatpush2.bf16.msra.mxu0 0
        %6350 = vmatprep.subr.bf16.mxu0 0
        %6351 = vmatpush2.bf16.msra.mxu0 0
        %6352 = vmatprep.mubr.bf16.mxu0 0
        %6353 = vmatmul.mubr.bf16.gmra.mxu0 %v6273
        %v6354 = vpop.f32.mrf.mxu0
        %v6355 = vadd.f32 0.0, %v6354
        %v6356 = vpop.f32.mrf.mxu0
        %v6357 = vpop.f32.mrf.mxu0
        %v6358 = vadd.f32 0.0, %v6357
        %v6359 = vpop.f32.mrf.mxu0
        %6360 = vmatprep.mubr.bf16.mxu0 0
        %6361 = vmatmul.mubr.bf16.gmra.mxu0 %v6276
        %v6362 = vpop.f32.mrf.mxu0
        %v6363 = vadd.f32 0.0, %v6362
        %v6364 = vpop.f32.mrf.mxu0
        %v6365 = vpop.f32.mrf.mxu0
        %v6366 = vadd.f32 0.0, %v6365
        %v6367 = vpop.f32.mrf.mxu0
        %6368 = vmatprep.mubr.bf16.mxu0 0
        %6369 = vmatmul.mubr.bf16.gmra.mxu0 %v6279
        %v6370 = vpop.f32.mrf.mxu0
        %v6371 = vadd.f32 0.0, %v6370
        %v6372 = vpop.f32.mrf.mxu0
        %v6373 = vpop.f32.mrf.mxu0
        %v6374 = vadd.f32 0.0, %v6373
        %v6375 = vpop.f32.mrf.mxu0
        %6376 = vmatprep.mubr.bf16.mxu0 0
        %6377 = vmatmul.mubr.bf16.gmra.mxu0 %v6282
        %v6378 = vpop.f32.mrf.mxu0
        %v6379 = vadd.f32 0.0, %v6378
        %v6380 = vpop.f32.mrf.mxu0
        %v6381 = vpop.f32.mrf.mxu0
        %v6382 = vadd.f32 0.0, %v6381
        %v6383 = vpop.f32.mrf.mxu0
        %6384 = vmatprep.mubr.bf16.mxu0 0
        %6385 = vmatmul.mubr.bf16.gmra.mxu0 %v6285
        %v6386 = vpop.f32.mrf.mxu0
        %v6387 = vadd.f32 0.0, %v6386
        %v6388 = vpop.f32.mrf.mxu0
        %v6389 = vpop.f32.mrf.mxu0
        %v6390 = vadd.f32 0.0, %v6389
        %v6391 = vpop.f32.mrf.mxu0
        %6392 = vmatprep.mubr.bf16.mxu0 0
        %6393 = vmatmul.mubr.bf16.gmra.mxu0 %v6288
        %v6394 = vpop.f32.mrf.mxu0
        %v6395 = vadd.f32 0.0, %v6394
        %v6396 = vpop.f32.mrf.mxu0
        %v6397 = vpop.f32.mrf.mxu0
        %v6398 = vadd.f32 0.0, %v6397
        %v6399 = vpop.f32.mrf.mxu0
        %6400 = vmatprep.mubr.bf16.mxu0 0
        %6401 = vmatmul.mubr.bf16.gmra.mxu0 %v6291
        %v6402 = vpop.f32.mrf.mxu0
        %v6403 = vadd.f32 0.0, %v6402
        %v6404 = vpop.f32.mrf.mxu0
        %v6405 = vpop.f32.mrf.mxu0
        %v6406 = vadd.f32 0.0, %v6405
        %v6407 = vpop.f32.mrf.mxu0
        %6408 = vmatprep.mubr.bf16.mxu0 0
        %6409 = vmatmul.mubr.bf16.gmra.mxu0 %v6294
        %v6410 = vpop.f32.mrf.mxu0
        %v6411 = vadd.f32 0.0, %v6410
        %v6412 = vpop.f32.mrf.mxu0
        %v6413 = vpop.f32.mrf.mxu0
        %v6414 = vadd.f32 0.0, %v6413
        %v6415 = vpop.f32.mrf.mxu0
        %6416 = vmatprep.mubr.bf16.mxu0 0
        %6417 = vmatmul.mubr.bf16.gmra.mxu0 %v6297
        %v6418 = vpop.f32.mrf.mxu0
        %v6419 = vadd.f32 0.0, %v6418
        %v6420 = vpop.f32.mrf.mxu0
        %v6421 = vpop.f32.mrf.mxu0
        %v6422 = vadd.f32 0.0, %v6421
        %v6423 = vpop.f32.mrf.mxu0
        %6424 = vmatprep.mubr.bf16.mxu0 0
        %6425 = vmatmul.mubr.bf16.gmra.mxu0 %v6300
        %v6426 = vpop.f32.mrf.mxu0
        %v6427 = vadd.f32 0.0, %v6426
        %v6428 = vpop.f32.mrf.mxu0
        %v6429 = vpop.f32.mrf.mxu0
        %v6430 = vadd.f32 0.0, %v6429
        %v6431 = vpop.f32.mrf.mxu0
        %6432 = vmatprep.mubr.bf16.mxu0 0
        %6433 = vmatmul.mubr.bf16.gmra.mxu0 %v6303
        %v6434 = vpop.f32.mrf.mxu0
        %v6435 = vadd.f32 0.0, %v6434
        %v6436 = vpop.f32.mrf.mxu0
        %v6437 = vpop.f32.mrf.mxu0
        %v6438 = vadd.f32 0.0, %v6437
        %v6439 = vpop.f32.mrf.mxu0
        %6440 = vmatprep.mubr.bf16.mxu0 0
        %6441 = vmatmul.mubr.bf16.gmra.mxu0 %v6306
        %v6442 = vpop.f32.mrf.mxu0
        %v6443 = vadd.f32 0.0, %v6442
        %v6444 = vpop.f32.mrf.mxu0
        %v6445 = vpop.f32.mrf.mxu0
        %v6446 = vadd.f32 0.0, %v6445
        %v6447 = vpop.f32.mrf.mxu0
        %6448 = vmatprep.mubr.bf16.mxu0 0
        %6449 = vmatmul.mubr.bf16.gmra.mxu0 %v6309
        %v6450 = vpop.f32.mrf.mxu0
        %v6451 = vadd.f32 0.0, %v6450
        %v6452 = vpop.f32.mrf.mxu0
        %v6453 = vpop.f32.mrf.mxu0
        %v6454 = vadd.f32 0.0, %v6453
        %v6455 = vpop.f32.mrf.mxu0
        %6456 = vmatprep.mubr.bf16.mxu0 0
        %6457 = vmatmul.mubr.bf16.gmra.mxu0 %v6312
        %v6458 = vpop.f32.mrf.mxu0
        %v6459 = vadd.f32 0.0, %v6458
        %v6460 = vpop.f32.mrf.mxu0
        %v6461 = vpop.f32.mrf.mxu0
        %v6462 = vadd.f32 0.0, %v6461
        %v6463 = vpop.f32.mrf.mxu0
        %6464 = vmatprep.mubr.bf16.mxu0 0
        %6465 = vmatmul.mubr.bf16.gmra.mxu0 %v6315
        %v6466 = vpop.f32.mrf.mxu0
        %v6467 = vadd.f32 0.0, %v6466
        %v6468 = vpop.f32.mrf.mxu0
        %v6469 = vpop.f32.mrf.mxu0
        %v6470 = vadd.f32 0.0, %v6469
        %v6471 = vpop.f32.mrf.mxu0
        %6472 = vmatprep.mubr.bf16.mxu0 0
        %6473 = vmatmul.mubr.bf16.gmra.mxu0 %v6318
        %v6474 = vpop.f32.mrf.mxu0
        %v6475 = vadd.f32 0.0, %v6474
        %v6476 = vpop.f32.mrf.mxu0
        %v6477 = vpop.f32.mrf.mxu0
        %v6478 = vadd.f32 0.0, %v6477
        %v6479 = vpop.f32.mrf.mxu0
        %6480 = vdwg.mxu0
        %v6481 = vadd.f32 %v6183, %v6355
        %v6482 = vadd.f32 %v6184, %v6358
        %v6483 = vadd.f32 %v6185, %v6363
        %v6484 = vadd.f32 %v6186, %v6366
        %v6485 = vadd.f32 %v6187, %v6371
        %v6486 = vadd.f32 %v6188, %v6374
        %v6487 = vadd.f32 %v6189, %v6379
        %v6488 = vadd.f32 %v6190, %v6382
        %v6489 = vadd.f32 %v6191, %v6387
        %v6490 = vadd.f32 %v6192, %v6390
        %v6491 = vadd.f32 %v6193, %v6395
        %v6492 = vadd.f32 %v6194, %v6398
        %v6493 = vadd.f32 %v6195, %v6403
        %v6494 = vadd.f32 %v6196, %v6406
        %v6495 = vadd.f32 %v6197, %v6411
        %v6496 = vadd.f32 %v6198, %v6414
        %v6497 = vadd.f32 %v6199, %v6419
        %v6498 = vadd.f32 %v6200, %v6422
        %v6499 = vadd.f32 %v6201, %v6427
        %v6500 = vadd.f32 %v6202, %v6430
        %v6501 = vadd.f32 %v6203, %v6435
        %v6502 = vadd.f32 %v6204, %v6438
        %v6503 = vadd.f32 %v6205, %v6443
        %v6504 = vadd.f32 %v6206, %v6446
        %v6505 = vadd.f32 %v6207, %v6451
        %v6506 = vadd.f32 %v6208, %v6454
        %v6507 = vadd.f32 %v6209, %v6459
        %v6508 = vadd.f32 %v6210, %v6462
        %v6509 = vadd.f32 %v6211, %v6467
        %v6510 = vadd.f32 %v6212, %v6470
        %v6511 = vadd.f32 %v6213, %v6475
        %v6512 = vadd.f32 %v6214, %v6478
        %v6513 = vld [vmem:[%s2672 + $0x2] sm:$0xff]
        %v6514 = vld [vmem:[%s2672 + $0xa] sm:$0xff]
        %v6515 = vld [vmem:[%s2672 + $0x1a] sm:$0xff]
        %v6516 = vld [vmem:[%s2672 + $0x22] sm:$0xff]
        %v6517 = vld [vmem:[%s2672 + $0x32] sm:$0xff]
        %v6518 = vld [vmem:[%s2672 + $0x3a] sm:$0xff]
        %v6519 = vld [vmem:[%s2672 + $0x4a] sm:$0xff]
        %v6520 = vld [vmem:[%s2672 + $0x52] sm:$0xff]
        %v6521 = vld [vmem:[%s2672 + $0x62] sm:$0xff]
        %v6522 = vld [vmem:[%s2672 + $0x6a] sm:$0xff]
        %v6523 = vld [vmem:[%s2672 + $0x7a] sm:$0xff]
        %v6524 = vld [vmem:[%s2672 + $0x82] sm:$0xff]
        %v6525 = vld [vmem:[%s2672 + $0x92] sm:$0xff]
        %v6526 = vld [vmem:[%s2672 + $0x9a] sm:$0xff]
        %v6527 = vld [vmem:[%s2672 + $0xaa] sm:$0xff]
        %v6528 = vld [vmem:[%s2672 + $0xb2] sm:$0xff]
        %v6529 = vld [vmem:[%s2672 + $0xc2] sm:$0xff]
        %v6530 = vld [vmem:[%s2672 + $0xca] sm:$0xff]
        %v6531 = vld [vmem:[%s2672 + $0xda] sm:$0xff]
        %v6532 = vld [vmem:[%s2672 + $0xe2] sm:$0xff]
        %v6533 = vld [vmem:[%s2672 + $0xf2] sm:$0xff]
        %v6534 = vld [vmem:[%s2672 + $0xfa] sm:$0xff]
        %v6535 = vld [vmem:[%s2672 + $0x10a] sm:$0xff]
        %v6536 = vld [vmem:[%s2672 + $0x112] sm:$0xff]
        %v6537 = vld [vmem:[%s2672 + $0x122] sm:$0xff]
        %v6538 = vld [vmem:[%s2672 + $0x12a] sm:$0xff]
        %v6539 = vld [vmem:[%s2672 + $0x13a] sm:$0xff]
        %v6540 = vld [vmem:[%s2672 + $0x142] sm:$0xff]
        %v6541 = vld [vmem:[%s2672 + $0x152] sm:$0xff]
        %v6542 = vld [vmem:[%s2672 + $0x15a] sm:$0xff]
        %v6543 = vld [vmem:[%s2672 + $0x16a] sm:$0xff]
        %v6544 = vld [vmem:[%s2672 + $0x172] sm:$0xff]
        %v6545 = vpack.c.bf16 %v6514, %v6513
        %v6546 = vpack.c.bf16 %v6516, %v6515
        %v6547 = vpack.c.bf16 %v6518, %v6517
        %v6548 = vpack.c.bf16 %v6520, %v6519
        %v6549 = vpack.c.bf16 %v6522, %v6521
        %v6550 = vpack.c.bf16 %v6524, %v6523
        %v6551 = vpack.c.bf16 %v6526, %v6525
        %v6552 = vpack.c.bf16 %v6528, %v6527
        %v6553 = vpack.c.bf16 %v6530, %v6529
        %v6554 = vpack.c.bf16 %v6532, %v6531
        %v6555 = vpack.c.bf16 %v6534, %v6533
        %v6556 = vpack.c.bf16 %v6536, %v6535
        %v6557 = vpack.c.bf16 %v6538, %v6537
        %v6558 = vpack.c.bf16 %v6540, %v6539
        %v6559 = vpack.c.bf16 %v6542, %v6541
        %v6560 = vpack.c.bf16 %v6544, %v6543
        %s6561 = scalar_lea.vmem %s6, 136
        %v6562 = vld [vmem:[%s6561] sm:$0xf]
        %v6563 = vld [vmem:[%s6561 + $0x4] sm:$0xf]
        %v6566 = vunpack.c.l.b16 %v6562
        %v6567 = vunpack.c.l.b16 %v6563
        %v6568 = vpack.c.b16 %v6567, %v6566
        %v6571 = vsel %vm377, %v6545, 0
        %v6574 = vsel %vm377, %v6546, 0
        %v6577 = vsel %vm377, %v6547, 0
        %v6580 = vsel %vm377, %v6548, 0
        %v6583 = vsel %vm377, %v6549, 0
        %v6586 = vsel %vm377, %v6550, 0
        %v6589 = vsel %vm377, %v6551, 0
        %v6592 = vsel %vm377, %v6552, 0
        %v6595 = vsel %vm377, %v6553, 0
        %v6598 = vsel %vm377, %v6554, 0
        %v6601 = vsel %vm377, %v6555, 0
        %v6604 = vsel %vm377, %v6556, 0
        %v6607 = vsel %vm377, %v6557, 0
        %v6610 = vsel %vm377, %v6558, 0
        %v6613 = vsel %vm377, %v6559, 0
        %v6616 = vsel %vm377, %v6560, 0
        %6618 = vmatprep.subr.bf16.mxu0 0
        %6619 = vmatpush1.bf16.msra.mxu0 0
        %6620 = vmatprep.subr.bf16.mxu0 0
        %6621 = vmatpush1.bf16.msra.mxu0 0
        %6622 = vmatprep.subr.bf16.mxu0 0
        %6623 = vmatpush1.bf16.msra.mxu0 0
        %6624 = vmatprep.subr.bf16.mxu0 0
        %6625 = vmatpush1.bf16.msra.mxu0 0
        %6626 = vmatprep.subr.bf16.mxu0 0
        %6627 = vmatpush1.bf16.msra.mxu0 0
        %6628 = vmatprep.subr.bf16.mxu0 0
        %6629 = vmatpush1.bf16.msra.mxu0 0
        %6630 = vmatprep.subr.bf16.mxu0 0
        %6631 = vmatpush1.bf16.msra.mxu0 0
        %6632 = vmatprep.subr.bf16.mxu0 0
        %6633 = vmatpush1.bf16.msra.mxu0 %v6568
        %6634 = vmatprep.subr.bf16.mxu0 0
        %6635 = vmatpush2.bf16.msra.mxu0 0
        %6636 = vmatprep.subr.bf16.mxu0 0
        %6637 = vmatpush2.bf16.msra.mxu0 0
        %6638 = vmatprep.subr.bf16.mxu0 0
        %6639 = vmatpush2.bf16.msra.mxu0 0
        %6640 = vmatprep.subr.bf16.mxu0 0
        %6641 = vmatpush2.bf16.msra.mxu0 0
        %6642 = vmatprep.subr.bf16.mxu0 0
        %6643 = vmatpush2.bf16.msra.mxu0 0
        %6644 = vmatprep.subr.bf16.mxu0 0
        %6645 = vmatpush2.bf16.msra.mxu0 0
        %6646 = vmatprep.subr.bf16.mxu0 0
        %6647 = vmatpush2.bf16.msra.mxu0 0
        %6648 = vmatprep.subr.bf16.mxu0 0
        %6649 = vmatpush2.bf16.msra.mxu0 0
        %6650 = vmatprep.mubr.bf16.mxu0 0
        %6651 = vmatmul.mubr.bf16.gmra.mxu0 %v6571
        %v6652 = vpop.f32.mrf.mxu0
        %v6653 = vadd.f32 0.0, %v6652
        %v6654 = vpop.f32.mrf.mxu0
        %v6655 = vpop.f32.mrf.mxu0
        %v6656 = vadd.f32 0.0, %v6655
        %v6657 = vpop.f32.mrf.mxu0
        %6658 = vmatprep.mubr.bf16.mxu0 0
        %6659 = vmatmul.mubr.bf16.gmra.mxu0 %v6574
        %v6660 = vpop.f32.mrf.mxu0
        %v6661 = vadd.f32 0.0, %v6660
        %v6662 = vpop.f32.mrf.mxu0
        %v6663 = vpop.f32.mrf.mxu0
        %v6664 = vadd.f32 0.0, %v6663
        %v6665 = vpop.f32.mrf.mxu0
        %6666 = vmatprep.mubr.bf16.mxu0 0
        %6667 = vmatmul.mubr.bf16.gmra.mxu0 %v6577
        %v6668 = vpop.f32.mrf.mxu0
        %v6669 = vadd.f32 0.0, %v6668
        %v6670 = vpop.f32.mrf.mxu0
        %v6671 = vpop.f32.mrf.mxu0
        %v6672 = vadd.f32 0.0, %v6671
        %v6673 = vpop.f32.mrf.mxu0
        %6674 = vmatprep.mubr.bf16.mxu0 0
        %6675 = vmatmul.mubr.bf16.gmra.mxu0 %v6580
        %v6676 = vpop.f32.mrf.mxu0
        %v6677 = vadd.f32 0.0, %v6676
        %v6678 = vpop.f32.mrf.mxu0
        %v6679 = vpop.f32.mrf.mxu0
        %v6680 = vadd.f32 0.0, %v6679
        %v6681 = vpop.f32.mrf.mxu0
        %6682 = vmatprep.mubr.bf16.mxu0 0
        %6683 = vmatmul.mubr.bf16.gmra.mxu0 %v6583
        %v6684 = vpop.f32.mrf.mxu0
        %v6685 = vadd.f32 0.0, %v6684
        %v6686 = vpop.f32.mrf.mxu0
        %v6687 = vpop.f32.mrf.mxu0
        %v6688 = vadd.f32 0.0, %v6687
        %v6689 = vpop.f32.mrf.mxu0
        %6690 = vmatprep.mubr.bf16.mxu0 0
        %6691 = vmatmul.mubr.bf16.gmra.mxu0 %v6586
        %v6692 = vpop.f32.mrf.mxu0
        %v6693 = vadd.f32 0.0, %v6692
        %v6694 = vpop.f32.mrf.mxu0
        %v6695 = vpop.f32.mrf.mxu0
        %v6696 = vadd.f32 0.0, %v6695
        %v6697 = vpop.f32.mrf.mxu0
        %6698 = vmatprep.mubr.bf16.mxu0 0
        %6699 = vmatmul.mubr.bf16.gmra.mxu0 %v6589
        %v6700 = vpop.f32.mrf.mxu0
        %v6701 = vadd.f32 0.0, %v6700
        %v6702 = vpop.f32.mrf.mxu0
        %v6703 = vpop.f32.mrf.mxu0
        %v6704 = vadd.f32 0.0, %v6703
        %v6705 = vpop.f32.mrf.mxu0
        %6706 = vmatprep.mubr.bf16.mxu0 0
        %6707 = vmatmul.mubr.bf16.gmra.mxu0 %v6592
        %v6708 = vpop.f32.mrf.mxu0
        %v6709 = vadd.f32 0.0, %v6708
        %v6710 = vpop.f32.mrf.mxu0
        %v6711 = vpop.f32.mrf.mxu0
        %v6712 = vadd.f32 0.0, %v6711
        %v6713 = vpop.f32.mrf.mxu0
        %6714 = vmatprep.mubr.bf16.mxu0 0
        %6715 = vmatmul.mubr.bf16.gmra.mxu0 %v6595
        %v6716 = vpop.f32.mrf.mxu0
        %v6717 = vadd.f32 0.0, %v6716
        %v6718 = vpop.f32.mrf.mxu0
        %v6719 = vpop.f32.mrf.mxu0
        %v6720 = vadd.f32 0.0, %v6719
        %v6721 = vpop.f32.mrf.mxu0
        %6722 = vmatprep.mubr.bf16.mxu0 0
        %6723 = vmatmul.mubr.bf16.gmra.mxu0 %v6598
        %v6724 = vpop.f32.mrf.mxu0
        %v6725 = vadd.f32 0.0, %v6724
        %v6726 = vpop.f32.mrf.mxu0
        %v6727 = vpop.f32.mrf.mxu0
        %v6728 = vadd.f32 0.0, %v6727
        %v6729 = vpop.f32.mrf.mxu0
        %6730 = vmatprep.mubr.bf16.mxu0 0
        %6731 = vmatmul.mubr.bf16.gmra.mxu0 %v6601
        %v6732 = vpop.f32.mrf.mxu0
        %v6733 = vadd.f32 0.0, %v6732
        %v6734 = vpop.f32.mrf.mxu0
        %v6735 = vpop.f32.mrf.mxu0
        %v6736 = vadd.f32 0.0, %v6735
        %v6737 = vpop.f32.mrf.mxu0
        %6738 = vmatprep.mubr.bf16.mxu0 0
        %6739 = vmatmul.mubr.bf16.gmra.mxu0 %v6604
        %v6740 = vpop.f32.mrf.mxu0
        %v6741 = vadd.f32 0.0, %v6740
        %v6742 = vpop.f32.mrf.mxu0
        %v6743 = vpop.f32.mrf.mxu0
        %v6744 = vadd.f32 0.0, %v6743
        %v6745 = vpop.f32.mrf.mxu0
        %6746 = vmatprep.mubr.bf16.mxu0 0
        %6747 = vmatmul.mubr.bf16.gmra.mxu0 %v6607
        %v6748 = vpop.f32.mrf.mxu0
        %v6749 = vadd.f32 0.0, %v6748
        %v6750 = vpop.f32.mrf.mxu0
        %v6751 = vpop.f32.mrf.mxu0
        %v6752 = vadd.f32 0.0, %v6751
        %v6753 = vpop.f32.mrf.mxu0
        %6754 = vmatprep.mubr.bf16.mxu0 0
        %6755 = vmatmul.mubr.bf16.gmra.mxu0 %v6610
        %v6756 = vpop.f32.mrf.mxu0
        %v6757 = vadd.f32 0.0, %v6756
        %v6758 = vpop.f32.mrf.mxu0
        %v6759 = vpop.f32.mrf.mxu0
        %v6760 = vadd.f32 0.0, %v6759
        %v6761 = vpop.f32.mrf.mxu0
        %6762 = vmatprep.mubr.bf16.mxu0 0
        %6763 = vmatmul.mubr.bf16.gmra.mxu0 %v6613
        %v6764 = vpop.f32.mrf.mxu0
        %v6765 = vadd.f32 0.0, %v6764
        %v6766 = vpop.f32.mrf.mxu0
        %v6767 = vpop.f32.mrf.mxu0
        %v6768 = vadd.f32 0.0, %v6767
        %v6769 = vpop.f32.mrf.mxu0
        %6770 = vmatprep.mubr.bf16.mxu0 0
        %6771 = vmatmul.mubr.bf16.gmra.mxu0 %v6616
        %v6772 = vpop.f32.mrf.mxu0
        %v6773 = vadd.f32 0.0, %v6772
        %v6774 = vpop.f32.mrf.mxu0
        %v6775 = vpop.f32.mrf.mxu0
        %v6776 = vadd.f32 0.0, %v6775
        %v6777 = vpop.f32.mrf.mxu0
        %6778 = vdwg.mxu0
        %v6779 = vadd.f32 %v6481, %v6653
        %v6780 = vadd.f32 %v6482, %v6656
        %v6781 = vadd.f32 %v6483, %v6661
        %v6782 = vadd.f32 %v6484, %v6664
        %v6783 = vadd.f32 %v6485, %v6669
        %v6784 = vadd.f32 %v6486, %v6672
        %v6785 = vadd.f32 %v6487, %v6677
        %v6786 = vadd.f32 %v6488, %v6680
        %v6787 = vadd.f32 %v6489, %v6685
        %v6788 = vadd.f32 %v6490, %v6688
        %v6789 = vadd.f32 %v6491, %v6693
        %v6790 = vadd.f32 %v6492, %v6696
        %v6791 = vadd.f32 %v6493, %v6701
        %v6792 = vadd.f32 %v6494, %v6704
        %v6793 = vadd.f32 %v6495, %v6709
        %v6794 = vadd.f32 %v6496, %v6712
        %v6795 = vadd.f32 %v6497, %v6717
        %v6796 = vadd.f32 %v6498, %v6720
        %v6797 = vadd.f32 %v6499, %v6725
        %v6798 = vadd.f32 %v6500, %v6728
        %v6799 = vadd.f32 %v6501, %v6733
        %v6800 = vadd.f32 %v6502, %v6736
        %v6801 = vadd.f32 %v6503, %v6741
        %v6802 = vadd.f32 %v6504, %v6744
        %v6803 = vadd.f32 %v6505, %v6749
        %v6804 = vadd.f32 %v6506, %v6752
        %v6805 = vadd.f32 %v6507, %v6757
        %v6806 = vadd.f32 %v6508, %v6760
        %v6807 = vadd.f32 %v6509, %v6765
        %v6808 = vadd.f32 %v6510, %v6768
        %v6809 = vadd.f32 %v6511, %v6773
        %v6810 = vadd.f32 %v6512, %v6776
        %v6811 = vld [vmem:[#allocation2] sm:$0xff]
        %v6812 = vld [vmem:[#allocation2 + $0x8] sm:$0xff]
        %v6813 = vld [vmem:[#allocation2 + $0x10] sm:$0xff]
        %v6814 = vld [vmem:[#allocation2 + $0x18] sm:$0xff]
        %v6815 = vld [vmem:[#allocation2 + $0x20] sm:$0xff]
        %v6816 = vld [vmem:[#allocation2 + $0x28] sm:$0xff]
        %v6817 = vld [vmem:[#allocation2 + $0x30] sm:$0xff]
        %v6818 = vld [vmem:[#allocation2 + $0x38] sm:$0xff]
        %v6819 = vld [vmem:[#allocation2 + $0x40] sm:$0xff]
        %v6820 = vld [vmem:[#allocation2 + $0x48] sm:$0xff]
        %v6821 = vld [vmem:[#allocation2 + $0x50] sm:$0xff]
        %v6822 = vld [vmem:[#allocation2 + $0x58] sm:$0xff]
        %v6823 = vld [vmem:[#allocation2 + $0x60] sm:$0xff]
        %v6824 = vld [vmem:[#allocation2 + $0x68] sm:$0xff]
        %v6825 = vld [vmem:[#allocation2 + $0x70] sm:$0xff]
        %v6826 = vld [vmem:[#allocation2 + $0x78] sm:$0xff]
        %v6827 = vld [vmem:[#allocation2 + $0x80] sm:$0xff]
        %v6828 = vld [vmem:[#allocation2 + $0x88] sm:$0xff]
        %v6829 = vld [vmem:[#allocation2 + $0x90] sm:$0xff]
        %v6830 = vld [vmem:[#allocation2 + $0x98] sm:$0xff]
        %v6831 = vld [vmem:[#allocation2 + $0xa0] sm:$0xff]
        %v6832 = vld [vmem:[#allocation2 + $0xa8] sm:$0xff]
        %v6833 = vld [vmem:[#allocation2 + $0xb0] sm:$0xff]
        %v6834 = vld [vmem:[#allocation2 + $0xb8] sm:$0xff]
        %v6835 = vld [vmem:[#allocation2 + $0xc0] sm:$0xff]
        %v6836 = vld [vmem:[#allocation2 + $0xc8] sm:$0xff]
        %v6837 = vld [vmem:[#allocation2 + $0xd0] sm:$0xff]
        %v6838 = vld [vmem:[#allocation2 + $0xd8] sm:$0xff]
        %v6839 = vld [vmem:[#allocation2 + $0xe0] sm:$0xff]
        %v6840 = vld [vmem:[#allocation2 + $0xe8] sm:$0xff]
        %v6841 = vld [vmem:[#allocation2 + $0xf0] sm:$0xff]
        %v6842 = vld [vmem:[#allocation2 + $0xf8] sm:$0xff]
        %v6843 = vadd.f32 %v6811, %v6779
        %v6844 = vadd.f32 %v6812, %v6780
        %v6845 = vadd.f32 %v6813, %v6781
        %v6846 = vadd.f32 %v6814, %v6782
        %v6847 = vadd.f32 %v6815, %v6783
        %v6848 = vadd.f32 %v6816, %v6784
        %v6849 = vadd.f32 %v6817, %v6785
        %v6850 = vadd.f32 %v6818, %v6786
        %v6851 = vadd.f32 %v6819, %v6787
        %v6852 = vadd.f32 %v6820, %v6788
        %v6853 = vadd.f32 %v6821, %v6789
        %v6854 = vadd.f32 %v6822, %v6790
        %v6855 = vadd.f32 %v6823, %v6791
        %v6856 = vadd.f32 %v6824, %v6792
        %v6857 = vadd.f32 %v6825, %v6793
        %v6858 = vadd.f32 %v6826, %v6794
        %v6859 = vadd.f32 %v6827, %v6795
        %v6860 = vadd.f32 %v6828, %v6796
        %v6861 = vadd.f32 %v6829, %v6797
        %v6862 = vadd.f32 %v6830, %v6798
        %v6863 = vadd.f32 %v6831, %v6799
        %v6864 = vadd.f32 %v6832, %v6800
        %v6865 = vadd.f32 %v6833, %v6801
        %v6866 = vadd.f32 %v6834, %v6802
        %v6867 = vadd.f32 %v6835, %v6803
        %v6868 = vadd.f32 %v6836, %v6804
        %v6869 = vadd.f32 %v6837, %v6805
        %v6870 = vadd.f32 %v6838, %v6806
        %v6871 = vadd.f32 %v6839, %v6807
        %v6872 = vadd.f32 %v6840, %v6808
        %v6873 = vadd.f32 %v6841, %v6809
        %v6874 = vadd.f32 %v6842, %v6810
        %6875 = vst [vmem:[#allocation2] sm:$0xff] %v6843
        %6876 = vst [vmem:[#allocation2 + $0x8] sm:$0xff] %v6844
        %6877 = vst [vmem:[#allocation2 + $0x10] sm:$0xff] %v6845
        %6878 = vst [vmem:[#allocation2 + $0x18] sm:$0xff] %v6846
        %6879 = vst [vmem:[#allocation2 + $0x20] sm:$0xff] %v6847
        %6880 = vst [vmem:[#allocation2 + $0x28] sm:$0xff] %v6848
        %6881 = vst [vmem:[#allocation2 + $0x30] sm:$0xff] %v6849
        %6882 = vst [vmem:[#allocation2 + $0x38] sm:$0xff] %v6850
        %6883 = vst [vmem:[#allocation2 + $0x40] sm:$0xff] %v6851
        %6884 = vst [vmem:[#allocation2 + $0x48] sm:$0xff] %v6852
        %6885 = vst [vmem:[#allocation2 + $0x50] sm:$0xff] %v6853
        %6886 = vst [vmem:[#allocation2 + $0x58] sm:$0xff] %v6854
        %6887 = vst [vmem:[#allocation2 + $0x60] sm:$0xff] %v6855
        %6888 = vst [vmem:[#allocation2 + $0x68] sm:$0xff] %v6856
        %6889 = vst [vmem:[#allocation2 + $0x70] sm:$0xff] %v6857
        %6890 = vst [vmem:[#allocation2 + $0x78] sm:$0xff] %v6858
        %6891 = vst [vmem:[#allocation2 + $0x80] sm:$0xff] %v6859
        %6892 = vst [vmem:[#allocation2 + $0x88] sm:$0xff] %v6860
        %6893 = vst [vmem:[#allocation2 + $0x90] sm:$0xff] %v6861
        %6894 = vst [vmem:[#allocation2 + $0x98] sm:$0xff] %v6862
        %6895 = vst [vmem:[#allocation2 + $0xa0] sm:$0xff] %v6863
        %6896 = vst [vmem:[#allocation2 + $0xa8] sm:$0xff] %v6864
        %6897 = vst [vmem:[#allocation2 + $0xb0] sm:$0xff] %v6865
        %6898 = vst [vmem:[#allocation2 + $0xb8] sm:$0xff] %v6866
        %6899 = vst [vmem:[#allocation2 + $0xc0] sm:$0xff] %v6867
        %6900 = vst [vmem:[#allocation2 + $0xc8] sm:$0xff] %v6868
        %6901 = vst [vmem:[#allocation2 + $0xd0] sm:$0xff] %v6869
        %6902 = vst [vmem:[#allocation2 + $0xd8] sm:$0xff] %v6870
        %6903 = vst [vmem:[#allocation2 + $0xe0] sm:$0xff] %v6871
        %6904 = vst [vmem:[#allocation2 + $0xe8] sm:$0xff] %v6872
        %6905 = vst [vmem:[#allocation2 + $0xf0] sm:$0xff] %v6873
        %6906 = vst [vmem:[#allocation2 + $0xf8] sm:$0xff] %v6874
        %v6907 = vld [vmem:[#allocation2] sm:$0xff]
        %v6908 = vld [vmem:[#allocation2 + $0x8] sm:$0xff]
        %v6909 = vld [vmem:[#allocation2 + $0x10] sm:$0xff]
        %v6910 = vld [vmem:[#allocation2 + $0x18] sm:$0xff]
        %v6911 = vld [vmem:[#allocation2 + $0x20] sm:$0xff]
        %v6912 = vld [vmem:[#allocation2 + $0x28] sm:$0xff]
        %v6913 = vld [vmem:[#allocation2 + $0x30] sm:$0xff]
        %v6914 = vld [vmem:[#allocation2 + $0x38] sm:$0xff]
        %v6915 = vld [vmem:[#allocation2 + $0x40] sm:$0xff]
        %v6916 = vld [vmem:[#allocation2 + $0x48] sm:$0xff]
        %v6917 = vld [vmem:[#allocation2 + $0x50] sm:$0xff]
        %v6918 = vld [vmem:[#allocation2 + $0x58] sm:$0xff]
        %v6919 = vld [vmem:[#allocation2 + $0x60] sm:$0xff]
        %v6920 = vld [vmem:[#allocation2 + $0x68] sm:$0xff]
        %v6921 = vld [vmem:[#allocation2 + $0x70] sm:$0xff]
        %v6922 = vld [vmem:[#allocation2 + $0x78] sm:$0xff]
        %v6923 = vld [vmem:[#allocation2 + $0x80] sm:$0xff]
        %v6924 = vld [vmem:[#allocation2 + $0x88] sm:$0xff]
        %v6925 = vld [vmem:[#allocation2 + $0x90] sm:$0xff]
        %v6926 = vld [vmem:[#allocation2 + $0x98] sm:$0xff]
        %v6927 = vld [vmem:[#allocation2 + $0xa0] sm:$0xff]
        %v6928 = vld [vmem:[#allocation2 + $0xa8] sm:$0xff]
        %v6929 = vld [vmem:[#allocation2 + $0xb0] sm:$0xff]
        %v6930 = vld [vmem:[#allocation2 + $0xb8] sm:$0xff]
        %v6931 = vld [vmem:[#allocation2 + $0xc0] sm:$0xff]
        %v6932 = vld [vmem:[#allocation2 + $0xc8] sm:$0xff]
        %v6933 = vld [vmem:[#allocation2 + $0xd0] sm:$0xff]
        %v6934 = vld [vmem:[#allocation2 + $0xd8] sm:$0xff]
        %v6935 = vld [vmem:[#allocation2 + $0xe0] sm:$0xff]
        %v6936 = vld [vmem:[#allocation2 + $0xe8] sm:$0xff]
        %v6937 = vld [vmem:[#allocation2 + $0xf0] sm:$0xff]
        %v6938 = vld [vmem:[#allocation2 + $0xf8] sm:$0xff]
        %s6939 = scalar_lea.vmem %s1, 2
        %v6940 = vld [vmem:[%s6939] sm:$0x1]
        %v6942 = vlaneseq
        %v6943 = vshrl.u32 %v6942, 7
        %v6944 = vsub.s32 0, %v6943
        %v6945 = vrot.slane %v6940, %v6944
        %v6947 = vmul.f32 %v6907, %v6945
        %v6948 = vmul.f32 %v6908, %v6945
        %v6949 = vmul.f32 %v6909, %v6945
        %v6950 = vmul.f32 %v6910, %v6945
        %v6951 = vmul.f32 %v6911, %v6945
        %v6952 = vmul.f32 %v6912, %v6945
        %v6953 = vmul.f32 %v6913, %v6945
        %v6954 = vmul.f32 %v6914, %v6945
        %v6955 = vmul.f32 %v6915, %v6945
        %v6956 = vmul.f32 %v6916, %v6945
        %v6957 = vmul.f32 %v6917, %v6945
        %v6958 = vmul.f32 %v6918, %v6945
        %v6959 = vmul.f32 %v6919, %v6945
        %v6960 = vmul.f32 %v6920, %v6945
        %v6961 = vmul.f32 %v6921, %v6945
        %v6962 = vmul.f32 %v6922, %v6945
        %v6963 = vmul.f32 %v6923, %v6945
        %v6964 = vmul.f32 %v6924, %v6945
        %v6965 = vmul.f32 %v6925, %v6945
        %v6966 = vmul.f32 %v6926, %v6945
        %v6967 = vmul.f32 %v6927, %v6945
        %v6968 = vmul.f32 %v6928, %v6945
        %v6969 = vmul.f32 %v6929, %v6945
        %v6970 = vmul.f32 %v6930, %v6945
        %v6971 = vmul.f32 %v6931, %v6945
        %v6972 = vmul.f32 %v6932, %v6945
        %v6973 = vmul.f32 %v6933, %v6945
        %v6974 = vmul.f32 %v6934, %v6945
        %v6975 = vmul.f32 %v6935, %v6945
        %v6976 = vmul.f32 %v6936, %v6945
        %v6977 = vmul.f32 %v6937, %v6945
        %v6978 = vmul.f32 %v6938, %v6945
        %s6979 = scalar_lea.vmem %s2, 2
        %v6980 = vld [vmem:[%s6979] sm:$0x1]
        %v6982 = vlaneseq
        %v6983 = vshrl.u32 %v6982, 7
        %v6984 = vsub.s32 0, %v6983
        %v6985 = vrot.slane %v6980, %v6984
        %v6987 = vadd.f32 %v6947, %v6985
        %v6988 = vadd.f32 %v6948, %v6985
        %v6989 = vadd.f32 %v6949, %v6985
        %v6990 = vadd.f32 %v6950, %v6985
        %v6991 = vadd.f32 %v6951, %v6985
        %v6992 = vadd.f32 %v6952, %v6985
        %v6993 = vadd.f32 %v6953, %v6985
        %v6994 = vadd.f32 %v6954, %v6985
        %v6995 = vadd.f32 %v6955, %v6985
        %v6996 = vadd.f32 %v6956, %v6985
        %v6997 = vadd.f32 %v6957, %v6985
        %v6998 = vadd.f32 %v6958, %v6985
        %v6999 = vadd.f32 %v6959, %v6985
        %v7000 = vadd.f32 %v6960, %v6985
        %v7001 = vadd.f32 %v6961, %v6985
        %v7002 = vadd.f32 %v6962, %v6985
        %v7003 = vadd.f32 %v6963, %v6985
        %v7004 = vadd.f32 %v6964, %v6985
        %v7005 = vadd.f32 %v6965, %v6985
        %v7006 = vadd.f32 %v6966, %v6985
        %v7007 = vadd.f32 %v6967, %v6985
        %v7008 = vadd.f32 %v6968, %v6985
        %v7009 = vadd.f32 %v6969, %v6985
        %v7010 = vadd.f32 %v6970, %v6985
        %v7011 = vadd.f32 %v6971, %v6985
        %v7012 = vadd.f32 %v6972, %v6985
        %v7013 = vadd.f32 %v6973, %v6985
        %v7014 = vadd.f32 %v6974, %v6985
        %v7015 = vadd.f32 %v6975, %v6985
        %v7016 = vadd.f32 %v6976, %v6985
        %v7017 = vadd.f32 %v6977, %v6985
        %v7018 = vadd.f32 %v6978, %v6985
        %v7019 = vmax.f32 %v6987, 0.0
        %v7020 = vmax.f32 %v6988, 0.0
        %v7021 = vmax.f32 %v6989, 0.0
        %v7022 = vmax.f32 %v6990, 0.0
        %v7023 = vmax.f32 %v6991, 0.0
        %v7024 = vmax.f32 %v6992, 0.0
        %v7025 = vmax.f32 %v6993, 0.0
        %v7026 = vmax.f32 %v6994, 0.0
        %v7027 = vmax.f32 %v6995, 0.0
        %v7028 = vmax.f32 %v6996, 0.0
        %v7029 = vmax.f32 %v6997, 0.0
        %v7030 = vmax.f32 %v6998, 0.0
        %v7031 = vmax.f32 %v6999, 0.0
        %v7032 = vmax.f32 %v7000, 0.0
        %v7033 = vmax.f32 %v7001, 0.0
        %v7034 = vmax.f32 %v7002, 0.0
        %v7035 = vmax.f32 %v7003, 0.0
        %v7036 = vmax.f32 %v7004, 0.0
        %v7037 = vmax.f32 %v7005, 0.0
        %v7038 = vmax.f32 %v7006, 0.0
        %v7039 = vmax.f32 %v7007, 0.0
        %v7040 = vmax.f32 %v7008, 0.0
        %v7041 = vmax.f32 %v7009, 0.0
        %v7042 = vmax.f32 %v7010, 0.0
        %v7043 = vmax.f32 %v7011, 0.0
        %v7044 = vmax.f32 %v7012, 0.0
        %v7045 = vmax.f32 %v7013, 0.0
        %v7046 = vmax.f32 %v7014, 0.0
        %v7047 = vmax.f32 %v7015, 0.0
        %v7048 = vmax.f32 %v7016, 0.0
        %v7049 = vmax.f32 %v7017, 0.0
        %v7050 = vmax.f32 %v7018, 0.0
        %v7051 = vpack.c.bf16 %v7020, %v7019
        %v7052 = vpack.c.bf16 %v7022, %v7021
        %v7053 = vpack.c.bf16 %v7024, %v7023
        %v7054 = vpack.c.bf16 %v7026, %v7025
        %v7055 = vpack.c.bf16 %v7028, %v7027
        %v7056 = vpack.c.bf16 %v7030, %v7029
        %v7057 = vpack.c.bf16 %v7032, %v7031
        %v7058 = vpack.c.bf16 %v7034, %v7033
        %v7059 = vpack.c.bf16 %v7036, %v7035
        %v7060 = vpack.c.bf16 %v7038, %v7037
        %v7061 = vpack.c.bf16 %v7040, %v7039
        %v7062 = vpack.c.bf16 %v7042, %v7041
        %v7063 = vpack.c.bf16 %v7044, %v7043
        %v7064 = vpack.c.bf16 %v7046, %v7045
        %v7065 = vpack.c.bf16 %v7048, %v7047
        %v7066 = vpack.c.bf16 %v7050, %v7049
        %s7067 = scalar_lea.vmem %s3, 128
        %v7068 = vld [vmem:[%s7067] sm:$0xf]
        %v7069 = vld [vmem:[%s7067 + $0x4] sm:$0xf]
        %v7070 = vld [vmem:[%s7067 + $0x8] sm:$0xf]
        %v7071 = vld [vmem:[%s7067 + $0xc] sm:$0xf]
        %v7072 = vld [vmem:[%s7067 + $0x10] sm:$0xf]
        %v7073 = vld [vmem:[%s7067 + $0x14] sm:$0xf]
        %v7074 = vld [vmem:[%s7067 + $0x18] sm:$0xf]
        %v7075 = vld [vmem:[%s7067 + $0x1c] sm:$0xf]
        %v7076 = vld [vmem:[%s7067 + $0x20] sm:$0xf]
        %v7077 = vld [vmem:[%s7067 + $0x24] sm:$0xf]
        %v7078 = vld [vmem:[%s7067 + $0x28] sm:$0xf]
        %v7079 = vld [vmem:[%s7067 + $0x2c] sm:$0xf]
        %v7080 = vld [vmem:[%s7067 + $0x30] sm:$0xf]
        %v7081 = vld [vmem:[%s7067 + $0x34] sm:$0xf]
        %v7082 = vld [vmem:[%s7067 + $0x38] sm:$0xf]
        %v7083 = vld [vmem:[%s7067 + $0x3c] sm:$0xf]
        %v7100 = vunpack.c.l.b16 %v7068
        %v7101 = vunpack.c.l.b16 %v7069
        %v7102 = vunpack.c.l.b16 %v7070
        %v7103 = vunpack.c.l.b16 %v7071
        %v7104 = vunpack.c.l.b16 %v7072
        %v7105 = vunpack.c.l.b16 %v7073
        %v7106 = vunpack.c.l.b16 %v7074
        %v7107 = vunpack.c.l.b16 %v7075
        %v7108 = vunpack.c.l.b16 %v7076
        %v7109 = vunpack.c.l.b16 %v7077
        %v7110 = vunpack.c.l.b16 %v7078
        %v7111 = vunpack.c.l.b16 %v7079
        %v7112 = vunpack.c.l.b16 %v7080
        %v7113 = vunpack.c.l.b16 %v7081
        %v7114 = vunpack.c.l.b16 %v7082
        %v7115 = vunpack.c.l.b16 %v7083
        %v7116 = vpack.c.b16 %v7101, %v7100
        %v7117 = vpack.c.b16 %v7103, %v7102
        %v7118 = vpack.c.b16 %v7105, %v7104
        %v7119 = vpack.c.b16 %v7107, %v7106
        %v7120 = vpack.c.b16 %v7109, %v7108
        %v7121 = vpack.c.b16 %v7111, %v7110
        %v7122 = vpack.c.b16 %v7113, %v7112
        %v7123 = vpack.c.b16 %v7115, %v7114
        %7132 = vmatprep.subr.bf16.mxu0 0
        %7133 = vmatpush1.bf16.msra.mxu0 %v7123
        %7134 = vmatprep.subr.bf16.mxu0 0
        %7135 = vmatpush1.bf16.msra.mxu0 %v7122
        %7136 = vmatprep.subr.bf16.mxu0 0
        %7137 = vmatpush1.bf16.msra.mxu0 %v7121
        %7138 = vmatprep.subr.bf16.mxu0 0
        %7139 = vmatpush1.bf16.msra.mxu0 %v7120
        %7140 = vmatprep.subr.bf16.mxu0 0
        %7141 = vmatpush1.bf16.msra.mxu0 %v7119
        %7142 = vmatprep.subr.bf16.mxu0 0
        %7143 = vmatpush1.bf16.msra.mxu0 %v7118
        %7144 = vmatprep.subr.bf16.mxu0 0
        %7145 = vmatpush1.bf16.msra.mxu0 %v7117
        %7146 = vmatprep.subr.bf16.mxu0 0
        %7147 = vmatpush1.bf16.msra.mxu0 %v7116
        %7148 = vmatprep.subr.bf16.mxu0 0
        %7149 = vmatpush2.bf16.msra.mxu0 0
        %7150 = vmatprep.subr.bf16.mxu0 0
        %7151 = vmatpush2.bf16.msra.mxu0 0
        %7152 = vmatprep.subr.bf16.mxu0 0
        %7153 = vmatpush2.bf16.msra.mxu0 0
        %7154 = vmatprep.subr.bf16.mxu0 0
        %7155 = vmatpush2.bf16.msra.mxu0 0
        %7156 = vmatprep.subr.bf16.mxu0 0
        %7157 = vmatpush2.bf16.msra.mxu0 0
        %7158 = vmatprep.subr.bf16.mxu0 0
        %7159 = vmatpush2.bf16.msra.mxu0 0
        %7160 = vmatprep.subr.bf16.mxu0 0
        %7161 = vmatpush2.bf16.msra.mxu0 0
        %7162 = vmatprep.subr.bf16.mxu0 0
        %7163 = vmatpush2.bf16.msra.mxu0 0
        %7164 = vmatprep.mubr.bf16.mxu0 0
        %7165 = vmatmul.mubr.bf16.gmra.mxu0 %v7051
        %v7166 = vpop.f32.mrf.mxu0
        %v7167 = vadd.f32 0.0, %v7166
        %v7168 = vpop.f32.mrf.mxu0
        %v7169 = vpop.f32.mrf.mxu0
        %v7170 = vadd.f32 0.0, %v7169
        %v7171 = vpop.f32.mrf.mxu0
        %7172 = vmatprep.mubr.bf16.mxu0 0
        %7173 = vmatmul.mubr.bf16.gmra.mxu0 %v7052
        %v7174 = vpop.f32.mrf.mxu0
        %v7175 = vadd.f32 0.0, %v7174
        %v7176 = vpop.f32.mrf.mxu0
        %v7177 = vpop.f32.mrf.mxu0
        %v7178 = vadd.f32 0.0, %v7177
        %v7179 = vpop.f32.mrf.mxu0
        %7180 = vmatprep.mubr.bf16.mxu0 0
        %7181 = vmatmul.mubr.bf16.gmra.mxu0 %v7053
        %v7182 = vpop.f32.mrf.mxu0
        %v7183 = vadd.f32 0.0, %v7182
        %v7184 = vpop.f32.mrf.mxu0
        %v7185 = vpop.f32.mrf.mxu0
        %v7186 = vadd.f32 0.0, %v7185
        %v7187 = vpop.f32.mrf.mxu0
        %7188 = vmatprep.mubr.bf16.mxu0 0
        %7189 = vmatmul.mubr.bf16.gmra.mxu0 %v7054
        %v7190 = vpop.f32.mrf.mxu0
        %v7191 = vadd.f32 0.0, %v7190
        %v7192 = vpop.f32.mrf.mxu0
        %v7193 = vpop.f32.mrf.mxu0
        %v7194 = vadd.f32 0.0, %v7193
        %v7195 = vpop.f32.mrf.mxu0
        %7196 = vmatprep.mubr.bf16.mxu0 0
        %7197 = vmatmul.mubr.bf16.gmra.mxu0 %v7055
        %v7198 = vpop.f32.mrf.mxu0
        %v7199 = vadd.f32 0.0, %v7198
        %v7200 = vpop.f32.mrf.mxu0
        %v7201 = vpop.f32.mrf.mxu0
        %v7202 = vadd.f32 0.0, %v7201
        %v7203 = vpop.f32.mrf.mxu0
        %7204 = vmatprep.mubr.bf16.mxu0 0
        %7205 = vmatmul.mubr.bf16.gmra.mxu0 %v7056
        %v7206 = vpop.f32.mrf.mxu0
        %v7207 = vadd.f32 0.0, %v7206
        %v7208 = vpop.f32.mrf.mxu0
        %v7209 = vpop.f32.mrf.mxu0
        %v7210 = vadd.f32 0.0, %v7209
        %v7211 = vpop.f32.mrf.mxu0
        %7212 = vmatprep.mubr.bf16.mxu0 0
        %7213 = vmatmul.mubr.bf16.gmra.mxu0 %v7057
        %v7214 = vpop.f32.mrf.mxu0
        %v7215 = vadd.f32 0.0, %v7214
        %v7216 = vpop.f32.mrf.mxu0
        %v7217 = vpop.f32.mrf.mxu0
        %v7218 = vadd.f32 0.0, %v7217
        %v7219 = vpop.f32.mrf.mxu0
        %7220 = vmatprep.mubr.bf16.mxu0 0
        %7221 = vmatmul.mubr.bf16.gmra.mxu0 %v7058
        %v7222 = vpop.f32.mrf.mxu0
        %v7223 = vadd.f32 0.0, %v7222
        %v7224 = vpop.f32.mrf.mxu0
        %v7225 = vpop.f32.mrf.mxu0
        %v7226 = vadd.f32 0.0, %v7225
        %v7227 = vpop.f32.mrf.mxu0
        %7228 = vmatprep.mubr.bf16.mxu0 0
        %7229 = vmatmul.mubr.bf16.gmra.mxu0 %v7059
        %v7230 = vpop.f32.mrf.mxu0
        %v7231 = vadd.f32 0.0, %v7230
        %v7232 = vpop.f32.mrf.mxu0
        %v7233 = vpop.f32.mrf.mxu0
        %v7234 = vadd.f32 0.0, %v7233
        %v7235 = vpop.f32.mrf.mxu0
        %7236 = vmatprep.mubr.bf16.mxu0 0
        %7237 = vmatmul.mubr.bf16.gmra.mxu0 %v7060
        %v7238 = vpop.f32.mrf.mxu0
        %v7239 = vadd.f32 0.0, %v7238
        %v7240 = vpop.f32.mrf.mxu0
        %v7241 = vpop.f32.mrf.mxu0
        %v7242 = vadd.f32 0.0, %v7241
        %v7243 = vpop.f32.mrf.mxu0
        %7244 = vmatprep.mubr.bf16.mxu0 0
        %7245 = vmatmul.mubr.bf16.gmra.mxu0 %v7061
        %v7246 = vpop.f32.mrf.mxu0
        %v7247 = vadd.f32 0.0, %v7246
        %v7248 = vpop.f32.mrf.mxu0
        %v7249 = vpop.f32.mrf.mxu0
        %v7250 = vadd.f32 0.0, %v7249
        %v7251 = vpop.f32.mrf.mxu0
        %7252 = vmatprep.mubr.bf16.mxu0 0
        %7253 = vmatmul.mubr.bf16.gmra.mxu0 %v7062
        %v7254 = vpop.f32.mrf.mxu0
        %v7255 = vadd.f32 0.0, %v7254
        %v7256 = vpop.f32.mrf.mxu0
        %v7257 = vpop.f32.mrf.mxu0
        %v7258 = vadd.f32 0.0, %v7257
        %v7259 = vpop.f32.mrf.mxu0
        %7260 = vmatprep.mubr.bf16.mxu0 0
        %7261 = vmatmul.mubr.bf16.gmra.mxu0 %v7063
        %v7262 = vpop.f32.mrf.mxu0
        %v7263 = vadd.f32 0.0, %v7262
        %v7264 = vpop.f32.mrf.mxu0
        %v7265 = vpop.f32.mrf.mxu0
        %v7266 = vadd.f32 0.0, %v7265
        %v7267 = vpop.f32.mrf.mxu0
        %7268 = vmatprep.mubr.bf16.mxu0 0
        %7269 = vmatmul.mubr.bf16.gmra.mxu0 %v7064
        %v7270 = vpop.f32.mrf.mxu0
        %v7271 = vadd.f32 0.0, %v7270
        %v7272 = vpop.f32.mrf.mxu0
        %v7273 = vpop.f32.mrf.mxu0
        %v7274 = vadd.f32 0.0, %v7273
        %v7275 = vpop.f32.mrf.mxu0
        %7276 = vmatprep.mubr.bf16.mxu0 0
        %7277 = vmatmul.mubr.bf16.gmra.mxu0 %v7065
        %v7278 = vpop.f32.mrf.mxu0
        %v7279 = vadd.f32 0.0, %v7278
        %v7280 = vpop.f32.mrf.mxu0
        %v7281 = vpop.f32.mrf.mxu0
        %v7282 = vadd.f32 0.0, %v7281
        %v7283 = vpop.f32.mrf.mxu0
        %7284 = vmatprep.mubr.bf16.mxu0 0
        %7285 = vmatmul.mubr.bf16.gmra.mxu0 %v7066
        %v7286 = vpop.f32.mrf.mxu0
        %v7287 = vadd.f32 0.0, %v7286
        %v7288 = vpop.f32.mrf.mxu0
        %v7289 = vpop.f32.mrf.mxu0
        %v7290 = vadd.f32 0.0, %v7289
        %v7291 = vpop.f32.mrf.mxu0
        %7292 = vdwg.mxu0
        %s7293 = scalar_lea.vmem %s4, 2
        %v7294 = vld [vmem:[%s7293] sm:$0x1]
        %v7296 = vlaneseq
        %v7297 = vshrl.u32 %v7296, 7
        %v7298 = vsub.s32 0, %v7297
        %v7299 = vrot.slane %v7294, %v7298
        %v7301 = vmul.f32 %v7167, %v7299
        %v7302 = vmul.f32 %v7170, %v7299
        %v7303 = vmul.f32 %v7175, %v7299
        %v7304 = vmul.f32 %v7178, %v7299
        %v7305 = vmul.f32 %v7183, %v7299
        %v7306 = vmul.f32 %v7186, %v7299
        %v7307 = vmul.f32 %v7191, %v7299
        %v7308 = vmul.f32 %v7194, %v7299
        %v7309 = vmul.f32 %v7199, %v7299
        %v7310 = vmul.f32 %v7202, %v7299
        %v7311 = vmul.f32 %v7207, %v7299
        %v7312 = vmul.f32 %v7210, %v7299
        %v7313 = vmul.f32 %v7215, %v7299
        %v7314 = vmul.f32 %v7218, %v7299
        %v7315 = vmul.f32 %v7223, %v7299
        %v7316 = vmul.f32 %v7226, %v7299
        %v7317 = vmul.f32 %v7231, %v7299
        %v7318 = vmul.f32 %v7234, %v7299
        %v7319 = vmul.f32 %v7239, %v7299
        %v7320 = vmul.f32 %v7242, %v7299
        %v7321 = vmul.f32 %v7247, %v7299
        %v7322 = vmul.f32 %v7250, %v7299
        %v7323 = vmul.f32 %v7255, %v7299
        %v7324 = vmul.f32 %v7258, %v7299
        %v7325 = vmul.f32 %v7263, %v7299
        %v7326 = vmul.f32 %v7266, %v7299
        %v7327 = vmul.f32 %v7271, %v7299
        %v7328 = vmul.f32 %v7274, %v7299
        %v7329 = vmul.f32 %v7279, %v7299
        %v7330 = vmul.f32 %v7282, %v7299
        %v7331 = vmul.f32 %v7287, %v7299
        %v7332 = vmul.f32 %v7290, %v7299
        %s7333 = scalar_lea.vmem [#allocation7], 2
        %v7334 = vld [vmem:[%s7333] sm:$0x1]
        %v7336 = vlaneseq
        %v7337 = vshrl.u32 %v7336, 7
        %v7338 = vsub.s32 0, %v7337
        %v7339 = vrot.slane %v7334, %v7338
        %v7341 = vadd.f32 %v7301, %v7339
        %v7342 = vadd.f32 %v7302, %v7339
        %v7343 = vadd.f32 %v7303, %v7339
        %v7344 = vadd.f32 %v7304, %v7339
        %v7345 = vadd.f32 %v7305, %v7339
        %v7346 = vadd.f32 %v7306, %v7339
        %v7347 = vadd.f32 %v7307, %v7339
        %v7348 = vadd.f32 %v7308, %v7339
        %v7349 = vadd.f32 %v7309, %v7339
        %v7350 = vadd.f32 %v7310, %v7339
        %v7351 = vadd.f32 %v7311, %v7339
        %v7352 = vadd.f32 %v7312, %v7339
        %v7353 = vadd.f32 %v7313, %v7339
        %v7354 = vadd.f32 %v7314, %v7339
        %v7355 = vadd.f32 %v7315, %v7339
        %v7356 = vadd.f32 %v7316, %v7339
        %v7357 = vadd.f32 %v7317, %v7339
        %v7358 = vadd.f32 %v7318, %v7339
        %v7359 = vadd.f32 %v7319, %v7339
        %v7360 = vadd.f32 %v7320, %v7339
        %v7361 = vadd.f32 %v7321, %v7339
        %v7362 = vadd.f32 %v7322, %v7339
        %v7363 = vadd.f32 %v7323, %v7339
        %v7364 = vadd.f32 %v7324, %v7339
        %v7365 = vadd.f32 %v7325, %v7339
        %v7366 = vadd.f32 %v7326, %v7339
        %v7367 = vadd.f32 %v7327, %v7339
        %v7368 = vadd.f32 %v7328, %v7339
        %v7369 = vadd.f32 %v7329, %v7339
        %v7370 = vadd.f32 %v7330, %v7339
        %v7371 = vadd.f32 %v7331, %v7339
        %v7372 = vadd.f32 %v7332, %v7339
        %v7373 = vmax.f32 %v7341, 0.0
        %v7374 = vmax.f32 %v7342, 0.0
        %v7375 = vmax.f32 %v7343, 0.0
        %v7376 = vmax.f32 %v7344, 0.0
        %v7377 = vmax.f32 %v7345, 0.0
        %v7378 = vmax.f32 %v7346, 0.0
        %v7379 = vmax.f32 %v7347, 0.0
        %v7380 = vmax.f32 %v7348, 0.0
        %v7381 = vmax.f32 %v7349, 0.0
        %v7382 = vmax.f32 %v7350, 0.0
        %v7383 = vmax.f32 %v7351, 0.0
        %v7384 = vmax.f32 %v7352, 0.0
        %v7385 = vmax.f32 %v7353, 0.0
        %v7386 = vmax.f32 %v7354, 0.0
        %v7387 = vmax.f32 %v7355, 0.0
        %v7388 = vmax.f32 %v7356, 0.0
        %v7389 = vmax.f32 %v7357, 0.0
        %v7390 = vmax.f32 %v7358, 0.0
        %v7391 = vmax.f32 %v7359, 0.0
        %v7392 = vmax.f32 %v7360, 0.0
        %v7393 = vmax.f32 %v7361, 0.0
        %v7394 = vmax.f32 %v7362, 0.0
        %v7395 = vmax.f32 %v7363, 0.0
        %v7396 = vmax.f32 %v7364, 0.0
        %v7397 = vmax.f32 %v7365, 0.0
        %v7398 = vmax.f32 %v7366, 0.0
        %v7399 = vmax.f32 %v7367, 0.0
        %v7400 = vmax.f32 %v7368, 0.0
        %v7401 = vmax.f32 %v7369, 0.0
        %v7402 = vmax.f32 %v7370, 0.0
        %v7403 = vmax.f32 %v7371, 0.0
        %v7404 = vmax.f32 %v7372, 0.0
        %7405 = vst.msk [vmem:[%s916 + $0x1] sm:$0xff] %vm377, %v7373
        %7406 = vst.msk [vmem:[%s916 + $0x9] sm:$0xff] %vm377, %v7374
        %7407 = vst.msk [vmem:[%s916 + $0x19] sm:$0xff] %vm377, %v7375
        %7408 = vst.msk [vmem:[%s916 + $0x21] sm:$0xff] %vm377, %v7376
        %7409 = vst.msk [vmem:[%s916 + $0x31] sm:$0xff] %vm377, %v7377
        %7410 = vst.msk [vmem:[%s916 + $0x39] sm:$0xff] %vm377, %v7378
        %7411 = vst.msk [vmem:[%s916 + $0x49] sm:$0xff] %vm377, %v7379
        %7412 = vst.msk [vmem:[%s916 + $0x51] sm:$0xff] %vm377, %v7380
        %7413 = vst.msk [vmem:[%s916 + $0x61] sm:$0xff] %vm377, %v7381
        %7414 = vst.msk [vmem:[%s916 + $0x69] sm:$0xff] %vm377, %v7382
        %7415 = vst.msk [vmem:[%s916 + $0x79] sm:$0xff] %vm377, %v7383
        %7416 = vst.msk [vmem:[%s916 + $0x81] sm:$0xff] %vm377, %v7384
        %7417 = vst.msk [vmem:[%s916 + $0x91] sm:$0xff] %vm377, %v7385
        %7418 = vst.msk [vmem:[%s916 + $0x99] sm:$0xff] %vm377, %v7386
        %7419 = vst.msk [vmem:[%s916 + $0xa9] sm:$0xff] %vm377, %v7387
        %7420 = vst.msk [vmem:[%s916 + $0xb1] sm:$0xff] %vm377, %v7388
        %7421 = vst.msk [vmem:[%s916 + $0xc1] sm:$0xff] %vm377, %v7389
        %7422 = vst.msk [vmem:[%s916 + $0xc9] sm:$0xff] %vm377, %v7390
        %7423 = vst.msk [vmem:[%s916 + $0xd9] sm:$0xff] %vm377, %v7391
        %7424 = vst.msk [vmem:[%s916 + $0xe1] sm:$0xff] %vm377, %v7392
        %7425 = vst.msk [vmem:[%s916 + $0xf1] sm:$0xff] %vm377, %v7393
        %7426 = vst.msk [vmem:[%s916 + $0xf9] sm:$0xff] %vm377, %v7394
        %7427 = vst.msk [vmem:[%s916 + $0x109] sm:$0xff] %vm377, %v7395
        %7428 = vst.msk [vmem:[%s916 + $0x111] sm:$0xff] %vm377, %v7396
        %7429 = vst.msk [vmem:[%s916 + $0x121] sm:$0xff] %vm377, %v7397
        %7430 = vst.msk [vmem:[%s916 + $0x129] sm:$0xff] %vm377, %v7398
        %7431 = vst.msk [vmem:[%s916 + $0x139] sm:$0xff] %vm377, %v7399
        %7432 = vst.msk [vmem:[%s916 + $0x141] sm:$0xff] %vm377, %v7400
        %7433 = vst.msk [vmem:[%s916 + $0x151] sm:$0xff] %vm377, %v7401
        %7434 = vst.msk [vmem:[%s916 + $0x159] sm:$0xff] %vm377, %v7402
        %7435 = vst.msk [vmem:[%s916 + $0x169] sm:$0xff] %vm377, %v7403
        %7436 = vst.msk [vmem:[%s916 + $0x171] sm:$0xff] %vm377, %v7404
        %v7437 = vld [vmem:[#allocation3] sm:$0xff]
        %v7438 = vld [vmem:[#allocation3 + $0x8] sm:$0xff]
        %v7439 = vld [vmem:[#allocation3 + $0x18] sm:$0xff]
        %v7440 = vld [vmem:[#allocation3 + $0x20] sm:$0xff]
        %v7441 = vld [vmem:[#allocation3 + $0x30] sm:$0xff]
        %v7442 = vld [vmem:[#allocation3 + $0x38] sm:$0xff]
        %v7443 = vld [vmem:[#allocation3 + $0x48] sm:$0xff]
        %v7444 = vld [vmem:[#allocation3 + $0x50] sm:$0xff]
        %v7445 = vld [vmem:[#allocation3 + $0x60] sm:$0xff]
        %v7446 = vld [vmem:[#allocation3 + $0x68] sm:$0xff]
        %v7447 = vld [vmem:[#allocation3 + $0x78] sm:$0xff]
        %v7448 = vld [vmem:[#allocation3 + $0x80] sm:$0xff]
        %v7449 = vld [vmem:[#allocation3 + $0x90] sm:$0xff]
        %v7450 = vld [vmem:[#allocation3 + $0x98] sm:$0xff]
        %v7451 = vld [vmem:[#allocation3 + $0xa8] sm:$0xff]
        %v7452 = vld [vmem:[#allocation3 + $0xb0] sm:$0xff]
        %v7453 = vld [vmem:[#allocation3 + $0xc0] sm:$0xff]
        %v7454 = vld [vmem:[#allocation3 + $0xc8] sm:$0xff]
        %v7455 = vld [vmem:[#allocation3 + $0xd8] sm:$0xff]
        %v7456 = vld [vmem:[#allocation3 + $0xe0] sm:$0xff]
        %v7457 = vld [vmem:[#allocation3 + $0xf0] sm:$0xff]
        %v7458 = vld [vmem:[#allocation3 + $0xf8] sm:$0xff]
        %v7459 = vld [vmem:[#allocation3 + $0x108] sm:$0xff]
        %v7460 = vld [vmem:[#allocation3 + $0x110] sm:$0xff]
        %v7461 = vld [vmem:[#allocation3 + $0x120] sm:$0xff]
        %v7462 = vld [vmem:[#allocation3 + $0x128] sm:$0xff]
        %v7463 = vld [vmem:[#allocation3 + $0x138] sm:$0xff]
        %v7464 = vld [vmem:[#allocation3 + $0x140] sm:$0xff]
        %v7465 = vld [vmem:[#allocation3 + $0x150] sm:$0xff]
        %v7466 = vld [vmem:[#allocation3 + $0x158] sm:$0xff]
        %v7467 = vld [vmem:[#allocation3 + $0x168] sm:$0xff]
        %v7468 = vld [vmem:[#allocation3 + $0x170] sm:$0xff]
        %v7469 = vpack.c.bf16 %v7438, %v7437
        %v7470 = vpack.c.bf16 %v7440, %v7439
        %v7471 = vpack.c.bf16 %v7442, %v7441
        %v7472 = vpack.c.bf16 %v7444, %v7443
        %v7473 = vpack.c.bf16 %v7446, %v7445
        %v7474 = vpack.c.bf16 %v7448, %v7447
        %v7475 = vpack.c.bf16 %v7450, %v7449
        %v7476 = vpack.c.bf16 %v7452, %v7451
        %v7477 = vpack.c.bf16 %v7454, %v7453
        %v7478 = vpack.c.bf16 %v7456, %v7455
        %v7479 = vpack.c.bf16 %v7458, %v7457
        %v7480 = vpack.c.bf16 %v7460, %v7459
        %v7481 = vpack.c.bf16 %v7462, %v7461
        %v7482 = vpack.c.bf16 %v7464, %v7463
        %v7483 = vpack.c.bf16 %v7466, %v7465
        %v7484 = vpack.c.bf16 %v7468, %v7467
        %s7485 = scalar_lea.vmem %s6, 144
        %v7486 = vld [vmem:[%s7485] sm:$0xf]
        %v7487 = vld [vmem:[%s7485 + $0x4] sm:$0xf]
        %v7488 = vld [vmem:[#allocation3 + $0x1] sm:$0xff]
        %v7489 = vld [vmem:[#allocation3 + $0x9] sm:$0xff]
        %v7490 = vld [vmem:[#allocation3 + $0x19] sm:$0xff]
        %v7491 = vld [vmem:[#allocation3 + $0x21] sm:$0xff]
        %v7492 = vld [vmem:[#allocation3 + $0x31] sm:$0xff]
        %v7493 = vld [vmem:[#allocation3 + $0x39] sm:$0xff]
        %v7494 = vld [vmem:[#allocation3 + $0x49] sm:$0xff]
        %v7495 = vld [vmem:[#allocation3 + $0x51] sm:$0xff]
        %v7496 = vld [vmem:[#allocation3 + $0x61] sm:$0xff]
        %v7497 = vld [vmem:[#allocation3 + $0x69] sm:$0xff]
        %v7498 = vld [vmem:[#allocation3 + $0x79] sm:$0xff]
        %v7499 = vld [vmem:[#allocation3 + $0x81] sm:$0xff]
        %v7500 = vld [vmem:[#allocation3 + $0x91] sm:$0xff]
        %v7501 = vld [vmem:[#allocation3 + $0x99] sm:$0xff]
        %v7502 = vld [vmem:[#allocation3 + $0xa9] sm:$0xff]
        %v7503 = vld [vmem:[#allocation3 + $0xb1] sm:$0xff]
        %v7504 = vld [vmem:[#allocation3 + $0xc1] sm:$0xff]
        %v7505 = vld [vmem:[#allocation3 + $0xc9] sm:$0xff]
        %v7506 = vld [vmem:[#allocation3 + $0xd9] sm:$0xff]
        %v7507 = vld [vmem:[#allocation3 + $0xe1] sm:$0xff]
        %v7508 = vld [vmem:[#allocation3 + $0xf1] sm:$0xff]
        %v7509 = vld [vmem:[#allocation3 + $0xf9] sm:$0xff]
        %v7510 = vld [vmem:[#allocation3 + $0x109] sm:$0xff]
        %v7511 = vld [vmem:[#allocation3 + $0x111] sm:$0xff]
        %v7512 = vld [vmem:[#allocation3 + $0x121] sm:$0xff]
        %v7513 = vld [vmem:[#allocation3 + $0x129] sm:$0xff]
        %v7514 = vld [vmem:[#allocation3 + $0x139] sm:$0xff]
        %v7515 = vld [vmem:[#allocation3 + $0x141] sm:$0xff]
        %v7516 = vld [vmem:[#allocation3 + $0x151] sm:$0xff]
        %v7517 = vld [vmem:[#allocation3 + $0x159] sm:$0xff]
        %v7518 = vld [vmem:[#allocation3 + $0x169] sm:$0xff]
        %v7519 = vld [vmem:[#allocation3 + $0x171] sm:$0xff]
        %v7520 = vpack.c.bf16 %v7489, %v7488
        %v7521 = vpack.c.bf16 %v7491, %v7490
        %v7522 = vpack.c.bf16 %v7493, %v7492
        %v7523 = vpack.c.bf16 %v7495, %v7494
        %v7524 = vpack.c.bf16 %v7497, %v7496
        %v7525 = vpack.c.bf16 %v7499, %v7498
        %v7526 = vpack.c.bf16 %v7501, %v7500
        %v7527 = vpack.c.bf16 %v7503, %v7502
        %v7528 = vpack.c.bf16 %v7505, %v7504
        %v7529 = vpack.c.bf16 %v7507, %v7506
        %v7530 = vpack.c.bf16 %v7509, %v7508
        %v7531 = vpack.c.bf16 %v7511, %v7510
        %v7532 = vpack.c.bf16 %v7513, %v7512
        %v7533 = vpack.c.bf16 %v7515, %v7514
        %v7534 = vpack.c.bf16 %v7517, %v7516
        %v7535 = vpack.c.bf16 %v7519, %v7518
        %s7536 = scalar_lea.vmem %s6, 152
        %v7537 = vld [vmem:[%s7536] sm:$0xf]
        %v7538 = vld [vmem:[%s7536 + $0x4] sm:$0xf]
        %v7541 = vunpack.c.l.b16 %v7537
        %v7542 = vunpack.c.l.b16 %v7538
        %v7543 = vpack.c.b16 %v7542, %v7541
        %v7546 = vsel %vm377, %v7520, 0
        %v7549 = vsel %vm377, %v7521, 0
        %v7552 = vsel %vm377, %v7522, 0
        %v7555 = vsel %vm377, %v7523, 0
        %v7558 = vsel %vm377, %v7524, 0
        %v7561 = vsel %vm377, %v7525, 0
        %v7564 = vsel %vm377, %v7526, 0
        %v7567 = vsel %vm377, %v7527, 0
        %v7570 = vsel %vm377, %v7528, 0
        %v7573 = vsel %vm377, %v7529, 0
        %v7576 = vsel %vm377, %v7530, 0
        %v7579 = vsel %vm377, %v7531, 0
        %v7582 = vsel %vm377, %v7532, 0
        %v7585 = vsel %vm377, %v7533, 0
        %v7588 = vsel %vm377, %v7534, 0
        %v7591 = vsel %vm377, %v7535, 0
        %7593 = vmatprep.subr.bf16.mxu0 0
        %7594 = vmatpush1.bf16.msra.mxu0 0
        %7595 = vmatprep.subr.bf16.mxu0 0
        %7596 = vmatpush1.bf16.msra.mxu0 0
        %7597 = vmatprep.subr.bf16.mxu0 0
        %7598 = vmatpush1.bf16.msra.mxu0 0
        %7599 = vmatprep.subr.bf16.mxu0 0
        %7600 = vmatpush1.bf16.msra.mxu0 0
        %7601 = vmatprep.subr.bf16.mxu0 0
        %7602 = vmatpush1.bf16.msra.mxu0 0
        %7603 = vmatprep.subr.bf16.mxu0 0
        %7604 = vmatpush1.bf16.msra.mxu0 0
        %7605 = vmatprep.subr.bf16.mxu0 0
        %7606 = vmatpush1.bf16.msra.mxu0 0
        %7607 = vmatprep.subr.bf16.mxu0 0
        %7608 = vmatpush1.bf16.msra.mxu0 %v7543
        %7609 = vmatprep.subr.bf16.mxu0 0
        %7610 = vmatpush2.bf16.msra.mxu0 0
        %7611 = vmatprep.subr.bf16.mxu0 0
        %7612 = vmatpush2.bf16.msra.mxu0 0
        %7613 = vmatprep.subr.bf16.mxu0 0
        %7614 = vmatpush2.bf16.msra.mxu0 0
        %7615 = vmatprep.subr.bf16.mxu0 0
        %7616 = vmatpush2.bf16.msra.mxu0 0
        %7617 = vmatprep.subr.bf16.mxu0 0
        %7618 = vmatpush2.bf16.msra.mxu0 0
        %7619 = vmatprep.subr.bf16.mxu0 0
        %7620 = vmatpush2.bf16.msra.mxu0 0
        %7621 = vmatprep.subr.bf16.mxu0 0
        %7622 = vmatpush2.bf16.msra.mxu0 0
        %7623 = vmatprep.subr.bf16.mxu0 0
        %7624 = vmatpush2.bf16.msra.mxu0 0
        %7625 = vmatprep.mubr.bf16.mxu0 0
        %7626 = vmatmul.mubr.bf16.gmra.mxu0 %v7546
        %v7627 = vpop.f32.mrf.mxu0
        %v7628 = vadd.f32 0.0, %v7627
        %v7629 = vpop.f32.mrf.mxu0
        %v7630 = vpop.f32.mrf.mxu0
        %v7631 = vadd.f32 0.0, %v7630
        %v7632 = vpop.f32.mrf.mxu0
        %7633 = vmatprep.mubr.bf16.mxu0 0
        %7634 = vmatmul.mubr.bf16.gmra.mxu0 %v7549
        %v7635 = vpop.f32.mrf.mxu0
        %v7636 = vadd.f32 0.0, %v7635
        %v7637 = vpop.f32.mrf.mxu0
        %v7638 = vpop.f32.mrf.mxu0
        %v7639 = vadd.f32 0.0, %v7638
        %v7640 = vpop.f32.mrf.mxu0
        %7641 = vmatprep.mubr.bf16.mxu0 0
        %7642 = vmatmul.mubr.bf16.gmra.mxu0 %v7552
        %v7643 = vpop.f32.mrf.mxu0
        %v7644 = vadd.f32 0.0, %v7643
        %v7645 = vpop.f32.mrf.mxu0
        %v7646 = vpop.f32.mrf.mxu0
        %v7647 = vadd.f32 0.0, %v7646
        %v7648 = vpop.f32.mrf.mxu0
        %7649 = vmatprep.mubr.bf16.mxu0 0
        %7650 = vmatmul.mubr.bf16.gmra.mxu0 %v7555
        %v7651 = vpop.f32.mrf.mxu0
        %v7652 = vadd.f32 0.0, %v7651
        %v7653 = vpop.f32.mrf.mxu0
        %v7654 = vpop.f32.mrf.mxu0
        %v7655 = vadd.f32 0.0, %v7654
        %v7656 = vpop.f32.mrf.mxu0
        %7657 = vmatprep.mubr.bf16.mxu0 0
        %7658 = vmatmul.mubr.bf16.gmra.mxu0 %v7558
        %v7659 = vpop.f32.mrf.mxu0
        %v7660 = vadd.f32 0.0, %v7659
        %v7661 = vpop.f32.mrf.mxu0
        %v7662 = vpop.f32.mrf.mxu0
        %v7663 = vadd.f32 0.0, %v7662
        %v7664 = vpop.f32.mrf.mxu0
        %7665 = vmatprep.mubr.bf16.mxu0 0
        %7666 = vmatmul.mubr.bf16.gmra.mxu0 %v7561
        %v7667 = vpop.f32.mrf.mxu0
        %v7668 = vadd.f32 0.0, %v7667
        %v7669 = vpop.f32.mrf.mxu0
        %v7670 = vpop.f32.mrf.mxu0
        %v7671 = vadd.f32 0.0, %v7670
        %v7672 = vpop.f32.mrf.mxu0
        %7673 = vmatprep.mubr.bf16.mxu0 0
        %7674 = vmatmul.mubr.bf16.gmra.mxu0 %v7564
        %v7675 = vpop.f32.mrf.mxu0
        %v7676 = vadd.f32 0.0, %v7675
        %v7677 = vpop.f32.mrf.mxu0
        %v7678 = vpop.f32.mrf.mxu0
        %v7679 = vadd.f32 0.0, %v7678
        %v7680 = vpop.f32.mrf.mxu0
        %7681 = vmatprep.mubr.bf16.mxu0 0
        %7682 = vmatmul.mubr.bf16.gmra.mxu0 %v7567
        %v7683 = vpop.f32.mrf.mxu0
        %v7684 = vadd.f32 0.0, %v7683
        %v7685 = vpop.f32.mrf.mxu0
        %v7686 = vpop.f32.mrf.mxu0
        %v7687 = vadd.f32 0.0, %v7686
        %v7688 = vpop.f32.mrf.mxu0
        %7689 = vmatprep.mubr.bf16.mxu0 0
        %7690 = vmatmul.mubr.bf16.gmra.mxu0 %v7570
        %v7691 = vpop.f32.mrf.mxu0
        %v7692 = vadd.f32 0.0, %v7691
        %v7693 = vpop.f32.mrf.mxu0
        %v7694 = vpop.f32.mrf.mxu0
        %v7695 = vadd.f32 0.0, %v7694
        %v7696 = vpop.f32.mrf.mxu0
        %7697 = vmatprep.mubr.bf16.mxu0 0
        %7698 = vmatmul.mubr.bf16.gmra.mxu0 %v7573
        %v7699 = vpop.f32.mrf.mxu0
        %v7700 = vadd.f32 0.0, %v7699
        %v7701 = vpop.f32.mrf.mxu0
        %v7702 = vpop.f32.mrf.mxu0
        %v7703 = vadd.f32 0.0, %v7702
        %v7704 = vpop.f32.mrf.mxu0
        %7705 = vmatprep.mubr.bf16.mxu0 0
        %7706 = vmatmul.mubr.bf16.gmra.mxu0 %v7576
        %v7707 = vpop.f32.mrf.mxu0
        %v7708 = vadd.f32 0.0, %v7707
        %v7709 = vpop.f32.mrf.mxu0
        %v7710 = vpop.f32.mrf.mxu0
        %v7711 = vadd.f32 0.0, %v7710
        %v7712 = vpop.f32.mrf.mxu0
        %7713 = vmatprep.mubr.bf16.mxu0 0
        %7714 = vmatmul.mubr.bf16.gmra.mxu0 %v7579
        %v7715 = vpop.f32.mrf.mxu0
        %v7716 = vadd.f32 0.0, %v7715
        %v7717 = vpop.f32.mrf.mxu0
        %v7718 = vpop.f32.mrf.mxu0
        %v7719 = vadd.f32 0.0, %v7718
        %v7720 = vpop.f32.mrf.mxu0
        %7721 = vmatprep.mubr.bf16.mxu0 0
        %7722 = vmatmul.mubr.bf16.gmra.mxu0 %v7582
        %v7723 = vpop.f32.mrf.mxu0
        %v7724 = vadd.f32 0.0, %v7723
        %v7725 = vpop.f32.mrf.mxu0
        %v7726 = vpop.f32.mrf.mxu0
        %v7727 = vadd.f32 0.0, %v7726
        %v7728 = vpop.f32.mrf.mxu0
        %7729 = vmatprep.mubr.bf16.mxu0 0
        %7730 = vmatmul.mubr.bf16.gmra.mxu0 %v7585
        %v7731 = vpop.f32.mrf.mxu0
        %v7732 = vadd.f32 0.0, %v7731
        %v7733 = vpop.f32.mrf.mxu0
        %v7734 = vpop.f32.mrf.mxu0
        %v7735 = vadd.f32 0.0, %v7734
        %v7736 = vpop.f32.mrf.mxu0
        %7737 = vmatprep.mubr.bf16.mxu0 0
        %7738 = vmatmul.mubr.bf16.gmra.mxu0 %v7588
        %v7739 = vpop.f32.mrf.mxu0
        %v7740 = vadd.f32 0.0, %v7739
        %v7741 = vpop.f32.mrf.mxu0
        %v7742 = vpop.f32.mrf.mxu0
        %v7743 = vadd.f32 0.0, %v7742
        %v7744 = vpop.f32.mrf.mxu0
        %7745 = vmatprep.mubr.bf16.mxu0 0
        %7746 = vmatmul.mubr.bf16.gmra.mxu0 %v7591
        %v7747 = vpop.f32.mrf.mxu0
        %v7748 = vadd.f32 0.0, %v7747
        %v7749 = vpop.f32.mrf.mxu0
        %v7750 = vpop.f32.mrf.mxu0
        %v7751 = vadd.f32 0.0, %v7750
        %v7752 = vpop.f32.mrf.mxu0
        %7753 = vdwg.mxu0
        %v7756 = vunpack.c.l.b16 %v7486
        %v7757 = vunpack.c.l.b16 %v7487
        %v7758 = vpack.c.b16 %v7757, %v7756
        %v7761 = vsel %vm377, %v7469, 0
        %v7764 = vsel %vm377, %v7470, 0
        %v7767 = vsel %vm377, %v7471, 0
        %v7770 = vsel %vm377, %v7472, 0
        %v7773 = vsel %vm377, %v7473, 0
        %v7776 = vsel %vm377, %v7474, 0
        %v7779 = vsel %vm377, %v7475, 0
        %v7782 = vsel %vm377, %v7476, 0
        %v7785 = vsel %vm377, %v7477, 0
        %v7788 = vsel %vm377, %v7478, 0
        %v7791 = vsel %vm377, %v7479, 0
        %v7794 = vsel %vm377, %v7480, 0
        %v7797 = vsel %vm377, %v7481, 0
        %v7800 = vsel %vm377, %v7482, 0
        %v7803 = vsel %vm377, %v7483, 0
        %v7806 = vsel %vm377, %v7484, 0
        %7808 = vmatprep.subr.bf16.mxu0 0
        %7809 = vmatpush1.bf16.msra.mxu0 0
        %7810 = vmatprep.subr.bf16.mxu0 0
        %7811 = vmatpush1.bf16.msra.mxu0 0
        %7812 = vmatprep.subr.bf16.mxu0 0
        %7813 = vmatpush1.bf16.msra.mxu0 0
        %7814 = vmatprep.subr.bf16.mxu0 0
        %7815 = vmatpush1.bf16.msra.mxu0 0
        %7816 = vmatprep.subr.bf16.mxu0 0
        %7817 = vmatpush1.bf16.msra.mxu0 0
        %7818 = vmatprep.subr.bf16.mxu0 0
        %7819 = vmatpush1.bf16.msra.mxu0 0
        %7820 = vmatprep.subr.bf16.mxu0 0
        %7821 = vmatpush1.bf16.msra.mxu0 0
        %7822 = vmatprep.subr.bf16.mxu0 0
        %7823 = vmatpush1.bf16.msra.mxu0 %v7758
        %7824 = vmatprep.subr.bf16.mxu0 0
        %7825 = vmatpush2.bf16.msra.mxu0 0
        %7826 = vmatprep.subr.bf16.mxu0 0
        %7827 = vmatpush2.bf16.msra.mxu0 0
        %7828 = vmatprep.subr.bf16.mxu0 0
        %7829 = vmatpush2.bf16.msra.mxu0 0
        %7830 = vmatprep.subr.bf16.mxu0 0
        %7831 = vmatpush2.bf16.msra.mxu0 0
        %7832 = vmatprep.subr.bf16.mxu0 0
        %7833 = vmatpush2.bf16.msra.mxu0 0
        %7834 = vmatprep.subr.bf16.mxu0 0
        %7835 = vmatpush2.bf16.msra.mxu0 0
        %7836 = vmatprep.subr.bf16.mxu0 0
        %7837 = vmatpush2.bf16.msra.mxu0 0
        %7838 = vmatprep.subr.bf16.mxu0 0
        %7839 = vmatpush2.bf16.msra.mxu0 0
        %7840 = vmatprep.mubr.bf16.mxu0 0
        %7841 = vmatmul.mubr.bf16.gmra.mxu0 %v7761
        %v7842 = vpop.f32.mrf.mxu0
        %v7843 = vadd.f32 %v7628, %v7842
        %v7844 = vpop.f32.mrf.mxu0
        %v7845 = vpop.f32.mrf.mxu0
        %v7846 = vadd.f32 %v7631, %v7845
        %v7847 = vpop.f32.mrf.mxu0
        %7848 = vmatprep.mubr.bf16.mxu0 0
        %7849 = vmatmul.mubr.bf16.gmra.mxu0 %v7764
        %v7850 = vpop.f32.mrf.mxu0
        %v7851 = vadd.f32 %v7636, %v7850
        %v7852 = vpop.f32.mrf.mxu0
        %v7853 = vpop.f32.mrf.mxu0
        %v7854 = vadd.f32 %v7639, %v7853
        %v7855 = vpop.f32.mrf.mxu0
        %7856 = vmatprep.mubr.bf16.mxu0 0
        %7857 = vmatmul.mubr.bf16.gmra.mxu0 %v7767
        %v7858 = vpop.f32.mrf.mxu0
        %v7859 = vadd.f32 %v7644, %v7858
        %v7860 = vpop.f32.mrf.mxu0
        %v7861 = vpop.f32.mrf.mxu0
        %v7862 = vadd.f32 %v7647, %v7861
        %v7863 = vpop.f32.mrf.mxu0
        %7864 = vmatprep.mubr.bf16.mxu0 0
        %7865 = vmatmul.mubr.bf16.gmra.mxu0 %v7770
        %v7866 = vpop.f32.mrf.mxu0
        %v7867 = vadd.f32 %v7652, %v7866
        %v7868 = vpop.f32.mrf.mxu0
        %v7869 = vpop.f32.mrf.mxu0
        %v7870 = vadd.f32 %v7655, %v7869
        %v7871 = vpop.f32.mrf.mxu0
        %7872 = vmatprep.mubr.bf16.mxu0 0
        %7873 = vmatmul.mubr.bf16.gmra.mxu0 %v7773
        %v7874 = vpop.f32.mrf.mxu0
        %v7875 = vadd.f32 %v7660, %v7874
        %v7876 = vpop.f32.mrf.mxu0
        %v7877 = vpop.f32.mrf.mxu0
        %v7878 = vadd.f32 %v7663, %v7877
        %v7879 = vpop.f32.mrf.mxu0
        %7880 = vmatprep.mubr.bf16.mxu0 0
        %7881 = vmatmul.mubr.bf16.gmra.mxu0 %v7776
        %v7882 = vpop.f32.mrf.mxu0
        %v7883 = vadd.f32 %v7668, %v7882
        %v7884 = vpop.f32.mrf.mxu0
        %v7885 = vpop.f32.mrf.mxu0
        %v7886 = vadd.f32 %v7671, %v7885
        %v7887 = vpop.f32.mrf.mxu0
        %7888 = vmatprep.mubr.bf16.mxu0 0
        %7889 = vmatmul.mubr.bf16.gmra.mxu0 %v7779
        %v7890 = vpop.f32.mrf.mxu0
        %v7891 = vadd.f32 %v7676, %v7890
        %v7892 = vpop.f32.mrf.mxu0
        %v7893 = vpop.f32.mrf.mxu0
        %v7894 = vadd.f32 %v7679, %v7893
        %v7895 = vpop.f32.mrf.mxu0
        %7896 = vmatprep.mubr.bf16.mxu0 0
        %7897 = vmatmul.mubr.bf16.gmra.mxu0 %v7782
        %v7898 = vpop.f32.mrf.mxu0
        %v7899 = vadd.f32 %v7684, %v7898
        %v7900 = vpop.f32.mrf.mxu0
        %v7901 = vpop.f32.mrf.mxu0
        %v7902 = vadd.f32 %v7687, %v7901
        %v7903 = vpop.f32.mrf.mxu0
        %7904 = vmatprep.mubr.bf16.mxu0 0
        %7905 = vmatmul.mubr.bf16.gmra.mxu0 %v7785
        %v7906 = vpop.f32.mrf.mxu0
        %v7907 = vadd.f32 %v7692, %v7906
        %v7908 = vpop.f32.mrf.mxu0
        %v7909 = vpop.f32.mrf.mxu0
        %v7910 = vadd.f32 %v7695, %v7909
        %v7911 = vpop.f32.mrf.mxu0
        %7912 = vmatprep.mubr.bf16.mxu0 0
        %7913 = vmatmul.mubr.bf16.gmra.mxu0 %v7788
        %v7914 = vpop.f32.mrf.mxu0
        %v7915 = vadd.f32 %v7700, %v7914
        %v7916 = vpop.f32.mrf.mxu0
        %v7917 = vpop.f32.mrf.mxu0
        %v7918 = vadd.f32 %v7703, %v7917
        %v7919 = vpop.f32.mrf.mxu0
        %7920 = vmatprep.mubr.bf16.mxu0 0
        %7921 = vmatmul.mubr.bf16.gmra.mxu0 %v7791
        %v7922 = vpop.f32.mrf.mxu0
        %v7923 = vadd.f32 %v7708, %v7922
        %v7924 = vpop.f32.mrf.mxu0
        %v7925 = vpop.f32.mrf.mxu0
        %v7926 = vadd.f32 %v7711, %v7925
        %v7927 = vpop.f32.mrf.mxu0
        %7928 = vmatprep.mubr.bf16.mxu0 0
        %7929 = vmatmul.mubr.bf16.gmra.mxu0 %v7794
        %v7930 = vpop.f32.mrf.mxu0
        %v7931 = vadd.f32 %v7716, %v7930
        %v7932 = vpop.f32.mrf.mxu0
        %v7933 = vpop.f32.mrf.mxu0
        %v7934 = vadd.f32 %v7719, %v7933
        %v7935 = vpop.f32.mrf.mxu0
        %7936 = vmatprep.mubr.bf16.mxu0 0
        %7937 = vmatmul.mubr.bf16.gmra.mxu0 %v7797
        %v7938 = vpop.f32.mrf.mxu0
        %v7939 = vadd.f32 %v7724, %v7938
        %v7940 = vpop.f32.mrf.mxu0
        %v7941 = vpop.f32.mrf.mxu0
        %v7942 = vadd.f32 %v7727, %v7941
        %v7943 = vpop.f32.mrf.mxu0
        %7944 = vmatprep.mubr.bf16.mxu0 0
        %7945 = vmatmul.mubr.bf16.gmra.mxu0 %v7800
        %v7946 = vpop.f32.mrf.mxu0
        %v7947 = vadd.f32 %v7732, %v7946
        %v7948 = vpop.f32.mrf.mxu0
        %v7949 = vpop.f32.mrf.mxu0
        %v7950 = vadd.f32 %v7735, %v7949
        %v7951 = vpop.f32.mrf.mxu0
        %7952 = vmatprep.mubr.bf16.mxu0 0
        %7953 = vmatmul.mubr.bf16.gmra.mxu0 %v7803
        %v7954 = vpop.f32.mrf.mxu0
        %v7955 = vadd.f32 %v7740, %v7954
        %v7956 = vpop.f32.mrf.mxu0
        %v7957 = vpop.f32.mrf.mxu0
        %v7958 = vadd.f32 %v7743, %v7957
        %v7959 = vpop.f32.mrf.mxu0
        %7960 = vmatprep.mubr.bf16.mxu0 0
        %7961 = vmatmul.mubr.bf16.gmra.mxu0 %v7806
        %v7962 = vpop.f32.mrf.mxu0
        %v7963 = vadd.f32 %v7748, %v7962
        %v7964 = vpop.f32.mrf.mxu0
        %v7965 = vpop.f32.mrf.mxu0
        %v7966 = vadd.f32 %v7751, %v7965
        %v7967 = vpop.f32.mrf.mxu0
        %7968 = vdwg.mxu0
        %v7969 = vld [vmem:[#allocation3 + $0x2] sm:$0xff]
        %v7970 = vld [vmem:[#allocation3 + $0xa] sm:$0xff]
        %v7971 = vld [vmem:[#allocation3 + $0x1a] sm:$0xff]
        %v7972 = vld [vmem:[#allocation3 + $0x22] sm:$0xff]
        %v7973 = vld [vmem:[#allocation3 + $0x32] sm:$0xff]
        %v7974 = vld [vmem:[#allocation3 + $0x3a] sm:$0xff]
        %v7975 = vld [vmem:[#allocation3 + $0x4a] sm:$0xff]
        %v7976 = vld [vmem:[#allocation3 + $0x52] sm:$0xff]
        %v7977 = vld [vmem:[#allocation3 + $0x62] sm:$0xff]
        %v7978 = vld [vmem:[#allocation3 + $0x6a] sm:$0xff]
        %v7979 = vld [vmem:[#allocation3 + $0x7a] sm:$0xff]
        %v7980 = vld [vmem:[#allocation3 + $0x82] sm:$0xff]
        %v7981 = vld [vmem:[#allocation3 + $0x92] sm:$0xff]
        %v7982 = vld [vmem:[#allocation3 + $0x9a] sm:$0xff]
        %v7983 = vld [vmem:[#allocation3 + $0xaa] sm:$0xff]
        %v7984 = vld [vmem:[#allocation3 + $0xb2] sm:$0xff]
        %v7985 = vld [vmem:[#allocation3 + $0xc2] sm:$0xff]
        %v7986 = vld [vmem:[#allocation3 + $0xca] sm:$0xff]
        %v7987 = vld [vmem:[#allocation3 + $0xda] sm:$0xff]
        %v7988 = vld [vmem:[#allocation3 + $0xe2] sm:$0xff]
        %v7989 = vld [vmem:[#allocation3 + $0xf2] sm:$0xff]
        %v7990 = vld [vmem:[#allocation3 + $0xfa] sm:$0xff]
        %v7991 = vld [vmem:[#allocation3 + $0x10a] sm:$0xff]
        %v7992 = vld [vmem:[#allocation3 + $0x112] sm:$0xff]
        %v7993 = vld [vmem:[#allocation3 + $0x122] sm:$0xff]
        %v7994 = vld [vmem:[#allocation3 + $0x12a] sm:$0xff]
        %v7995 = vld [vmem:[#allocation3 + $0x13a] sm:$0xff]
        %v7996 = vld [vmem:[#allocation3 + $0x142] sm:$0xff]
        %v7997 = vld [vmem:[#allocation3 + $0x152] sm:$0xff]
        %v7998 = vld [vmem:[#allocation3 + $0x15a] sm:$0xff]
        %v7999 = vld [vmem:[#allocation3 + $0x16a] sm:$0xff]
        %v8000 = vld [vmem:[#allocation3 + $0x172] sm:$0xff]
        %v8001 = vpack.c.bf16 %v7970, %v7969
        %v8002 = vpack.c.bf16 %v7972, %v7971
        %v8003 = vpack.c.bf16 %v7974, %v7973
        %v8004 = vpack.c.bf16 %v7976, %v7975
        %v8005 = vpack.c.bf16 %v7978, %v7977
        %v8006 = vpack.c.bf16 %v7980, %v7979
        %v8007 = vpack.c.bf16 %v7982, %v7981
        %v8008 = vpack.c.bf16 %v7984, %v7983
        %v8009 = vpack.c.bf16 %v7986, %v7985
        %v8010 = vpack.c.bf16 %v7988, %v7987
        %v8011 = vpack.c.bf16 %v7990, %v7989
        %v8012 = vpack.c.bf16 %v7992, %v7991
        %v8013 = vpack.c.bf16 %v7994, %v7993
        %v8014 = vpack.c.bf16 %v7996, %v7995
        %v8015 = vpack.c.bf16 %v7998, %v7997
        %v8016 = vpack.c.bf16 %v8000, %v7999
        %s8017 = scalar_lea.vmem %s6, 160
        %v8018 = vld [vmem:[%s8017] sm:$0xf]
        %v8019 = vld [vmem:[%s8017 + $0x4] sm:$0xf]
        %v8022 = vunpack.c.l.b16 %v8018
        %v8023 = vunpack.c.l.b16 %v8019
        %v8024 = vpack.c.b16 %v8023, %v8022
        %v8027 = vsel %vm377, %v8001, 0
        %v8030 = vsel %vm377, %v8002, 0
        %v8033 = vsel %vm377, %v8003, 0
        %v8036 = vsel %vm377, %v8004, 0
        %v8039 = vsel %vm377, %v8005, 0
        %v8042 = vsel %vm377, %v8006, 0
        %v8045 = vsel %vm377, %v8007, 0
        %v8048 = vsel %vm377, %v8008, 0
        %v8051 = vsel %vm377, %v8009, 0
        %v8054 = vsel %vm377, %v8010, 0
        %v8057 = vsel %vm377, %v8011, 0
        %v8060 = vsel %vm377, %v8012, 0
        %v8063 = vsel %vm377, %v8013, 0
        %v8066 = vsel %vm377, %v8014, 0
        %v8069 = vsel %vm377, %v8015, 0
        %v8072 = vsel %vm377, %v8016, 0
        %8074 = vmatprep.subr.bf16.mxu0 0
        %8075 = vmatpush1.bf16.msra.mxu0 0
        %8076 = vmatprep.subr.bf16.mxu0 0
        %8077 = vmatpush1.bf16.msra.mxu0 0
        %8078 = vmatprep.subr.bf16.mxu0 0
        %8079 = vmatpush1.bf16.msra.mxu0 0
        %8080 = vmatprep.subr.bf16.mxu0 0
        %8081 = vmatpush1.bf16.msra.mxu0 0
        %8082 = vmatprep.subr.bf16.mxu0 0
        %8083 = vmatpush1.bf16.msra.mxu0 0
        %8084 = vmatprep.subr.bf16.mxu0 0
        %8085 = vmatpush1.bf16.msra.mxu0 0
        %8086 = vmatprep.subr.bf16.mxu0 0
        %8087 = vmatpush1.bf16.msra.mxu0 0
        %8088 = vmatprep.subr.bf16.mxu0 0
        %8089 = vmatpush1.bf16.msra.mxu0 %v8024
        %8090 = vmatprep.subr.bf16.mxu0 0
        %8091 = vmatpush2.bf16.msra.mxu0 0
        %8092 = vmatprep.subr.bf16.mxu0 0
        %8093 = vmatpush2.bf16.msra.mxu0 0
        %8094 = vmatprep.subr.bf16.mxu0 0
        %8095 = vmatpush2.bf16.msra.mxu0 0
        %8096 = vmatprep.subr.bf16.mxu0 0
        %8097 = vmatpush2.bf16.msra.mxu0 0
        %8098 = vmatprep.subr.bf16.mxu0 0
        %8099 = vmatpush2.bf16.msra.mxu0 0
        %8100 = vmatprep.subr.bf16.mxu0 0
        %8101 = vmatpush2.bf16.msra.mxu0 0
        %8102 = vmatprep.subr.bf16.mxu0 0
        %8103 = vmatpush2.bf16.msra.mxu0 0
        %8104 = vmatprep.subr.bf16.mxu0 0
        %8105 = vmatpush2.bf16.msra.mxu0 0
        %8106 = vmatprep.mubr.bf16.mxu0 0
        %8107 = vmatmul.mubr.bf16.gmra.mxu0 %v8027
        %v8108 = vpop.f32.mrf.mxu0
        %v8109 = vadd.f32 0.0, %v8108
        %v8110 = vpop.f32.mrf.mxu0
        %v8111 = vpop.f32.mrf.mxu0
        %v8112 = vadd.f32 0.0, %v8111
        %v8113 = vpop.f32.mrf.mxu0
        %8114 = vmatprep.mubr.bf16.mxu0 0
        %8115 = vmatmul.mubr.bf16.gmra.mxu0 %v8030
        %v8116 = vpop.f32.mrf.mxu0
        %v8117 = vadd.f32 0.0, %v8116
        %v8118 = vpop.f32.mrf.mxu0
        %v8119 = vpop.f32.mrf.mxu0
        %v8120 = vadd.f32 0.0, %v8119
        %v8121 = vpop.f32.mrf.mxu0
        %8122 = vmatprep.mubr.bf16.mxu0 0
        %8123 = vmatmul.mubr.bf16.gmra.mxu0 %v8033
        %v8124 = vpop.f32.mrf.mxu0
        %v8125 = vadd.f32 0.0, %v8124
        %v8126 = vpop.f32.mrf.mxu0
        %v8127 = vpop.f32.mrf.mxu0
        %v8128 = vadd.f32 0.0, %v8127
        %v8129 = vpop.f32.mrf.mxu0
        %8130 = vmatprep.mubr.bf16.mxu0 0
        %8131 = vmatmul.mubr.bf16.gmra.mxu0 %v8036
        %v8132 = vpop.f32.mrf.mxu0
        %v8133 = vadd.f32 0.0, %v8132
        %v8134 = vpop.f32.mrf.mxu0
        %v8135 = vpop.f32.mrf.mxu0
        %v8136 = vadd.f32 0.0, %v8135
        %v8137 = vpop.f32.mrf.mxu0
        %8138 = vmatprep.mubr.bf16.mxu0 0
        %8139 = vmatmul.mubr.bf16.gmra.mxu0 %v8039
        %v8140 = vpop.f32.mrf.mxu0
        %v8141 = vadd.f32 0.0, %v8140
        %v8142 = vpop.f32.mrf.mxu0
        %v8143 = vpop.f32.mrf.mxu0
        %v8144 = vadd.f32 0.0, %v8143
        %v8145 = vpop.f32.mrf.mxu0
        %8146 = vmatprep.mubr.bf16.mxu0 0
        %8147 = vmatmul.mubr.bf16.gmra.mxu0 %v8042
        %v8148 = vpop.f32.mrf.mxu0
        %v8149 = vadd.f32 0.0, %v8148
        %v8150 = vpop.f32.mrf.mxu0
        %v8151 = vpop.f32.mrf.mxu0
        %v8152 = vadd.f32 0.0, %v8151
        %v8153 = vpop.f32.mrf.mxu0
        %8154 = vmatprep.mubr.bf16.mxu0 0
        %8155 = vmatmul.mubr.bf16.gmra.mxu0 %v8045
        %v8156 = vpop.f32.mrf.mxu0
        %v8157 = vadd.f32 0.0, %v8156
        %v8158 = vpop.f32.mrf.mxu0
        %v8159 = vpop.f32.mrf.mxu0
        %v8160 = vadd.f32 0.0, %v8159
        %v8161 = vpop.f32.mrf.mxu0
        %8162 = vmatprep.mubr.bf16.mxu0 0
        %8163 = vmatmul.mubr.bf16.gmra.mxu0 %v8048
        %v8164 = vpop.f32.mrf.mxu0
        %v8165 = vadd.f32 0.0, %v8164
        %v8166 = vpop.f32.mrf.mxu0
        %v8167 = vpop.f32.mrf.mxu0
        %v8168 = vadd.f32 0.0, %v8167
        %v8169 = vpop.f32.mrf.mxu0
        %8170 = vmatprep.mubr.bf16.mxu0 0
        %8171 = vmatmul.mubr.bf16.gmra.mxu0 %v8051
        %v8172 = vpop.f32.mrf.mxu0
        %v8173 = vadd.f32 0.0, %v8172
        %v8174 = vpop.f32.mrf.mxu0
        %v8175 = vpop.f32.mrf.mxu0
        %v8176 = vadd.f32 0.0, %v8175
        %v8177 = vpop.f32.mrf.mxu0
        %8178 = vmatprep.mubr.bf16.mxu0 0
        %8179 = vmatmul.mubr.bf16.gmra.mxu0 %v8054
        %v8180 = vpop.f32.mrf.mxu0
        %v8181 = vadd.f32 0.0, %v8180
        %v8182 = vpop.f32.mrf.mxu0
        %v8183 = vpop.f32.mrf.mxu0
        %v8184 = vadd.f32 0.0, %v8183
        %v8185 = vpop.f32.mrf.mxu0
        %8186 = vmatprep.mubr.bf16.mxu0 0
        %8187 = vmatmul.mubr.bf16.gmra.mxu0 %v8057
        %v8188 = vpop.f32.mrf.mxu0
        %v8189 = vadd.f32 0.0, %v8188
        %v8190 = vpop.f32.mrf.mxu0
        %v8191 = vpop.f32.mrf.mxu0
        %v8192 = vadd.f32 0.0, %v8191
        %v8193 = vpop.f32.mrf.mxu0
        %8194 = vmatprep.mubr.bf16.mxu0 0
        %8195 = vmatmul.mubr.bf16.gmra.mxu0 %v8060
        %v8196 = vpop.f32.mrf.mxu0
        %v8197 = vadd.f32 0.0, %v8196
        %v8198 = vpop.f32.mrf.mxu0
        %v8199 = vpop.f32.mrf.mxu0
        %v8200 = vadd.f32 0.0, %v8199
        %v8201 = vpop.f32.mrf.mxu0
        %8202 = vmatprep.mubr.bf16.mxu0 0
        %8203 = vmatmul.mubr.bf16.gmra.mxu0 %v8063
        %v8204 = vpop.f32.mrf.mxu0
        %v8205 = vadd.f32 0.0, %v8204
        %v8206 = vpop.f32.mrf.mxu0
        %v8207 = vpop.f32.mrf.mxu0
        %v8208 = vadd.f32 0.0, %v8207
        %v8209 = vpop.f32.mrf.mxu0
        %8210 = vmatprep.mubr.bf16.mxu0 0
        %8211 = vmatmul.mubr.bf16.gmra.mxu0 %v8066
        %v8212 = vpop.f32.mrf.mxu0
        %v8213 = vadd.f32 0.0, %v8212
        %v8214 = vpop.f32.mrf.mxu0
        %v8215 = vpop.f32.mrf.mxu0
        %v8216 = vadd.f32 0.0, %v8215
        %v8217 = vpop.f32.mrf.mxu0
        %8218 = vmatprep.mubr.bf16.mxu0 0
        %8219 = vmatmul.mubr.bf16.gmra.mxu0 %v8069
        %v8220 = vpop.f32.mrf.mxu0
        %v8221 = vadd.f32 0.0, %v8220
        %v8222 = vpop.f32.mrf.mxu0
        %v8223 = vpop.f32.mrf.mxu0
        %v8224 = vadd.f32 0.0, %v8223
        %v8225 = vpop.f32.mrf.mxu0
        %8226 = vmatprep.mubr.bf16.mxu0 0
        %8227 = vmatmul.mubr.bf16.gmra.mxu0 %v8072
        %v8228 = vpop.f32.mrf.mxu0
        %v8229 = vadd.f32 0.0, %v8228
        %v8230 = vpop.f32.mrf.mxu0
        %v8231 = vpop.f32.mrf.mxu0
        %v8232 = vadd.f32 0.0, %v8231
        %v8233 = vpop.f32.mrf.mxu0
        %8234 = vdwg.mxu0
        %v8235 = vadd.f32 %v7843, %v8109
        %v8236 = vadd.f32 %v7846, %v8112
        %v8237 = vadd.f32 %v7851, %v8117
        %v8238 = vadd.f32 %v7854, %v8120
        %v8239 = vadd.f32 %v7859, %v8125
        %v8240 = vadd.f32 %v7862, %v8128
        %v8241 = vadd.f32 %v7867, %v8133
        %v8242 = vadd.f32 %v7870, %v8136
        %v8243 = vadd.f32 %v7875, %v8141
        %v8244 = vadd.f32 %v7878, %v8144
        %v8245 = vadd.f32 %v7883, %v8149
        %v8246 = vadd.f32 %v7886, %v8152
        %v8247 = vadd.f32 %v7891, %v8157
        %v8248 = vadd.f32 %v7894, %v8160
        %v8249 = vadd.f32 %v7899, %v8165
        %v8250 = vadd.f32 %v7902, %v8168
        %v8251 = vadd.f32 %v7907, %v8173
        %v8252 = vadd.f32 %v7910, %v8176
        %v8253 = vadd.f32 %v7915, %v8181
        %v8254 = vadd.f32 %v7918, %v8184
        %v8255 = vadd.f32 %v7923, %v8189
        %v8256 = vadd.f32 %v7926, %v8192
        %v8257 = vadd.f32 %v7931, %v8197
        %v8258 = vadd.f32 %v7934, %v8200
        %v8259 = vadd.f32 %v7939, %v8205
        %v8260 = vadd.f32 %v7942, %v8208
        %v8261 = vadd.f32 %v7947, %v8213
        %v8262 = vadd.f32 %v7950, %v8216
        %v8263 = vadd.f32 %v7955, %v8221
        %v8264 = vadd.f32 %v7958, %v8224
        %v8265 = vadd.f32 %v7963, %v8229
        %v8266 = vadd.f32 %v7966, %v8232
        %v8267 = vld [vmem:[%s916] sm:$0xff]
        %v8268 = vld [vmem:[%s916 + $0x8] sm:$0xff]
        %v8269 = vld [vmem:[%s916 + $0x18] sm:$0xff]
        %v8270 = vld [vmem:[%s916 + $0x20] sm:$0xff]
        %v8271 = vld [vmem:[%s916 + $0x30] sm:$0xff]
        %v8272 = vld [vmem:[%s916 + $0x38] sm:$0xff]
        %v8273 = vld [vmem:[%s916 + $0x48] sm:$0xff]
        %v8274 = vld [vmem:[%s916 + $0x50] sm:$0xff]
        %v8275 = vld [vmem:[%s916 + $0x60] sm:$0xff]
        %v8276 = vld [vmem:[%s916 + $0x68] sm:$0xff]
        %v8277 = vld [vmem:[%s916 + $0x78] sm:$0xff]
        %v8278 = vld [vmem:[%s916 + $0x80] sm:$0xff]
        %v8279 = vld [vmem:[%s916 + $0x90] sm:$0xff]
        %v8280 = vld [vmem:[%s916 + $0x98] sm:$0xff]
        %v8281 = vld [vmem:[%s916 + $0xa8] sm:$0xff]
        %v8282 = vld [vmem:[%s916 + $0xb0] sm:$0xff]
        %v8283 = vld [vmem:[%s916 + $0xc0] sm:$0xff]
        %v8284 = vld [vmem:[%s916 + $0xc8] sm:$0xff]
        %v8285 = vld [vmem:[%s916 + $0xd8] sm:$0xff]
        %v8286 = vld [vmem:[%s916 + $0xe0] sm:$0xff]
        %v8287 = vld [vmem:[%s916 + $0xf0] sm:$0xff]
        %v8288 = vld [vmem:[%s916 + $0xf8] sm:$0xff]
        %v8289 = vld [vmem:[%s916 + $0x108] sm:$0xff]
        %v8290 = vld [vmem:[%s916 + $0x110] sm:$0xff]
        %v8291 = vld [vmem:[%s916 + $0x120] sm:$0xff]
        %v8292 = vld [vmem:[%s916 + $0x128] sm:$0xff]
        %v8293 = vld [vmem:[%s916 + $0x138] sm:$0xff]
        %v8294 = vld [vmem:[%s916 + $0x140] sm:$0xff]
        %v8295 = vld [vmem:[%s916 + $0x150] sm:$0xff]
        %v8296 = vld [vmem:[%s916 + $0x158] sm:$0xff]
        %v8297 = vld [vmem:[%s916 + $0x168] sm:$0xff]
        %v8298 = vld [vmem:[%s916 + $0x170] sm:$0xff]
        %v8299 = vpack.c.bf16 %v8268, %v8267
        %v8300 = vpack.c.bf16 %v8270, %v8269
        %v8301 = vpack.c.bf16 %v8272, %v8271
        %v8302 = vpack.c.bf16 %v8274, %v8273
        %v8303 = vpack.c.bf16 %v8276, %v8275
        %v8304 = vpack.c.bf16 %v8278, %v8277
        %v8305 = vpack.c.bf16 %v8280, %v8279
        %v8306 = vpack.c.bf16 %v8282, %v8281
        %v8307 = vpack.c.bf16 %v8284, %v8283
        %v8308 = vpack.c.bf16 %v8286, %v8285
        %v8309 = vpack.c.bf16 %v8288, %v8287
        %v8310 = vpack.c.bf16 %v8290, %v8289
        %v8311 = vpack.c.bf16 %v8292, %v8291
        %v8312 = vpack.c.bf16 %v8294, %v8293
        %v8313 = vpack.c.bf16 %v8296, %v8295
        %v8314 = vpack.c.bf16 %v8298, %v8297
        %s8315 = scalar_lea.vmem %s6, 168
        %v8316 = vld [vmem:[%s8315] sm:$0xf]
        %v8317 = vld [vmem:[%s8315 + $0x4] sm:$0xf]
        %v8320 = vunpack.c.l.b16 %v8316
        %v8321 = vunpack.c.l.b16 %v8317
        %v8322 = vpack.c.b16 %v8321, %v8320
        %v8325 = vsel %vm377, %v8299, 0
        %v8328 = vsel %vm377, %v8300, 0
        %v8331 = vsel %vm377, %v8301, 0
        %v8334 = vsel %vm377, %v8302, 0
        %v8337 = vsel %vm377, %v8303, 0
        %v8340 = vsel %vm377, %v8304, 0
        %v8343 = vsel %vm377, %v8305, 0
        %v8346 = vsel %vm377, %v8306, 0
        %v8349 = vsel %vm377, %v8307, 0
        %v8352 = vsel %vm377, %v8308, 0
        %v8355 = vsel %vm377, %v8309, 0
        %v8358 = vsel %vm377, %v8310, 0
        %v8361 = vsel %vm377, %v8311, 0
        %v8364 = vsel %vm377, %v8312, 0
        %v8367 = vsel %vm377, %v8313, 0
        %v8370 = vsel %vm377, %v8314, 0
        %8372 = vmatprep.subr.bf16.mxu0 0
        %8373 = vmatpush1.bf16.msra.mxu0 0
        %8374 = vmatprep.subr.bf16.mxu0 0
        %8375 = vmatpush1.bf16.msra.mxu0 0
        %8376 = vmatprep.subr.bf16.mxu0 0
        %8377 = vmatpush1.bf16.msra.mxu0 0
        %8378 = vmatprep.subr.bf16.mxu0 0
        %8379 = vmatpush1.bf16.msra.mxu0 0
        %8380 = vmatprep.subr.bf16.mxu0 0
        %8381 = vmatpush1.bf16.msra.mxu0 0
        %8382 = vmatprep.subr.bf16.mxu0 0
        %8383 = vmatpush1.bf16.msra.mxu0 0
        %8384 = vmatprep.subr.bf16.mxu0 0
        %8385 = vmatpush1.bf16.msra.mxu0 0
        %8386 = vmatprep.subr.bf16.mxu0 0
        %8387 = vmatpush1.bf16.msra.mxu0 %v8322
        %8388 = vmatprep.subr.bf16.mxu0 0
        %8389 = vmatpush2.bf16.msra.mxu0 0
        %8390 = vmatprep.subr.bf16.mxu0 0
        %8391 = vmatpush2.bf16.msra.mxu0 0
        %8392 = vmatprep.subr.bf16.mxu0 0
        %8393 = vmatpush2.bf16.msra.mxu0 0
        %8394 = vmatprep.subr.bf16.mxu0 0
        %8395 = vmatpush2.bf16.msra.mxu0 0
        %8396 = vmatprep.subr.bf16.mxu0 0
        %8397 = vmatpush2.bf16.msra.mxu0 0
        %8398 = vmatprep.subr.bf16.mxu0 0
        %8399 = vmatpush2.bf16.msra.mxu0 0
        %8400 = vmatprep.subr.bf16.mxu0 0
        %8401 = vmatpush2.bf16.msra.mxu0 0
        %8402 = vmatprep.subr.bf16.mxu0 0
        %8403 = vmatpush2.bf16.msra.mxu0 0
        %8404 = vmatprep.mubr.bf16.mxu0 0
        %8405 = vmatmul.mubr.bf16.gmra.mxu0 %v8325
        %v8406 = vpop.f32.mrf.mxu0
        %v8407 = vadd.f32 0.0, %v8406
        %v8408 = vpop.f32.mrf.mxu0
        %v8409 = vpop.f32.mrf.mxu0
        %v8410 = vadd.f32 0.0, %v8409
        %v8411 = vpop.f32.mrf.mxu0
        %8412 = vmatprep.mubr.bf16.mxu0 0
        %8413 = vmatmul.mubr.bf16.gmra.mxu0 %v8328
        %v8414 = vpop.f32.mrf.mxu0
        %v8415 = vadd.f32 0.0, %v8414
        %v8416 = vpop.f32.mrf.mxu0
        %v8417 = vpop.f32.mrf.mxu0
        %v8418 = vadd.f32 0.0, %v8417
        %v8419 = vpop.f32.mrf.mxu0
        %8420 = vmatprep.mubr.bf16.mxu0 0
        %8421 = vmatmul.mubr.bf16.gmra.mxu0 %v8331
        %v8422 = vpop.f32.mrf.mxu0
        %v8423 = vadd.f32 0.0, %v8422
        %v8424 = vpop.f32.mrf.mxu0
        %v8425 = vpop.f32.mrf.mxu0
        %v8426 = vadd.f32 0.0, %v8425
        %v8427 = vpop.f32.mrf.mxu0
        %8428 = vmatprep.mubr.bf16.mxu0 0
        %8429 = vmatmul.mubr.bf16.gmra.mxu0 %v8334
        %v8430 = vpop.f32.mrf.mxu0
        %v8431 = vadd.f32 0.0, %v8430
        %v8432 = vpop.f32.mrf.mxu0
        %v8433 = vpop.f32.mrf.mxu0
        %v8434 = vadd.f32 0.0, %v8433
        %v8435 = vpop.f32.mrf.mxu0
        %8436 = vmatprep.mubr.bf16.mxu0 0
        %8437 = vmatmul.mubr.bf16.gmra.mxu0 %v8337
        %v8438 = vpop.f32.mrf.mxu0
        %v8439 = vadd.f32 0.0, %v8438
        %v8440 = vpop.f32.mrf.mxu0
        %v8441 = vpop.f32.mrf.mxu0
        %v8442 = vadd.f32 0.0, %v8441
        %v8443 = vpop.f32.mrf.mxu0
        %8444 = vmatprep.mubr.bf16.mxu0 0
        %8445 = vmatmul.mubr.bf16.gmra.mxu0 %v8340
        %v8446 = vpop.f32.mrf.mxu0
        %v8447 = vadd.f32 0.0, %v8446
        %v8448 = vpop.f32.mrf.mxu0
        %v8449 = vpop.f32.mrf.mxu0
        %v8450 = vadd.f32 0.0, %v8449
        %v8451 = vpop.f32.mrf.mxu0
        %8452 = vmatprep.mubr.bf16.mxu0 0
        %8453 = vmatmul.mubr.bf16.gmra.mxu0 %v8343
        %v8454 = vpop.f32.mrf.mxu0
        %v8455 = vadd.f32 0.0, %v8454
        %v8456 = vpop.f32.mrf.mxu0
        %v8457 = vpop.f32.mrf.mxu0
        %v8458 = vadd.f32 0.0, %v8457
        %v8459 = vpop.f32.mrf.mxu0
        %8460 = vmatprep.mubr.bf16.mxu0 0
        %8461 = vmatmul.mubr.bf16.gmra.mxu0 %v8346
        %v8462 = vpop.f32.mrf.mxu0
        %v8463 = vadd.f32 0.0, %v8462
        %v8464 = vpop.f32.mrf.mxu0
        %v8465 = vpop.f32.mrf.mxu0
        %v8466 = vadd.f32 0.0, %v8465
        %v8467 = vpop.f32.mrf.mxu0
        %8468 = vmatprep.mubr.bf16.mxu0 0
        %8469 = vmatmul.mubr.bf16.gmra.mxu0 %v8349
        %v8470 = vpop.f32.mrf.mxu0
        %v8471 = vadd.f32 0.0, %v8470
        %v8472 = vpop.f32.mrf.mxu0
        %v8473 = vpop.f32.mrf.mxu0
        %v8474 = vadd.f32 0.0, %v8473
        %v8475 = vpop.f32.mrf.mxu0
        %8476 = vmatprep.mubr.bf16.mxu0 0
        %8477 = vmatmul.mubr.bf16.gmra.mxu0 %v8352
        %v8478 = vpop.f32.mrf.mxu0
        %v8479 = vadd.f32 0.0, %v8478
        %v8480 = vpop.f32.mrf.mxu0
        %v8481 = vpop.f32.mrf.mxu0
        %v8482 = vadd.f32 0.0, %v8481
        %v8483 = vpop.f32.mrf.mxu0
        %8484 = vmatprep.mubr.bf16.mxu0 0
        %8485 = vmatmul.mubr.bf16.gmra.mxu0 %v8355
        %v8486 = vpop.f32.mrf.mxu0
        %v8487 = vadd.f32 0.0, %v8486
        %v8488 = vpop.f32.mrf.mxu0
        %v8489 = vpop.f32.mrf.mxu0
        %v8490 = vadd.f32 0.0, %v8489
        %v8491 = vpop.f32.mrf.mxu0
        %8492 = vmatprep.mubr.bf16.mxu0 0
        %8493 = vmatmul.mubr.bf16.gmra.mxu0 %v8358
        %v8494 = vpop.f32.mrf.mxu0
        %v8495 = vadd.f32 0.0, %v8494
        %v8496 = vpop.f32.mrf.mxu0
        %v8497 = vpop.f32.mrf.mxu0
        %v8498 = vadd.f32 0.0, %v8497
        %v8499 = vpop.f32.mrf.mxu0
        %8500 = vmatprep.mubr.bf16.mxu0 0
        %8501 = vmatmul.mubr.bf16.gmra.mxu0 %v8361
        %v8502 = vpop.f32.mrf.mxu0
        %v8503 = vadd.f32 0.0, %v8502
        %v8504 = vpop.f32.mrf.mxu0
        %v8505 = vpop.f32.mrf.mxu0
        %v8506 = vadd.f32 0.0, %v8505
        %v8507 = vpop.f32.mrf.mxu0
        %8508 = vmatprep.mubr.bf16.mxu0 0
        %8509 = vmatmul.mubr.bf16.gmra.mxu0 %v8364
        %v8510 = vpop.f32.mrf.mxu0
        %v8511 = vadd.f32 0.0, %v8510
        %v8512 = vpop.f32.mrf.mxu0
        %v8513 = vpop.f32.mrf.mxu0
        %v8514 = vadd.f32 0.0, %v8513
        %v8515 = vpop.f32.mrf.mxu0
        %8516 = vmatprep.mubr.bf16.mxu0 0
        %8517 = vmatmul.mubr.bf16.gmra.mxu0 %v8367
        %v8518 = vpop.f32.mrf.mxu0
        %v8519 = vadd.f32 0.0, %v8518
        %v8520 = vpop.f32.mrf.mxu0
        %v8521 = vpop.f32.mrf.mxu0
        %v8522 = vadd.f32 0.0, %v8521
        %v8523 = vpop.f32.mrf.mxu0
        %8524 = vmatprep.mubr.bf16.mxu0 0
        %8525 = vmatmul.mubr.bf16.gmra.mxu0 %v8370
        %v8526 = vpop.f32.mrf.mxu0
        %v8527 = vadd.f32 0.0, %v8526
        %v8528 = vpop.f32.mrf.mxu0
        %v8529 = vpop.f32.mrf.mxu0
        %v8530 = vadd.f32 0.0, %v8529
        %v8531 = vpop.f32.mrf.mxu0
        %8532 = vdwg.mxu0
        %v8533 = vadd.f32 %v8235, %v8407
        %v8534 = vadd.f32 %v8236, %v8410
        %v8535 = vadd.f32 %v8237, %v8415
        %v8536 = vadd.f32 %v8238, %v8418
        %v8537 = vadd.f32 %v8239, %v8423
        %v8538 = vadd.f32 %v8240, %v8426
        %v8539 = vadd.f32 %v8241, %v8431
        %v8540 = vadd.f32 %v8242, %v8434
        %v8541 = vadd.f32 %v8243, %v8439
        %v8542 = vadd.f32 %v8244, %v8442
        %v8543 = vadd.f32 %v8245, %v8447
        %v8544 = vadd.f32 %v8246, %v8450
        %v8545 = vadd.f32 %v8247, %v8455
        %v8546 = vadd.f32 %v8248, %v8458
        %v8547 = vadd.f32 %v8249, %v8463
        %v8548 = vadd.f32 %v8250, %v8466
        %v8549 = vadd.f32 %v8251, %v8471
        %v8550 = vadd.f32 %v8252, %v8474
        %v8551 = vadd.f32 %v8253, %v8479
        %v8552 = vadd.f32 %v8254, %v8482
        %v8553 = vadd.f32 %v8255, %v8487
        %v8554 = vadd.f32 %v8256, %v8490
        %v8555 = vadd.f32 %v8257, %v8495
        %v8556 = vadd.f32 %v8258, %v8498
        %v8557 = vadd.f32 %v8259, %v8503
        %v8558 = vadd.f32 %v8260, %v8506
        %v8559 = vadd.f32 %v8261, %v8511
        %v8560 = vadd.f32 %v8262, %v8514
        %v8561 = vadd.f32 %v8263, %v8519
        %v8562 = vadd.f32 %v8264, %v8522
        %v8563 = vadd.f32 %v8265, %v8527
        %v8564 = vadd.f32 %v8266, %v8530
        %v8565 = vld [vmem:[%s916 + $0x1] sm:$0xff]
        %v8566 = vld [vmem:[%s916 + $0x9] sm:$0xff]
        %v8567 = vld [vmem:[%s916 + $0x19] sm:$0xff]
        %v8568 = vld [vmem:[%s916 + $0x21] sm:$0xff]
        %v8569 = vld [vmem:[%s916 + $0x31] sm:$0xff]
        %v8570 = vld [vmem:[%s916 + $0x39] sm:$0xff]
        %v8571 = vld [vmem:[%s916 + $0x49] sm:$0xff]
        %v8572 = vld [vmem:[%s916 + $0x51] sm:$0xff]
        %v8573 = vld [vmem:[%s916 + $0x61] sm:$0xff]
        %v8574 = vld [vmem:[%s916 + $0x69] sm:$0xff]
        %v8575 = vld [vmem:[%s916 + $0x79] sm:$0xff]
        %v8576 = vld [vmem:[%s916 + $0x81] sm:$0xff]
        %v8577 = vld [vmem:[%s916 + $0x91] sm:$0xff]
        %v8578 = vld [vmem:[%s916 + $0x99] sm:$0xff]
        %v8579 = vld [vmem:[%s916 + $0xa9] sm:$0xff]
        %v8580 = vld [vmem:[%s916 + $0xb1] sm:$0xff]
        %v8581 = vld [vmem:[%s916 + $0xc1] sm:$0xff]
        %v8582 = vld [vmem:[%s916 + $0xc9] sm:$0xff]
        %v8583 = vld [vmem:[%s916 + $0xd9] sm:$0xff]
        %v8584 = vld [vmem:[%s916 + $0xe1] sm:$0xff]
        %v8585 = vld [vmem:[%s916 + $0xf1] sm:$0xff]
        %v8586 = vld [vmem:[%s916 + $0xf9] sm:$0xff]
        %v8587 = vld [vmem:[%s916 + $0x109] sm:$0xff]
        %v8588 = vld [vmem:[%s916 + $0x111] sm:$0xff]
        %v8589 = vld [vmem:[%s916 + $0x121] sm:$0xff]
        %v8590 = vld [vmem:[%s916 + $0x129] sm:$0xff]
        %v8591 = vld [vmem:[%s916 + $0x139] sm:$0xff]
        %v8592 = vld [vmem:[%s916 + $0x141] sm:$0xff]
        %v8593 = vld [vmem:[%s916 + $0x151] sm:$0xff]
        %v8594 = vld [vmem:[%s916 + $0x159] sm:$0xff]
        %v8595 = vld [vmem:[%s916 + $0x169] sm:$0xff]
        %v8596 = vld [vmem:[%s916 + $0x171] sm:$0xff]
        %v8597 = vpack.c.bf16 %v8566, %v8565
        %v8598 = vpack.c.bf16 %v8568, %v8567
        %v8599 = vpack.c.bf16 %v8570, %v8569
        %v8600 = vpack.c.bf16 %v8572, %v8571
        %v8601 = vpack.c.bf16 %v8574, %v8573
        %v8602 = vpack.c.bf16 %v8576, %v8575
        %v8603 = vpack.c.bf16 %v8578, %v8577
        %v8604 = vpack.c.bf16 %v8580, %v8579
        %v8605 = vpack.c.bf16 %v8582, %v8581
        %v8606 = vpack.c.bf16 %v8584, %v8583
        %v8607 = vpack.c.bf16 %v8586, %v8585
        %v8608 = vpack.c.bf16 %v8588, %v8587
        %v8609 = vpack.c.bf16 %v8590, %v8589
        %v8610 = vpack.c.bf16 %v8592, %v8591
        %v8611 = vpack.c.bf16 %v8594, %v8593
        %v8612 = vpack.c.bf16 %v8596, %v8595
        %s8613 = scalar_lea.vmem %s6, 176
        %v8614 = vld [vmem:[%s8613] sm:$0xf]
        %v8615 = vld [vmem:[%s8613 + $0x4] sm:$0xf]
        %v8618 = vunpack.c.l.b16 %v8614
        %v8619 = vunpack.c.l.b16 %v8615
        %v8620 = vpack.c.b16 %v8619, %v8618
        %v8623 = vsel %vm377, %v8597, 0
        %v8626 = vsel %vm377, %v8598, 0
        %v8629 = vsel %vm377, %v8599, 0
        %v8632 = vsel %vm377, %v8600, 0
        %v8635 = vsel %vm377, %v8601, 0
        %v8638 = vsel %vm377, %v8602, 0
        %v8641 = vsel %vm377, %v8603, 0
        %v8644 = vsel %vm377, %v8604, 0
        %v8647 = vsel %vm377, %v8605, 0
        %v8650 = vsel %vm377, %v8606, 0
        %v8653 = vsel %vm377, %v8607, 0
        %v8656 = vsel %vm377, %v8608, 0
        %v8659 = vsel %vm377, %v8609, 0
        %v8662 = vsel %vm377, %v8610, 0
        %v8665 = vsel %vm377, %v8611, 0
        %v8668 = vsel %vm377, %v8612, 0
        %8670 = vmatprep.subr.bf16.mxu0 0
        %8671 = vmatpush1.bf16.msra.mxu0 0
        %8672 = vmatprep.subr.bf16.mxu0 0
        %8673 = vmatpush1.bf16.msra.mxu0 0
        %8674 = vmatprep.subr.bf16.mxu0 0
        %8675 = vmatpush1.bf16.msra.mxu0 0
        %8676 = vmatprep.subr.bf16.mxu0 0
        %8677 = vmatpush1.bf16.msra.mxu0 0
        %8678 = vmatprep.subr.bf16.mxu0 0
        %8679 = vmatpush1.bf16.msra.mxu0 0
        %8680 = vmatprep.subr.bf16.mxu0 0
        %8681 = vmatpush1.bf16.msra.mxu0 0
        %8682 = vmatprep.subr.bf16.mxu0 0
        %8683 = vmatpush1.bf16.msra.mxu0 0
        %8684 = vmatprep.subr.bf16.mxu0 0
        %8685 = vmatpush1.bf16.msra.mxu0 %v8620
        %8686 = vmatprep.subr.bf16.mxu0 0
        %8687 = vmatpush2.bf16.msra.mxu0 0
        %8688 = vmatprep.subr.bf16.mxu0 0
        %8689 = vmatpush2.bf16.msra.mxu0 0
        %8690 = vmatprep.subr.bf16.mxu0 0
        %8691 = vmatpush2.bf16.msra.mxu0 0
        %8692 = vmatprep.subr.bf16.mxu0 0
        %8693 = vmatpush2.bf16.msra.mxu0 0
        %8694 = vmatprep.subr.bf16.mxu0 0
        %8695 = vmatpush2.bf16.msra.mxu0 0
        %8696 = vmatprep.subr.bf16.mxu0 0
        %8697 = vmatpush2.bf16.msra.mxu0 0
        %8698 = vmatprep.subr.bf16.mxu0 0
        %8699 = vmatpush2.bf16.msra.mxu0 0
        %8700 = vmatprep.subr.bf16.mxu0 0
        %8701 = vmatpush2.bf16.msra.mxu0 0
        %8702 = vmatprep.mubr.bf16.mxu0 0
        %8703 = vmatmul.mubr.bf16.gmra.mxu0 %v8623
        %v8704 = vpop.f32.mrf.mxu0
        %v8705 = vadd.f32 0.0, %v8704
        %v8706 = vpop.f32.mrf.mxu0
        %v8707 = vpop.f32.mrf.mxu0
        %v8708 = vadd.f32 0.0, %v8707
        %v8709 = vpop.f32.mrf.mxu0
        %8710 = vmatprep.mubr.bf16.mxu0 0
        %8711 = vmatmul.mubr.bf16.gmra.mxu0 %v8626
        %v8712 = vpop.f32.mrf.mxu0
        %v8713 = vadd.f32 0.0, %v8712
        %v8714 = vpop.f32.mrf.mxu0
        %v8715 = vpop.f32.mrf.mxu0
        %v8716 = vadd.f32 0.0, %v8715
        %v8717 = vpop.f32.mrf.mxu0
        %8718 = vmatprep.mubr.bf16.mxu0 0
        %8719 = vmatmul.mubr.bf16.gmra.mxu0 %v8629
        %v8720 = vpop.f32.mrf.mxu0
        %v8721 = vadd.f32 0.0, %v8720
        %v8722 = vpop.f32.mrf.mxu0
        %v8723 = vpop.f32.mrf.mxu0
        %v8724 = vadd.f32 0.0, %v8723
        %v8725 = vpop.f32.mrf.mxu0
        %8726 = vmatprep.mubr.bf16.mxu0 0
        %8727 = vmatmul.mubr.bf16.gmra.mxu0 %v8632
        %v8728 = vpop.f32.mrf.mxu0
        %v8729 = vadd.f32 0.0, %v8728
        %v8730 = vpop.f32.mrf.mxu0
        %v8731 = vpop.f32.mrf.mxu0
        %v8732 = vadd.f32 0.0, %v8731
        %v8733 = vpop.f32.mrf.mxu0
        %8734 = vmatprep.mubr.bf16.mxu0 0
        %8735 = vmatmul.mubr.bf16.gmra.mxu0 %v8635
        %v8736 = vpop.f32.mrf.mxu0
        %v8737 = vadd.f32 0.0, %v8736
        %v8738 = vpop.f32.mrf.mxu0
        %v8739 = vpop.f32.mrf.mxu0
        %v8740 = vadd.f32 0.0, %v8739
        %v8741 = vpop.f32.mrf.mxu0
        %8742 = vmatprep.mubr.bf16.mxu0 0
        %8743 = vmatmul.mubr.bf16.gmra.mxu0 %v8638
        %v8744 = vpop.f32.mrf.mxu0
        %v8745 = vadd.f32 0.0, %v8744
        %v8746 = vpop.f32.mrf.mxu0
        %v8747 = vpop.f32.mrf.mxu0
        %v8748 = vadd.f32 0.0, %v8747
        %v8749 = vpop.f32.mrf.mxu0
        %8750 = vmatprep.mubr.bf16.mxu0 0
        %8751 = vmatmul.mubr.bf16.gmra.mxu0 %v8641
        %v8752 = vpop.f32.mrf.mxu0
        %v8753 = vadd.f32 0.0, %v8752
        %v8754 = vpop.f32.mrf.mxu0
        %v8755 = vpop.f32.mrf.mxu0
        %v8756 = vadd.f32 0.0, %v8755
        %v8757 = vpop.f32.mrf.mxu0
        %8758 = vmatprep.mubr.bf16.mxu0 0
        %8759 = vmatmul.mubr.bf16.gmra.mxu0 %v8644
        %v8760 = vpop.f32.mrf.mxu0
        %v8761 = vadd.f32 0.0, %v8760
        %v8762 = vpop.f32.mrf.mxu0
        %v8763 = vpop.f32.mrf.mxu0
        %v8764 = vadd.f32 0.0, %v8763
        %v8765 = vpop.f32.mrf.mxu0
        %8766 = vmatprep.mubr.bf16.mxu0 0
        %8767 = vmatmul.mubr.bf16.gmra.mxu0 %v8647
        %v8768 = vpop.f32.mrf.mxu0
        %v8769 = vadd.f32 0.0, %v8768
        %v8770 = vpop.f32.mrf.mxu0
        %v8771 = vpop.f32.mrf.mxu0
        %v8772 = vadd.f32 0.0, %v8771
        %v8773 = vpop.f32.mrf.mxu0
        %8774 = vmatprep.mubr.bf16.mxu0 0
        %8775 = vmatmul.mubr.bf16.gmra.mxu0 %v8650
        %v8776 = vpop.f32.mrf.mxu0
        %v8777 = vadd.f32 0.0, %v8776
        %v8778 = vpop.f32.mrf.mxu0
        %v8779 = vpop.f32.mrf.mxu0
        %v8780 = vadd.f32 0.0, %v8779
        %v8781 = vpop.f32.mrf.mxu0
        %8782 = vmatprep.mubr.bf16.mxu0 0
        %8783 = vmatmul.mubr.bf16.gmra.mxu0 %v8653
        %v8784 = vpop.f32.mrf.mxu0
        %v8785 = vadd.f32 0.0, %v8784
        %v8786 = vpop.f32.mrf.mxu0
        %v8787 = vpop.f32.mrf.mxu0
        %v8788 = vadd.f32 0.0, %v8787
        %v8789 = vpop.f32.mrf.mxu0
        %8790 = vmatprep.mubr.bf16.mxu0 0
        %8791 = vmatmul.mubr.bf16.gmra.mxu0 %v8656
        %v8792 = vpop.f32.mrf.mxu0
        %v8793 = vadd.f32 0.0, %v8792
        %v8794 = vpop.f32.mrf.mxu0
        %v8795 = vpop.f32.mrf.mxu0
        %v8796 = vadd.f32 0.0, %v8795
        %v8797 = vpop.f32.mrf.mxu0
        %8798 = vmatprep.mubr.bf16.mxu0 0
        %8799 = vmatmul.mubr.bf16.gmra.mxu0 %v8659
        %v8800 = vpop.f32.mrf.mxu0
        %v8801 = vadd.f32 0.0, %v8800
        %v8802 = vpop.f32.mrf.mxu0
        %v8803 = vpop.f32.mrf.mxu0
        %v8804 = vadd.f32 0.0, %v8803
        %v8805 = vpop.f32.mrf.mxu0
        %8806 = vmatprep.mubr.bf16.mxu0 0
        %8807 = vmatmul.mubr.bf16.gmra.mxu0 %v8662
        %v8808 = vpop.f32.mrf.mxu0
        %v8809 = vadd.f32 0.0, %v8808
        %v8810 = vpop.f32.mrf.mxu0
        %v8811 = vpop.f32.mrf.mxu0
        %v8812 = vadd.f32 0.0, %v8811
        %v8813 = vpop.f32.mrf.mxu0
        %8814 = vmatprep.mubr.bf16.mxu0 0
        %8815 = vmatmul.mubr.bf16.gmra.mxu0 %v8665
        %v8816 = vpop.f32.mrf.mxu0
        %v8817 = vadd.f32 0.0, %v8816
        %v8818 = vpop.f32.mrf.mxu0
        %v8819 = vpop.f32.mrf.mxu0
        %v8820 = vadd.f32 0.0, %v8819
        %v8821 = vpop.f32.mrf.mxu0
        %8822 = vmatprep.mubr.bf16.mxu0 0
        %8823 = vmatmul.mubr.bf16.gmra.mxu0 %v8668
        %v8824 = vpop.f32.mrf.mxu0
        %v8825 = vadd.f32 0.0, %v8824
        %v8826 = vpop.f32.mrf.mxu0
        %v8827 = vpop.f32.mrf.mxu0
        %v8828 = vadd.f32 0.0, %v8827
        %v8829 = vpop.f32.mrf.mxu0
        %8830 = vdwg.mxu0
        %v8831 = vadd.f32 %v8533, %v8705
        %v8832 = vadd.f32 %v8534, %v8708
        %v8833 = vadd.f32 %v8535, %v8713
        %v8834 = vadd.f32 %v8536, %v8716
        %v8835 = vadd.f32 %v8537, %v8721
        %v8836 = vadd.f32 %v8538, %v8724
        %v8837 = vadd.f32 %v8539, %v8729
        %v8838 = vadd.f32 %v8540, %v8732
        %v8839 = vadd.f32 %v8541, %v8737
        %v8840 = vadd.f32 %v8542, %v8740
        %v8841 = vadd.f32 %v8543, %v8745
        %v8842 = vadd.f32 %v8544, %v8748
        %v8843 = vadd.f32 %v8545, %v8753
        %v8844 = vadd.f32 %v8546, %v8756
        %v8845 = vadd.f32 %v8547, %v8761
        %v8846 = vadd.f32 %v8548, %v8764
        %v8847 = vadd.f32 %v8549, %v8769
        %v8848 = vadd.f32 %v8550, %v8772
        %v8849 = vadd.f32 %v8551, %v8777
        %v8850 = vadd.f32 %v8552, %v8780
        %v8851 = vadd.f32 %v8553, %v8785
        %v8852 = vadd.f32 %v8554, %v8788
        %v8853 = vadd.f32 %v8555, %v8793
        %v8854 = vadd.f32 %v8556, %v8796
        %v8855 = vadd.f32 %v8557, %v8801
        %v8856 = vadd.f32 %v8558, %v8804
        %v8857 = vadd.f32 %v8559, %v8809
        %v8858 = vadd.f32 %v8560, %v8812
        %v8859 = vadd.f32 %v8561, %v8817
        %v8860 = vadd.f32 %v8562, %v8820
        %v8861 = vadd.f32 %v8563, %v8825
        %v8862 = vadd.f32 %v8564, %v8828
        %v8863 = vld [vmem:[%s916 + $0x2] sm:$0xff]
        %v8864 = vld [vmem:[%s916 + $0xa] sm:$0xff]
        %v8865 = vld [vmem:[%s916 + $0x1a] sm:$0xff]
        %v8866 = vld [vmem:[%s916 + $0x22] sm:$0xff]
        %v8867 = vld [vmem:[%s916 + $0x32] sm:$0xff]
        %v8868 = vld [vmem:[%s916 + $0x3a] sm:$0xff]
        %v8869 = vld [vmem:[%s916 + $0x4a] sm:$0xff]
        %v8870 = vld [vmem:[%s916 + $0x52] sm:$0xff]
        %v8871 = vld [vmem:[%s916 + $0x62] sm:$0xff]
        %v8872 = vld [vmem:[%s916 + $0x6a] sm:$0xff]
        %v8873 = vld [vmem:[%s916 + $0x7a] sm:$0xff]
        %v8874 = vld [vmem:[%s916 + $0x82] sm:$0xff]
        %v8875 = vld [vmem:[%s916 + $0x92] sm:$0xff]
        %v8876 = vld [vmem:[%s916 + $0x9a] sm:$0xff]
        %v8877 = vld [vmem:[%s916 + $0xaa] sm:$0xff]
        %v8878 = vld [vmem:[%s916 + $0xb2] sm:$0xff]
        %v8879 = vld [vmem:[%s916 + $0xc2] sm:$0xff]
        %v8880 = vld [vmem:[%s916 + $0xca] sm:$0xff]
        %v8881 = vld [vmem:[%s916 + $0xda] sm:$0xff]
        %v8882 = vld [vmem:[%s916 + $0xe2] sm:$0xff]
        %v8883 = vld [vmem:[%s916 + $0xf2] sm:$0xff]
        %v8884 = vld [vmem:[%s916 + $0xfa] sm:$0xff]
        %v8885 = vld [vmem:[%s916 + $0x10a] sm:$0xff]
        %v8886 = vld [vmem:[%s916 + $0x112] sm:$0xff]
        %v8887 = vld [vmem:[%s916 + $0x122] sm:$0xff]
        %v8888 = vld [vmem:[%s916 + $0x12a] sm:$0xff]
        %v8889 = vld [vmem:[%s916 + $0x13a] sm:$0xff]
        %v8890 = vld [vmem:[%s916 + $0x142] sm:$0xff]
        %v8891 = vld [vmem:[%s916 + $0x152] sm:$0xff]
        %v8892 = vld [vmem:[%s916 + $0x15a] sm:$0xff]
        %v8893 = vld [vmem:[%s916 + $0x16a] sm:$0xff]
        %v8894 = vld [vmem:[%s916 + $0x172] sm:$0xff]
        %v8895 = vpack.c.bf16 %v8864, %v8863
        %v8896 = vpack.c.bf16 %v8866, %v8865
        %v8897 = vpack.c.bf16 %v8868, %v8867
        %v8898 = vpack.c.bf16 %v8870, %v8869
        %v8899 = vpack.c.bf16 %v8872, %v8871
        %v8900 = vpack.c.bf16 %v8874, %v8873
        %v8901 = vpack.c.bf16 %v8876, %v8875
        %v8902 = vpack.c.bf16 %v8878, %v8877
        %v8903 = vpack.c.bf16 %v8880, %v8879
        %v8904 = vpack.c.bf16 %v8882, %v8881
        %v8905 = vpack.c.bf16 %v8884, %v8883
        %v8906 = vpack.c.bf16 %v8886, %v8885
        %v8907 = vpack.c.bf16 %v8888, %v8887
        %v8908 = vpack.c.bf16 %v8890, %v8889
        %v8909 = vpack.c.bf16 %v8892, %v8891
        %v8910 = vpack.c.bf16 %v8894, %v8893
        %s8911 = scalar_lea.vmem %s6, 184
        %v8912 = vld [vmem:[%s8911] sm:$0xf]
        %v8913 = vld [vmem:[%s8911 + $0x4] sm:$0xf]
        %v8916 = vunpack.c.l.b16 %v8912
        %v8917 = vunpack.c.l.b16 %v8913
        %v8918 = vpack.c.b16 %v8917, %v8916
        %v8921 = vsel %vm377, %v8895, 0
        %v8924 = vsel %vm377, %v8896, 0
        %v8927 = vsel %vm377, %v8897, 0
        %v8930 = vsel %vm377, %v8898, 0
        %v8933 = vsel %vm377, %v8899, 0
        %v8936 = vsel %vm377, %v8900, 0
        %v8939 = vsel %vm377, %v8901, 0
        %v8942 = vsel %vm377, %v8902, 0
        %v8945 = vsel %vm377, %v8903, 0
        %v8948 = vsel %vm377, %v8904, 0
        %v8951 = vsel %vm377, %v8905, 0
        %v8954 = vsel %vm377, %v8906, 0
        %v8957 = vsel %vm377, %v8907, 0
        %v8960 = vsel %vm377, %v8908, 0
        %v8963 = vsel %vm377, %v8909, 0
        %v8966 = vsel %vm377, %v8910, 0
        %8968 = vmatprep.subr.bf16.mxu0 0
        %8969 = vmatpush1.bf16.msra.mxu0 0
        %8970 = vmatprep.subr.bf16.mxu0 0
        %8971 = vmatpush1.bf16.msra.mxu0 0
        %8972 = vmatprep.subr.bf16.mxu0 0
        %8973 = vmatpush1.bf16.msra.mxu0 0
        %8974 = vmatprep.subr.bf16.mxu0 0
        %8975 = vmatpush1.bf16.msra.mxu0 0
        %8976 = vmatprep.subr.bf16.mxu0 0
        %8977 = vmatpush1.bf16.msra.mxu0 0
        %8978 = vmatprep.subr.bf16.mxu0 0
        %8979 = vmatpush1.bf16.msra.mxu0 0
        %8980 = vmatprep.subr.bf16.mxu0 0
        %8981 = vmatpush1.bf16.msra.mxu0 0
        %8982 = vmatprep.subr.bf16.mxu0 0
        %8983 = vmatpush1.bf16.msra.mxu0 %v8918
        %8984 = vmatprep.subr.bf16.mxu0 0
        %8985 = vmatpush2.bf16.msra.mxu0 0
        %8986 = vmatprep.subr.bf16.mxu0 0
        %8987 = vmatpush2.bf16.msra.mxu0 0
        %8988 = vmatprep.subr.bf16.mxu0 0
        %8989 = vmatpush2.bf16.msra.mxu0 0
        %8990 = vmatprep.subr.bf16.mxu0 0
        %8991 = vmatpush2.bf16.msra.mxu0 0
        %8992 = vmatprep.subr.bf16.mxu0 0
        %8993 = vmatpush2.bf16.msra.mxu0 0
        %8994 = vmatprep.subr.bf16.mxu0 0
        %8995 = vmatpush2.bf16.msra.mxu0 0
        %8996 = vmatprep.subr.bf16.mxu0 0
        %8997 = vmatpush2.bf16.msra.mxu0 0
        %8998 = vmatprep.subr.bf16.mxu0 0
        %8999 = vmatpush2.bf16.msra.mxu0 0
        %9000 = vmatprep.mubr.bf16.mxu0 0
        %9001 = vmatmul.mubr.bf16.gmra.mxu0 %v8921
        %v9002 = vpop.f32.mrf.mxu0
        %v9003 = vadd.f32 0.0, %v9002
        %v9004 = vpop.f32.mrf.mxu0
        %v9005 = vpop.f32.mrf.mxu0
        %v9006 = vadd.f32 0.0, %v9005
        %v9007 = vpop.f32.mrf.mxu0
        %9008 = vmatprep.mubr.bf16.mxu0 0
        %9009 = vmatmul.mubr.bf16.gmra.mxu0 %v8924
        %v9010 = vpop.f32.mrf.mxu0
        %v9011 = vadd.f32 0.0, %v9010
        %v9012 = vpop.f32.mrf.mxu0
        %v9013 = vpop.f32.mrf.mxu0
        %v9014 = vadd.f32 0.0, %v9013
        %v9015 = vpop.f32.mrf.mxu0
        %9016 = vmatprep.mubr.bf16.mxu0 0
        %9017 = vmatmul.mubr.bf16.gmra.mxu0 %v8927
        %v9018 = vpop.f32.mrf.mxu0
        %v9019 = vadd.f32 0.0, %v9018
        %v9020 = vpop.f32.mrf.mxu0
        %v9021 = vpop.f32.mrf.mxu0
        %v9022 = vadd.f32 0.0, %v9021
        %v9023 = vpop.f32.mrf.mxu0
        %9024 = vmatprep.mubr.bf16.mxu0 0
        %9025 = vmatmul.mubr.bf16.gmra.mxu0 %v8930
        %v9026 = vpop.f32.mrf.mxu0
        %v9027 = vadd.f32 0.0, %v9026
        %v9028 = vpop.f32.mrf.mxu0
        %v9029 = vpop.f32.mrf.mxu0
        %v9030 = vadd.f32 0.0, %v9029
        %v9031 = vpop.f32.mrf.mxu0
        %9032 = vmatprep.mubr.bf16.mxu0 0
        %9033 = vmatmul.mubr.bf16.gmra.mxu0 %v8933
        %v9034 = vpop.f32.mrf.mxu0
        %v9035 = vadd.f32 0.0, %v9034
        %v9036 = vpop.f32.mrf.mxu0
        %v9037 = vpop.f32.mrf.mxu0
        %v9038 = vadd.f32 0.0, %v9037
        %v9039 = vpop.f32.mrf.mxu0
        %9040 = vmatprep.mubr.bf16.mxu0 0
        %9041 = vmatmul.mubr.bf16.gmra.mxu0 %v8936
        %v9042 = vpop.f32.mrf.mxu0
        %v9043 = vadd.f32 0.0, %v9042
        %v9044 = vpop.f32.mrf.mxu0
        %v9045 = vpop.f32.mrf.mxu0
        %v9046 = vadd.f32 0.0, %v9045
        %v9047 = vpop.f32.mrf.mxu0
        %9048 = vmatprep.mubr.bf16.mxu0 0
        %9049 = vmatmul.mubr.bf16.gmra.mxu0 %v8939
        %v9050 = vpop.f32.mrf.mxu0
        %v9051 = vadd.f32 0.0, %v9050
        %v9052 = vpop.f32.mrf.mxu0
        %v9053 = vpop.f32.mrf.mxu0
        %v9054 = vadd.f32 0.0, %v9053
        %v9055 = vpop.f32.mrf.mxu0
        %9056 = vmatprep.mubr.bf16.mxu0 0
        %9057 = vmatmul.mubr.bf16.gmra.mxu0 %v8942
        %v9058 = vpop.f32.mrf.mxu0
        %v9059 = vadd.f32 0.0, %v9058
        %v9060 = vpop.f32.mrf.mxu0
        %v9061 = vpop.f32.mrf.mxu0
        %v9062 = vadd.f32 0.0, %v9061
        %v9063 = vpop.f32.mrf.mxu0
        %9064 = vmatprep.mubr.bf16.mxu0 0
        %9065 = vmatmul.mubr.bf16.gmra.mxu0 %v8945
        %v9066 = vpop.f32.mrf.mxu0
        %v9067 = vadd.f32 0.0, %v9066
        %v9068 = vpop.f32.mrf.mxu0
        %v9069 = vpop.f32.mrf.mxu0
        %v9070 = vadd.f32 0.0, %v9069
        %v9071 = vpop.f32.mrf.mxu0
        %9072 = vmatprep.mubr.bf16.mxu0 0
        %9073 = vmatmul.mubr.bf16.gmra.mxu0 %v8948
        %v9074 = vpop.f32.mrf.mxu0
        %v9075 = vadd.f32 0.0, %v9074
        %v9076 = vpop.f32.mrf.mxu0
        %v9077 = vpop.f32.mrf.mxu0
        %v9078 = vadd.f32 0.0, %v9077
        %v9079 = vpop.f32.mrf.mxu0
        %9080 = vmatprep.mubr.bf16.mxu0 0
        %9081 = vmatmul.mubr.bf16.gmra.mxu0 %v8951
        %v9082 = vpop.f32.mrf.mxu0
        %v9083 = vadd.f32 0.0, %v9082
        %v9084 = vpop.f32.mrf.mxu0
        %v9085 = vpop.f32.mrf.mxu0
        %v9086 = vadd.f32 0.0, %v9085
        %v9087 = vpop.f32.mrf.mxu0
        %9088 = vmatprep.mubr.bf16.mxu0 0
        %9089 = vmatmul.mubr.bf16.gmra.mxu0 %v8954
        %v9090 = vpop.f32.mrf.mxu0
        %v9091 = vadd.f32 0.0, %v9090
        %v9092 = vpop.f32.mrf.mxu0
        %v9093 = vpop.f32.mrf.mxu0
        %v9094 = vadd.f32 0.0, %v9093
        %v9095 = vpop.f32.mrf.mxu0
        %9096 = vmatprep.mubr.bf16.mxu0 0
        %9097 = vmatmul.mubr.bf16.gmra.mxu0 %v8957
        %v9098 = vpop.f32.mrf.mxu0
        %v9099 = vadd.f32 0.0, %v9098
        %v9100 = vpop.f32.mrf.mxu0
        %v9101 = vpop.f32.mrf.mxu0
        %v9102 = vadd.f32 0.0, %v9101
        %v9103 = vpop.f32.mrf.mxu0
        %9104 = vmatprep.mubr.bf16.mxu0 0
        %9105 = vmatmul.mubr.bf16.gmra.mxu0 %v8960
        %v9106 = vpop.f32.mrf.mxu0
        %v9107 = vadd.f32 0.0, %v9106
        %v9108 = vpop.f32.mrf.mxu0
        %v9109 = vpop.f32.mrf.mxu0
        %v9110 = vadd.f32 0.0, %v9109
        %v9111 = vpop.f32.mrf.mxu0
        %9112 = vmatprep.mubr.bf16.mxu0 0
        %9113 = vmatmul.mubr.bf16.gmra.mxu0 %v8963
        %v9114 = vpop.f32.mrf.mxu0
        %v9115 = vadd.f32 0.0, %v9114
        %v9116 = vpop.f32.mrf.mxu0
        %v9117 = vpop.f32.mrf.mxu0
        %v9118 = vadd.f32 0.0, %v9117
        %v9119 = vpop.f32.mrf.mxu0
        %9120 = vmatprep.mubr.bf16.mxu0 0
        %9121 = vmatmul.mubr.bf16.gmra.mxu0 %v8966
        %v9122 = vpop.f32.mrf.mxu0
        %v9123 = vadd.f32 0.0, %v9122
        %v9124 = vpop.f32.mrf.mxu0
        %v9125 = vpop.f32.mrf.mxu0
        %v9126 = vadd.f32 0.0, %v9125
        %v9127 = vpop.f32.mrf.mxu0
        %9128 = vdwg.mxu0
        %v9129 = vadd.f32 %v8831, %v9003
        %v9130 = vadd.f32 %v8832, %v9006
        %v9131 = vadd.f32 %v8833, %v9011
        %v9132 = vadd.f32 %v8834, %v9014
        %v9133 = vadd.f32 %v8835, %v9019
        %v9134 = vadd.f32 %v8836, %v9022
        %v9135 = vadd.f32 %v8837, %v9027
        %v9136 = vadd.f32 %v8838, %v9030
        %v9137 = vadd.f32 %v8839, %v9035
        %v9138 = vadd.f32 %v8840, %v9038
        %v9139 = vadd.f32 %v8841, %v9043
        %v9140 = vadd.f32 %v8842, %v9046
        %v9141 = vadd.f32 %v8843, %v9051
        %v9142 = vadd.f32 %v8844, %v9054
        %v9143 = vadd.f32 %v8845, %v9059
        %v9144 = vadd.f32 %v8846, %v9062
        %v9145 = vadd.f32 %v8847, %v9067
        %v9146 = vadd.f32 %v8848, %v9070
        %v9147 = vadd.f32 %v8849, %v9075
        %v9148 = vadd.f32 %v8850, %v9078
        %v9149 = vadd.f32 %v8851, %v9083
        %v9150 = vadd.f32 %v8852, %v9086
        %v9151 = vadd.f32 %v8853, %v9091
        %v9152 = vadd.f32 %v8854, %v9094
        %v9153 = vadd.f32 %v8855, %v9099
        %v9154 = vadd.f32 %v8856, %v9102
        %v9155 = vadd.f32 %v8857, %v9107
        %v9156 = vadd.f32 %v8858, %v9110
        %v9157 = vadd.f32 %v8859, %v9115
        %v9158 = vadd.f32 %v8860, %v9118
        %v9159 = vadd.f32 %v8861, %v9123
        %v9160 = vadd.f32 %v8862, %v9126
        %v9161 = vld [vmem:[%s2672] sm:$0xff]
        %v9162 = vld [vmem:[%s2672 + $0x8] sm:$0xff]
        %v9163 = vld [vmem:[%s2672 + $0x18] sm:$0xff]
        %v9164 = vld [vmem:[%s2672 + $0x20] sm:$0xff]
        %v9165 = vld [vmem:[%s2672 + $0x30] sm:$0xff]
        %v9166 = vld [vmem:[%s2672 + $0x38] sm:$0xff]
        %v9167 = vld [vmem:[%s2672 + $0x48] sm:$0xff]
        %v9168 = vld [vmem:[%s2672 + $0x50] sm:$0xff]
        %v9169 = vld [vmem:[%s2672 + $0x60] sm:$0xff]
        %v9170 = vld [vmem:[%s2672 + $0x68] sm:$0xff]
        %v9171 = vld [vmem:[%s2672 + $0x78] sm:$0xff]
        %v9172 = vld [vmem:[%s2672 + $0x80] sm:$0xff]
        %v9173 = vld [vmem:[%s2672 + $0x90] sm:$0xff]
        %v9174 = vld [vmem:[%s2672 + $0x98] sm:$0xff]
        %v9175 = vld [vmem:[%s2672 + $0xa8] sm:$0xff]
        %v9176 = vld [vmem:[%s2672 + $0xb0] sm:$0xff]
        %v9177 = vld [vmem:[%s2672 + $0xc0] sm:$0xff]
        %v9178 = vld [vmem:[%s2672 + $0xc8] sm:$0xff]
        %v9179 = vld [vmem:[%s2672 + $0xd8] sm:$0xff]
        %v9180 = vld [vmem:[%s2672 + $0xe0] sm:$0xff]
        %v9181 = vld [vmem:[%s2672 + $0xf0] sm:$0xff]
        %v9182 = vld [vmem:[%s2672 + $0xf8] sm:$0xff]
        %v9183 = vld [vmem:[%s2672 + $0x108] sm:$0xff]
        %v9184 = vld [vmem:[%s2672 + $0x110] sm:$0xff]
        %v9185 = vld [vmem:[%s2672 + $0x120] sm:$0xff]
        %v9186 = vld [vmem:[%s2672 + $0x128] sm:$0xff]
        %v9187 = vld [vmem:[%s2672 + $0x138] sm:$0xff]
        %v9188 = vld [vmem:[%s2672 + $0x140] sm:$0xff]
        %v9189 = vld [vmem:[%s2672 + $0x150] sm:$0xff]
        %v9190 = vld [vmem:[%s2672 + $0x158] sm:$0xff]
        %v9191 = vld [vmem:[%s2672 + $0x168] sm:$0xff]
        %v9192 = vld [vmem:[%s2672 + $0x170] sm:$0xff]
        %v9193 = vpack.c.bf16 %v9162, %v9161
        %v9194 = vpack.c.bf16 %v9164, %v9163
        %v9195 = vpack.c.bf16 %v9166, %v9165
        %v9196 = vpack.c.bf16 %v9168, %v9167
        %v9197 = vpack.c.bf16 %v9170, %v9169
        %v9198 = vpack.c.bf16 %v9172, %v9171
        %v9199 = vpack.c.bf16 %v9174, %v9173
        %v9200 = vpack.c.bf16 %v9176, %v9175
        %v9201 = vpack.c.bf16 %v9178, %v9177
        %v9202 = vpack.c.bf16 %v9180, %v9179
        %v9203 = vpack.c.bf16 %v9182, %v9181
        %v9204 = vpack.c.bf16 %v9184, %v9183
        %v9205 = vpack.c.bf16 %v9186, %v9185
        %v9206 = vpack.c.bf16 %v9188, %v9187
        %v9207 = vpack.c.bf16 %v9190, %v9189
        %v9208 = vpack.c.bf16 %v9192, %v9191
        %s9209 = scalar_lea.vmem %s6, 192
        %v9210 = vld [vmem:[%s9209] sm:$0xf]
        %v9211 = vld [vmem:[%s9209 + $0x4] sm:$0xf]
        %v9214 = vunpack.c.l.b16 %v9210
        %v9215 = vunpack.c.l.b16 %v9211
        %v9216 = vpack.c.b16 %v9215, %v9214
        %v9219 = vsel %vm377, %v9193, 0
        %v9222 = vsel %vm377, %v9194, 0
        %v9225 = vsel %vm377, %v9195, 0
        %v9228 = vsel %vm377, %v9196, 0
        %v9231 = vsel %vm377, %v9197, 0
        %v9234 = vsel %vm377, %v9198, 0
        %v9237 = vsel %vm377, %v9199, 0
        %v9240 = vsel %vm377, %v9200, 0
        %v9243 = vsel %vm377, %v9201, 0
        %v9246 = vsel %vm377, %v9202, 0
        %v9249 = vsel %vm377, %v9203, 0
        %v9252 = vsel %vm377, %v9204, 0
        %v9255 = vsel %vm377, %v9205, 0
        %v9258 = vsel %vm377, %v9206, 0
        %v9261 = vsel %vm377, %v9207, 0
        %v9264 = vsel %vm377, %v9208, 0
        %9266 = vmatprep.subr.bf16.mxu0 0
        %9267 = vmatpush1.bf16.msra.mxu0 0
        %9268 = vmatprep.subr.bf16.mxu0 0
        %9269 = vmatpush1.bf16.msra.mxu0 0
        %9270 = vmatprep.subr.bf16.mxu0 0
        %9271 = vmatpush1.bf16.msra.mxu0 0
        %9272 = vmatprep.subr.bf16.mxu0 0
        %9273 = vmatpush1.bf16.msra.mxu0 0
        %9274 = vmatprep.subr.bf16.mxu0 0
        %9275 = vmatpush1.bf16.msra.mxu0 0
        %9276 = vmatprep.subr.bf16.mxu0 0
        %9277 = vmatpush1.bf16.msra.mxu0 0
        %9278 = vmatprep.subr.bf16.mxu0 0
        %9279 = vmatpush1.bf16.msra.mxu0 0
        %9280 = vmatprep.subr.bf16.mxu0 0
        %9281 = vmatpush1.bf16.msra.mxu0 %v9216
        %9282 = vmatprep.subr.bf16.mxu0 0
        %9283 = vmatpush2.bf16.msra.mxu0 0
        %9284 = vmatprep.subr.bf16.mxu0 0
        %9285 = vmatpush2.bf16.msra.mxu0 0
        %9286 = vmatprep.subr.bf16.mxu0 0
        %9287 = vmatpush2.bf16.msra.mxu0 0
        %9288 = vmatprep.subr.bf16.mxu0 0
        %9289 = vmatpush2.bf16.msra.mxu0 0
        %9290 = vmatprep.subr.bf16.mxu0 0
        %9291 = vmatpush2.bf16.msra.mxu0 0
        %9292 = vmatprep.subr.bf16.mxu0 0
        %9293 = vmatpush2.bf16.msra.mxu0 0
        %9294 = vmatprep.subr.bf16.mxu0 0
        %9295 = vmatpush2.bf16.msra.mxu0 0
        %9296 = vmatprep.subr.bf16.mxu0 0
        %9297 = vmatpush2.bf16.msra.mxu0 0
        %9298 = vmatprep.mubr.bf16.mxu0 0
        %9299 = vmatmul.mubr.bf16.gmra.mxu0 %v9219
        %v9300 = vpop.f32.mrf.mxu0
        %v9301 = vadd.f32 0.0, %v9300
        %v9302 = vpop.f32.mrf.mxu0
        %v9303 = vpop.f32.mrf.mxu0
        %v9304 = vadd.f32 0.0, %v9303
        %v9305 = vpop.f32.mrf.mxu0
        %9306 = vmatprep.mubr.bf16.mxu0 0
        %9307 = vmatmul.mubr.bf16.gmra.mxu0 %v9222
        %v9308 = vpop.f32.mrf.mxu0
        %v9309 = vadd.f32 0.0, %v9308
        %v9310 = vpop.f32.mrf.mxu0
        %v9311 = vpop.f32.mrf.mxu0
        %v9312 = vadd.f32 0.0, %v9311
        %v9313 = vpop.f32.mrf.mxu0
        %9314 = vmatprep.mubr.bf16.mxu0 0
        %9315 = vmatmul.mubr.bf16.gmra.mxu0 %v9225
        %v9316 = vpop.f32.mrf.mxu0
        %v9317 = vadd.f32 0.0, %v9316
        %v9318 = vpop.f32.mrf.mxu0
        %v9319 = vpop.f32.mrf.mxu0
        %v9320 = vadd.f32 0.0, %v9319
        %v9321 = vpop.f32.mrf.mxu0
        %9322 = vmatprep.mubr.bf16.mxu0 0
        %9323 = vmatmul.mubr.bf16.gmra.mxu0 %v9228
        %v9324 = vpop.f32.mrf.mxu0
        %v9325 = vadd.f32 0.0, %v9324
        %v9326 = vpop.f32.mrf.mxu0
        %v9327 = vpop.f32.mrf.mxu0
        %v9328 = vadd.f32 0.0, %v9327
        %v9329 = vpop.f32.mrf.mxu0
        %9330 = vmatprep.mubr.bf16.mxu0 0
        %9331 = vmatmul.mubr.bf16.gmra.mxu0 %v9231
        %v9332 = vpop.f32.mrf.mxu0
        %v9333 = vadd.f32 0.0, %v9332
        %v9334 = vpop.f32.mrf.mxu0
        %v9335 = vpop.f32.mrf.mxu0
        %v9336 = vadd.f32 0.0, %v9335
        %v9337 = vpop.f32.mrf.mxu0
        %9338 = vmatprep.mubr.bf16.mxu0 0
        %9339 = vmatmul.mubr.bf16.gmra.mxu0 %v9234
        %v9340 = vpop.f32.mrf.mxu0
        %v9341 = vadd.f32 0.0, %v9340
        %v9342 = vpop.f32.mrf.mxu0
        %v9343 = vpop.f32.mrf.mxu0
        %v9344 = vadd.f32 0.0, %v9343
        %v9345 = vpop.f32.mrf.mxu0
        %9346 = vmatprep.mubr.bf16.mxu0 0
        %9347 = vmatmul.mubr.bf16.gmra.mxu0 %v9237
        %v9348 = vpop.f32.mrf.mxu0
        %v9349 = vadd.f32 0.0, %v9348
        %v9350 = vpop.f32.mrf.mxu0
        %v9351 = vpop.f32.mrf.mxu0
        %v9352 = vadd.f32 0.0, %v9351
        %v9353 = vpop.f32.mrf.mxu0
        %9354 = vmatprep.mubr.bf16.mxu0 0
        %9355 = vmatmul.mubr.bf16.gmra.mxu0 %v9240
        %v9356 = vpop.f32.mrf.mxu0
        %v9357 = vadd.f32 0.0, %v9356
        %v9358 = vpop.f32.mrf.mxu0
        %v9359 = vpop.f32.mrf.mxu0
        %v9360 = vadd.f32 0.0, %v9359
        %v9361 = vpop.f32.mrf.mxu0
        %9362 = vmatprep.mubr.bf16.mxu0 0
        %9363 = vmatmul.mubr.bf16.gmra.mxu0 %v9243
        %v9364 = vpop.f32.mrf.mxu0
        %v9365 = vadd.f32 0.0, %v9364
        %v9366 = vpop.f32.mrf.mxu0
        %v9367 = vpop.f32.mrf.mxu0
        %v9368 = vadd.f32 0.0, %v9367
        %v9369 = vpop.f32.mrf.mxu0
        %9370 = vmatprep.mubr.bf16.mxu0 0
        %9371 = vmatmul.mubr.bf16.gmra.mxu0 %v9246
        %v9372 = vpop.f32.mrf.mxu0
        %v9373 = vadd.f32 0.0, %v9372
        %v9374 = vpop.f32.mrf.mxu0
        %v9375 = vpop.f32.mrf.mxu0
        %v9376 = vadd.f32 0.0, %v9375
        %v9377 = vpop.f32.mrf.mxu0
        %9378 = vmatprep.mubr.bf16.mxu0 0
        %9379 = vmatmul.mubr.bf16.gmra.mxu0 %v9249
        %v9380 = vpop.f32.mrf.mxu0
        %v9381 = vadd.f32 0.0, %v9380
        %v9382 = vpop.f32.mrf.mxu0
        %v9383 = vpop.f32.mrf.mxu0
        %v9384 = vadd.f32 0.0, %v9383
        %v9385 = vpop.f32.mrf.mxu0
        %9386 = vmatprep.mubr.bf16.mxu0 0
        %9387 = vmatmul.mubr.bf16.gmra.mxu0 %v9252
        %v9388 = vpop.f32.mrf.mxu0
        %v9389 = vadd.f32 0.0, %v9388
        %v9390 = vpop.f32.mrf.mxu0
        %v9391 = vpop.f32.mrf.mxu0
        %v9392 = vadd.f32 0.0, %v9391
        %v9393 = vpop.f32.mrf.mxu0
        %9394 = vmatprep.mubr.bf16.mxu0 0
        %9395 = vmatmul.mubr.bf16.gmra.mxu0 %v9255
        %v9396 = vpop.f32.mrf.mxu0
        %v9397 = vadd.f32 0.0, %v9396
        %v9398 = vpop.f32.mrf.mxu0
        %v9399 = vpop.f32.mrf.mxu0
        %v9400 = vadd.f32 0.0, %v9399
        %v9401 = vpop.f32.mrf.mxu0
        %9402 = vmatprep.mubr.bf16.mxu0 0
        %9403 = vmatmul.mubr.bf16.gmra.mxu0 %v9258
        %v9404 = vpop.f32.mrf.mxu0
        %v9405 = vadd.f32 0.0, %v9404
        %v9406 = vpop.f32.mrf.mxu0
        %v9407 = vpop.f32.mrf.mxu0
        %v9408 = vadd.f32 0.0, %v9407
        %v9409 = vpop.f32.mrf.mxu0
        %9410 = vmatprep.mubr.bf16.mxu0 0
        %9411 = vmatmul.mubr.bf16.gmra.mxu0 %v9261
        %v9412 = vpop.f32.mrf.mxu0
        %v9413 = vadd.f32 0.0, %v9412
        %v9414 = vpop.f32.mrf.mxu0
        %v9415 = vpop.f32.mrf.mxu0
        %v9416 = vadd.f32 0.0, %v9415
        %v9417 = vpop.f32.mrf.mxu0
        %9418 = vmatprep.mubr.bf16.mxu0 0
        %9419 = vmatmul.mubr.bf16.gmra.mxu0 %v9264
        %v9420 = vpop.f32.mrf.mxu0
        %v9421 = vadd.f32 0.0, %v9420
        %v9422 = vpop.f32.mrf.mxu0
        %v9423 = vpop.f32.mrf.mxu0
        %v9424 = vadd.f32 0.0, %v9423
        %v9425 = vpop.f32.mrf.mxu0
        %9426 = vdwg.mxu0
        %v9427 = vadd.f32 %v9129, %v9301
        %v9428 = vadd.f32 %v9130, %v9304
        %v9429 = vadd.f32 %v9131, %v9309
        %v9430 = vadd.f32 %v9132, %v9312
        %v9431 = vadd.f32 %v9133, %v9317
        %v9432 = vadd.f32 %v9134, %v9320
        %v9433 = vadd.f32 %v9135, %v9325
        %v9434 = vadd.f32 %v9136, %v9328
        %v9435 = vadd.f32 %v9137, %v9333
        %v9436 = vadd.f32 %v9138, %v9336
        %v9437 = vadd.f32 %v9139, %v9341
        %v9438 = vadd.f32 %v9140, %v9344
        %v9439 = vadd.f32 %v9141, %v9349
        %v9440 = vadd.f32 %v9142, %v9352
        %v9441 = vadd.f32 %v9143, %v9357
        %v9442 = vadd.f32 %v9144, %v9360
        %v9443 = vadd.f32 %v9145, %v9365
        %v9444 = vadd.f32 %v9146, %v9368
        %v9445 = vadd.f32 %v9147, %v9373
        %v9446 = vadd.f32 %v9148, %v9376
        %v9447 = vadd.f32 %v9149, %v9381
        %v9448 = vadd.f32 %v9150, %v9384
        %v9449 = vadd.f32 %v9151, %v9389
        %v9450 = vadd.f32 %v9152, %v9392
        %v9451 = vadd.f32 %v9153, %v9397
        %v9452 = vadd.f32 %v9154, %v9400
        %v9453 = vadd.f32 %v9155, %v9405
        %v9454 = vadd.f32 %v9156, %v9408
        %v9455 = vadd.f32 %v9157, %v9413
        %v9456 = vadd.f32 %v9158, %v9416
        %v9457 = vadd.f32 %v9159, %v9421
        %v9458 = vadd.f32 %v9160, %v9424
        %v9459 = vld [vmem:[%s2672 + $0x1] sm:$0xff]
        %v9460 = vld [vmem:[%s2672 + $0x9] sm:$0xff]
        %v9461 = vld [vmem:[%s2672 + $0x19] sm:$0xff]
        %v9462 = vld [vmem:[%s2672 + $0x21] sm:$0xff]
        %v9463 = vld [vmem:[%s2672 + $0x31] sm:$0xff]
        %v9464 = vld [vmem:[%s2672 + $0x39] sm:$0xff]
        %v9465 = vld [vmem:[%s2672 + $0x49] sm:$0xff]
        %v9466 = vld [vmem:[%s2672 + $0x51] sm:$0xff]
        %v9467 = vld [vmem:[%s2672 + $0x61] sm:$0xff]
        %v9468 = vld [vmem:[%s2672 + $0x69] sm:$0xff]
        %v9469 = vld [vmem:[%s2672 + $0x79] sm:$0xff]
        %v9470 = vld [vmem:[%s2672 + $0x81] sm:$0xff]
        %v9471 = vld [vmem:[%s2672 + $0x91] sm:$0xff]
        %v9472 = vld [vmem:[%s2672 + $0x99] sm:$0xff]
        %v9473 = vld [vmem:[%s2672 + $0xa9] sm:$0xff]
        %v9474 = vld [vmem:[%s2672 + $0xb1] sm:$0xff]
        %v9475 = vld [vmem:[%s2672 + $0xc1] sm:$0xff]
        %v9476 = vld [vmem:[%s2672 + $0xc9] sm:$0xff]
        %v9477 = vld [vmem:[%s2672 + $0xd9] sm:$0xff]
        %v9478 = vld [vmem:[%s2672 + $0xe1] sm:$0xff]
        %v9479 = vld [vmem:[%s2672 + $0xf1] sm:$0xff]
        %v9480 = vld [vmem:[%s2672 + $0xf9] sm:$0xff]
        %v9481 = vld [vmem:[%s2672 + $0x109] sm:$0xff]
        %v9482 = vld [vmem:[%s2672 + $0x111] sm:$0xff]
        %v9483 = vld [vmem:[%s2672 + $0x121] sm:$0xff]
        %v9484 = vld [vmem:[%s2672 + $0x129] sm:$0xff]
        %v9485 = vld [vmem:[%s2672 + $0x139] sm:$0xff]
        %v9486 = vld [vmem:[%s2672 + $0x141] sm:$0xff]
        %v9487 = vld [vmem:[%s2672 + $0x151] sm:$0xff]
        %v9488 = vld [vmem:[%s2672 + $0x159] sm:$0xff]
        %v9489 = vld [vmem:[%s2672 + $0x169] sm:$0xff]
        %v9490 = vld [vmem:[%s2672 + $0x171] sm:$0xff]
        %v9491 = vpack.c.bf16 %v9460, %v9459
        %v9492 = vpack.c.bf16 %v9462, %v9461
        %v9493 = vpack.c.bf16 %v9464, %v9463
        %v9494 = vpack.c.bf16 %v9466, %v9465
        %v9495 = vpack.c.bf16 %v9468, %v9467
        %v9496 = vpack.c.bf16 %v9470, %v9469
        %v9497 = vpack.c.bf16 %v9472, %v9471
        %v9498 = vpack.c.bf16 %v9474, %v9473
        %v9499 = vpack.c.bf16 %v9476, %v9475
        %v9500 = vpack.c.bf16 %v9478, %v9477
        %v9501 = vpack.c.bf16 %v9480, %v9479
        %v9502 = vpack.c.bf16 %v9482, %v9481
        %v9503 = vpack.c.bf16 %v9484, %v9483
        %v9504 = vpack.c.bf16 %v9486, %v9485
        %v9505 = vpack.c.bf16 %v9488, %v9487
        %v9506 = vpack.c.bf16 %v9490, %v9489
        %s9507 = scalar_lea.vmem %s6, 200
        %v9508 = vld [vmem:[%s9507] sm:$0xf]
        %v9509 = vld [vmem:[%s9507 + $0x4] sm:$0xf]
        %v9512 = vunpack.c.l.b16 %v9508
        %v9513 = vunpack.c.l.b16 %v9509
        %v9514 = vpack.c.b16 %v9513, %v9512
        %v9517 = vsel %vm377, %v9491, 0
        %v9520 = vsel %vm377, %v9492, 0
        %v9523 = vsel %vm377, %v9493, 0
        %v9526 = vsel %vm377, %v9494, 0
        %v9529 = vsel %vm377, %v9495, 0
        %v9532 = vsel %vm377, %v9496, 0
        %v9535 = vsel %vm377, %v9497, 0
        %v9538 = vsel %vm377, %v9498, 0
        %v9541 = vsel %vm377, %v9499, 0
        %v9544 = vsel %vm377, %v9500, 0
        %v9547 = vsel %vm377, %v9501, 0
        %v9550 = vsel %vm377, %v9502, 0
        %v9553 = vsel %vm377, %v9503, 0
        %v9556 = vsel %vm377, %v9504, 0
        %v9559 = vsel %vm377, %v9505, 0
        %v9562 = vsel %vm377, %v9506, 0
        %9564 = vmatprep.subr.bf16.mxu0 0
        %9565 = vmatpush1.bf16.msra.mxu0 0
        %9566 = vmatprep.subr.bf16.mxu0 0
        %9567 = vmatpush1.bf16.msra.mxu0 0
        %9568 = vmatprep.subr.bf16.mxu0 0
        %9569 = vmatpush1.bf16.msra.mxu0 0
        %9570 = vmatprep.subr.bf16.mxu0 0
        %9571 = vmatpush1.bf16.msra.mxu0 0
        %9572 = vmatprep.subr.bf16.mxu0 0
        %9573 = vmatpush1.bf16.msra.mxu0 0
        %9574 = vmatprep.subr.bf16.mxu0 0
        %9575 = vmatpush1.bf16.msra.mxu0 0
        %9576 = vmatprep.subr.bf16.mxu0 0
        %9577 = vmatpush1.bf16.msra.mxu0 0
        %9578 = vmatprep.subr.bf16.mxu0 0
        %9579 = vmatpush1.bf16.msra.mxu0 %v9514
        %9580 = vmatprep.subr.bf16.mxu0 0
        %9581 = vmatpush2.bf16.msra.mxu0 0
        %9582 = vmatprep.subr.bf16.mxu0 0
        %9583 = vmatpush2.bf16.msra.mxu0 0
        %9584 = vmatprep.subr.bf16.mxu0 0
        %9585 = vmatpush2.bf16.msra.mxu0 0
        %9586 = vmatprep.subr.bf16.mxu0 0
        %9587 = vmatpush2.bf16.msra.mxu0 0
        %9588 = vmatprep.subr.bf16.mxu0 0
        %9589 = vmatpush2.bf16.msra.mxu0 0
        %9590 = vmatprep.subr.bf16.mxu0 0
        %9591 = vmatpush2.bf16.msra.mxu0 0
        %9592 = vmatprep.subr.bf16.mxu0 0
        %9593 = vmatpush2.bf16.msra.mxu0 0
        %9594 = vmatprep.subr.bf16.mxu0 0
        %9595 = vmatpush2.bf16.msra.mxu0 0
        %9596 = vmatprep.mubr.bf16.mxu0 0
        %9597 = vmatmul.mubr.bf16.gmra.mxu0 %v9517
        %v9598 = vpop.f32.mrf.mxu0
        %v9599 = vadd.f32 0.0, %v9598
        %v9600 = vpop.f32.mrf.mxu0
        %v9601 = vpop.f32.mrf.mxu0
        %v9602 = vadd.f32 0.0, %v9601
        %v9603 = vpop.f32.mrf.mxu0
        %9604 = vmatprep.mubr.bf16.mxu0 0
        %9605 = vmatmul.mubr.bf16.gmra.mxu0 %v9520
        %v9606 = vpop.f32.mrf.mxu0
        %v9607 = vadd.f32 0.0, %v9606
        %v9608 = vpop.f32.mrf.mxu0
        %v9609 = vpop.f32.mrf.mxu0
        %v9610 = vadd.f32 0.0, %v9609
        %v9611 = vpop.f32.mrf.mxu0
        %9612 = vmatprep.mubr.bf16.mxu0 0
        %9613 = vmatmul.mubr.bf16.gmra.mxu0 %v9523
        %v9614 = vpop.f32.mrf.mxu0
        %v9615 = vadd.f32 0.0, %v9614
        %v9616 = vpop.f32.mrf.mxu0
        %v9617 = vpop.f32.mrf.mxu0
        %v9618 = vadd.f32 0.0, %v9617
        %v9619 = vpop.f32.mrf.mxu0
        %9620 = vmatprep.mubr.bf16.mxu0 0
        %9621 = vmatmul.mubr.bf16.gmra.mxu0 %v9526
        %v9622 = vpop.f32.mrf.mxu0
        %v9623 = vadd.f32 0.0, %v9622
        %v9624 = vpop.f32.mrf.mxu0
        %v9625 = vpop.f32.mrf.mxu0
        %v9626 = vadd.f32 0.0, %v9625
        %v9627 = vpop.f32.mrf.mxu0
        %9628 = vmatprep.mubr.bf16.mxu0 0
        %9629 = vmatmul.mubr.bf16.gmra.mxu0 %v9529
        %v9630 = vpop.f32.mrf.mxu0
        %v9631 = vadd.f32 0.0, %v9630
        %v9632 = vpop.f32.mrf.mxu0
        %v9633 = vpop.f32.mrf.mxu0
        %v9634 = vadd.f32 0.0, %v9633
        %v9635 = vpop.f32.mrf.mxu0
        %9636 = vmatprep.mubr.bf16.mxu0 0
        %9637 = vmatmul.mubr.bf16.gmra.mxu0 %v9532
        %v9638 = vpop.f32.mrf.mxu0
        %v9639 = vadd.f32 0.0, %v9638
        %v9640 = vpop.f32.mrf.mxu0
        %v9641 = vpop.f32.mrf.mxu0
        %v9642 = vadd.f32 0.0, %v9641
        %v9643 = vpop.f32.mrf.mxu0
        %9644 = vmatprep.mubr.bf16.mxu0 0
        %9645 = vmatmul.mubr.bf16.gmra.mxu0 %v9535
        %v9646 = vpop.f32.mrf.mxu0
        %v9647 = vadd.f32 0.0, %v9646
        %v9648 = vpop.f32.mrf.mxu0
        %v9649 = vpop.f32.mrf.mxu0
        %v9650 = vadd.f32 0.0, %v9649
        %v9651 = vpop.f32.mrf.mxu0
        %9652 = vmatprep.mubr.bf16.mxu0 0
        %9653 = vmatmul.mubr.bf16.gmra.mxu0 %v9538
        %v9654 = vpop.f32.mrf.mxu0
        %v9655 = vadd.f32 0.0, %v9654
        %v9656 = vpop.f32.mrf.mxu0
        %v9657 = vpop.f32.mrf.mxu0
        %v9658 = vadd.f32 0.0, %v9657
        %v9659 = vpop.f32.mrf.mxu0
        %9660 = vmatprep.mubr.bf16.mxu0 0
        %9661 = vmatmul.mubr.bf16.gmra.mxu0 %v9541
        %v9662 = vpop.f32.mrf.mxu0
        %v9663 = vadd.f32 0.0, %v9662
        %v9664 = vpop.f32.mrf.mxu0
        %v9665 = vpop.f32.mrf.mxu0
        %v9666 = vadd.f32 0.0, %v9665
        %v9667 = vpop.f32.mrf.mxu0
        %9668 = vmatprep.mubr.bf16.mxu0 0
        %9669 = vmatmul.mubr.bf16.gmra.mxu0 %v9544
        %v9670 = vpop.f32.mrf.mxu0
        %v9671 = vadd.f32 0.0, %v9670
        %v9672 = vpop.f32.mrf.mxu0
        %v9673 = vpop.f32.mrf.mxu0
        %v9674 = vadd.f32 0.0, %v9673
        %v9675 = vpop.f32.mrf.mxu0
        %9676 = vmatprep.mubr.bf16.mxu0 0
        %9677 = vmatmul.mubr.bf16.gmra.mxu0 %v9547
        %v9678 = vpop.f32.mrf.mxu0
        %v9679 = vadd.f32 0.0, %v9678
        %v9680 = vpop.f32.mrf.mxu0
        %v9681 = vpop.f32.mrf.mxu0
        %v9682 = vadd.f32 0.0, %v9681
        %v9683 = vpop.f32.mrf.mxu0
        %9684 = vmatprep.mubr.bf16.mxu0 0
        %9685 = vmatmul.mubr.bf16.gmra.mxu0 %v9550
        %v9686 = vpop.f32.mrf.mxu0
        %v9687 = vadd.f32 0.0, %v9686
        %v9688 = vpop.f32.mrf.mxu0
        %v9689 = vpop.f32.mrf.mxu0
        %v9690 = vadd.f32 0.0, %v9689
        %v9691 = vpop.f32.mrf.mxu0
        %9692 = vmatprep.mubr.bf16.mxu0 0
        %9693 = vmatmul.mubr.bf16.gmra.mxu0 %v9553
        %v9694 = vpop.f32.mrf.mxu0
        %v9695 = vadd.f32 0.0, %v9694
        %v9696 = vpop.f32.mrf.mxu0
        %v9697 = vpop.f32.mrf.mxu0
        %v9698 = vadd.f32 0.0, %v9697
        %v9699 = vpop.f32.mrf.mxu0
        %9700 = vmatprep.mubr.bf16.mxu0 0
        %9701 = vmatmul.mubr.bf16.gmra.mxu0 %v9556
        %v9702 = vpop.f32.mrf.mxu0
        %v9703 = vadd.f32 0.0, %v9702
        %v9704 = vpop.f32.mrf.mxu0
        %v9705 = vpop.f32.mrf.mxu0
        %v9706 = vadd.f32 0.0, %v9705
        %v9707 = vpop.f32.mrf.mxu0
        %9708 = vmatprep.mubr.bf16.mxu0 0
        %9709 = vmatmul.mubr.bf16.gmra.mxu0 %v9559
        %v9710 = vpop.f32.mrf.mxu0
        %v9711 = vadd.f32 0.0, %v9710
        %v9712 = vpop.f32.mrf.mxu0
        %v9713 = vpop.f32.mrf.mxu0
        %v9714 = vadd.f32 0.0, %v9713
        %v9715 = vpop.f32.mrf.mxu0
        %9716 = vmatprep.mubr.bf16.mxu0 0
        %9717 = vmatmul.mubr.bf16.gmra.mxu0 %v9562
        %v9718 = vpop.f32.mrf.mxu0
        %v9719 = vadd.f32 0.0, %v9718
        %v9720 = vpop.f32.mrf.mxu0
        %v9721 = vpop.f32.mrf.mxu0
        %v9722 = vadd.f32 0.0, %v9721
        %v9723 = vpop.f32.mrf.mxu0
        %9724 = vdwg.mxu0
        %v9725 = vadd.f32 %v9427, %v9599
        %v9726 = vadd.f32 %v9428, %v9602
        %v9727 = vadd.f32 %v9429, %v9607
        %v9728 = vadd.f32 %v9430, %v9610
        %v9729 = vadd.f32 %v9431, %v9615
        %v9730 = vadd.f32 %v9432, %v9618
        %v9731 = vadd.f32 %v9433, %v9623
        %v9732 = vadd.f32 %v9434, %v9626
        %v9733 = vadd.f32 %v9435, %v9631
        %v9734 = vadd.f32 %v9436, %v9634
        %v9735 = vadd.f32 %v9437, %v9639
        %v9736 = vadd.f32 %v9438, %v9642
        %v9737 = vadd.f32 %v9439, %v9647
        %v9738 = vadd.f32 %v9440, %v9650
        %v9739 = vadd.f32 %v9441, %v9655
        %v9740 = vadd.f32 %v9442, %v9658
        %v9741 = vadd.f32 %v9443, %v9663
        %v9742 = vadd.f32 %v9444, %v9666
        %v9743 = vadd.f32 %v9445, %v9671
        %v9744 = vadd.f32 %v9446, %v9674
        %v9745 = vadd.f32 %v9447, %v9679
        %v9746 = vadd.f32 %v9448, %v9682
        %v9747 = vadd.f32 %v9449, %v9687
        %v9748 = vadd.f32 %v9450, %v9690
        %v9749 = vadd.f32 %v9451, %v9695
        %v9750 = vadd.f32 %v9452, %v9698
        %v9751 = vadd.f32 %v9453, %v9703
        %v9752 = vadd.f32 %v9454, %v9706
        %v9753 = vadd.f32 %v9455, %v9711
        %v9754 = vadd.f32 %v9456, %v9714
        %v9755 = vadd.f32 %v9457, %v9719
        %v9756 = vadd.f32 %v9458, %v9722
        %v9757 = vld [vmem:[%s2672 + $0x2] sm:$0xff]
        %v9758 = vld [vmem:[%s2672 + $0xa] sm:$0xff]
        %v9759 = vld [vmem:[%s2672 + $0x1a] sm:$0xff]
        %v9760 = vld [vmem:[%s2672 + $0x22] sm:$0xff]
        %v9761 = vld [vmem:[%s2672 + $0x32] sm:$0xff]
        %v9762 = vld [vmem:[%s2672 + $0x3a] sm:$0xff]
        %v9763 = vld [vmem:[%s2672 + $0x4a] sm:$0xff]
        %v9764 = vld [vmem:[%s2672 + $0x52] sm:$0xff]
        %v9765 = vld [vmem:[%s2672 + $0x62] sm:$0xff]
        %v9766 = vld [vmem:[%s2672 + $0x6a] sm:$0xff]
        %v9767 = vld [vmem:[%s2672 + $0x7a] sm:$0xff]
        %v9768 = vld [vmem:[%s2672 + $0x82] sm:$0xff]
        %v9769 = vld [vmem:[%s2672 + $0x92] sm:$0xff]
        %v9770 = vld [vmem:[%s2672 + $0x9a] sm:$0xff]
        %v9771 = vld [vmem:[%s2672 + $0xaa] sm:$0xff]
        %v9772 = vld [vmem:[%s2672 + $0xb2] sm:$0xff]
        %v9773 = vld [vmem:[%s2672 + $0xc2] sm:$0xff]
        %v9774 = vld [vmem:[%s2672 + $0xca] sm:$0xff]
        %v9775 = vld [vmem:[%s2672 + $0xda] sm:$0xff]
        %v9776 = vld [vmem:[%s2672 + $0xe2] sm:$0xff]
        %v9777 = vld [vmem:[%s2672 + $0xf2] sm:$0xff]
        %v9778 = vld [vmem:[%s2672 + $0xfa] sm:$0xff]
        %v9779 = vld [vmem:[%s2672 + $0x10a] sm:$0xff]
        %v9780 = vld [vmem:[%s2672 + $0x112] sm:$0xff]
        %v9781 = vld [vmem:[%s2672 + $0x122] sm:$0xff]
        %v9782 = vld [vmem:[%s2672 + $0x12a] sm:$0xff]
        %v9783 = vld [vmem:[%s2672 + $0x13a] sm:$0xff]
        %v9784 = vld [vmem:[%s2672 + $0x142] sm:$0xff]
        %v9785 = vld [vmem:[%s2672 + $0x152] sm:$0xff]
        %v9786 = vld [vmem:[%s2672 + $0x15a] sm:$0xff]
        %v9787 = vld [vmem:[%s2672 + $0x16a] sm:$0xff]
        %v9788 = vld [vmem:[%s2672 + $0x172] sm:$0xff]
        %v9789 = vpack.c.bf16 %v9758, %v9757
        %v9790 = vpack.c.bf16 %v9760, %v9759
        %v9791 = vpack.c.bf16 %v9762, %v9761
        %v9792 = vpack.c.bf16 %v9764, %v9763
        %v9793 = vpack.c.bf16 %v9766, %v9765
        %v9794 = vpack.c.bf16 %v9768, %v9767
        %v9795 = vpack.c.bf16 %v9770, %v9769
        %v9796 = vpack.c.bf16 %v9772, %v9771
        %v9797 = vpack.c.bf16 %v9774, %v9773
        %v9798 = vpack.c.bf16 %v9776, %v9775
        %v9799 = vpack.c.bf16 %v9778, %v9777
        %v9800 = vpack.c.bf16 %v9780, %v9779
        %v9801 = vpack.c.bf16 %v9782, %v9781
        %v9802 = vpack.c.bf16 %v9784, %v9783
        %v9803 = vpack.c.bf16 %v9786, %v9785
        %v9804 = vpack.c.bf16 %v9788, %v9787
        %s9805 = scalar_lea.vmem %s6, 208
        %v9806 = vld [vmem:[%s9805] sm:$0xf]
        %v9807 = vld [vmem:[%s9805 + $0x4] sm:$0xf]
        %v9810 = vunpack.c.l.b16 %v9806
        %v9811 = vunpack.c.l.b16 %v9807
        %v9812 = vpack.c.b16 %v9811, %v9810
        %v9815 = vsel %vm377, %v9789, 0
        %v9818 = vsel %vm377, %v9790, 0
        %v9821 = vsel %vm377, %v9791, 0
        %v9824 = vsel %vm377, %v9792, 0
        %v9827 = vsel %vm377, %v9793, 0
        %v9830 = vsel %vm377, %v9794, 0
        %v9833 = vsel %vm377, %v9795, 0
        %v9836 = vsel %vm377, %v9796, 0
        %v9839 = vsel %vm377, %v9797, 0
        %v9842 = vsel %vm377, %v9798, 0
        %v9845 = vsel %vm377, %v9799, 0
        %v9848 = vsel %vm377, %v9800, 0
        %v9851 = vsel %vm377, %v9801, 0
        %v9854 = vsel %vm377, %v9802, 0
        %v9857 = vsel %vm377, %v9803, 0
        %v9860 = vsel %vm377, %v9804, 0
        %9862 = vmatprep.subr.bf16.mxu0 0
        %9863 = vmatpush1.bf16.msra.mxu0 0
        %9864 = vmatprep.subr.bf16.mxu0 0
        %9865 = vmatpush1.bf16.msra.mxu0 0
        %9866 = vmatprep.subr.bf16.mxu0 0
        %9867 = vmatpush1.bf16.msra.mxu0 0
        %9868 = vmatprep.subr.bf16.mxu0 0
        %9869 = vmatpush1.bf16.msra.mxu0 0
        %9870 = vmatprep.subr.bf16.mxu0 0
        %9871 = vmatpush1.bf16.msra.mxu0 0
        %9872 = vmatprep.subr.bf16.mxu0 0
        %9873 = vmatpush1.bf16.msra.mxu0 0
        %9874 = vmatprep.subr.bf16.mxu0 0
        %9875 = vmatpush1.bf16.msra.mxu0 0
        %9876 = vmatprep.subr.bf16.mxu0 0
        %9877 = vmatpush1.bf16.msra.mxu0 %v9812
        %9878 = vmatprep.subr.bf16.mxu0 0
        %9879 = vmatpush2.bf16.msra.mxu0 0
        %9880 = vmatprep.subr.bf16.mxu0 0
        %9881 = vmatpush2.bf16.msra.mxu0 0
        %9882 = vmatprep.subr.bf16.mxu0 0
        %9883 = vmatpush2.bf16.msra.mxu0 0
        %9884 = vmatprep.subr.bf16.mxu0 0
        %9885 = vmatpush2.bf16.msra.mxu0 0
        %9886 = vmatprep.subr.bf16.mxu0 0
        %9887 = vmatpush2.bf16.msra.mxu0 0
        %9888 = vmatprep.subr.bf16.mxu0 0
        %9889 = vmatpush2.bf16.msra.mxu0 0
        %9890 = vmatprep.subr.bf16.mxu0 0
        %9891 = vmatpush2.bf16.msra.mxu0 0
        %9892 = vmatprep.subr.bf16.mxu0 0
        %9893 = vmatpush2.bf16.msra.mxu0 0
        %9894 = vmatprep.mubr.bf16.mxu0 0
        %9895 = vmatmul.mubr.bf16.gmra.mxu0 %v9815
        %v9896 = vpop.f32.mrf.mxu0
        %v9897 = vadd.f32 0.0, %v9896
        %v9898 = vpop.f32.mrf.mxu0
        %v9899 = vpop.f32.mrf.mxu0
        %v9900 = vadd.f32 0.0, %v9899
        %v9901 = vpop.f32.mrf.mxu0
        %9902 = vmatprep.mubr.bf16.mxu0 0
        %9903 = vmatmul.mubr.bf16.gmra.mxu0 %v9818
        %v9904 = vpop.f32.mrf.mxu0
        %v9905 = vadd.f32 0.0, %v9904
        %v9906 = vpop.f32.mrf.mxu0
        %v9907 = vpop.f32.mrf.mxu0
        %v9908 = vadd.f32 0.0, %v9907
        %v9909 = vpop.f32.mrf.mxu0
        %9910 = vmatprep.mubr.bf16.mxu0 0
        %9911 = vmatmul.mubr.bf16.gmra.mxu0 %v9821
        %v9912 = vpop.f32.mrf.mxu0
        %v9913 = vadd.f32 0.0, %v9912
        %v9914 = vpop.f32.mrf.mxu0
        %v9915 = vpop.f32.mrf.mxu0
        %v9916 = vadd.f32 0.0, %v9915
        %v9917 = vpop.f32.mrf.mxu0
        %9918 = vmatprep.mubr.bf16.mxu0 0
        %9919 = vmatmul.mubr.bf16.gmra.mxu0 %v9824
        %v9920 = vpop.f32.mrf.mxu0
        %v9921 = vadd.f32 0.0, %v9920
        %v9922 = vpop.f32.mrf.mxu0
        %v9923 = vpop.f32.mrf.mxu0
        %v9924 = vadd.f32 0.0, %v9923
        %v9925 = vpop.f32.mrf.mxu0
        %9926 = vmatprep.mubr.bf16.mxu0 0
        %9927 = vmatmul.mubr.bf16.gmra.mxu0 %v9827
        %v9928 = vpop.f32.mrf.mxu0
        %v9929 = vadd.f32 0.0, %v9928
        %v9930 = vpop.f32.mrf.mxu0
        %v9931 = vpop.f32.mrf.mxu0
        %v9932 = vadd.f32 0.0, %v9931
        %v9933 = vpop.f32.mrf.mxu0
        %9934 = vmatprep.mubr.bf16.mxu0 0
        %9935 = vmatmul.mubr.bf16.gmra.mxu0 %v9830
        %v9936 = vpop.f32.mrf.mxu0
        %v9937 = vadd.f32 0.0, %v9936
        %v9938 = vpop.f32.mrf.mxu0
        %v9939 = vpop.f32.mrf.mxu0
        %v9940 = vadd.f32 0.0, %v9939
        %v9941 = vpop.f32.mrf.mxu0
        %9942 = vmatprep.mubr.bf16.mxu0 0
        %9943 = vmatmul.mubr.bf16.gmra.mxu0 %v9833
        %v9944 = vpop.f32.mrf.mxu0
        %v9945 = vadd.f32 0.0, %v9944
        %v9946 = vpop.f32.mrf.mxu0
        %v9947 = vpop.f32.mrf.mxu0
        %v9948 = vadd.f32 0.0, %v9947
        %v9949 = vpop.f32.mrf.mxu0
        %9950 = vmatprep.mubr.bf16.mxu0 0
        %9951 = vmatmul.mubr.bf16.gmra.mxu0 %v9836
        %v9952 = vpop.f32.mrf.mxu0
        %v9953 = vadd.f32 0.0, %v9952
        %v9954 = vpop.f32.mrf.mxu0
        %v9955 = vpop.f32.mrf.mxu0
        %v9956 = vadd.f32 0.0, %v9955
        %v9957 = vpop.f32.mrf.mxu0
        %9958 = vmatprep.mubr.bf16.mxu0 0
        %9959 = vmatmul.mubr.bf16.gmra.mxu0 %v9839
        %v9960 = vpop.f32.mrf.mxu0
        %v9961 = vadd.f32 0.0, %v9960
        %v9962 = vpop.f32.mrf.mxu0
        %v9963 = vpop.f32.mrf.mxu0
        %v9964 = vadd.f32 0.0, %v9963
        %v9965 = vpop.f32.mrf.mxu0
        %9966 = vmatprep.mubr.bf16.mxu0 0
        %9967 = vmatmul.mubr.bf16.gmra.mxu0 %v9842
        %v9968 = vpop.f32.mrf.mxu0
        %v9969 = vadd.f32 0.0, %v9968
        %v9970 = vpop.f32.mrf.mxu0
        %v9971 = vpop.f32.mrf.mxu0
        %v9972 = vadd.f32 0.0, %v9971
        %v9973 = vpop.f32.mrf.mxu0
        %9974 = vmatprep.mubr.bf16.mxu0 0
        %9975 = vmatmul.mubr.bf16.gmra.mxu0 %v9845
        %v9976 = vpop.f32.mrf.mxu0
        %v9977 = vadd.f32 0.0, %v9976
        %v9978 = vpop.f32.mrf.mxu0
        %v9979 = vpop.f32.mrf.mxu0
        %v9980 = vadd.f32 0.0, %v9979
        %v9981 = vpop.f32.mrf.mxu0
        %9982 = vmatprep.mubr.bf16.mxu0 0
        %9983 = vmatmul.mubr.bf16.gmra.mxu0 %v9848
        %v9984 = vpop.f32.mrf.mxu0
        %v9985 = vadd.f32 0.0, %v9984
        %v9986 = vpop.f32.mrf.mxu0
        %v9987 = vpop.f32.mrf.mxu0
        %v9988 = vadd.f32 0.0, %v9987
        %v9989 = vpop.f32.mrf.mxu0
        %9990 = vmatprep.mubr.bf16.mxu0 0
        %9991 = vmatmul.mubr.bf16.gmra.mxu0 %v9851
        %v9992 = vpop.f32.mrf.mxu0
        %v9993 = vadd.f32 0.0, %v9992
        %v9994 = vpop.f32.mrf.mxu0
        %v9995 = vpop.f32.mrf.mxu0
        %v9996 = vadd.f32 0.0, %v9995
        %v9997 = vpop.f32.mrf.mxu0
        %9998 = vmatprep.mubr.bf16.mxu0 0
        %9999 = vmatmul.mubr.bf16.gmra.mxu0 %v9854
        %v10000 = vpop.f32.mrf.mxu0
        %v10001 = vadd.f32 0.0, %v10000
        %v10002 = vpop.f32.mrf.mxu0
        %v10003 = vpop.f32.mrf.mxu0
        %v10004 = vadd.f32 0.0, %v10003
        %v10005 = vpop.f32.mrf.mxu0
        %10006 = vmatprep.mubr.bf16.mxu0 0
        %10007 = vmatmul.mubr.bf16.gmra.mxu0 %v9857
        %v10008 = vpop.f32.mrf.mxu0
        %v10009 = vadd.f32 0.0, %v10008
        %v10010 = vpop.f32.mrf.mxu0
        %v10011 = vpop.f32.mrf.mxu0
        %v10012 = vadd.f32 0.0, %v10011
        %v10013 = vpop.f32.mrf.mxu0
        %10014 = vmatprep.mubr.bf16.mxu0 0
        %10015 = vmatmul.mubr.bf16.gmra.mxu0 %v9860
        %v10016 = vpop.f32.mrf.mxu0
        %v10017 = vadd.f32 0.0, %v10016
        %v10018 = vpop.f32.mrf.mxu0
        %v10019 = vpop.f32.mrf.mxu0
        %v10020 = vadd.f32 0.0, %v10019
        %v10021 = vpop.f32.mrf.mxu0
        %10022 = vdwg.mxu0
        %v10023 = vadd.f32 %v9725, %v9897
        %v10024 = vadd.f32 %v9726, %v9900
        %v10025 = vadd.f32 %v9727, %v9905
        %v10026 = vadd.f32 %v9728, %v9908
        %v10027 = vadd.f32 %v9729, %v9913
        %v10028 = vadd.f32 %v9730, %v9916
        %v10029 = vadd.f32 %v9731, %v9921
        %v10030 = vadd.f32 %v9732, %v9924
        %v10031 = vadd.f32 %v9733, %v9929
        %v10032 = vadd.f32 %v9734, %v9932
        %v10033 = vadd.f32 %v9735, %v9937
        %v10034 = vadd.f32 %v9736, %v9940
        %v10035 = vadd.f32 %v9737, %v9945
        %v10036 = vadd.f32 %v9738, %v9948
        %v10037 = vadd.f32 %v9739, %v9953
        %v10038 = vadd.f32 %v9740, %v9956
        %v10039 = vadd.f32 %v9741, %v9961
        %v10040 = vadd.f32 %v9742, %v9964
        %v10041 = vadd.f32 %v9743, %v9969
        %v10042 = vadd.f32 %v9744, %v9972
        %v10043 = vadd.f32 %v9745, %v9977
        %v10044 = vadd.f32 %v9746, %v9980
        %v10045 = vadd.f32 %v9747, %v9985
        %v10046 = vadd.f32 %v9748, %v9988
        %v10047 = vadd.f32 %v9749, %v9993
        %v10048 = vadd.f32 %v9750, %v9996
        %v10049 = vadd.f32 %v9751, %v10001
        %v10050 = vadd.f32 %v9752, %v10004
        %v10051 = vadd.f32 %v9753, %v10009
        %v10052 = vadd.f32 %v9754, %v10012
        %v10053 = vadd.f32 %v9755, %v10017
        %v10054 = vadd.f32 %v9756, %v10020
        %v10055 = vld [vmem:[#allocation2] sm:$0xff]
        %v10056 = vld [vmem:[#allocation2 + $0x8] sm:$0xff]
        %v10057 = vld [vmem:[#allocation2 + $0x10] sm:$0xff]
        %v10058 = vld [vmem:[#allocation2 + $0x18] sm:$0xff]
        %v10059 = vld [vmem:[#allocation2 + $0x20] sm:$0xff]
        %v10060 = vld [vmem:[#allocation2 + $0x28] sm:$0xff]
        %v10061 = vld [vmem:[#allocation2 + $0x30] sm:$0xff]
        %v10062 = vld [vmem:[#allocation2 + $0x38] sm:$0xff]
        %v10063 = vld [vmem:[#allocation2 + $0x40] sm:$0xff]
        %v10064 = vld [vmem:[#allocation2 + $0x48] sm:$0xff]
        %v10065 = vld [vmem:[#allocation2 + $0x50] sm:$0xff]
        %v10066 = vld [vmem:[#allocation2 + $0x58] sm:$0xff]
        %v10067 = vld [vmem:[#allocation2 + $0x60] sm:$0xff]
        %v10068 = vld [vmem:[#allocation2 + $0x68] sm:$0xff]
        %v10069 = vld [vmem:[#allocation2 + $0x70] sm:$0xff]
        %v10070 = vld [vmem:[#allocation2 + $0x78] sm:$0xff]
        %v10071 = vld [vmem:[#allocation2 + $0x80] sm:$0xff]
        %v10072 = vld [vmem:[#allocation2 + $0x88] sm:$0xff]
        %v10073 = vld [vmem:[#allocation2 + $0x90] sm:$0xff]
        %v10074 = vld [vmem:[#allocation2 + $0x98] sm:$0xff]
        %v10075 = vld [vmem:[#allocation2 + $0xa0] sm:$0xff]
        %v10076 = vld [vmem:[#allocation2 + $0xa8] sm:$0xff]
        %v10077 = vld [vmem:[#allocation2 + $0xb0] sm:$0xff]
        %v10078 = vld [vmem:[#allocation2 + $0xb8] sm:$0xff]
        %v10079 = vld [vmem:[#allocation2 + $0xc0] sm:$0xff]
        %v10080 = vld [vmem:[#allocation2 + $0xc8] sm:$0xff]
        %v10081 = vld [vmem:[#allocation2 + $0xd0] sm:$0xff]
        %v10082 = vld [vmem:[#allocation2 + $0xd8] sm:$0xff]
        %v10083 = vld [vmem:[#allocation2 + $0xe0] sm:$0xff]
        %v10084 = vld [vmem:[#allocation2 + $0xe8] sm:$0xff]
        %v10085 = vld [vmem:[#allocation2 + $0xf0] sm:$0xff]
        %v10086 = vld [vmem:[#allocation2 + $0xf8] sm:$0xff]
        %v10087 = vadd.f32 %v10055, %v10023
        %v10088 = vadd.f32 %v10056, %v10024
        %v10089 = vadd.f32 %v10057, %v10025
        %v10090 = vadd.f32 %v10058, %v10026
        %v10091 = vadd.f32 %v10059, %v10027
        %v10092 = vadd.f32 %v10060, %v10028
        %v10093 = vadd.f32 %v10061, %v10029
        %v10094 = vadd.f32 %v10062, %v10030
        %v10095 = vadd.f32 %v10063, %v10031
        %v10096 = vadd.f32 %v10064, %v10032
        %v10097 = vadd.f32 %v10065, %v10033
        %v10098 = vadd.f32 %v10066, %v10034
        %v10099 = vadd.f32 %v10067, %v10035
        %v10100 = vadd.f32 %v10068, %v10036
        %v10101 = vadd.f32 %v10069, %v10037
        %v10102 = vadd.f32 %v10070, %v10038
        %v10103 = vadd.f32 %v10071, %v10039
        %v10104 = vadd.f32 %v10072, %v10040
        %v10105 = vadd.f32 %v10073, %v10041
        %v10106 = vadd.f32 %v10074, %v10042
        %v10107 = vadd.f32 %v10075, %v10043
        %v10108 = vadd.f32 %v10076, %v10044
        %v10109 = vadd.f32 %v10077, %v10045
        %v10110 = vadd.f32 %v10078, %v10046
        %v10111 = vadd.f32 %v10079, %v10047
        %v10112 = vadd.f32 %v10080, %v10048
        %v10113 = vadd.f32 %v10081, %v10049
        %v10114 = vadd.f32 %v10082, %v10050
        %v10115 = vadd.f32 %v10083, %v10051
        %v10116 = vadd.f32 %v10084, %v10052
        %v10117 = vadd.f32 %v10085, %v10053
        %v10118 = vadd.f32 %v10086, %v10054
        %10119 = vst [vmem:[#allocation2] sm:$0xff] %v10087
        %10120 = vst [vmem:[#allocation2 + $0x8] sm:$0xff] %v10088
        %10121 = vst [vmem:[#allocation2 + $0x10] sm:$0xff] %v10089
        %10122 = vst [vmem:[#allocation2 + $0x18] sm:$0xff] %v10090
        %10123 = vst [vmem:[#allocation2 + $0x20] sm:$0xff] %v10091
        %10124 = vst [vmem:[#allocation2 + $0x28] sm:$0xff] %v10092
        %10125 = vst [vmem:[#allocation2 + $0x30] sm:$0xff] %v10093
        %10126 = vst [vmem:[#allocation2 + $0x38] sm:$0xff] %v10094
        %10127 = vst [vmem:[#allocation2 + $0x40] sm:$0xff] %v10095
        %10128 = vst [vmem:[#allocation2 + $0x48] sm:$0xff] %v10096
        %10129 = vst [vmem:[#allocation2 + $0x50] sm:$0xff] %v10097
        %10130 = vst [vmem:[#allocation2 + $0x58] sm:$0xff] %v10098
        %10131 = vst [vmem:[#allocation2 + $0x60] sm:$0xff] %v10099
        %10132 = vst [vmem:[#allocation2 + $0x68] sm:$0xff] %v10100
        %10133 = vst [vmem:[#allocation2 + $0x70] sm:$0xff] %v10101
        %10134 = vst [vmem:[#allocation2 + $0x78] sm:$0xff] %v10102
        %10135 = vst [vmem:[#allocation2 + $0x80] sm:$0xff] %v10103
        %10136 = vst [vmem:[#allocation2 + $0x88] sm:$0xff] %v10104
        %10137 = vst [vmem:[#allocation2 + $0x90] sm:$0xff] %v10105
        %10138 = vst [vmem:[#allocation2 + $0x98] sm:$0xff] %v10106
        %10139 = vst [vmem:[#allocation2 + $0xa0] sm:$0xff] %v10107
        %10140 = vst [vmem:[#allocation2 + $0xa8] sm:$0xff] %v10108
        %10141 = vst [vmem:[#allocation2 + $0xb0] sm:$0xff] %v10109
        %10142 = vst [vmem:[#allocation2 + $0xb8] sm:$0xff] %v10110
        %10143 = vst [vmem:[#allocation2 + $0xc0] sm:$0xff] %v10111
        %10144 = vst [vmem:[#allocation2 + $0xc8] sm:$0xff] %v10112
        %10145 = vst [vmem:[#allocation2 + $0xd0] sm:$0xff] %v10113
        %10146 = vst [vmem:[#allocation2 + $0xd8] sm:$0xff] %v10114
        %10147 = vst [vmem:[#allocation2 + $0xe0] sm:$0xff] %v10115
        %10148 = vst [vmem:[#allocation2 + $0xe8] sm:$0xff] %v10116
        %10149 = vst [vmem:[#allocation2 + $0xf0] sm:$0xff] %v10117
        %10150 = vst [vmem:[#allocation2 + $0xf8] sm:$0xff] %v10118
        %v10151 = vld [vmem:[#allocation2] sm:$0xff]
        %v10152 = vld [vmem:[#allocation2 + $0x8] sm:$0xff]
        %v10153 = vld [vmem:[#allocation2 + $0x10] sm:$0xff]
        %v10154 = vld [vmem:[#allocation2 + $0x18] sm:$0xff]
        %v10155 = vld [vmem:[#allocation2 + $0x20] sm:$0xff]
        %v10156 = vld [vmem:[#allocation2 + $0x28] sm:$0xff]
        %v10157 = vld [vmem:[#allocation2 + $0x30] sm:$0xff]
        %v10158 = vld [vmem:[#allocation2 + $0x38] sm:$0xff]
        %v10159 = vld [vmem:[#allocation2 + $0x40] sm:$0xff]
        %v10160 = vld [vmem:[#allocation2 + $0x48] sm:$0xff]
        %v10161 = vld [vmem:[#allocation2 + $0x50] sm:$0xff]
        %v10162 = vld [vmem:[#allocation2 + $0x58] sm:$0xff]
        %v10163 = vld [vmem:[#allocation2 + $0x60] sm:$0xff]
        %v10164 = vld [vmem:[#allocation2 + $0x68] sm:$0xff]
        %v10165 = vld [vmem:[#allocation2 + $0x70] sm:$0xff]
        %v10166 = vld [vmem:[#allocation2 + $0x78] sm:$0xff]
        %v10167 = vld [vmem:[#allocation2 + $0x80] sm:$0xff]
        %v10168 = vld [vmem:[#allocation2 + $0x88] sm:$0xff]
        %v10169 = vld [vmem:[#allocation2 + $0x90] sm:$0xff]
        %v10170 = vld [vmem:[#allocation2 + $0x98] sm:$0xff]
        %v10171 = vld [vmem:[#allocation2 + $0xa0] sm:$0xff]
        %v10172 = vld [vmem:[#allocation2 + $0xa8] sm:$0xff]
        %v10173 = vld [vmem:[#allocation2 + $0xb0] sm:$0xff]
        %v10174 = vld [vmem:[#allocation2 + $0xb8] sm:$0xff]
        %v10175 = vld [vmem:[#allocation2 + $0xc0] sm:$0xff]
        %v10176 = vld [vmem:[#allocation2 + $0xc8] sm:$0xff]
        %v10177 = vld [vmem:[#allocation2 + $0xd0] sm:$0xff]
        %v10178 = vld [vmem:[#allocation2 + $0xd8] sm:$0xff]
        %v10179 = vld [vmem:[#allocation2 + $0xe0] sm:$0xff]
        %v10180 = vld [vmem:[#allocation2 + $0xe8] sm:$0xff]
        %v10181 = vld [vmem:[#allocation2 + $0xf0] sm:$0xff]
        %v10182 = vld [vmem:[#allocation2 + $0xf8] sm:$0xff]
        %10183 = vst [vmem:[%s311] sm:$0xff] %v10151
        %10184 = vst [vmem:[%s311 + $0x8] sm:$0xff] %v10152
        %10185 = vst [vmem:[%s311 + $0x10] sm:$0xff] %v10153
        %10186 = vst [vmem:[%s311 + $0x18] sm:$0xff] %v10154
        %10187 = vst [vmem:[%s311 + $0x20] sm:$0xff] %v10155
        %10188 = vst [vmem:[%s311 + $0x28] sm:$0xff] %v10156
        %10189 = vst [vmem:[%s311 + $0x30] sm:$0xff] %v10157
        %10190 = vst [vmem:[%s311 + $0x38] sm:$0xff] %v10158
        %10191 = vst [vmem:[%s311 + $0x40] sm:$0xff] %v10159
        %10192 = vst [vmem:[%s311 + $0x48] sm:$0xff] %v10160
        %10193 = vst [vmem:[%s311 + $0x50] sm:$0xff] %v10161
        %10194 = vst [vmem:[%s311 + $0x58] sm:$0xff] %v10162
        %10195 = vst [vmem:[%s311 + $0x60] sm:$0xff] %v10163
        %10196 = vst [vmem:[%s311 + $0x68] sm:$0xff] %v10164
        %10197 = vst [vmem:[%s311 + $0x70] sm:$0xff] %v10165
        %10198 = vst [vmem:[%s311 + $0x78] sm:$0xff] %v10166
        %10199 = vst [vmem:[%s311 + $0x80] sm:$0xff] %v10167
        %10200 = vst [vmem:[%s311 + $0x88] sm:$0xff] %v10168
        %10201 = vst [vmem:[%s311 + $0x90] sm:$0xff] %v10169
        %10202 = vst [vmem:[%s311 + $0x98] sm:$0xff] %v10170
        %10203 = vst [vmem:[%s311 + $0xa0] sm:$0xff] %v10171
        %10204 = vst [vmem:[%s311 + $0xa8] sm:$0xff] %v10172
        %10205 = vst [vmem:[%s311 + $0xb0] sm:$0xff] %v10173
        %10206 = vst [vmem:[%s311 + $0xb8] sm:$0xff] %v10174
        %10207 = vst [vmem:[%s311 + $0xc0] sm:$0xff] %v10175
        %10208 = vst [vmem:[%s311 + $0xc8] sm:$0xff] %v10176
        %10209 = vst [vmem:[%s311 + $0xd0] sm:$0xff] %v10177
        %10210 = vst [vmem:[%s311 + $0xd8] sm:$0xff] %v10178
        %10211 = vst [vmem:[%s311 + $0xe0] sm:$0xff] %v10179
        %10212 = vst [vmem:[%s311 + $0xe8] sm:$0xff] %v10180
        %10213 = vst [vmem:[%s311 + $0xf0] sm:$0xff] %v10181
        %10214 = vst [vmem:[%s311 + $0xf8] sm:$0xff] %v10182
        %s10215 = sand.u32 %s185, 1
        %s10216 = scalar_lea.sflag [#allocation6], %s10215
        %s10217 = sand.u32 %s185, 1
        %s10218 = smul.addr %s10217, 256
        %s10219 = scalar_lea.vmem [#allocation9], %s10218
        // Predicated region
        $region57: #{tpu_custom_call.1} parent=47 // pred_check
          %p10220 = pneg %p195
        $region58: #{tpu_custom_call.1} parent=47 // pred_check_branch
          %10222 = sbr.rel (%p10220) target = $region60
        $region59: #{tpu_custom_call.1} parent=47 // pred_region
          %s10224 = ssub.s32 4096, 4096
          %10225 = vsyncadd %s10216, %s10224
          %s10226 = smul.addr %s25, 32
          %s10227 = smul.addr %s10226, 128
          %s10228 = scalar_lea.hbm %s7, %s10227
          %s10229 = sshll.u32 %s10219, 4
          %s10230 = int_to_ptr.vmem [resolvable:$true] %s10229
          %10235 = dma.vmem_to_hbm [thread:$0]  %s10230, 4096, %s10228, %s10216, 128, 128, 8
        $region60: #{tpu_custom_call.1} parent=47 // pred_fallthru
          _
      $region48: #{tpu_custom_call.1} parent=5 // pred_fallthru
        _
      %p10236 = scmp.le.s32.totalorder 2, %s20
      // Predicated region
      $region61: #{tpu_custom_call.1} parent=5 // pred_check
        %p10237 = pneg %p10236
      $region62: #{tpu_custom_call.1} parent=5 // pred_check_branch
        %10239 = sbr.rel (%p10237) target = $region64
      $region63: #{tpu_custom_call.1} parent=5 // pred_region
        %s10240 = ssub.s32 %s20, 2
        // Predicated region
        $region65: #{tpu_custom_call.1} parent=63 // pred_check
          %p10241 = pneg %p201
        $region66: #{tpu_custom_call.1} parent=63 // pred_check_branch
          %10243 = sbr.rel (%p10241) target = $region68
        $region67: #{tpu_custom_call.1} parent=63 // pred_region
          %s10244 = sand.u32 %s186, 1
          %s10245 = scalar_lea.sflag [#allocation6], %s10244
          %s10246 = sand.u32 %s186, 1
          %s10247 = smul.addr %s10246, 256
          %s10248 = scalar_lea.vmem [#allocation9], %s10247
          %10249 = dma.done %s10245, 4096
        $region68: #{tpu_custom_call.1} parent=63 // pred_fallthru
          _
      $region64: #{tpu_custom_call.1} parent=5 // pred_fallthru
        _
    $region6: #{tpu_custom_call.1} parent=1 // loop_footer
      %s24 = sadd.s32 1, %s20
    $region7: #{tpu_custom_call.1} parent=1 // loop_footer_branch
      %19 = sbr.rel target = $region3
    $region8: #{tpu_custom_call.1} parent=1 // loop_exit
      _
    %10250 = vsyncpa [#allocation5], 1
    %s10251 = scalar_lea.sflag [#allocation5], 1
    %10252 = vsyncpa %s10251, 1
    %10253 = vsyncpa [#allocation8], 1
    %10254 = vsyncpa [#allocation6], 1
    %s10255 = scalar_lea.sflag [#allocation6], 1
    %10256 = vsyncpa %s10255, 1

</llo_original>
